<compile_context>
chip_gen: v5e
topology: v5e:2x2
jax: 0.10.0
libtpu: 0.0.40
codegen_flags: <defaults>
</compile_context>

<pallas_src>
import functools
import math

import jax
import jax.numpy as jnp
from jax import lax
from jax.experimental import pallas as pl
from jax.experimental.pallas import tpu as pltpu


def _run_chunks(n, body):
    """Run body(ci) for ci in [0, n): unrolled when small, fori_loop otherwise."""
    if n <= 16:
        for ci in range(n):
            body(ci)
    else:
        def _step(i, carry):
            body(i)
            return carry
        lax.fori_loop(0, n, _step, 0)


# ----------------------------------------------------------------------------
# Fused RCU kernel
# ----------------------------------------------------------------------------
def _rcu_kernel(xpad_hbm, w1_ref, w2_ref, mask_ref, xres_ref, o_ref,
                xbuf, hbuf, sem, *, TH, W, WB, C, RR1, RR2):
    """One (batch, row-tile) grid cell of  x + relu(conv2(relu(conv1(x)))).

    xpad_hbm : (N, (H+4)*WB, C) bf16 in HBM. x zero-padded by 2 rows top/bottom
               and to width WB (2 zero cols left, >=2 right), (row, col)
               flattened to row*WB + col.
    w1_ref/w2_ref : (9, C, C) bf16, tap-major (Cin, Cout), VMEM-resident.
    mask_ref : (RR1*WB, 1) f32 column keep-mask (1 for image cols, 0 for pads).
    xres_ref : (1, TH, W, C) f32 block of the original x (residual).
    o_ref    : (1, TH, W, C) f32 output block.
    xbuf     : (2, (TH+4)*WB + 8, C) bf16 -- double-buffered halo'd input band.
    hbuf     : ((TH+2)*WB + 8, C) bf16   -- conv1 intermediate.
    sem      : DMA semaphores, one per xbuf slot.
    """
    b = pl.program_id(0)
    r = pl.program_id(1)
    num_r = pl.num_programs(1)

    L_IN = (TH + 4) * WB          # flattened input rows incl. 2-row halo
    L_H = (TH + 2) * WB           # conv1 rows incl. 1-row halo for conv2
    CH1 = RR1 * WB                # conv1 row-chunk (flattened rows)
    CH2 = RR2 * WB                # conv2 row-chunk (flattened rows)
    n1 = (TH + 2) // RR1
    n2 = TH // RR2

    slot = r % 2

    def band_copy(rr, sl):
        return pltpu.make_async_copy(
            xpad_hbm.at[b, pl.ds(rr * (TH * WB), L_IN), :],
            xbuf.at[sl, pl.ds(0, L_IN), :],
            sem.at[sl])

    # --- double-buffered band DMA ---------------------------------------------
    # r == 0: nothing in flight yet -> issue + wait (exposed once per image).
    # r  > 0: the band was prefetched during step r-1 -> just wait.
    @pl.when(r == 0)
    def _():
        band_copy(r, slot).start()

    band_copy(r, slot).wait()

    # Prefetch the next row band of the same image into the other slot so the
    # HBM transfer hides behind this step's MXU work.
    @pl.when(r + 1 < num_r)
    def _():
        band_copy(r + 1, 1 - slot).start()

    # Tiny tail (read by the wrapped last taps; feeds only cropped columns).
    xbuf[slot, pl.ds(L_IN, 8), :] = jnp.zeros((8, C), jnp.bfloat16)

    mask = mask_ref[...]          # (CH1, 1) f32, hoisted out of the chunk loop

    # --- conv1 (3x3, pad=1, no bias) + ReLU, row-chunked ----------------------
    # Tap (dy, dx) is a contiguous slice of the flattened buffer at offset
    # dy*WB + dx.  Chunk size keeps the (CH1, C) f32 accumulator in vregs.
    def conv1_chunk(ci):
        base = ci * CH1
        acc = jnp.dot(xbuf[slot, pl.ds(base, CH1), :], w1_ref[0],
                      preferred_element_type=jnp.float32)
        for t in range(1, 9):
            dy, dx = divmod(t, 3)
            acc = acc + jnp.dot(
                xbuf[slot, pl.ds(base + dy * WB + dx, CH1), :], w1_ref[t],
                preferred_element_type=jnp.float32)
        # Zero the out-of-image columns (conv2's horizontal zero padding).
        hbuf[pl.ds(base, CH1), :] = (
            jnp.maximum(acc, 0.0) * mask).astype(jnp.bfloat16)

    _run_chunks(n1, conv1_chunk)

    hbuf[pl.ds(L_H, 8), :] = jnp.zeros((8, C), jnp.bfloat16)

    # h rows outside the image: conv2's zero padding at the picture top/bottom.
    @pl.when(r == 0)
    def _():
        hbuf[pl.ds(0, WB), :] = jnp.zeros((WB, C), jnp.bfloat16)

    @pl.when(r == num_r - 1)
    def _():
        hbuf[pl.ds((TH + 1) * WB, WB), :] = jnp.zeros((WB, C), jnp.bfloat16)

    # --- conv2 (3x3, pad=1, no bias) + ReLU + residual, row-chunked ------------
    def conv2_chunk(ci):
        base = ci * CH2
        acc = jnp.dot(hbuf[pl.ds(base, CH2), :], w2_ref[0],
                      preferred_element_type=jnp.float32)
        for t in range(1, 9):
            dy, dx = divmod(t, 3)
            acc = acc + jnp.dot(
                hbuf[pl.ds(base + dy * WB + dx, CH2), :], w2_ref[t],
                preferred_element_type=jnp.float32)
        y = jnp.maximum(acc, 0.0).reshape(RR2, WB, C)[:, :W, :]
        row0 = ci * RR2
        o_ref[0, pl.ds(row0, RR2), :, :] = (
            xres_ref[0, pl.ds(row0, RR2), :, :] + y)

    _run_chunks(n2, conv2_chunk)


# ----------------------------------------------------------------------------
# Wrapper (PyTorch NCHW in / NCHW out)
# ----------------------------------------------------------------------------
def preact_residual_conv_unit(x_nchw, w1_oihw, w2_oihw, *, row_block=None):
    """PreActResidualConvUnit forward:  x + relu(conv2(relu(conv1(x)))).

    x_nchw     : (N, C, H, W) float32   (PyTorch layout)
    w*_oihw    : (C, C, 3, 3) float32   (PyTorch Conv2d weights, bias=False)
    returns    : (N, C, H, W) float32
    """
    N, C, H, W = x_nchw.shape
    assert w1_oihw.shape == (C, C, 3, 3) and w2_oihw.shape == (C, C, 3, 3)
    assert C % 128 == 0, "channels must be a multiple of 128 (TPU lane width)"

    # Width pad rounded up to 8 sublanes (not next-pow-2): <8 wasted columns.
    WB = max(8, ((W + 4 + 7) // 8) * 8)

    # Per-generation VMEM budget (v5e/v6e: 128 MiB, v7x: 64 MiB).
    try:
        vmem_cap = int(pltpu.get_tpu_info().vmem_capacity_bytes)
    except Exception:
        vmem_cap = 64 * 1024 * 1024

    def _vmem_bytes(th):
        xb = 2 * ((th + 4) * WB + 8) * C * 2      # double-buffered band scratch
        hb = ((th + 2) * WB + 8) * C * 2          # conv1 intermediate
        wt = 2 * 2 * 9 * C * C * 2                # weights (worst case 2x buffered)
        io = 2 * 2 * th * W * C * 4               # residual + output blocks (2x)
        return xb + hb + wt + io + (2 << 20)

    if row_block is None:
        budget = int(0.45 * vmem_cap)
        divisors = [d for d in range(1, min(H, 256) + 1) if H % d == 0]
        fitting = [d for d in divisors if _vmem_bytes(d) <= budget]
        TH = max(fitting) if fitting else divisors[0]
    else:
        TH = row_block
    assert H % TH == 0, "H must be divisible by the row tile"

    # Row-chunk sizes (in image rows) so each conv's f32 accumulator (~<=96 KiB)
    # lives in vector registers instead of VMEM.
    row_cap = max(WB, (96 * 1024) // (4 * C))

    def _largest_div(n):
        best = 1
        for d in range(1, n + 1):
            if n % d == 0 and d * WB <= row_cap:
                best = d
        return best

    RR1 = _largest_div(TH + 2)
    RR2 = _largest_div(TH)
    CH1 = RR1 * WB

    x = jnp.transpose(x_nchw, (0, 2, 3, 1))      # -> NHWC (channels on lanes)

    # Layout prep: pad 2 rows top/bottom, 2 cols left, WB-W-2 cols right (zeros),
    # cast to bf16, flatten (row, col) -> row*WB + col.
    xpad = jnp.pad(x, ((0, 0), (2, 2), (2, WB - W - 2), (0, 0)))
    xpad = xpad.astype(jnp.bfloat16).reshape(N, (H + 4) * WB, C)

    # PyTorch OIHW -> tap-major (9, Cin, Cout), bf16 (kept resident in VMEM).
    def _taps(w):
        return jnp.transpose(w, (2, 3, 1, 0)).reshape(9, C, C).astype(jnp.bfloat16)

    w1t, w2t = _taps(w1_oihw), _taps(w2_oihw)

    # Precomputed column keep-mask (chunk-periodic: chunks start on row bounds).
    col = jnp.arange(CH1, dtype=jnp.int32) % WB
    mask1 = ((col >= 1) & (col <= W)).astype(jnp.float32)[:, None]

    def _const_spec(shape):
        if len(shape) == 3:
            idx = lambda b, r: (0, 0, 0)
        else:
            idx = lambda b, r: (0, 0)
        try:   # single-buffer constant blocks; fall back if unsupported.
            return pl.BlockSpec(shape, idx, pipeline_mode=pl.Buffered(1))
        except Exception:
            return pl.BlockSpec(shape, idx)

    kernel = functools.partial(_rcu_kernel, TH=TH, W=W, WB=WB, C=C,
                               RR1=RR1, RR2=RR2)

    vmem_limit = int(min(0.9 * vmem_cap,
                         max(_vmem_bytes(TH) + (8 << 20), 32 << 20)))

    out = pl.pallas_call(
        kernel,
        out_shape=jax.ShapeDtypeStruct((N, H, W, C), jnp.float32),
        grid_spec=pltpu.PrefetchScalarGridSpec(
            num_scalar_prefetch=0,
            grid=(N, H // TH),
            in_specs=[
                pl.BlockSpec(memory_space=pl.ANY),                       # xpad (HBM)
                _const_spec((9, C, C)),                                  # w1 resident
                _const_spec((9, C, C)),                                  # w2 resident
                _const_spec((CH1, 1)),                                   # column mask
                pl.BlockSpec((1, TH, W, C), lambda b, r: (b, r, 0, 0)),  # residual x
            ],
            out_specs=pl.BlockSpec((1, TH, W, C), lambda b, r: (b, r, 0, 0)),
            scratch_shapes=[
                pltpu.VMEM((2, (TH + 4) * WB + 8, C), jnp.bfloat16),
                pltpu.VMEM(((TH + 2) * WB + 8, C), jnp.bfloat16),
                pltpu.SemaphoreType.DMA((2,)),
            ],
        ),
        # Row-tile axis must stay sequential ("arbitrary") for the cross-step
        # band prefetch; batch axis is parallel for megacore.
        compiler_params=pltpu.CompilerParams(
            dimension_semantics=("parallel", "arbitrary"),
            vmem_limit_bytes=vmem_limit),
    )(xpad, w1t, w2t, mask1, x)

    return jnp.transpose(out, (0, 3, 1, 2))      # -> NCHW


# ----------------------------------------------------------------------------
# Pure-JAX reference (f32) for a correctness check
# ----------------------------------------------------------------------------
def _reference(x_nchw, w1, w2):
    dn = lax.conv_dimension_numbers(x_nchw.shape, w1.shape,
                                    ("NCHW", "OIHW", "NCHW"))
    h = lax.conv_general_dilated(x_nchw, w1, (1, 1), ((1, 1), (1, 1)),
                                 dimension_numbers=dn)
    h = jnp.maximum(h, 0.0)
    y = lax.conv_general_dilated(h, w2, (1, 1), ((1, 1), (1, 1)),
                                 dimension_numbers=dn)
    return x_nchw + jnp.maximum(y, 0.0)


# ----------------------------------------------------------------------------
if __name__ == "__main__":
    key = jax.random.PRNGKey(0)
    kx, k1, k2 = jax.random.split(key, 3)

    N, C, H, W = 2, 128, 16, 16            # small, lane-aligned channel count
    x = jax.random.normal(kx, (N, C, H, W), jnp.float32)
    fan_in = 9 * C
    w1 = jax.random.normal(k1, (C, C, 3, 3), jnp.float32) / math.sqrt(fan_in)
    w2 = jax.random.normal(k2, (C, C, 3, 3), jnp.float32) / math.sqrt(fan_in)

    fwd = jax.jit(preact_residual_conv_unit)
    out = jax.block_until_ready(fwd(x, w1, w2))

    assert out.shape == (N, C, H, W), out.shape
    assert bool(jnp.all(jnp.isfinite(out)))

    ref = _reference(x, w1, w2)
    err = float(jnp.max(jnp.abs(out - ref)))
    # bf16 matmul inputs with f32 accumulation: expect ~1e-2 absolute error.
    assert err < 0.1, f"max abs error vs f32 reference: {err}"

    print("KERNEL_OK")
</pallas_src>

<mosaic_0001>
module attributes {stable_mosaic.version = 11 : i64} {
  func.func @_rcu_kernel(%arg0: i32, %arg1: i32, %arg2: memref<2x480x128xbf16, #tpu.memory_space<any>>, %arg3: memref<9x128x128xbf16, #tpu.memory_space<vmem>>, %arg4: memref<9x128x128xbf16, #tpu.memory_space<vmem>>, %arg5: memref<144x1xf32, #tpu.memory_space<vmem>>, %arg6: memref<1x16x16x128xf32, #tpu.memory_space<vmem>>, %arg7: memref<1x16x16x128xf32, #tpu.memory_space<vmem>>, %arg8: memref<2x488x128xbf16, #tpu.memory_space<vmem>>, %arg9: memref<440x128xbf16, #tpu.memory_space<vmem>>, %arg10: memref<2x!tpu.dma_semaphore, #tpu.memory_space<semaphore_mem>>) attributes {dimension_semantics = [#tpu.dimension_semantics<parallel>, #tpu.dimension_semantics<arbitrary>], iteration_bounds = array<i64: 2, 1>, scalar_prefetch = 0 : i64, scratch_operands = 3 : i64, tpu.core_type = #tpu.core_type<tc>, window_params = [{}, {pipeline_mode = #tpu.pipeline_mode<synchronous>, transform_indices = @transform_1, window_bounds = array<i64: 9, 128, 128>}, {pipeline_mode = #tpu.pipeline_mode<synchronous>, transform_indices = @transform_2, window_bounds = array<i64: 9, 128, 128>}, {pipeline_mode = #tpu.pipeline_mode<synchronous>, transform_indices = @transform_3, window_bounds = array<i64: 144, 1>}, {transform_indices = @transform_4, window_bounds = array<i64: 1, 16, 16, 128>}, {transform_indices = @transform_5, window_bounds = array<i64: 1, 16, 16, 128>}]} {
    %c2_i32 = arith.constant 2 : i32
    %c0_i32 = arith.constant 0 : i32
    %0 = arith.cmpi eq, %c2_i32, %c0_i32 : i32
    %c1_i32 = arith.constant 1 : i32
    %1 = arith.select %0, %c1_i32, %c2_i32 : i32
    %2 = arith.remsi %arg1, %1 : i32
    %c0_i32_0 = arith.constant 0 : i32
    %3 = arith.cmpi ne, %2, %c0_i32_0 : i32
    %c0_i32_1 = arith.constant 0 : i32
    %4 = arith.cmpi slt, %2, %c0_i32_1 : i32
    %c0_i32_2 = arith.constant 0 : i32
    %5 = arith.cmpi slt, %1, %c0_i32_2 : i32
    %6 = arith.xori %4, %5 : i1
    %7 = arith.andi %6, %3 : i1
    %8 = arith.addi %2, %1 : i32
    %9 = arith.select %7, %8, %2 : i32
    %c0_i32_3 = arith.constant 0 : i32
    %10 = arith.cmpi eq, %arg1, %c0_i32_3 : i32
    %11 = arith.extui %10 : i1 to i32
    %c0_i32_4 = arith.constant 0 : i32
    %12 = arith.cmpi ne, %11, %c0_i32_4 : i32
    scf.if %12 {
      %c384_i32_278 = arith.constant 384 : i32
      %350 = arith.muli %arg1, %c384_i32_278 : i32
      %c0_i32_279 = arith.constant 0 : i32
      %351 = tpu.memref_slice %arg2[%arg0, %350, %c0_i32_279] : memref<2x480x128xbf16, #tpu.memory_space<any>> -> memref<1x480x128xbf16, #tpu.memory_space<any>>
      %352 = tpu.memref_squeeze %351 : memref<1x480x128xbf16, #tpu.memory_space<any>> -> memref<480x128xbf16, #tpu.memory_space<any>>
      %c0_i32_280 = arith.constant 0 : i32
      %c0_i32_281 = arith.constant 0 : i32
      %353 = tpu.memref_slice %arg8[%9, %c0_i32_280, %c0_i32_281] : memref<2x488x128xbf16, #tpu.memory_space<vmem>> -> memref<1x480x128xbf16, #tpu.memory_space<vmem>>
      %354 = tpu.memref_squeeze %353 : memref<1x480x128xbf16, #tpu.memory_space<vmem>> -> memref<480x128xbf16, #tpu.memory_space<vmem>>
      %355 = tpu.memref_slice %arg10[%9] : memref<2x!tpu.dma_semaphore, #tpu.memory_space<semaphore_mem>> -> memref<1x!tpu.dma_semaphore, #tpu.memory_space<semaphore_mem>>
      %356 = tpu.memref_squeeze %355 : memref<1x!tpu.dma_semaphore, #tpu.memory_space<semaphore_mem>> -> memref<!tpu.dma_semaphore, #tpu.memory_space<semaphore_mem>>
      tpu.enqueue_dma source(%352 : memref<480x128xbf16, #tpu.memory_space<any>>) target(%354 : memref<480x128xbf16, #tpu.memory_space<vmem>>) target_semaphore(%356 : memref<!tpu.dma_semaphore, #tpu.memory_space<semaphore_mem>>)
    } else {
    }
    %c384_i32 = arith.constant 384 : i32
    %13 = arith.muli %arg1, %c384_i32 : i32
    %c0_i32_5 = arith.constant 0 : i32
    %14 = tpu.memref_slice %arg2[%arg0, %13, %c0_i32_5] : memref<2x480x128xbf16, #tpu.memory_space<any>> -> memref<1x480x128xbf16, #tpu.memory_space<any>>
    %15 = tpu.memref_squeeze %14 : memref<1x480x128xbf16, #tpu.memory_space<any>> -> memref<480x128xbf16, #tpu.memory_space<any>>
    %c0_i32_6 = arith.constant 0 : i32
    %c0_i32_7 = arith.constant 0 : i32
    %16 = tpu.memref_slice %arg8[%9, %c0_i32_6, %c0_i32_7] : memref<2x488x128xbf16, #tpu.memory_space<vmem>> -> memref<1x480x128xbf16, #tpu.memory_space<vmem>>
    %17 = tpu.memref_squeeze %16 : memref<1x480x128xbf16, #tpu.memory_space<vmem>> -> memref<480x128xbf16, #tpu.memory_space<vmem>>
    %18 = tpu.memref_slice %arg10[%9] : memref<2x!tpu.dma_semaphore, #tpu.memory_space<semaphore_mem>> -> memref<1x!tpu.dma_semaphore, #tpu.memory_space<semaphore_mem>>
    %19 = tpu.memref_squeeze %18 : memref<1x!tpu.dma_semaphore, #tpu.memory_space<semaphore_mem>> -> memref<!tpu.dma_semaphore, #tpu.memory_space<semaphore_mem>>
    tpu.wait_dma2 semaphore(%19 : memref<!tpu.dma_semaphore, #tpu.memory_space<semaphore_mem>>) src(%15 : memref<480x128xbf16, #tpu.memory_space<any>>) dst(%17 : memref<480x128xbf16, #tpu.memory_space<vmem>>)
    %c1_i32_8 = arith.constant 1 : i32
    %20 = arith.addi %arg1, %c1_i32_8 : i32
    %c1_i32_9 = arith.constant 1 : i32
    %21 = arith.cmpi slt, %20, %c1_i32_9 : i32
    %22 = arith.extui %21 : i1 to i32
    %c0_i32_10 = arith.constant 0 : i32
    %23 = arith.cmpi ne, %22, %c0_i32_10 : i32
    scf.if %23 {
      %c1_i32_278 = arith.constant 1 : i32
      %350 = arith.addi %arg1, %c1_i32_278 : i32
      %c1_i32_279 = arith.constant 1 : i32
      %351 = arith.subi %c1_i32_279, %9 : i32
      %c384_i32_280 = arith.constant 384 : i32
      %352 = arith.muli %350, %c384_i32_280 : i32
      %c0_i32_281 = arith.constant 0 : i32
      %353 = tpu.memref_slice %arg2[%arg0, %352, %c0_i32_281] : memref<2x480x128xbf16, #tpu.memory_space<any>> -> memref<1x480x128xbf16, #tpu.memory_space<any>>
      %354 = tpu.memref_squeeze %353 : memref<1x480x128xbf16, #tpu.memory_space<any>> -> memref<480x128xbf16, #tpu.memory_space<any>>
      %c0_i32_282 = arith.constant 0 : i32
      %c0_i32_283 = arith.constant 0 : i32
      %355 = tpu.memref_slice %arg8[%351, %c0_i32_282, %c0_i32_283] : memref<2x488x128xbf16, #tpu.memory_space<vmem>> -> memref<1x480x128xbf16, #tpu.memory_space<vmem>>
      %356 = tpu.memref_squeeze %355 : memref<1x480x128xbf16, #tpu.memory_space<vmem>> -> memref<480x128xbf16, #tpu.memory_space<vmem>>
      %357 = tpu.memref_slice %arg10[%351] : memref<2x!tpu.dma_semaphore, #tpu.memory_space<semaphore_mem>> -> memref<1x!tpu.dma_semaphore, #tpu.memory_space<semaphore_mem>>
      %358 = tpu.memref_squeeze %357 : memref<1x!tpu.dma_semaphore, #tpu.memory_space<semaphore_mem>> -> memref<!tpu.dma_semaphore, #tpu.memory_space<semaphore_mem>>
      tpu.enqueue_dma source(%354 : memref<480x128xbf16, #tpu.memory_space<any>>) target(%356 : memref<480x128xbf16, #tpu.memory_space<vmem>>) target_semaphore(%358 : memref<!tpu.dma_semaphore, #tpu.memory_space<semaphore_mem>>)
    } else {
    }
    %cst = arith.constant 0.000000e+00 : bf16
    %24 = vector.broadcast %cst : bf16 to vector<8x128xbf16>
    %25 = arith.index_cast %9 : i32 to index
    %c480 = arith.constant 480 : index
    %c0 = arith.constant 0 : index
    %26 = vector.load %arg8[%25, %c480, %c0] : memref<2x488x128xbf16, #tpu.memory_space<vmem>>, vector<1x8x128xbf16>
    %27 = vector.shape_cast %26 : vector<1x8x128xbf16> to vector<8x128xbf16>
    %28 = vector.shape_cast %24 : vector<8x128xbf16> to vector<1x8x128xbf16>
    tpu.vector_store %arg8[%25, %c480, %c0], %28 {strides = array<i32>} : memref<2x488x128xbf16, #tpu.memory_space<vmem>>, vector<1x8x128xbf16>,
    %c0_11 = arith.constant 0 : index
    %c0_12 = arith.constant 0 : index
    %29 = vector.load %arg5[%c0_11, %c0_12] : memref<144x1xf32, #tpu.memory_space<vmem>>, vector<144x1xf32>
    %30 = arith.index_cast %9 : i32 to index
    %c0_13 = arith.constant 0 : index
    %c0_14 = arith.constant 0 : index
    %31 = vector.load %arg8[%30, %c0_13, %c0_14] : memref<2x488x128xbf16, #tpu.memory_space<vmem>>, vector<1x144x128xbf16>
    %32 = vector.shape_cast %31 : vector<1x144x128xbf16> to vector<144x128xbf16>
    %c0_15 = arith.constant 0 : index
    %c0_16 = arith.constant 0 : index
    %c0_17 = arith.constant 0 : index
    %33 = vector.load %arg3[%c0_15, %c0_16, %c0_17] : memref<9x128x128xbf16, #tpu.memory_space<vmem>>, vector<1x128x128xbf16>
    %34 = vector.shape_cast %33 : vector<1x128x128xbf16> to vector<128x128xbf16>
    %cst_18 = arith.constant dense<0.000000e+00> : vector<144x128xf32>
    %35 = tpu.matmul %32, %34, %cst_18 {dimension_numbers = #tpu.dot_dimension_numbers<[1], [0], [0], [1], [0, 0, 1, 1], [], []>} : vector<144x128xbf16>, vector<128x128xbf16>, vector<144x128xf32> -> vector<144x128xf32>
    %36 = arith.index_cast %9 : i32 to index
    %c1 = arith.constant 1 : index
    %c0_19 = arith.constant 0 : index
    %37 = vector.load %arg8[%36, %c1, %c0_19] : memref<2x488x128xbf16, #tpu.memory_space<vmem>>, vector<1x144x128xbf16>
    %38 = vector.shape_cast %37 : vector<1x144x128xbf16> to vector<144x128xbf16>
    %c1_20 = arith.constant 1 : index
    %c0_21 = arith.constant 0 : index
    %c0_22 = arith.constant 0 : index
    %39 = vector.load %arg3[%c1_20, %c0_21, %c0_22] : memref<9x128x128xbf16, #tpu.memory_space<vmem>>, vector<1x128x128xbf16>
    %40 = vector.shape_cast %39 : vector<1x128x128xbf16> to vector<128x128xbf16>
    %cst_23 = arith.constant dense<0.000000e+00> : vector<144x128xf32>
    %41 = tpu.matmul %38, %40, %cst_23 {dimension_numbers = #tpu.dot_dimension_numbers<[1], [0], [0], [1], [0, 0, 1, 1], [], []>} : vector<144x128xbf16>, vector<128x128xbf16>, vector<144x128xf32> -> vector<144x128xf32>
    %42 = arith.addf %35, %41 : vector<144x128xf32>
    %43 = arith.index_cast %9 : i32 to index
    %c2 = arith.constant 2 : index
    %c0_24 = arith.constant 0 : index
    %44 = vector.load %arg8[%43, %c2, %c0_24] : memref<2x488x128xbf16, #tpu.memory_space<vmem>>, vector<1x144x128xbf16>
    %45 = vector.shape_cast %44 : vector<1x144x128xbf16> to vector<144x128xbf16>
    %c2_25 = arith.constant 2 : index
    %c0_26 = arith.constant 0 : index
    %c0_27 = arith.constant 0 : index
    %46 = vector.load %arg3[%c2_25, %c0_26, %c0_27] : memref<9x128x128xbf16, #tpu.memory_space<vmem>>, vector<1x128x128xbf16>
    %47 = vector.shape_cast %46 : vector<1x128x128xbf16> to vector<128x128xbf16>
    %cst_28 = arith.constant dense<0.000000e+00> : vector<144x128xf32>
    %48 = tpu.matmul %45, %47, %cst_28 {dimension_numbers = #tpu.dot_dimension_numbers<[1], [0], [0], [1], [0, 0, 1, 1], [], []>} : vector<144x128xbf16>, vector<128x128xbf16>, vector<144x128xf32> -> vector<144x128xf32>
    %49 = arith.addf %42, %48 : vector<144x128xf32>
    %50 = arith.index_cast %9 : i32 to index
    %c24 = arith.constant 24 : index
    %c0_29 = arith.constant 0 : index
    %51 = vector.load %arg8[%50, %c24, %c0_29] : memref<2x488x128xbf16, #tpu.memory_space<vmem>>, vector<1x144x128xbf16>
    %52 = vector.shape_cast %51 : vector<1x144x128xbf16> to vector<144x128xbf16>
    %c3 = arith.constant 3 : index
    %c0_30 = arith.constant 0 : index
    %c0_31 = arith.constant 0 : index
    %53 = vector.load %arg3[%c3, %c0_30, %c0_31] : memref<9x128x128xbf16, #tpu.memory_space<vmem>>, vector<1x128x128xbf16>
    %54 = vector.shape_cast %53 : vector<1x128x128xbf16> to vector<128x128xbf16>
    %cst_32 = arith.constant dense<0.000000e+00> : vector<144x128xf32>
    %55 = tpu.matmul %52, %54, %cst_32 {dimension_numbers = #tpu.dot_dimension_numbers<[1], [0], [0], [1], [0, 0, 1, 1], [], []>} : vector<144x128xbf16>, vector<128x128xbf16>, vector<144x128xf32> -> vector<144x128xf32>
    %56 = arith.addf %49, %55 : vector<144x128xf32>
    %57 = arith.index_cast %9 : i32 to index
    %c25 = arith.constant 25 : index
    %c0_33 = arith.constant 0 : index
    %58 = vector.load %arg8[%57, %c25, %c0_33] : memref<2x488x128xbf16, #tpu.memory_space<vmem>>, vector<1x144x128xbf16>
    %59 = vector.shape_cast %58 : vector<1x144x128xbf16> to vector<144x128xbf16>
    %c4 = arith.constant 4 : index
    %c0_34 = arith.constant 0 : index
    %c0_35 = arith.constant 0 : index
    %60 = vector.load %arg3[%c4, %c0_34, %c0_35] : memref<9x128x128xbf16, #tpu.memory_space<vmem>>, vector<1x128x128xbf16>
    %61 = vector.shape_cast %60 : vector<1x128x128xbf16> to vector<128x128xbf16>
    %cst_36 = arith.constant dense<0.000000e+00> : vector<144x128xf32>
    %62 = tpu.matmul %59, %61, %cst_36 {dimension_numbers = #tpu.dot_dimension_numbers<[1], [0], [0], [1], [0, 0, 1, 1], [], []>} : vector<144x128xbf16>, vector<128x128xbf16>, vector<144x128xf32> -> vector<144x128xf32>
    %63 = arith.addf %56, %62 : vector<144x128xf32>
    %64 = arith.index_cast %9 : i32 to index
    %c26 = arith.constant 26 : index
    %c0_37 = arith.constant 0 : index
    %65 = vector.load %arg8[%64, %c26, %c0_37] : memref<2x488x128xbf16, #tpu.memory_space<vmem>>, vector<1x144x128xbf16>
    %66 = vector.shape_cast %65 : vector<1x144x128xbf16> to vector<144x128xbf16>
    %c5 = arith.constant 5 : index
    %c0_38 = arith.constant 0 : index
    %c0_39 = arith.constant 0 : index
    %67 = vector.load %arg3[%c5, %c0_38, %c0_39] : memref<9x128x128xbf16, #tpu.memory_space<vmem>>, vector<1x128x128xbf16>
    %68 = vector.shape_cast %67 : vector<1x128x128xbf16> to vector<128x128xbf16>
    %cst_40 = arith.constant dense<0.000000e+00> : vector<144x128xf32>
    %69 = tpu.matmul %66, %68, %cst_40 {dimension_numbers = #tpu.dot_dimension_numbers<[1], [0], [0], [1], [0, 0, 1, 1], [], []>} : vector<144x128xbf16>, vector<128x128xbf16>, vector<144x128xf32> -> vector<144x128xf32>
    %70 = arith.addf %63, %69 : vector<144x128xf32>
    %71 = arith.index_cast %9 : i32 to index
    %c48 = arith.constant 48 : index
    %c0_41 = arith.constant 0 : index
    %72 = vector.load %arg8[%71, %c48, %c0_41] : memref<2x488x128xbf16, #tpu.memory_space<vmem>>, vector<1x144x128xbf16>
    %73 = vector.shape_cast %72 : vector<1x144x128xbf16> to vector<144x128xbf16>
    %c6 = arith.constant 6 : index
    %c0_42 = arith.constant 0 : index
    %c0_43 = arith.constant 0 : index
    %74 = vector.load %arg3[%c6, %c0_42, %c0_43] : memref<9x128x128xbf16, #tpu.memory_space<vmem>>, vector<1x128x128xbf16>
    %75 = vector.shape_cast %74 : vector<1x128x128xbf16> to vector<128x128xbf16>
    %cst_44 = arith.constant dense<0.000000e+00> : vector<144x128xf32>
    %76 = tpu.matmul %73, %75, %cst_44 {dimension_numbers = #tpu.dot_dimension_numbers<[1], [0], [0], [1], [0, 0, 1, 1], [], []>} : vector<144x128xbf16>, vector<128x128xbf16>, vector<144x128xf32> -> vector<144x128xf32>
    %77 = arith.addf %70, %76 : vector<144x128xf32>
    %78 = arith.index_cast %9 : i32 to index
    %c49 = arith.constant 49 : index
    %c0_45 = arith.constant 0 : index
    %79 = vector.load %arg8[%78, %c49, %c0_45] : memref<2x488x128xbf16, #tpu.memory_space<vmem>>, vector<1x144x128xbf16>
    %80 = vector.shape_cast %79 : vector<1x144x128xbf16> to vector<144x128xbf16>
    %c7 = arith.constant 7 : index
    %c0_46 = arith.constant 0 : index
    %c0_47 = arith.constant 0 : index
    %81 = vector.load %arg3[%c7, %c0_46, %c0_47] : memref<9x128x128xbf16, #tpu.memory_space<vmem>>, vector<1x128x128xbf16>
    %82 = vector.shape_cast %81 : vector<1x128x128xbf16> to vector<128x128xbf16>
    %cst_48 = arith.constant dense<0.000000e+00> : vector<144x128xf32>
    %83 = tpu.matmul %80, %82, %cst_48 {dimension_numbers = #tpu.dot_dimension_numbers<[1], [0], [0], [1], [0, 0, 1, 1], [], []>} : vector<144x128xbf16>, vector<128x128xbf16>, vector<144x128xf32> -> vector<144x128xf32>
    %84 = arith.addf %77, %83 : vector<144x128xf32>
    %85 = arith.index_cast %9 : i32 to index
    %c50 = arith.constant 50 : index
    %c0_49 = arith.constant 0 : index
    %86 = vector.load %arg8[%85, %c50, %c0_49] : memref<2x488x128xbf16, #tpu.memory_space<vmem>>, vector<1x144x128xbf16>
    %87 = vector.shape_cast %86 : vector<1x144x128xbf16> to vector<144x128xbf16>
    %c8 = arith.constant 8 : index
    %c0_50 = arith.constant 0 : index
    %c0_51 = arith.constant 0 : index
    %88 = vector.load %arg3[%c8, %c0_50, %c0_51] : memref<9x128x128xbf16, #tpu.memory_space<vmem>>, vector<1x128x128xbf16>
    %89 = vector.shape_cast %88 : vector<1x128x128xbf16> to vector<128x128xbf16>
    %cst_52 = arith.constant dense<0.000000e+00> : vector<144x128xf32>
    %90 = tpu.matmul %87, %89, %cst_52 {dimension_numbers = #tpu.dot_dimension_numbers<[1], [0], [0], [1], [0, 0, 1, 1], [], []>} : vector<144x128xbf16>, vector<128x128xbf16>, vector<144x128xf32> -> vector<144x128xf32>
    %91 = arith.addf %84, %90 : vector<144x128xf32>
    %cst_53 = arith.constant 0.000000e+00 : f32
    %92 = vector.broadcast %cst_53 : f32 to vector<144x128xf32>
    %93 = arith.maximumf %91, %92 : vector<144x128xf32>
    %94 = vector.broadcast %29 : vector<144x1xf32> to vector<144x128xf32>
    %95 = arith.mulf %93, %94 : vector<144x128xf32>
    %96 = arith.truncf %95 : vector<144x128xf32> to vector<144x128xbf16>
    %c0_54 = arith.constant 0 : index
    %c0_55 = arith.constant 0 : index
    %97 = vector.load %arg9[%c0_54, %c0_55] : memref<440x128xbf16, #tpu.memory_space<vmem>>, vector<144x128xbf16>
    tpu.vector_store %arg9[%c0_54, %c0_55], %96 {strides = array<i32>} : memref<440x128xbf16, #tpu.memory_space<vmem>>, vector<144x128xbf16>,
    %98 = arith.index_cast %9 : i32 to index
    %c144 = arith.constant 144 : index
    %c0_56 = arith.constant 0 : index
    %99 = vector.load %arg8[%98, %c144, %c0_56] : memref<2x488x128xbf16, #tpu.memory_space<vmem>>, vector<1x144x128xbf16>
    %100 = vector.shape_cast %99 : vector<1x144x128xbf16> to vector<144x128xbf16>
    %c0_57 = arith.constant 0 : index
    %c0_58 = arith.constant 0 : index
    %c0_59 = arith.constant 0 : index
    %101 = vector.load %arg3[%c0_57, %c0_58, %c0_59] : memref<9x128x128xbf16, #tpu.memory_space<vmem>>, vector<1x128x128xbf16>
    %102 = vector.shape_cast %101 : vector<1x128x128xbf16> to vector<128x128xbf16>
    %cst_60 = arith.constant dense<0.000000e+00> : vector<144x128xf32>
    %103 = tpu.matmul %100, %102, %cst_60 {dimension_numbers = #tpu.dot_dimension_numbers<[1], [0], [0], [1], [0, 0, 1, 1], [], []>} : vector<144x128xbf16>, vector<128x128xbf16>, vector<144x128xf32> -> vector<144x128xf32>
    %104 = arith.index_cast %9 : i32 to index
    %c145 = arith.constant 145 : index
    %c0_61 = arith.constant 0 : index
    %105 = vector.load %arg8[%104, %c145, %c0_61] : memref<2x488x128xbf16, #tpu.memory_space<vmem>>, vector<1x144x128xbf16>
    %106 = vector.shape_cast %105 : vector<1x144x128xbf16> to vector<144x128xbf16>
    %c1_62 = arith.constant 1 : index
    %c0_63 = arith.constant 0 : index
    %c0_64 = arith.constant 0 : index
    %107 = vector.load %arg3[%c1_62, %c0_63, %c0_64] : memref<9x128x128xbf16, #tpu.memory_space<vmem>>, vector<1x128x128xbf16>
    %108 = vector.shape_cast %107 : vector<1x128x128xbf16> to vector<128x128xbf16>
    %cst_65 = arith.constant dense<0.000000e+00> : vector<144x128xf32>
    %109 = tpu.matmul %106, %108, %cst_65 {dimension_numbers = #tpu.dot_dimension_numbers<[1], [0], [0], [1], [0, 0, 1, 1], [], []>} : vector<144x128xbf16>, vector<128x128xbf16>, vector<144x128xf32> -> vector<144x128xf32>
    %110 = arith.addf %103, %109 : vector<144x128xf32>
    %111 = arith.index_cast %9 : i32 to index
    %c146 = arith.constant 146 : index
    %c0_66 = arith.constant 0 : index
    %112 = vector.load %arg8[%111, %c146, %c0_66] : memref<2x488x128xbf16, #tpu.memory_space<vmem>>, vector<1x144x128xbf16>
    %113 = vector.shape_cast %112 : vector<1x144x128xbf16> to vector<144x128xbf16>
    %c2_67 = arith.constant 2 : index
    %c0_68 = arith.constant 0 : index
    %c0_69 = arith.constant 0 : index
    %114 = vector.load %arg3[%c2_67, %c0_68, %c0_69] : memref<9x128x128xbf16, #tpu.memory_space<vmem>>, vector<1x128x128xbf16>
    %115 = vector.shape_cast %114 : vector<1x128x128xbf16> to vector<128x128xbf16>
    %cst_70 = arith.constant dense<0.000000e+00> : vector<144x128xf32>
    %116 = tpu.matmul %113, %115, %cst_70 {dimension_numbers = #tpu.dot_dimension_numbers<[1], [0], [0], [1], [0, 0, 1, 1], [], []>} : vector<144x128xbf16>, vector<128x128xbf16>, vector<144x128xf32> -> vector<144x128xf32>
    %117 = arith.addf %110, %116 : vector<144x128xf32>
    %118 = arith.index_cast %9 : i32 to index
    %c168 = arith.constant 168 : index
    %c0_71 = arith.constant 0 : index
    %119 = vector.load %arg8[%118, %c168, %c0_71] : memref<2x488x128xbf16, #tpu.memory_space<vmem>>, vector<1x144x128xbf16>
    %120 = vector.shape_cast %119 : vector<1x144x128xbf16> to vector<144x128xbf16>
    %c3_72 = arith.constant 3 : index
    %c0_73 = arith.constant 0 : index
    %c0_74 = arith.constant 0 : index
    %121 = vector.load %arg3[%c3_72, %c0_73, %c0_74] : memref<9x128x128xbf16, #tpu.memory_space<vmem>>, vector<1x128x128xbf16>
    %122 = vector.shape_cast %121 : vector<1x128x128xbf16> to vector<128x128xbf16>
    %cst_75 = arith.constant dense<0.000000e+00> : vector<144x128xf32>
    %123 = tpu.matmul %120, %122, %cst_75 {dimension_numbers = #tpu.dot_dimension_numbers<[1], [0], [0], [1], [0, 0, 1, 1], [], []>} : vector<144x128xbf16>, vector<128x128xbf16>, vector<144x128xf32> -> vector<144x128xf32>
    %124 = arith.addf %117, %123 : vector<144x128xf32>
    %125 = arith.index_cast %9 : i32 to index
    %c169 = arith.constant 169 : index
    %c0_76 = arith.constant 0 : index
    %126 = vector.load %arg8[%125, %c169, %c0_76] : memref<2x488x128xbf16, #tpu.memory_space<vmem>>, vector<1x144x128xbf16>
    %127 = vector.shape_cast %126 : vector<1x144x128xbf16> to vector<144x128xbf16>
    %c4_77 = arith.constant 4 : index
    %c0_78 = arith.constant 0 : index
    %c0_79 = arith.constant 0 : index
    %128 = vector.load %arg3[%c4_77, %c0_78, %c0_79] : memref<9x128x128xbf16, #tpu.memory_space<vmem>>, vector<1x128x128xbf16>
    %129 = vector.shape_cast %128 : vector<1x128x128xbf16> to vector<128x128xbf16>
    %cst_80 = arith.constant dense<0.000000e+00> : vector<144x128xf32>
    %130 = tpu.matmul %127, %129, %cst_80 {dimension_numbers = #tpu.dot_dimension_numbers<[1], [0], [0], [1], [0, 0, 1, 1], [], []>} : vector<144x128xbf16>, vector<128x128xbf16>, vector<144x128xf32> -> vector<144x128xf32>
    %131 = arith.addf %124, %130 : vector<144x128xf32>
    %132 = arith.index_cast %9 : i32 to index
    %c170 = arith.constant 170 : index
    %c0_81 = arith.constant 0 : index
    %133 = vector.load %arg8[%132, %c170, %c0_81] : memref<2x488x128xbf16, #tpu.memory_space<vmem>>, vector<1x144x128xbf16>
    %134 = vector.shape_cast %133 : vector<1x144x128xbf16> to vector<144x128xbf16>
    %c5_82 = arith.constant 5 : index
    %c0_83 = arith.constant 0 : index
    %c0_84 = arith.constant 0 : index
    %135 = vector.load %arg3[%c5_82, %c0_83, %c0_84] : memref<9x128x128xbf16, #tpu.memory_space<vmem>>, vector<1x128x128xbf16>
    %136 = vector.shape_cast %135 : vector<1x128x128xbf16> to vector<128x128xbf16>
    %cst_85 = arith.constant dense<0.000000e+00> : vector<144x128xf32>
    %137 = tpu.matmul %134, %136, %cst_85 {dimension_numbers = #tpu.dot_dimension_numbers<[1], [0], [0], [1], [0, 0, 1, 1], [], []>} : vector<144x128xbf16>, vector<128x128xbf16>, vector<144x128xf32> -> vector<144x128xf32>
    %138 = arith.addf %131, %137 : vector<144x128xf32>
    %139 = arith.index_cast %9 : i32 to index
    %c192 = arith.constant 192 : index
    %c0_86 = arith.constant 0 : index
    %140 = vector.load %arg8[%139, %c192, %c0_86] : memref<2x488x128xbf16, #tpu.memory_space<vmem>>, vector<1x144x128xbf16>
    %141 = vector.shape_cast %140 : vector<1x144x128xbf16> to vector<144x128xbf16>
    %c6_87 = arith.constant 6 : index
    %c0_88 = arith.constant 0 : index
    %c0_89 = arith.constant 0 : index
    %142 = vector.load %arg3[%c6_87, %c0_88, %c0_89] : memref<9x128x128xbf16, #tpu.memory_space<vmem>>, vector<1x128x128xbf16>
    %143 = vector.shape_cast %142 : vector<1x128x128xbf16> to vector<128x128xbf16>
    %cst_90 = arith.constant dense<0.000000e+00> : vector<144x128xf32>
    %144 = tpu.matmul %141, %143, %cst_90 {dimension_numbers = #tpu.dot_dimension_numbers<[1], [0], [0], [1], [0, 0, 1, 1], [], []>} : vector<144x128xbf16>, vector<128x128xbf16>, vector<144x128xf32> -> vector<144x128xf32>
    %145 = arith.addf %138, %144 : vector<144x128xf32>
    %146 = arith.index_cast %9 : i32 to index
    %c193 = arith.constant 193 : index
    %c0_91 = arith.constant 0 : index
    %147 = vector.load %arg8[%146, %c193, %c0_91] : memref<2x488x128xbf16, #tpu.memory_space<vmem>>, vector<1x144x128xbf16>
    %148 = vector.shape_cast %147 : vector<1x144x128xbf16> to vector<144x128xbf16>
    %c7_92 = arith.constant 7 : index
    %c0_93 = arith.constant 0 : index
    %c0_94 = arith.constant 0 : index
    %149 = vector.load %arg3[%c7_92, %c0_93, %c0_94] : memref<9x128x128xbf16, #tpu.memory_space<vmem>>, vector<1x128x128xbf16>
    %150 = vector.shape_cast %149 : vector<1x128x128xbf16> to vector<128x128xbf16>
    %cst_95 = arith.constant dense<0.000000e+00> : vector<144x128xf32>
    %151 = tpu.matmul %148, %150, %cst_95 {dimension_numbers = #tpu.dot_dimension_numbers<[1], [0], [0], [1], [0, 0, 1, 1], [], []>} : vector<144x128xbf16>, vector<128x128xbf16>, vector<144x128xf32> -> vector<144x128xf32>
    %152 = arith.addf %145, %151 : vector<144x128xf32>
    %153 = arith.index_cast %9 : i32 to index
    %c194 = arith.constant 194 : index
    %c0_96 = arith.constant 0 : index
    %154 = vector.load %arg8[%153, %c194, %c0_96] : memref<2x488x128xbf16, #tpu.memory_space<vmem>>, vector<1x144x128xbf16>
    %155 = vector.shape_cast %154 : vector<1x144x128xbf16> to vector<144x128xbf16>
    %c8_97 = arith.constant 8 : index
    %c0_98 = arith.constant 0 : index
    %c0_99 = arith.constant 0 : index
    %156 = vector.load %arg3[%c8_97, %c0_98, %c0_99] : memref<9x128x128xbf16, #tpu.memory_space<vmem>>, vector<1x128x128xbf16>
    %157 = vector.shape_cast %156 : vector<1x128x128xbf16> to vector<128x128xbf16>
    %cst_100 = arith.constant dense<0.000000e+00> : vector<144x128xf32>
    %158 = tpu.matmul %155, %157, %cst_100 {dimension_numbers = #tpu.dot_dimension_numbers<[1], [0], [0], [1], [0, 0, 1, 1], [], []>} : vector<144x128xbf16>, vector<128x128xbf16>, vector<144x128xf32> -> vector<144x128xf32>
    %159 = arith.addf %152, %158 : vector<144x128xf32>
    %cst_101 = arith.constant 0.000000e+00 : f32
    %160 = vector.broadcast %cst_101 : f32 to vector<144x128xf32>
    %161 = arith.maximumf %159, %160 : vector<144x128xf32>
    %162 = vector.broadcast %29 : vector<144x1xf32> to vector<144x128xf32>
    %163 = arith.mulf %161, %162 : vector<144x128xf32>
    %164 = arith.truncf %163 : vector<144x128xf32> to vector<144x128xbf16>
    %c144_102 = arith.constant 144 : index
    %c0_103 = arith.constant 0 : index
    %165 = vector.load %arg9[%c144_102, %c0_103] : memref<440x128xbf16, #tpu.memory_space<vmem>>, vector<144x128xbf16>
    tpu.vector_store %arg9[%c144_102, %c0_103], %164 {strides = array<i32>} : memref<440x128xbf16, #tpu.memory_space<vmem>>, vector<144x128xbf16>,
    %166 = arith.index_cast %9 : i32 to index
    %c288 = arith.constant 288 : index
    %c0_104 = arith.constant 0 : index
    %167 = vector.load %arg8[%166, %c288, %c0_104] : memref<2x488x128xbf16, #tpu.memory_space<vmem>>, vector<1x144x128xbf16>
    %168 = vector.shape_cast %167 : vector<1x144x128xbf16> to vector<144x128xbf16>
    %c0_105 = arith.constant 0 : index
    %c0_106 = arith.constant 0 : index
    %c0_107 = arith.constant 0 : index
    %169 = vector.load %arg3[%c0_105, %c0_106, %c0_107] : memref<9x128x128xbf16, #tpu.memory_space<vmem>>, vector<1x128x128xbf16>
    %170 = vector.shape_cast %169 : vector<1x128x128xbf16> to vector<128x128xbf16>
    %cst_108 = arith.constant dense<0.000000e+00> : vector<144x128xf32>
    %171 = tpu.matmul %168, %170, %cst_108 {dimension_numbers = #tpu.dot_dimension_numbers<[1], [0], [0], [1], [0, 0, 1, 1], [], []>} : vector<144x128xbf16>, vector<128x128xbf16>, vector<144x128xf32> -> vector<144x128xf32>
    %172 = arith.index_cast %9 : i32 to index
    %c289 = arith.constant 289 : index
    %c0_109 = arith.constant 0 : index
    %173 = vector.load %arg8[%172, %c289, %c0_109] : memref<2x488x128xbf16, #tpu.memory_space<vmem>>, vector<1x144x128xbf16>
    %174 = vector.shape_cast %173 : vector<1x144x128xbf16> to vector<144x128xbf16>
    %c1_110 = arith.constant 1 : index
    %c0_111 = arith.constant 0 : index
    %c0_112 = arith.constant 0 : index
    %175 = vector.load %arg3[%c1_110, %c0_111, %c0_112] : memref<9x128x128xbf16, #tpu.memory_space<vmem>>, vector<1x128x128xbf16>
    %176 = vector.shape_cast %175 : vector<1x128x128xbf16> to vector<128x128xbf16>
    %cst_113 = arith.constant dense<0.000000e+00> : vector<144x128xf32>
    %177 = tpu.matmul %174, %176, %cst_113 {dimension_numbers = #tpu.dot_dimension_numbers<[1], [0], [0], [1], [0, 0, 1, 1], [], []>} : vector<144x128xbf16>, vector<128x128xbf16>, vector<144x128xf32> -> vector<144x128xf32>
    %178 = arith.addf %171, %177 : vector<144x128xf32>
    %179 = arith.index_cast %9 : i32 to index
    %c290 = arith.constant 290 : index
    %c0_114 = arith.constant 0 : index
    %180 = vector.load %arg8[%179, %c290, %c0_114] : memref<2x488x128xbf16, #tpu.memory_space<vmem>>, vector<1x144x128xbf16>
    %181 = vector.shape_cast %180 : vector<1x144x128xbf16> to vector<144x128xbf16>
    %c2_115 = arith.constant 2 : index
    %c0_116 = arith.constant 0 : index
    %c0_117 = arith.constant 0 : index
    %182 = vector.load %arg3[%c2_115, %c0_116, %c0_117] : memref<9x128x128xbf16, #tpu.memory_space<vmem>>, vector<1x128x128xbf16>
    %183 = vector.shape_cast %182 : vector<1x128x128xbf16> to vector<128x128xbf16>
    %cst_118 = arith.constant dense<0.000000e+00> : vector<144x128xf32>
    %184 = tpu.matmul %181, %183, %cst_118 {dimension_numbers = #tpu.dot_dimension_numbers<[1], [0], [0], [1], [0, 0, 1, 1], [], []>} : vector<144x128xbf16>, vector<128x128xbf16>, vector<144x128xf32> -> vector<144x128xf32>
    %185 = arith.addf %178, %184 : vector<144x128xf32>
    %186 = arith.index_cast %9 : i32 to index
    %c312 = arith.constant 312 : index
    %c0_119 = arith.constant 0 : index
    %187 = vector.load %arg8[%186, %c312, %c0_119] : memref<2x488x128xbf16, #tpu.memory_space<vmem>>, vector<1x144x128xbf16>
    %188 = vector.shape_cast %187 : vector<1x144x128xbf16> to vector<144x128xbf16>
    %c3_120 = arith.constant 3 : index
    %c0_121 = arith.constant 0 : index
    %c0_122 = arith.constant 0 : index
    %189 = vector.load %arg3[%c3_120, %c0_121, %c0_122] : memref<9x128x128xbf16, #tpu.memory_space<vmem>>, vector<1x128x128xbf16>
    %190 = vector.shape_cast %189 : vector<1x128x128xbf16> to vector<128x128xbf16>
    %cst_123 = arith.constant dense<0.000000e+00> : vector<144x128xf32>
    %191 = tpu.matmul %188, %190, %cst_123 {dimension_numbers = #tpu.dot_dimension_numbers<[1], [0], [0], [1], [0, 0, 1, 1], [], []>} : vector<144x128xbf16>, vector<128x128xbf16>, vector<144x128xf32> -> vector<144x128xf32>
    %192 = arith.addf %185, %191 : vector<144x128xf32>
    %193 = arith.index_cast %9 : i32 to index
    %c313 = arith.constant 313 : index
    %c0_124 = arith.constant 0 : index
    %194 = vector.load %arg8[%193, %c313, %c0_124] : memref<2x488x128xbf16, #tpu.memory_space<vmem>>, vector<1x144x128xbf16>
    %195 = vector.shape_cast %194 : vector<1x144x128xbf16> to vector<144x128xbf16>
    %c4_125 = arith.constant 4 : index
    %c0_126 = arith.constant 0 : index
    %c0_127 = arith.constant 0 : index
    %196 = vector.load %arg3[%c4_125, %c0_126, %c0_127] : memref<9x128x128xbf16, #tpu.memory_space<vmem>>, vector<1x128x128xbf16>
    %197 = vector.shape_cast %196 : vector<1x128x128xbf16> to vector<128x128xbf16>
    %cst_128 = arith.constant dense<0.000000e+00> : vector<144x128xf32>
    %198 = tpu.matmul %195, %197, %cst_128 {dimension_numbers = #tpu.dot_dimension_numbers<[1], [0], [0], [1], [0, 0, 1, 1], [], []>} : vector<144x128xbf16>, vector<128x128xbf16>, vector<144x128xf32> -> vector<144x128xf32>
    %199 = arith.addf %192, %198 : vector<144x128xf32>
    %200 = arith.index_cast %9 : i32 to index
    %c314 = arith.constant 314 : index
    %c0_129 = arith.constant 0 : index
    %201 = vector.load %arg8[%200, %c314, %c0_129] : memref<2x488x128xbf16, #tpu.memory_space<vmem>>, vector<1x144x128xbf16>
    %202 = vector.shape_cast %201 : vector<1x144x128xbf16> to vector<144x128xbf16>
    %c5_130 = arith.constant 5 : index
    %c0_131 = arith.constant 0 : index
    %c0_132 = arith.constant 0 : index
    %203 = vector.load %arg3[%c5_130, %c0_131, %c0_132] : memref<9x128x128xbf16, #tpu.memory_space<vmem>>, vector<1x128x128xbf16>
    %204 = vector.shape_cast %203 : vector<1x128x128xbf16> to vector<128x128xbf16>
    %cst_133 = arith.constant dense<0.000000e+00> : vector<144x128xf32>
    %205 = tpu.matmul %202, %204, %cst_133 {dimension_numbers = #tpu.dot_dimension_numbers<[1], [0], [0], [1], [0, 0, 1, 1], [], []>} : vector<144x128xbf16>, vector<128x128xbf16>, vector<144x128xf32> -> vector<144x128xf32>
    %206 = arith.addf %199, %205 : vector<144x128xf32>
    %207 = arith.index_cast %9 : i32 to index
    %c336 = arith.constant 336 : index
    %c0_134 = arith.constant 0 : index
    %208 = vector.load %arg8[%207, %c336, %c0_134] : memref<2x488x128xbf16, #tpu.memory_space<vmem>>, vector<1x144x128xbf16>
    %209 = vector.shape_cast %208 : vector<1x144x128xbf16> to vector<144x128xbf16>
    %c6_135 = arith.constant 6 : index
    %c0_136 = arith.constant 0 : index
    %c0_137 = arith.constant 0 : index
    %210 = vector.load %arg3[%c6_135, %c0_136, %c0_137] : memref<9x128x128xbf16, #tpu.memory_space<vmem>>, vector<1x128x128xbf16>
    %211 = vector.shape_cast %210 : vector<1x128x128xbf16> to vector<128x128xbf16>
    %cst_138 = arith.constant dense<0.000000e+00> : vector<144x128xf32>
    %212 = tpu.matmul %209, %211, %cst_138 {dimension_numbers = #tpu.dot_dimension_numbers<[1], [0], [0], [1], [0, 0, 1, 1], [], []>} : vector<144x128xbf16>, vector<128x128xbf16>, vector<144x128xf32> -> vector<144x128xf32>
    %213 = arith.addf %206, %212 : vector<144x128xf32>
    %214 = arith.index_cast %9 : i32 to index
    %c337 = arith.constant 337 : index
    %c0_139 = arith.constant 0 : index
    %215 = vector.load %arg8[%214, %c337, %c0_139] : memref<2x488x128xbf16, #tpu.memory_space<vmem>>, vector<1x144x128xbf16>
    %216 = vector.shape_cast %215 : vector<1x144x128xbf16> to vector<144x128xbf16>
    %c7_140 = arith.constant 7 : index
    %c0_141 = arith.constant 0 : index
    %c0_142 = arith.constant 0 : index
    %217 = vector.load %arg3[%c7_140, %c0_141, %c0_142] : memref<9x128x128xbf16, #tpu.memory_space<vmem>>, vector<1x128x128xbf16>
    %218 = vector.shape_cast %217 : vector<1x128x128xbf16> to vector<128x128xbf16>
    %cst_143 = arith.constant dense<0.000000e+00> : vector<144x128xf32>
    %219 = tpu.matmul %216, %218, %cst_143 {dimension_numbers = #tpu.dot_dimension_numbers<[1], [0], [0], [1], [0, 0, 1, 1], [], []>} : vector<144x128xbf16>, vector<128x128xbf16>, vector<144x128xf32> -> vector<144x128xf32>
    %220 = arith.addf %213, %219 : vector<144x128xf32>
    %221 = arith.index_cast %9 : i32 to index
    %c338 = arith.constant 338 : index
    %c0_144 = arith.constant 0 : index
    %222 = vector.load %arg8[%221, %c338, %c0_144] : memref<2x488x128xbf16, #tpu.memory_space<vmem>>, vector<1x144x128xbf16>
    %223 = vector.shape_cast %222 : vector<1x144x128xbf16> to vector<144x128xbf16>
    %c8_145 = arith.constant 8 : index
    %c0_146 = arith.constant 0 : index
    %c0_147 = arith.constant 0 : index
    %224 = vector.load %arg3[%c8_145, %c0_146, %c0_147] : memref<9x128x128xbf16, #tpu.memory_space<vmem>>, vector<1x128x128xbf16>
    %225 = vector.shape_cast %224 : vector<1x128x128xbf16> to vector<128x128xbf16>
    %cst_148 = arith.constant dense<0.000000e+00> : vector<144x128xf32>
    %226 = tpu.matmul %223, %225, %cst_148 {dimension_numbers = #tpu.dot_dimension_numbers<[1], [0], [0], [1], [0, 0, 1, 1], [], []>} : vector<144x128xbf16>, vector<128x128xbf16>, vector<144x128xf32> -> vector<144x128xf32>
    %227 = arith.addf %220, %226 : vector<144x128xf32>
    %cst_149 = arith.constant 0.000000e+00 : f32
    %228 = vector.broadcast %cst_149 : f32 to vector<144x128xf32>
    %229 = arith.maximumf %227, %228 : vector<144x128xf32>
    %230 = vector.broadcast %29 : vector<144x1xf32> to vector<144x128xf32>
    %231 = arith.mulf %229, %230 : vector<144x128xf32>
    %232 = arith.truncf %231 : vector<144x128xf32> to vector<144x128xbf16>
    %c288_150 = arith.constant 288 : index
    %c0_151 = arith.constant 0 : index
    %233 = vector.load %arg9[%c288_150, %c0_151] : memref<440x128xbf16, #tpu.memory_space<vmem>>, vector<144x128xbf16>
    tpu.vector_store %arg9[%c288_150, %c0_151], %232 {strides = array<i32>} : memref<440x128xbf16, #tpu.memory_space<vmem>>, vector<144x128xbf16>,
    %cst_152 = arith.constant 0.000000e+00 : bf16
    %234 = vector.broadcast %cst_152 : bf16 to vector<8x128xbf16>
    %c432 = arith.constant 432 : index
    %c0_153 = arith.constant 0 : index
    %235 = vector.load %arg9[%c432, %c0_153] : memref<440x128xbf16, #tpu.memory_space<vmem>>, vector<8x128xbf16>
    tpu.vector_store %arg9[%c432, %c0_153], %234 {strides = array<i32>} : memref<440x128xbf16, #tpu.memory_space<vmem>>, vector<8x128xbf16>,
    %c0_i32_154 = arith.constant 0 : i32
    %236 = arith.cmpi eq, %arg1, %c0_i32_154 : i32
    %237 = arith.extui %236 : i1 to i32
    %c0_i32_155 = arith.constant 0 : i32
    %238 = arith.cmpi ne, %237, %c0_i32_155 : i32
    scf.if %238 {
      %cst_278 = arith.constant 0.000000e+00 : bf16
      %350 = vector.broadcast %cst_278 : bf16 to vector<24x128xbf16>
      %c0_279 = arith.constant 0 : index
      %c0_280 = arith.constant 0 : index
      %351 = vector.load %arg9[%c0_279, %c0_280] : memref<440x128xbf16, #tpu.memory_space<vmem>>, vector<24x128xbf16>
      tpu.vector_store %arg9[%c0_279, %c0_280], %350 {strides = array<i32>} : memref<440x128xbf16, #tpu.memory_space<vmem>>, vector<24x128xbf16>,
    } else {
    }
    %c0_i32_156 = arith.constant 0 : i32
    %239 = arith.cmpi eq, %arg1, %c0_i32_156 : i32
    %240 = arith.extui %239 : i1 to i32
    %c0_i32_157 = arith.constant 0 : i32
    %241 = arith.cmpi ne, %240, %c0_i32_157 : i32
    scf.if %241 {
      %cst_278 = arith.constant 0.000000e+00 : bf16
      %350 = vector.broadcast %cst_278 : bf16 to vector<24x128xbf16>
      %c408 = arith.constant 408 : index
      %c0_279 = arith.constant 0 : index
      %351 = vector.load %arg9[%c408, %c0_279] : memref<440x128xbf16, #tpu.memory_space<vmem>>, vector<24x128xbf16>
      tpu.vector_store %arg9[%c408, %c0_279], %350 {strides = array<i32>} : memref<440x128xbf16, #tpu.memory_space<vmem>>, vector<24x128xbf16>,
    } else {
    }
    %c0_158 = arith.constant 0 : index
    %c0_159 = arith.constant 0 : index
    %242 = vector.load %arg9[%c0_158, %c0_159] : memref<440x128xbf16, #tpu.memory_space<vmem>>, vector<192x128xbf16>
    %c0_160 = arith.constant 0 : index
    %c0_161 = arith.constant 0 : index
    %c0_162 = arith.constant 0 : index
    %243 = vector.load %arg4[%c0_160, %c0_161, %c0_162] : memref<9x128x128xbf16, #tpu.memory_space<vmem>>, vector<1x128x128xbf16>
    %244 = vector.shape_cast %243 : vector<1x128x128xbf16> to vector<128x128xbf16>
    %cst_163 = arith.constant dense<0.000000e+00> : vector<192x128xf32>
    %245 = tpu.matmul %242, %244, %cst_163 {dimension_numbers = #tpu.dot_dimension_numbers<[1], [0], [0], [1], [0, 0, 1, 1], [], []>} : vector<192x128xbf16>, vector<128x128xbf16>, vector<192x128xf32> -> vector<192x128xf32>
    %c1_164 = arith.constant 1 : index
    %c0_165 = arith.constant 0 : index
    %246 = vector.load %arg9[%c1_164, %c0_165] : memref<440x128xbf16, #tpu.memory_space<vmem>>, vector<192x128xbf16>
    %c1_166 = arith.constant 1 : index
    %c0_167 = arith.constant 0 : index
    %c0_168 = arith.constant 0 : index
    %247 = vector.load %arg4[%c1_166, %c0_167, %c0_168] : memref<9x128x128xbf16, #tpu.memory_space<vmem>>, vector<1x128x128xbf16>
    %248 = vector.shape_cast %247 : vector<1x128x128xbf16> to vector<128x128xbf16>
    %cst_169 = arith.constant dense<0.000000e+00> : vector<192x128xf32>
    %249 = tpu.matmul %246, %248, %cst_169 {dimension_numbers = #tpu.dot_dimension_numbers<[1], [0], [0], [1], [0, 0, 1, 1], [], []>} : vector<192x128xbf16>, vector<128x128xbf16>, vector<192x128xf32> -> vector<192x128xf32>
    %250 = arith.addf %245, %249 : vector<192x128xf32>
    %c2_170 = arith.constant 2 : index
    %c0_171 = arith.constant 0 : index
    %251 = vector.load %arg9[%c2_170, %c0_171] : memref<440x128xbf16, #tpu.memory_space<vmem>>, vector<192x128xbf16>
    %c2_172 = arith.constant 2 : index
    %c0_173 = arith.constant 0 : index
    %c0_174 = arith.constant 0 : index
    %252 = vector.load %arg4[%c2_172, %c0_173, %c0_174] : memref<9x128x128xbf16, #tpu.memory_space<vmem>>, vector<1x128x128xbf16>
    %253 = vector.shape_cast %252 : vector<1x128x128xbf16> to vector<128x128xbf16>
    %cst_175 = arith.constant dense<0.000000e+00> : vector<192x128xf32>
    %254 = tpu.matmul %251, %253, %cst_175 {dimension_numbers = #tpu.dot_dimension_numbers<[1], [0], [0], [1], [0, 0, 1, 1], [], []>} : vector<192x128xbf16>, vector<128x128xbf16>, vector<192x128xf32> -> vector<192x128xf32>
    %255 = arith.addf %250, %254 : vector<192x128xf32>
    %c24_176 = arith.constant 24 : index
    %c0_177 = arith.constant 0 : index
    %256 = vector.load %arg9[%c24_176, %c0_177] : memref<440x128xbf16, #tpu.memory_space<vmem>>, vector<192x128xbf16>
    %c3_178 = arith.constant 3 : index
    %c0_179 = arith.constant 0 : index
    %c0_180 = arith.constant 0 : index
    %257 = vector.load %arg4[%c3_178, %c0_179, %c0_180] : memref<9x128x128xbf16, #tpu.memory_space<vmem>>, vector<1x128x128xbf16>
    %258 = vector.shape_cast %257 : vector<1x128x128xbf16> to vector<128x128xbf16>
    %cst_181 = arith.constant dense<0.000000e+00> : vector<192x128xf32>
    %259 = tpu.matmul %256, %258, %cst_181 {dimension_numbers = #tpu.dot_dimension_numbers<[1], [0], [0], [1], [0, 0, 1, 1], [], []>} : vector<192x128xbf16>, vector<128x128xbf16>, vector<192x128xf32> -> vector<192x128xf32>
    %260 = arith.addf %255, %259 : vector<192x128xf32>
    %c25_182 = arith.constant 25 : index
    %c0_183 = arith.constant 0 : index
    %261 = vector.load %arg9[%c25_182, %c0_183] : memref<440x128xbf16, #tpu.memory_space<vmem>>, vector<192x128xbf16>
    %c4_184 = arith.constant 4 : index
    %c0_185 = arith.constant 0 : index
    %c0_186 = arith.constant 0 : index
    %262 = vector.load %arg4[%c4_184, %c0_185, %c0_186] : memref<9x128x128xbf16, #tpu.memory_space<vmem>>, vector<1x128x128xbf16>
    %263 = vector.shape_cast %262 : vector<1x128x128xbf16> to vector<128x128xbf16>
    %cst_187 = arith.constant dense<0.000000e+00> : vector<192x128xf32>
    %264 = tpu.matmul %261, %263, %cst_187 {dimension_numbers = #tpu.dot_dimension_numbers<[1], [0], [0], [1], [0, 0, 1, 1], [], []>} : vector<192x128xbf16>, vector<128x128xbf16>, vector<192x128xf32> -> vector<192x128xf32>
    %265 = arith.addf %260, %264 : vector<192x128xf32>
    %c26_188 = arith.constant 26 : index
    %c0_189 = arith.constant 0 : index
    %266 = vector.load %arg9[%c26_188, %c0_189] : memref<440x128xbf16, #tpu.memory_space<vmem>>, vector<192x128xbf16>
    %c5_190 = arith.constant 5 : index
    %c0_191 = arith.constant 0 : index
    %c0_192 = arith.constant 0 : index
    %267 = vector.load %arg4[%c5_190, %c0_191, %c0_192] : memref<9x128x128xbf16, #tpu.memory_space<vmem>>, vector<1x128x128xbf16>
    %268 = vector.shape_cast %267 : vector<1x128x128xbf16> to vector<128x128xbf16>
    %cst_193 = arith.constant dense<0.000000e+00> : vector<192x128xf32>
    %269 = tpu.matmul %266, %268, %cst_193 {dimension_numbers = #tpu.dot_dimension_numbers<[1], [0], [0], [1], [0, 0, 1, 1], [], []>} : vector<192x128xbf16>, vector<128x128xbf16>, vector<192x128xf32> -> vector<192x128xf32>
    %270 = arith.addf %265, %269 : vector<192x128xf32>
    %c48_194 = arith.constant 48 : index
    %c0_195 = arith.constant 0 : index
    %271 = vector.load %arg9[%c48_194, %c0_195] : memref<440x128xbf16, #tpu.memory_space<vmem>>, vector<192x128xbf16>
    %c6_196 = arith.constant 6 : index
    %c0_197 = arith.constant 0 : index
    %c0_198 = arith.constant 0 : index
    %272 = vector.load %arg4[%c6_196, %c0_197, %c0_198] : memref<9x128x128xbf16, #tpu.memory_space<vmem>>, vector<1x128x128xbf16>
    %273 = vector.shape_cast %272 : vector<1x128x128xbf16> to vector<128x128xbf16>
    %cst_199 = arith.constant dense<0.000000e+00> : vector<192x128xf32>
    %274 = tpu.matmul %271, %273, %cst_199 {dimension_numbers = #tpu.dot_dimension_numbers<[1], [0], [0], [1], [0, 0, 1, 1], [], []>} : vector<192x128xbf16>, vector<128x128xbf16>, vector<192x128xf32> -> vector<192x128xf32>
    %275 = arith.addf %270, %274 : vector<192x128xf32>
    %c49_200 = arith.constant 49 : index
    %c0_201 = arith.constant 0 : index
    %276 = vector.load %arg9[%c49_200, %c0_201] : memref<440x128xbf16, #tpu.memory_space<vmem>>, vector<192x128xbf16>
    %c7_202 = arith.constant 7 : index
    %c0_203 = arith.constant 0 : index
    %c0_204 = arith.constant 0 : index
    %277 = vector.load %arg4[%c7_202, %c0_203, %c0_204] : memref<9x128x128xbf16, #tpu.memory_space<vmem>>, vector<1x128x128xbf16>
    %278 = vector.shape_cast %277 : vector<1x128x128xbf16> to vector<128x128xbf16>
    %cst_205 = arith.constant dense<0.000000e+00> : vector<192x128xf32>
    %279 = tpu.matmul %276, %278, %cst_205 {dimension_numbers = #tpu.dot_dimension_numbers<[1], [0], [0], [1], [0, 0, 1, 1], [], []>} : vector<192x128xbf16>, vector<128x128xbf16>, vector<192x128xf32> -> vector<192x128xf32>
    %280 = arith.addf %275, %279 : vector<192x128xf32>
    %c50_206 = arith.constant 50 : index
    %c0_207 = arith.constant 0 : index
    %281 = vector.load %arg9[%c50_206, %c0_207] : memref<440x128xbf16, #tpu.memory_space<vmem>>, vector<192x128xbf16>
    %c8_208 = arith.constant 8 : index
    %c0_209 = arith.constant 0 : index
    %c0_210 = arith.constant 0 : index
    %282 = vector.load %arg4[%c8_208, %c0_209, %c0_210] : memref<9x128x128xbf16, #tpu.memory_space<vmem>>, vector<1x128x128xbf16>
    %283 = vector.shape_cast %282 : vector<1x128x128xbf16> to vector<128x128xbf16>
    %cst_211 = arith.constant dense<0.000000e+00> : vector<192x128xf32>
    %284 = tpu.matmul %281, %283, %cst_211 {dimension_numbers = #tpu.dot_dimension_numbers<[1], [0], [0], [1], [0, 0, 1, 1], [], []>} : vector<192x128xbf16>, vector<128x128xbf16>, vector<192x128xf32> -> vector<192x128xf32>
    %285 = arith.addf %280, %284 : vector<192x128xf32>
    %cst_212 = arith.constant 0.000000e+00 : f32
    %286 = vector.broadcast %cst_212 : f32 to vector<192x128xf32>
    %287 = arith.maximumf %285, %286 : vector<192x128xf32>
    %288 = vector.shape_cast %287 : vector<192x128xf32> to vector<8x24x128xf32>
    %289 = vector.extract_strided_slice %288 {offsets = [0, 0, 0], sizes = [8, 16, 128], strides = [1, 1, 1]} : vector<8x24x128xf32> to vector<8x16x128xf32>
    %c0_213 = arith.constant 0 : index
    %c0_214 = arith.constant 0 : index
    %c0_215 = arith.constant 0 : index
    %c0_216 = arith.constant 0 : index
    %290 = vector.load %arg6[%c0_213, %c0_214, %c0_215, %c0_216] : memref<1x16x16x128xf32, #tpu.memory_space<vmem>>, vector<1x8x16x128xf32>
    %291 = vector.shape_cast %290 : vector<1x8x16x128xf32> to vector<8x16x128xf32>
    %292 = arith.addf %291, %289 : vector<8x16x128xf32>
    %c0_217 = arith.constant 0 : index
    %c0_218 = arith.constant 0 : index
    %c0_219 = arith.constant 0 : index
    %c0_220 = arith.constant 0 : index
    %293 = vector.load %arg7[%c0_217, %c0_218, %c0_219, %c0_220] : memref<1x16x16x128xf32, #tpu.memory_space<vmem>>, vector<1x8x16x128xf32>
    %294 = vector.shape_cast %293 : vector<1x8x16x128xf32> to vector<8x16x128xf32>
    %295 = vector.shape_cast %292 : vector<8x16x128xf32> to vector<1x8x16x128xf32>
    tpu.vector_store %arg7[%c0_217, %c0_218, %c0_219, %c0_220], %295 {strides = array<i32>} : memref<1x16x16x128xf32, #tpu.memory_space<vmem>>, vector<1x8x16x128xf32>,
    %c192_221 = arith.constant 192 : index
    %c0_222 = arith.constant 0 : index
    %296 = vector.load %arg9[%c192_221, %c0_222] : memref<440x128xbf16, #tpu.memory_space<vmem>>, vector<192x128xbf16>
    %c0_223 = arith.constant 0 : index
    %c0_224 = arith.constant 0 : index
    %c0_225 = arith.constant 0 : index
    %297 = vector.load %arg4[%c0_223, %c0_224, %c0_225] : memref<9x128x128xbf16, #tpu.memory_space<vmem>>, vector<1x128x128xbf16>
    %298 = vector.shape_cast %297 : vector<1x128x128xbf16> to vector<128x128xbf16>
    %cst_226 = arith.constant dense<0.000000e+00> : vector<192x128xf32>
    %299 = tpu.matmul %296, %298, %cst_226 {dimension_numbers = #tpu.dot_dimension_numbers<[1], [0], [0], [1], [0, 0, 1, 1], [], []>} : vector<192x128xbf16>, vector<128x128xbf16>, vector<192x128xf32> -> vector<192x128xf32>
    %c193_227 = arith.constant 193 : index
    %c0_228 = arith.constant 0 : index
    %300 = vector.load %arg9[%c193_227, %c0_228] : memref<440x128xbf16, #tpu.memory_space<vmem>>, vector<192x128xbf16>
    %c1_229 = arith.constant 1 : index
    %c0_230 = arith.constant 0 : index
    %c0_231 = arith.constant 0 : index
    %301 = vector.load %arg4[%c1_229, %c0_230, %c0_231] : memref<9x128x128xbf16, #tpu.memory_space<vmem>>, vector<1x128x128xbf16>
    %302 = vector.shape_cast %301 : vector<1x128x128xbf16> to vector<128x128xbf16>
    %cst_232 = arith.constant dense<0.000000e+00> : vector<192x128xf32>
    %303 = tpu.matmul %300, %302, %cst_232 {dimension_numbers = #tpu.dot_dimension_numbers<[1], [0], [0], [1], [0, 0, 1, 1], [], []>} : vector<192x128xbf16>, vector<128x128xbf16>, vector<192x128xf32> -> vector<192x128xf32>
    %304 = arith.addf %299, %303 : vector<192x128xf32>
    %c194_233 = arith.constant 194 : index
    %c0_234 = arith.constant 0 : index
    %305 = vector.load %arg9[%c194_233, %c0_234] : memref<440x128xbf16, #tpu.memory_space<vmem>>, vector<192x128xbf16>
    %c2_235 = arith.constant 2 : index
    %c0_236 = arith.constant 0 : index
    %c0_237 = arith.constant 0 : index
    %306 = vector.load %arg4[%c2_235, %c0_236, %c0_237] : memref<9x128x128xbf16, #tpu.memory_space<vmem>>, vector<1x128x128xbf16>
    %307 = vector.shape_cast %306 : vector<1x128x128xbf16> to vector<128x128xbf16>
    %cst_238 = arith.constant dense<0.000000e+00> : vector<192x128xf32>
    %308 = tpu.matmul %305, %307, %cst_238 {dimension_numbers = #tpu.dot_dimension_numbers<[1], [0], [0], [1], [0, 0, 1, 1], [], []>} : vector<192x128xbf16>, vector<128x128xbf16>, vector<192x128xf32> -> vector<192x128xf32>
    %309 = arith.addf %304, %308 : vector<192x128xf32>
    %c216 = arith.constant 216 : index
    %c0_239 = arith.constant 0 : index
    %310 = vector.load %arg9[%c216, %c0_239] : memref<440x128xbf16, #tpu.memory_space<vmem>>, vector<192x128xbf16>
    %c3_240 = arith.constant 3 : index
    %c0_241 = arith.constant 0 : index
    %c0_242 = arith.constant 0 : index
    %311 = vector.load %arg4[%c3_240, %c0_241, %c0_242] : memref<9x128x128xbf16, #tpu.memory_space<vmem>>, vector<1x128x128xbf16>
    %312 = vector.shape_cast %311 : vector<1x128x128xbf16> to vector<128x128xbf16>
    %cst_243 = arith.constant dense<0.000000e+00> : vector<192x128xf32>
    %313 = tpu.matmul %310, %312, %cst_243 {dimension_numbers = #tpu.dot_dimension_numbers<[1], [0], [0], [1], [0, 0, 1, 1], [], []>} : vector<192x128xbf16>, vector<128x128xbf16>, vector<192x128xf32> -> vector<192x128xf32>
    %314 = arith.addf %309, %313 : vector<192x128xf32>
    %c217 = arith.constant 217 : index
    %c0_244 = arith.constant 0 : index
    %315 = vector.load %arg9[%c217, %c0_244] : memref<440x128xbf16, #tpu.memory_space<vmem>>, vector<192x128xbf16>
    %c4_245 = arith.constant 4 : index
    %c0_246 = arith.constant 0 : index
    %c0_247 = arith.constant 0 : index
    %316 = vector.load %arg4[%c4_245, %c0_246, %c0_247] : memref<9x128x128xbf16, #tpu.memory_space<vmem>>, vector<1x128x128xbf16>
    %317 = vector.shape_cast %316 : vector<1x128x128xbf16> to vector<128x128xbf16>
    %cst_248 = arith.constant dense<0.000000e+00> : vector<192x128xf32>
    %318 = tpu.matmul %315, %317, %cst_248 {dimension_numbers = #tpu.dot_dimension_numbers<[1], [0], [0], [1], [0, 0, 1, 1], [], []>} : vector<192x128xbf16>, vector<128x128xbf16>, vector<192x128xf32> -> vector<192x128xf32>
    %319 = arith.addf %314, %318 : vector<192x128xf32>
    %c218 = arith.constant 218 : index
    %c0_249 = arith.constant 0 : index
    %320 = vector.load %arg9[%c218, %c0_249] : memref<440x128xbf16, #tpu.memory_space<vmem>>, vector<192x128xbf16>
    %c5_250 = arith.constant 5 : index
    %c0_251 = arith.constant 0 : index
    %c0_252 = arith.constant 0 : index
    %321 = vector.load %arg4[%c5_250, %c0_251, %c0_252] : memref<9x128x128xbf16, #tpu.memory_space<vmem>>, vector<1x128x128xbf16>
    %322 = vector.shape_cast %321 : vector<1x128x128xbf16> to vector<128x128xbf16>
    %cst_253 = arith.constant dense<0.000000e+00> : vector<192x128xf32>
    %323 = tpu.matmul %320, %322, %cst_253 {dimension_numbers = #tpu.dot_dimension_numbers<[1], [0], [0], [1], [0, 0, 1, 1], [], []>} : vector<192x128xbf16>, vector<128x128xbf16>, vector<192x128xf32> -> vector<192x128xf32>
    %324 = arith.addf %319, %323 : vector<192x128xf32>
    %c240 = arith.constant 240 : index
    %c0_254 = arith.constant 0 : index
    %325 = vector.load %arg9[%c240, %c0_254] : memref<440x128xbf16, #tpu.memory_space<vmem>>, vector<192x128xbf16>
    %c6_255 = arith.constant 6 : index
    %c0_256 = arith.constant 0 : index
    %c0_257 = arith.constant 0 : index
    %326 = vector.load %arg4[%c6_255, %c0_256, %c0_257] : memref<9x128x128xbf16, #tpu.memory_space<vmem>>, vector<1x128x128xbf16>
    %327 = vector.shape_cast %326 : vector<1x128x128xbf16> to vector<128x128xbf16>
    %cst_258 = arith.constant dense<0.000000e+00> : vector<192x128xf32>
    %328 = tpu.matmul %325, %327, %cst_258 {dimension_numbers = #tpu.dot_dimension_numbers<[1], [0], [0], [1], [0, 0, 1, 1], [], []>} : vector<192x128xbf16>, vector<128x128xbf16>, vector<192x128xf32> -> vector<192x128xf32>
    %329 = arith.addf %324, %328 : vector<192x128xf32>
    %c241 = arith.constant 241 : index
    %c0_259 = arith.constant 0 : index
    %330 = vector.load %arg9[%c241, %c0_259] : memref<440x128xbf16, #tpu.memory_space<vmem>>, vector<192x128xbf16>
    %c7_260 = arith.constant 7 : index
    %c0_261 = arith.constant 0 : index
    %c0_262 = arith.constant 0 : index
    %331 = vector.load %arg4[%c7_260, %c0_261, %c0_262] : memref<9x128x128xbf16, #tpu.memory_space<vmem>>, vector<1x128x128xbf16>
    %332 = vector.shape_cast %331 : vector<1x128x128xbf16> to vector<128x128xbf16>
    %cst_263 = arith.constant dense<0.000000e+00> : vector<192x128xf32>
    %333 = tpu.matmul %330, %332, %cst_263 {dimension_numbers = #tpu.dot_dimension_numbers<[1], [0], [0], [1], [0, 0, 1, 1], [], []>} : vector<192x128xbf16>, vector<128x128xbf16>, vector<192x128xf32> -> vector<192x128xf32>
    %334 = arith.addf %329, %333 : vector<192x128xf32>
    %c242 = arith.constant 242 : index
    %c0_264 = arith.constant 0 : index
    %335 = vector.load %arg9[%c242, %c0_264] : memref<440x128xbf16, #tpu.memory_space<vmem>>, vector<192x128xbf16>
    %c8_265 = arith.constant 8 : index
    %c0_266 = arith.constant 0 : index
    %c0_267 = arith.constant 0 : index
    %336 = vector.load %arg4[%c8_265, %c0_266, %c0_267] : memref<9x128x128xbf16, #tpu.memory_space<vmem>>, vector<1x128x128xbf16>
    %337 = vector.shape_cast %336 : vector<1x128x128xbf16> to vector<128x128xbf16>
    %cst_268 = arith.constant dense<0.000000e+00> : vector<192x128xf32>
    %338 = tpu.matmul %335, %337, %cst_268 {dimension_numbers = #tpu.dot_dimension_numbers<[1], [0], [0], [1], [0, 0, 1, 1], [], []>} : vector<192x128xbf16>, vector<128x128xbf16>, vector<192x128xf32> -> vector<192x128xf32>
    %339 = arith.addf %334, %338 : vector<192x128xf32>
    %cst_269 = arith.constant 0.000000e+00 : f32
    %340 = vector.broadcast %cst_269 : f32 to vector<192x128xf32>
    %341 = arith.maximumf %339, %340 : vector<192x128xf32>
    %342 = vector.shape_cast %341 : vector<192x128xf32> to vector<8x24x128xf32>
    %343 = vector.extract_strided_slice %342 {offsets = [0, 0, 0], sizes = [8, 16, 128], strides = [1, 1, 1]} : vector<8x24x128xf32> to vector<8x16x128xf32>
    %c0_270 = arith.constant 0 : index
    %c8_271 = arith.constant 8 : index
    %c0_272 = arith.constant 0 : index
    %c0_273 = arith.constant 0 : index
    %344 = vector.load %arg6[%c0_270, %c8_271, %c0_272, %c0_273] : memref<1x16x16x128xf32, #tpu.memory_space<vmem>>, vector<1x8x16x128xf32>
    %345 = vector.shape_cast %344 : vector<1x8x16x128xf32> to vector<8x16x128xf32>
    %346 = arith.addf %345, %343 : vector<8x16x128xf32>
    %c0_274 = arith.constant 0 : index
    %c8_275 = arith.constant 8 : index
    %c0_276 = arith.constant 0 : index
    %c0_277 = arith.constant 0 : index
    %347 = vector.load %arg7[%c0_274, %c8_275, %c0_276, %c0_277] : memref<1x16x16x128xf32, #tpu.memory_space<vmem>>, vector<1x8x16x128xf32>
    %348 = vector.shape_cast %347 : vector<1x8x16x128xf32> to vector<8x16x128xf32>
    %349 = vector.shape_cast %346 : vector<8x16x128xf32> to vector<1x8x16x128xf32>
    tpu.vector_store %arg7[%c0_274, %c8_275, %c0_276, %c0_277], %349 {strides = array<i32>} : memref<1x16x16x128xf32, #tpu.memory_space<vmem>>, vector<1x8x16x128xf32>,
    return
  }
  func.func @transform_1(%arg0: i32, %arg1: i32) -> (i32, i32, i32) {
    %c0_i32 = arith.constant 0 : i32
    %c0_i32_0 = arith.constant 0 : i32
    %c0_i32_1 = arith.constant 0 : i32
    %c0_i32_2 = arith.constant 0 : i32
    return %c0_i32, %c0_i32_0, %c0_i32_1 : i32, i32, i32
  }
  func.func @transform_2(%arg0: i32, %arg1: i32) -> (i32, i32, i32) {
    %c0_i32 = arith.constant 0 : i32
    %c0_i32_0 = arith.constant 0 : i32
    %c0_i32_1 = arith.constant 0 : i32
    %c0_i32_2 = arith.constant 0 : i32
    return %c0_i32, %c0_i32_0, %c0_i32_1 : i32, i32, i32
  }
  func.func @transform_3(%arg0: i32, %arg1: i32) -> (i32, i32) {
    %c0_i32 = arith.constant 0 : i32
    %c0_i32_0 = arith.constant 0 : i32
    %c0_i32_1 = arith.constant 0 : i32
    return %c0_i32, %c0_i32_0 : i32, i32
  }
  func.func @transform_4(%arg0: i32, %arg1: i32) -> (i32, i32, i32, i32) {
    %c0_i32 = arith.constant 0 : i32
    %c0_i32_0 = arith.constant 0 : i32
    %c0_i32_1 = arith.constant 0 : i32
    return %arg0, %arg1, %c0_i32, %c0_i32_0 : i32, i32, i32, i32
  }
  func.func @transform_5(%arg0: i32, %arg1: i32) -> (i32, i32, i32, i32) {
    %c0_i32 = arith.constant 0 : i32
    %c0_i32_0 = arith.constant 0 : i32
    %c0_i32_1 = arith.constant 0 : i32
    return %arg0, %arg1, %c0_i32, %c0_i32_0 : i32, i32, i32, i32
  }
}

</mosaic_0001>

<llo_original>
// kernel: preact_residual_conv_unit.1
$region0: #{preact_residual_conv_unit.1}
  #allocation0 [shape = 'u32[]', space=smem, size = 0x4, offset = 0x4, fixed_abs, tag = 'smem constant byte address 0x4 - core index']
  #allocation1 [shape = 'u32[72,128]{1,0:T(1,128)}', space=vmem, size = 0x9000, scoped, tag = 'internal scratch']
  #allocation2 [shape = 'bf16[2,488,128]{2,1,0:T(8,128)(2,1)}', space=vmem, size = 0x3d000, scoped, tag = 'scratch operand']
  #allocation3 [shape = 'bf16[440,128]{1,0:T(8,128)(2,1)}', space=vmem, size = 0x1b800, scoped, tag = 'scratch operand']
  #allocation4 [shape = 's32[2]{0}', space=sflag, size = 0x8, scoped, tag = 'scratch operand']
  #allocation7 [shape = 's32[]', space=sflag, size = 0x4, offset = 0, fixed_abs, tag = 'sflag constant byte address 0x0 - dummy sync flag']
  #allocation8 [shape = 's32[]', space=sflag, size = 0x4, offset = 0, fixed_abs, tag = 'sflag constant byte address 0x0 - dummy sync flag']
  %s0 = inlined_call_operand.vmem [shape: bf16[2,480,128], index: 0, kind: input, shape index: {}]
  %s1 = inlined_call_operand.vmem [shape: bf16[9,128,128], index: 1, kind: input, shape index: {}]
  %s2 = inlined_call_operand.vmem [shape: bf16[9,128,128], index: 2, kind: input, shape index: {}]
  %s3 = inlined_call_operand.vmem [shape: f32[144,1], index: 3, kind: input, shape index: {}]
  %s4 = inlined_call_operand.vmem [shape: f32[2,16,16,128], index: 4, kind: input, shape index: {}]
  %s5 = inlined_call_operand.hbm [shape: f32[2,16,16,128], index: 5, kind: output, shape index: {}]
  %s6 = sld [smem:[#allocation0]]
  $region99: #{preact_residual_conv_unit.1} parent=0
    _
  %s8 = ssub.s32 1, %s6
  %s9 = scalar_select 0, %s8, %s6
  $region1: #{preact_residual_conv_unit.1} parent=0
    #allocation5 [shape = 'u8[262144]{0}', space=vmem, size = 0x40000, scoped, tag = 'output window, operand 0']
    #allocation6 [shape = 's32[2]{0}', space=sflag, size = 0x8, scoped, tag = 'scoped memory for preact_residual_conv_unit.1']
    %10 = vsyncpa [#allocation6], 0
    %s11 = scalar_lea.sflag [#allocation6], 1
    %12 = vsyncpa %s11, 0
    loop: start=0, step=1, limit=4
    $region2: #{preact_residual_conv_unit.1} parent=1 // loop_pre_header
      _
    $region3: #{preact_residual_conv_unit.1} parent=1 // loop_header
      %s14 = sphi 0, %s18
      %p15 = scmp.ge.s32.totalorder %s14, 4
      %s21 = sphi 0, %s33
      %s22 = sphi 0, %s29
      %s23 = sphi 0, %s21
      %s24 = sphi 0, %s22
      %s25 = sphi 0, %s23
      %s26 = sphi 0, %s24
      %s34 = sphi 0, %s34
      %s36 = sphi 0, %s34
      %s37 = sphi 0, %s36
      %s51 = sphi 0, %s37
      %s55 = sphi 0, %s55
      %s57 = sphi 0, %s55
      %s58 = sphi 0, %s57
      %s72 = sphi 0, %s58
      %s76 = sphi 0, %s76
      %s78 = sphi 0, %s76
      %s79 = sphi 0, %s78
      %s93 = sphi 0, %s79
      %s101 = sphi 0, %s103
      %s104 = sphi 0, %s101
      %s105 = sphi 0, %s104
      %s121 = sphi 0, %s105
      %s129 = sphi 0, %s131
      %s132 = sphi 0, %s129
      %s133 = sphi 0, %s132
      %s149 = sphi 0, %s133
    $region4: #{preact_residual_conv_unit.1} parent=1 // loop_header_branch
      %17 = sbr.rel (%p15) target = $region8
    $region5: #{preact_residual_conv_unit.1} parent=1 // loop_body
      %s19 = ssub.s32 %s14, 1
      %s20 = ssub.s32 %s14, 2
      %s27 = sadd.s32 1, %s22
      %p28 = scmp.ge.s32.totalorder %s27, 1
      %s29 = scalar_select %p28, 0, %s27
      %s30 = sadd.s32 1, %s21
      %s31 = scalar_select %p28, %s30, %s21
      %p32 = scmp.ge.s32.totalorder %s31, 2
      %s33 = scalar_select %p32, 0, %s31
      %s35 = sadd.s32 %s34, 1
      %p38 = scmp.eq.s32.totalorder %s14, 1
      %p39 = scmp.ne.s32.totalorder %s34, %s36
      %p40 = scmp.eq.s32.totalorder %s14, 0
      %p41 = por %p39, %p40
      %p42 = scmp.ne.s32.totalorder %s34, %s36
      %p43 = scmp.eq.s32.totalorder %s19, 1
      %p44 = por %p42, %p43
      %p45 = scmp.ne.s32.totalorder %s36, %s37
      %p46 = scmp.eq.s32.totalorder %s19, 0
      %p47 = por %p45, %p46
      %p48 = scmp.ne.s32.totalorder %s36, %s37
      %p49 = scmp.eq.s32.totalorder %s20, 1
      %p50 = por %p48, %p49
      %p52 = scmp.ne.s32.totalorder %s37, %s51
      %p53 = scmp.eq.s32.totalorder %s20, 0
      %p54 = por %p52, %p53
      %s56 = sadd.s32 %s55, 1
      %p59 = scmp.eq.s32.totalorder %s14, 1
      %p60 = scmp.ne.s32.totalorder %s55, %s57
      %p61 = scmp.eq.s32.totalorder %s14, 0
      %p62 = por %p60, %p61
      %p63 = scmp.ne.s32.totalorder %s55, %s57
      %p64 = scmp.eq.s32.totalorder %s19, 1
      %p65 = por %p63, %p64
      %p66 = scmp.ne.s32.totalorder %s57, %s58
      %p67 = scmp.eq.s32.totalorder %s19, 0
      %p68 = por %p66, %p67
      %p69 = scmp.ne.s32.totalorder %s57, %s58
      %p70 = scmp.eq.s32.totalorder %s20, 1
      %p71 = por %p69, %p70
      %p73 = scmp.ne.s32.totalorder %s58, %s72
      %p74 = scmp.eq.s32.totalorder %s20, 0
      %p75 = por %p73, %p74
      %s77 = sadd.s32 %s76, 1
      %p80 = scmp.eq.s32.totalorder %s14, 1
      %p81 = scmp.ne.s32.totalorder %s76, %s78
      %p82 = scmp.eq.s32.totalorder %s14, 0
      %p83 = por %p81, %p82
      %p84 = scmp.ne.s32.totalorder %s76, %s78
      %p85 = scmp.eq.s32.totalorder %s19, 1
      %p86 = por %p84, %p85
      %p87 = scmp.ne.s32.totalorder %s78, %s79
      %p88 = scmp.eq.s32.totalorder %s19, 0
      %p89 = por %p87, %p88
      %p90 = scmp.ne.s32.totalorder %s78, %s79
      %p91 = scmp.eq.s32.totalorder %s20, 1
      %p92 = por %p90, %p91
      %p94 = scmp.ne.s32.totalorder %s79, %s93
      %p95 = scmp.eq.s32.totalorder %s20, 0
      %p96 = por %p94, %p95
      %s97 = ssub.s32 %s21, %s33
      %s98 = ssub.s32 %s22, %s29
      %s99 = sor.u32 %s97, %s98
      %p100 = scmp.eq.s32.totalorder %s99, 0
      %s102 = sadd.s32 %s101, 1
      %s103 = scalar_select %p100, %s101, %s102
      %p106 = pneg %p100
      %p107 = scmp.eq.s32.totalorder %s14, 1
      %p108 = por %p106, %p107
      %p109 = scmp.ne.s32.totalorder %s101, %s104
      %p110 = scmp.eq.s32.totalorder %s14, 0
      %p111 = por %p109, %p110
      %p112 = scmp.ne.s32.totalorder %s101, %s104
      %p113 = scmp.eq.s32.totalorder %s19, 1
      %p114 = por %p112, %p113
      %p115 = scmp.ne.s32.totalorder %s104, %s105
      %p116 = scmp.eq.s32.totalorder %s19, 0
      %p117 = por %p115, %p116
      %p118 = scmp.ne.s32.totalorder %s104, %s105
      %p119 = scmp.eq.s32.totalorder %s20, 1
      %p120 = por %p118, %p119
      %p122 = scmp.ne.s32.totalorder %s105, %s121
      %p123 = scmp.eq.s32.totalorder %s20, 0
      %p124 = por %p122, %p123
      %s125 = ssub.s32 %s21, %s33
      %s126 = ssub.s32 %s22, %s29
      %s127 = sor.u32 %s125, %s126
      %p128 = scmp.eq.s32.totalorder %s127, 0
      %s130 = sadd.s32 %s129, 1
      %s131 = scalar_select %p128, %s129, %s130
      %p134 = pneg %p128
      %p135 = scmp.eq.s32.totalorder %s14, 1
      %p136 = por %p134, %p135
      %p137 = scmp.ne.s32.totalorder %s129, %s132
      %p138 = scmp.eq.s32.totalorder %s14, 0
      %p139 = por %p137, %p138
      %p140 = scmp.ne.s32.totalorder %s129, %s132
      %p141 = scmp.eq.s32.totalorder %s19, 1
      %p142 = por %p140, %p141
      %p143 = scmp.ne.s32.totalorder %s132, %s133
      %p144 = scmp.eq.s32.totalorder %s19, 0
      %p145 = por %p143, %p144
      %p146 = scmp.ne.s32.totalorder %s132, %s133
      %p147 = scmp.eq.s32.totalorder %s20, 1
      %p148 = por %p146, %p147
      %p150 = scmp.ne.s32.totalorder %s133, %s149
      %p151 = scmp.eq.s32.totalorder %s20, 0
      %p152 = por %p150, %p151
      %p153 = scmp.le.s32.totalorder 1, %s14
      %p154 = scmp.lt.s32.totalorder %s14, 3
      %p155 = pnand %p153, %p154
      %p156 = pneg %p155
      // Predicated region
      $region9: #{preact_residual_conv_unit.1} parent=5 // pred_check
        _
      $region10: #{preact_residual_conv_unit.1} parent=5 // pred_check_branch
        %158 = sbr.rel (%p155) target = $region12
      $region11: #{preact_residual_conv_unit.1} parent=5 // pred_region
        %s159 = ssub.s32 %s14, 1
        // Predicated region
        $region13: #{preact_residual_conv_unit.1} parent=11 // pred_check
          %p160 = pneg %p47
        $region14: #{preact_residual_conv_unit.1} parent=11 // pred_check_branch
          %162 = sbr.rel (%p160) target = $region16
        $region15: #{preact_residual_conv_unit.1} parent=11 // pred_region
          _
        $region16: #{preact_residual_conv_unit.1} parent=11 // pred_fallthru
          _
        // Predicated region
        $region17: #{preact_residual_conv_unit.1} parent=11 // pred_check
          %p163 = pneg %p68
        $region18: #{preact_residual_conv_unit.1} parent=11 // pred_check_branch
          %165 = sbr.rel (%p163) target = $region20
        $region19: #{preact_residual_conv_unit.1} parent=11 // pred_region
          _
        $region20: #{preact_residual_conv_unit.1} parent=11 // pred_fallthru
          _
        // Predicated region
        $region21: #{preact_residual_conv_unit.1} parent=11 // pred_check
          %p166 = pneg %p89
        $region22: #{preact_residual_conv_unit.1} parent=11 // pred_check_branch
          %168 = sbr.rel (%p166) target = $region24
        $region23: #{preact_residual_conv_unit.1} parent=11 // pred_region
          _
        $region24: #{preact_residual_conv_unit.1} parent=11 // pred_fallthru
          _
      $region12: #{preact_residual_conv_unit.1} parent=5 // pred_fallthru
        _
      %p169 = scmp.lt.s32.totalorder %s14, 2
      // Predicated region
      $region25: #{preact_residual_conv_unit.1} parent=5 // pred_check
        %p170 = pneg %p169
      $region26: #{preact_residual_conv_unit.1} parent=5 // pred_check_branch
        %172 = sbr.rel (%p170) target = $region28
      $region27: #{preact_residual_conv_unit.1} parent=5 // pred_region
        // Predicated region
        $region29: #{preact_residual_conv_unit.1} parent=27 // pred_check
          %p173 = pneg %p111
        $region30: #{preact_residual_conv_unit.1} parent=27 // pred_check_branch
          %175 = sbr.rel (%p173) target = $region32
        $region31: #{preact_residual_conv_unit.1} parent=27 // pred_region
          %s176 = smul.u32 16, %s22
          %p177 = scmp.lt.s32.totalorder %s21, 1
          %s178 = scalar_select %p177, %s21, 1
          %p179 = scmp.lt.s32.totalorder %s176, 15
          %s180 = scalar_select %p179, %s176, 15
          %s181 = smul.addr %s180, 2
          %s182 = smul.addr %s178, 32
          %s183 = sadd.s32 %s181, %s182
          %s184 = smul.addr %s183, 8
          %s185 = scalar_lea.vmem %s4, %s184
          %s186 = smul.u32 16, %s22
        $region32: #{preact_residual_conv_unit.1} parent=27 // pred_fallthru
          _
      $region28: #{preact_residual_conv_unit.1} parent=5 // pred_fallthru
        _
      %p187 = scmp.le.s32.totalorder 1, %s14
      %p188 = scmp.lt.s32.totalorder %s14, 3
      %p189 = pnand %p187, %p188
      %p190 = pneg %p189
      // Predicated region
      $region33: #{preact_residual_conv_unit.1} parent=5 // pred_check
        _
      $region34: #{preact_residual_conv_unit.1} parent=5 // pred_check_branch
        %192 = sbr.rel (%p189) target = $region36
      $region35: #{preact_residual_conv_unit.1} parent=5 // pred_region
        %s193 = ssub.s32 %s14, 1
        %p194 = pneg %p47
        %p195 = pneg %p44
        %p196 = pneg %p68
        %p197 = pneg %p65
        %p198 = pneg %p89
        %p199 = pneg %p86
        %s200 = smul.u32 16, %s24
        %p201 = scmp.lt.s32.totalorder %s23, 1
        %s202 = scalar_select %p201, %s23, 1
        %p203 = scmp.lt.s32.totalorder %s200, 15
        %s204 = scalar_select %p203, %s200, 15
        %s205 = smul.addr %s204, 2
        %s206 = smul.addr %s202, 32
        %s207 = sadd.s32 %s205, %s206
        %s208 = smul.addr %s207, 8
        %s209 = scalar_lea.vmem %s4, %s208
        %p210 = pneg %p117
        %p211 = pneg %p114
        %p212 = pneg %p145
        %p213 = pneg %p142
        %s214 = sand.u32 %s132, 1
        %s215 = scalar_lea.sflag [#allocation6], %s214
        %s216 = sand.u32 %s132, 1
        %s217 = smul.addr %s216, 256
        %s218 = scalar_lea.vmem [#allocation5], %s217
        %s219 = smul.u32 16, %s24
        %p220 = scmp.lt.s32.totalorder %s23, 1
        %s221 = scalar_select %p220, %s23, 1
        %p222 = scmp.lt.s32.totalorder %s219, 15
        %s223 = scalar_select %p222, %s219, 15
        %s224 = smul.addr %s223, 2
        %s225 = smul.addr %s221, 32
        %s226 = sadd.s32 %s224, %s225
        %s227 = smul.addr %s226, 8
        %s228 = scalar_lea.vmem %s4, %s227
        %s229 = smul.u32 16, %s24
        %s230 = smul.u32 16, %s24
        %p232 = scmp.lt.s32.totalorder %s24, 0
        %s233 = ssub.s32 0, %s24
        %s234 = scalar_select %p232, %s233, %s24
        %s235 = sand.u32 %s234, 1
        %s236 = ssub.s32 0, %s235
        %s237 = scalar_select %p232, %s236, %s235
        %p238 = scmp.ne.s32.totalorder %s237, 0
        %p239 = scmp.lt.s32.totalorder %s237, 0
        %p240 = pnand %p239, %p238
        %p241 = pneg %p240
        %s242 = sadd.s32 %s237, 2
        %s243 = scalar_select %p241, %s242, %s237
        %p244 = scmp.eq.s32.totalorder %s24, 0
        // Predicated region
        $region37: #{preact_residual_conv_unit.1} parent=35 // pred_check
          %p245 = pneg %p244
        $region38: #{preact_residual_conv_unit.1} parent=35 // pred_check_branch
          %247 = sbr.rel (%p245) target = $region40
        $region39: #{preact_residual_conv_unit.1} parent=35 // pred_region
          %s248 = smul.u32 %s24, 384
          %s249 = sshra.s32 %s248, 3
          %s250 = sand.u32 %s248, 7
          %s251 = smul.u32 %s23, 60
          %s252 = sadd.s32 %s249, %s251
          %s253 = smul.addr %s252, 4
          %s254 = scalar_lea.vmem %s0, %s253
          %s255 = smul.u32 %s243, 61
          %s256 = smul.addr %s255, 4
          %s257 = scalar_lea.vmem [#allocation2], %s256
          %s258 = scalar_lea.sflag [#allocation4], %s243
          // Predicated region
          $region41: #{preact_residual_conv_unit.1} parent=39 // pred_check
            _
          $region42: #{preact_residual_conv_unit.1} parent=39 // pred_check_branch
            %260 = sbr.rel (0) target = $region44
          $region43: #{preact_residual_conv_unit.1} parent=39 // pred_region
            loop: start=0, step=1, limit=1
            $region45: #{preact_residual_conv_unit.1} parent=43 // loop_pre_header
              _
            $region46: #{preact_residual_conv_unit.1} parent=43 // loop_header
              %s262 = sphi 0, %s266
              %p263 = scmp.ge.s32.totalorder %s262, 1
              %s267 = sphi %s254, %s254
              %s268 = sphi %s257, %s257
            $region47: #{preact_residual_conv_unit.1} parent=43 // loop_header_branch
              %265 = sbr.rel (%p263) target = $region51
            $region48: #{preact_residual_conv_unit.1} parent=43 // loop_body
              %v269 = vld [vmem:[%s267] sm:$0xff]
              %270 = vst [vmem:[%s268] sm:$0xff] %v269
              %v271 = vld [vmem:[%s267 + $0x8] sm:$0xff]
              %272 = vst [vmem:[%s268 + $0x8] sm:$0xff] %v271
              %v273 = vld [vmem:[%s267 + $0x10] sm:$0xff]
              %274 = vst [vmem:[%s268 + $0x10] sm:$0xff] %v273
              %v275 = vld [vmem:[%s267 + $0x18] sm:$0xff]
              %276 = vst [vmem:[%s268 + $0x18] sm:$0xff] %v275
              %v277 = vld [vmem:[%s267 + $0x20] sm:$0xff]
              %278 = vst [vmem:[%s268 + $0x20] sm:$0xff] %v277
              %v279 = vld [vmem:[%s267 + $0x28] sm:$0xff]
              %280 = vst [vmem:[%s268 + $0x28] sm:$0xff] %v279
              %v281 = vld [vmem:[%s267 + $0x30] sm:$0xff]
              %282 = vst [vmem:[%s268 + $0x30] sm:$0xff] %v281
              %v283 = vld [vmem:[%s267 + $0x38] sm:$0xff]
              %284 = vst [vmem:[%s268 + $0x38] sm:$0xff] %v283
              %v285 = vld [vmem:[%s267 + $0x40] sm:$0xff]
              %286 = vst [vmem:[%s268 + $0x40] sm:$0xff] %v285
              %v287 = vld [vmem:[%s267 + $0x48] sm:$0xff]
              %288 = vst [vmem:[%s268 + $0x48] sm:$0xff] %v287
              %v289 = vld [vmem:[%s267 + $0x50] sm:$0xff]
              %290 = vst [vmem:[%s268 + $0x50] sm:$0xff] %v289
              %v291 = vld [vmem:[%s267 + $0x58] sm:$0xff]
              %292 = vst [vmem:[%s268 + $0x58] sm:$0xff] %v291
              %v293 = vld [vmem:[%s267 + $0x60] sm:$0xff]
              %294 = vst [vmem:[%s268 + $0x60] sm:$0xff] %v293
              %v295 = vld [vmem:[%s267 + $0x68] sm:$0xff]
              %296 = vst [vmem:[%s268 + $0x68] sm:$0xff] %v295
              %v297 = vld [vmem:[%s267 + $0x70] sm:$0xff]
              %298 = vst [vmem:[%s268 + $0x70] sm:$0xff] %v297
              %v299 = vld [vmem:[%s267 + $0x78] sm:$0xff]
              %300 = vst [vmem:[%s268 + $0x78] sm:$0xff] %v299
              %v301 = vld [vmem:[%s267 + $0x80] sm:$0xff]
              %302 = vst [vmem:[%s268 + $0x80] sm:$0xff] %v301
              %v303 = vld [vmem:[%s267 + $0x88] sm:$0xff]
              %304 = vst [vmem:[%s268 + $0x88] sm:$0xff] %v303
              %v305 = vld [vmem:[%s267 + $0x90] sm:$0xff]
              %306 = vst [vmem:[%s268 + $0x90] sm:$0xff] %v305
              %v307 = vld [vmem:[%s267 + $0x98] sm:$0xff]
              %308 = vst [vmem:[%s268 + $0x98] sm:$0xff] %v307
              %v309 = vld [vmem:[%s267 + $0xa0] sm:$0xff]
              %310 = vst [vmem:[%s268 + $0xa0] sm:$0xff] %v309
              %v311 = vld [vmem:[%s267 + $0xa8] sm:$0xff]
              %312 = vst [vmem:[%s268 + $0xa8] sm:$0xff] %v311
              %v313 = vld [vmem:[%s267 + $0xb0] sm:$0xff]
              %314 = vst [vmem:[%s268 + $0xb0] sm:$0xff] %v313
              %v315 = vld [vmem:[%s267 + $0xb8] sm:$0xff]
              %316 = vst [vmem:[%s268 + $0xb8] sm:$0xff] %v315
              %v317 = vld [vmem:[%s267 + $0xc0] sm:$0xff]
              %318 = vst [vmem:[%s268 + $0xc0] sm:$0xff] %v317
              %v319 = vld [vmem:[%s267 + $0xc8] sm:$0xff]
              %320 = vst [vmem:[%s268 + $0xc8] sm:$0xff] %v319
              %v321 = vld [vmem:[%s267 + $0xd0] sm:$0xff]
              %322 = vst [vmem:[%s268 + $0xd0] sm:$0xff] %v321
              %v323 = vld [vmem:[%s267 + $0xd8] sm:$0xff]
              %324 = vst [vmem:[%s268 + $0xd8] sm:$0xff] %v323
              %v325 = vld [vmem:[%s267 + $0xe0] sm:$0xff]
              %326 = vst [vmem:[%s268 + $0xe0] sm:$0xff] %v325
              %v327 = vld [vmem:[%s267 + $0xe8] sm:$0xff]
              %328 = vst [vmem:[%s268 + $0xe8] sm:$0xff] %v327
            $region49: #{preact_residual_conv_unit.1} parent=43 // loop_footer
              %s266 = sadd.s32 1, %s262
            $region50: #{preact_residual_conv_unit.1} parent=43 // loop_footer_branch
              %261 = sbr.rel target = $region46
            $region51: #{preact_residual_conv_unit.1} parent=43 // loop_exit
              _
          $region44: #{preact_residual_conv_unit.1} parent=39 // pred_fallthru
            _
          // Predicated region
          $region52: #{preact_residual_conv_unit.1} parent=39 // pred_check
            _
          $region53: #{preact_residual_conv_unit.1} parent=39 // pred_check_branch
            %330 = sbr.rel target = $region55
          $region54: #{preact_residual_conv_unit.1} parent=39 // pred_region
            _
          $region55: #{preact_residual_conv_unit.1} parent=39 // pred_fallthru
            _
          // Predicated region
          $region56: #{preact_residual_conv_unit.1} parent=39 // pred_check
            _
          $region57: #{preact_residual_conv_unit.1} parent=39 // pred_check_branch
            %333 = sbr.rel (0) target = $region59
          $region58: #{preact_residual_conv_unit.1} parent=39 // pred_region
            %334 = vsyncadd %s258, 3840
          $region59: #{preact_residual_conv_unit.1} parent=39 // pred_fallthru
            _
        $region40: #{preact_residual_conv_unit.1} parent=35 // pred_fallthru
          _
        %s335 = smul.u32 %s243, 61
        %s336 = smul.addr %s335, 4
        %s337 = scalar_lea.vmem [#allocation2], %s336
        %s338 = scalar_lea.sflag [#allocation4], %s243
        %s339 = smul.u32 4, 60
        %s340 = smul.u32 %s339, 1
        %s341 = sshll.u32 %s340, 4
        %342 = dma.done %s338, %s341
        %s343 = sadd.s32 %s24, 1
        %p344 = scmp.lt.s32.totalorder %s343, 1
        // Predicated region
        $region60: #{preact_residual_conv_unit.1} parent=35 // pred_check
          %p345 = pneg %p344
        $region61: #{preact_residual_conv_unit.1} parent=35 // pred_check_branch
          %347 = sbr.rel (%p345) target = $region63
        $region62: #{preact_residual_conv_unit.1} parent=35 // pred_region
          %s348 = ssub.s32 1, %s243
          %s349 = smul.u32 %s343, 384
          %s350 = sshra.s32 %s349, 3
          %s351 = sand.u32 %s349, 7
          %s352 = smul.u32 %s23, 60
          %s353 = sadd.s32 %s350, %s352
          %s354 = smul.addr %s353, 4
          %s355 = scalar_lea.vmem %s0, %s354
          %s356 = smul.u32 %s348, 61
          %s357 = smul.addr %s356, 4
          %s358 = scalar_lea.vmem [#allocation2], %s357
          %s359 = scalar_lea.sflag [#allocation4], %s348
          // Predicated region
          $region64: #{preact_residual_conv_unit.1} parent=62 // pred_check
            _
          $region65: #{preact_residual_conv_unit.1} parent=62 // pred_check_branch
            %361 = sbr.rel (0) target = $region67
          $region66: #{preact_residual_conv_unit.1} parent=62 // pred_region
            loop: start=0, step=1, limit=1
            $region68: #{preact_residual_conv_unit.1} parent=66 // loop_pre_header
              _
            $region69: #{preact_residual_conv_unit.1} parent=66 // loop_header
              %s363 = sphi 0, %s367
              %p364 = scmp.ge.s32.totalorder %s363, 1
              %s368 = sphi %s355, %s355
              %s369 = sphi %s358, %s358
            $region70: #{preact_residual_conv_unit.1} parent=66 // loop_header_branch
              %366 = sbr.rel (%p364) target = $region74
            $region71: #{preact_residual_conv_unit.1} parent=66 // loop_body
              %v370 = vld [vmem:[%s368] sm:$0xff]
              %371 = vst [vmem:[%s369] sm:$0xff] %v370
              %v372 = vld [vmem:[%s368 + $0x8] sm:$0xff]
              %373 = vst [vmem:[%s369 + $0x8] sm:$0xff] %v372
              %v374 = vld [vmem:[%s368 + $0x10] sm:$0xff]
              %375 = vst [vmem:[%s369 + $0x10] sm:$0xff] %v374
              %v376 = vld [vmem:[%s368 + $0x18] sm:$0xff]
              %377 = vst [vmem:[%s369 + $0x18] sm:$0xff] %v376
              %v378 = vld [vmem:[%s368 + $0x20] sm:$0xff]
              %379 = vst [vmem:[%s369 + $0x20] sm:$0xff] %v378
              %v380 = vld [vmem:[%s368 + $0x28] sm:$0xff]
              %381 = vst [vmem:[%s369 + $0x28] sm:$0xff] %v380
              %v382 = vld [vmem:[%s368 + $0x30] sm:$0xff]
              %383 = vst [vmem:[%s369 + $0x30] sm:$0xff] %v382
              %v384 = vld [vmem:[%s368 + $0x38] sm:$0xff]
              %385 = vst [vmem:[%s369 + $0x38] sm:$0xff] %v384
              %v386 = vld [vmem:[%s368 + $0x40] sm:$0xff]
              %387 = vst [vmem:[%s369 + $0x40] sm:$0xff] %v386
              %v388 = vld [vmem:[%s368 + $0x48] sm:$0xff]
              %389 = vst [vmem:[%s369 + $0x48] sm:$0xff] %v388
              %v390 = vld [vmem:[%s368 + $0x50] sm:$0xff]
              %391 = vst [vmem:[%s369 + $0x50] sm:$0xff] %v390
              %v392 = vld [vmem:[%s368 + $0x58] sm:$0xff]
              %393 = vst [vmem:[%s369 + $0x58] sm:$0xff] %v392
              %v394 = vld [vmem:[%s368 + $0x60] sm:$0xff]
              %395 = vst [vmem:[%s369 + $0x60] sm:$0xff] %v394
              %v396 = vld [vmem:[%s368 + $0x68] sm:$0xff]
              %397 = vst [vmem:[%s369 + $0x68] sm:$0xff] %v396
              %v398 = vld [vmem:[%s368 + $0x70] sm:$0xff]
              %399 = vst [vmem:[%s369 + $0x70] sm:$0xff] %v398
              %v400 = vld [vmem:[%s368 + $0x78] sm:$0xff]
              %401 = vst [vmem:[%s369 + $0x78] sm:$0xff] %v400
              %v402 = vld [vmem:[%s368 + $0x80] sm:$0xff]
              %403 = vst [vmem:[%s369 + $0x80] sm:$0xff] %v402
              %v404 = vld [vmem:[%s368 + $0x88] sm:$0xff]
              %405 = vst [vmem:[%s369 + $0x88] sm:$0xff] %v404
              %v406 = vld [vmem:[%s368 + $0x90] sm:$0xff]
              %407 = vst [vmem:[%s369 + $0x90] sm:$0xff] %v406
              %v408 = vld [vmem:[%s368 + $0x98] sm:$0xff]
              %409 = vst [vmem:[%s369 + $0x98] sm:$0xff] %v408
              %v410 = vld [vmem:[%s368 + $0xa0] sm:$0xff]
              %411 = vst [vmem:[%s369 + $0xa0] sm:$0xff] %v410
              %v412 = vld [vmem:[%s368 + $0xa8] sm:$0xff]
              %413 = vst [vmem:[%s369 + $0xa8] sm:$0xff] %v412
              %v414 = vld [vmem:[%s368 + $0xb0] sm:$0xff]
              %415 = vst [vmem:[%s369 + $0xb0] sm:$0xff] %v414
              %v416 = vld [vmem:[%s368 + $0xb8] sm:$0xff]
              %417 = vst [vmem:[%s369 + $0xb8] sm:$0xff] %v416
              %v418 = vld [vmem:[%s368 + $0xc0] sm:$0xff]
              %419 = vst [vmem:[%s369 + $0xc0] sm:$0xff] %v418
              %v420 = vld [vmem:[%s368 + $0xc8] sm:$0xff]
              %421 = vst [vmem:[%s369 + $0xc8] sm:$0xff] %v420
              %v422 = vld [vmem:[%s368 + $0xd0] sm:$0xff]
              %423 = vst [vmem:[%s369 + $0xd0] sm:$0xff] %v422
              %v424 = vld [vmem:[%s368 + $0xd8] sm:$0xff]
              %425 = vst [vmem:[%s369 + $0xd8] sm:$0xff] %v424
              %v426 = vld [vmem:[%s368 + $0xe0] sm:$0xff]
              %427 = vst [vmem:[%s369 + $0xe0] sm:$0xff] %v426
              %v428 = vld [vmem:[%s368 + $0xe8] sm:$0xff]
              %429 = vst [vmem:[%s369 + $0xe8] sm:$0xff] %v428
            $region72: #{preact_residual_conv_unit.1} parent=66 // loop_footer
              %s367 = sadd.s32 1, %s363
            $region73: #{preact_residual_conv_unit.1} parent=66 // loop_footer_branch
              %362 = sbr.rel target = $region69
            $region74: #{preact_residual_conv_unit.1} parent=66 // loop_exit
              _
          $region67: #{preact_residual_conv_unit.1} parent=62 // pred_fallthru
            _
          // Predicated region
          $region75: #{preact_residual_conv_unit.1} parent=62 // pred_check
            _
          $region76: #{preact_residual_conv_unit.1} parent=62 // pred_check_branch
            %431 = sbr.rel target = $region78
          $region77: #{preact_residual_conv_unit.1} parent=62 // pred_region
            _
          $region78: #{preact_residual_conv_unit.1} parent=62 // pred_fallthru
            _
          // Predicated region
          $region79: #{preact_residual_conv_unit.1} parent=62 // pred_check
            _
          $region80: #{preact_residual_conv_unit.1} parent=62 // pred_check_branch
            %434 = sbr.rel (0) target = $region82
          $region81: #{preact_residual_conv_unit.1} parent=62 // pred_region
            %435 = vsyncadd %s359, 3840
          $region82: #{preact_residual_conv_unit.1} parent=62 // pred_fallthru
            _
        $region63: #{preact_residual_conv_unit.1} parent=35 // pred_fallthru
          _
        %436 = vst [vmem:[%s337 + $0xf0] sm:$0xf] 0
        %v437 = vld [vmem:[%s3] sm:$0xff]
        %v438 = vld [vmem:[%s3 + $0x8] sm:$0xff]
        %v439 = vld [vmem:[%s3 + $0x10] sm:$0xff]
        %v440 = vld [vmem:[%s3 + $0x18] sm:$0xff]
        %v441 = vld [vmem:[%s3 + $0x20] sm:$0xff]
        %v442 = vld [vmem:[%s3 + $0x28] sm:$0xff]
        %v443 = vld [vmem:[%s3 + $0x30] sm:$0xff]
        %v444 = vld [vmem:[%s3 + $0x38] sm:$0xff]
        %v445 = vld [vmem:[%s3 + $0x40] sm:$0xff]
        %v446 = vld [vmem:[%s3 + $0x48] sm:$0xff]
        %v447 = vld [vmem:[%s3 + $0x50] sm:$0xff]
        %v448 = vld [vmem:[%s3 + $0x58] sm:$0xff]
        %v449 = vld [vmem:[%s3 + $0x60] sm:$0xff]
        %v450 = vld [vmem:[%s3 + $0x68] sm:$0xff]
        %v451 = vld [vmem:[%s3 + $0x70] sm:$0xff]
        %v452 = vld [vmem:[%s3 + $0x78] sm:$0xff]
        %v453 = vld [vmem:[%s3 + $0x80] sm:$0xff]
        %v454 = vld [vmem:[%s3 + $0x88] sm:$0xff]
        %v455 = vld [vmem:[%s337] sm:$0xf]
        %v456 = vld [vmem:[%s337 + $0x4] sm:$0xf]
        %v457 = vld [vmem:[%s337 + $0x8] sm:$0xf]
        %v458 = vld [vmem:[%s337 + $0xc] sm:$0xf]
        %v459 = vld [vmem:[%s337 + $0x10] sm:$0xf]
        %v460 = vld [vmem:[%s337 + $0x14] sm:$0xf]
        %v461 = vld [vmem:[%s337 + $0x18] sm:$0xf]
        %v462 = vld [vmem:[%s337 + $0x1c] sm:$0xf]
        %v463 = vld [vmem:[%s337 + $0x20] sm:$0xf]
        %v464 = vld [vmem:[%s337 + $0x24] sm:$0xf]
        %v465 = vld [vmem:[%s337 + $0x28] sm:$0xf]
        %v466 = vld [vmem:[%s337 + $0x2c] sm:$0xf]
        %v467 = vld [vmem:[%s337 + $0x30] sm:$0xf]
        %v468 = vld [vmem:[%s337 + $0x34] sm:$0xf]
        %v469 = vld [vmem:[%s337 + $0x38] sm:$0xf]
        %v470 = vld [vmem:[%s337 + $0x3c] sm:$0xf]
        %v471 = vld [vmem:[%s337 + $0x40] sm:$0xf]
        %v472 = vld [vmem:[%s337 + $0x44] sm:$0xf]
        %v473 = vld [vmem:[%s1] sm:$0xf]
        %v474 = vld [vmem:[%s1 + $0x4] sm:$0xf]
        %v475 = vld [vmem:[%s1 + $0x8] sm:$0xf]
        %v476 = vld [vmem:[%s1 + $0xc] sm:$0xf]
        %v477 = vld [vmem:[%s1 + $0x10] sm:$0xf]
        %v478 = vld [vmem:[%s1 + $0x14] sm:$0xf]
        %v479 = vld [vmem:[%s1 + $0x18] sm:$0xf]
        %v480 = vld [vmem:[%s1 + $0x1c] sm:$0xf]
        %v481 = vld [vmem:[%s1 + $0x20] sm:$0xf]
        %v482 = vld [vmem:[%s1 + $0x24] sm:$0xf]
        %v483 = vld [vmem:[%s1 + $0x28] sm:$0xf]
        %v484 = vld [vmem:[%s1 + $0x2c] sm:$0xf]
        %v485 = vld [vmem:[%s1 + $0x30] sm:$0xf]
        %v486 = vld [vmem:[%s1 + $0x34] sm:$0xf]
        %v487 = vld [vmem:[%s1 + $0x38] sm:$0xf]
        %v488 = vld [vmem:[%s1 + $0x3c] sm:$0xf]
        %v489 = vld [vmem:[%s337 + $0x48] sm:$0x1]
        %s490 = scalar_lea.vmem %s1, 64
        %v491 = vld [vmem:[%s490] sm:$0xf]
        %v492 = vld [vmem:[%s490 + $0x4] sm:$0xf]
        %v493 = vld [vmem:[%s490 + $0x8] sm:$0xf]
        %v494 = vld [vmem:[%s490 + $0xc] sm:$0xf]
        %v495 = vld [vmem:[%s490 + $0x10] sm:$0xf]
        %v496 = vld [vmem:[%s490 + $0x14] sm:$0xf]
        %v497 = vld [vmem:[%s490 + $0x18] sm:$0xf]
        %v498 = vld [vmem:[%s490 + $0x1c] sm:$0xf]
        %v499 = vld [vmem:[%s490 + $0x20] sm:$0xf]
        %v500 = vld [vmem:[%s490 + $0x24] sm:$0xf]
        %v501 = vld [vmem:[%s490 + $0x28] sm:$0xf]
        %v502 = vld [vmem:[%s490 + $0x2c] sm:$0xf]
        %v503 = vld [vmem:[%s490 + $0x30] sm:$0xf]
        %v504 = vld [vmem:[%s490 + $0x34] sm:$0xf]
        %v505 = vld [vmem:[%s490 + $0x38] sm:$0xf]
        %v506 = vld [vmem:[%s490 + $0x3c] sm:$0xf]
        %v526 = vunpack.c.l.b16 %v455
        %v527 = vunpack.c.l.b16 %v456
        %v528 = vunpack.c.l.b16 %v457
        %v529 = vunpack.c.l.b16 %v458
        %v530 = vunpack.c.l.b16 %v459
        %v531 = vunpack.c.l.b16 %v460
        %v532 = vunpack.c.l.b16 %v461
        %v533 = vunpack.c.l.b16 %v462
        %v534 = vunpack.c.l.b16 %v463
        %v535 = vunpack.c.l.b16 %v464
        %v536 = vunpack.c.l.b16 %v465
        %v537 = vunpack.c.l.b16 %v466
        %v538 = vunpack.c.l.b16 %v467
        %v539 = vunpack.c.l.b16 %v468
        %v540 = vunpack.c.l.b16 %v469
        %v541 = vunpack.c.l.b16 %v470
        %v542 = vunpack.c.l.b16 %v471
        %v543 = vunpack.c.l.b16 %v472
        %v544 = vunpack.c.l.b16 %v489
        %v545 = vpack.c.b16 %v527, %v526
        %v546 = vpack.c.b16 %v529, %v528
        %v547 = vpack.c.b16 %v531, %v530
        %v548 = vpack.c.b16 %v533, %v532
        %v549 = vpack.c.b16 %v535, %v534
        %v550 = vpack.c.b16 %v537, %v536
        %v551 = vpack.c.b16 %v539, %v538
        %v552 = vpack.c.b16 %v541, %v540
        %v553 = vpack.c.b16 %v543, %v542
        %v554 = vpack.c.b16 %v544, %v544
        %vm555 = vsmask.f32 7424
        %v557 = vshrl.u32 %v545, 16
        %v559 = vshll.u32 %v545, 16
        %v561 = vrot.slane %v559, 1
        %v562 = vor.u32 %v557, %v561
        %v564 = vshll.u32 %v546, 16
        %v566 = vrot.slane %v564, 1
        %v567 = vsel %vm555, %v562, %v566
        %v568 = vshrl.u32 %v546, 16
        %v570 = vor.u32 %v568, %v566
        %v572 = vshll.u32 %v547, 16
        %v574 = vrot.slane %v572, 1
        %v575 = vsel %vm555, %v570, %v574
        %v576 = vshrl.u32 %v547, 16
        %v578 = vor.u32 %v576, %v574
        %v580 = vshll.u32 %v548, 16
        %v582 = vrot.slane %v580, 1
        %v583 = vsel %vm555, %v578, %v582
        %v584 = vshrl.u32 %v548, 16
        %v586 = vor.u32 %v584, %v582
        %v588 = vshll.u32 %v549, 16
        %v590 = vrot.slane %v588, 1
        %v591 = vsel %vm555, %v586, %v590
        %v592 = vshrl.u32 %v549, 16
        %v594 = vor.u32 %v592, %v590
        %v596 = vshll.u32 %v550, 16
        %v598 = vrot.slane %v596, 1
        %v599 = vsel %vm555, %v594, %v598
        %v600 = vshrl.u32 %v550, 16
        %v602 = vor.u32 %v600, %v598
        %v604 = vshll.u32 %v551, 16
        %v606 = vrot.slane %v604, 1
        %v607 = vsel %vm555, %v602, %v606
        %v608 = vshrl.u32 %v551, 16
        %v610 = vor.u32 %v608, %v606
        %v612 = vshll.u32 %v552, 16
        %v614 = vrot.slane %v612, 1
        %v615 = vsel %vm555, %v610, %v614
        %v616 = vshrl.u32 %v552, 16
        %v618 = vor.u32 %v616, %v614
        %v620 = vshll.u32 %v553, 16
        %v622 = vrot.slane %v620, 1
        %v623 = vsel %vm555, %v618, %v622
        %v624 = vshrl.u32 %v553, 16
        %v626 = vor.u32 %v624, %v622
        %v628 = vshll.u32 %v554, 16
        %v630 = vrot.slane %v628, 1
        %v631 = vsel %vm555, %v626, %v630
        %v657 = vunpack.c.l.b16 %v491
        %v658 = vunpack.c.l.b16 %v492
        %v659 = vunpack.c.l.b16 %v493
        %v660 = vunpack.c.l.b16 %v494
        %v661 = vunpack.c.l.b16 %v495
        %v662 = vunpack.c.l.b16 %v496
        %v663 = vunpack.c.l.b16 %v497
        %v664 = vunpack.c.l.b16 %v498
        %v665 = vunpack.c.l.b16 %v499
        %v666 = vunpack.c.l.b16 %v500
        %v667 = vunpack.c.l.b16 %v501
        %v668 = vunpack.c.l.b16 %v502
        %v669 = vunpack.c.l.b16 %v503
        %v670 = vunpack.c.l.b16 %v504
        %v671 = vunpack.c.l.b16 %v505
        %v672 = vunpack.c.l.b16 %v506
        %v673 = vpack.c.b16 %v658, %v657
        %v674 = vpack.c.b16 %v660, %v659
        %v675 = vpack.c.b16 %v662, %v661
        %v676 = vpack.c.b16 %v664, %v663
        %v677 = vpack.c.b16 %v666, %v665
        %v678 = vpack.c.b16 %v668, %v667
        %v679 = vpack.c.b16 %v670, %v669
        %v680 = vpack.c.b16 %v672, %v671
        %689 = vmatpush.bf16.msra.mxu0 %v680
        %690 = vmatpush.bf16.msra.mxu0 %v679
        %691 = vmatpush.bf16.msra.mxu0 %v678
        %692 = vmatpush.bf16.msra.mxu0 %v677
        %693 = vmatpush.bf16.msra.mxu0 %v676
        %694 = vmatpush.bf16.msra.mxu0 %v675
        %695 = vmatpush.bf16.msra.mxu0 %v674
        %696 = vmatpush.bf16.msra.mxu0 %v673
        %697 = vmatmul.bf16.gmra.mxu0 %v567
        %v698 = vpop.f32.mrf.mxu0
        %v699 = vadd.f32 0.0, %v698
        %v700 = vpop.f32.mrf.mxu0
        %v701 = vadd.f32 0.0, %v700
        %702 = vmatmul.bf16.gmra.mxu0 %v575
        %v703 = vpop.f32.mrf.mxu0
        %v704 = vadd.f32 0.0, %v703
        %v705 = vpop.f32.mrf.mxu0
        %v706 = vadd.f32 0.0, %v705
        %707 = vmatmul.bf16.gmra.mxu0 %v583
        %v708 = vpop.f32.mrf.mxu0
        %v709 = vadd.f32 0.0, %v708
        %v710 = vpop.f32.mrf.mxu0
        %v711 = vadd.f32 0.0, %v710
        %712 = vmatmul.bf16.gmra.mxu0 %v591
        %v713 = vpop.f32.mrf.mxu0
        %v714 = vadd.f32 0.0, %v713
        %v715 = vpop.f32.mrf.mxu0
        %v716 = vadd.f32 0.0, %v715
        %717 = vmatmul.bf16.gmra.mxu0 %v599
        %v718 = vpop.f32.mrf.mxu0
        %v719 = vadd.f32 0.0, %v718
        %v720 = vpop.f32.mrf.mxu0
        %v721 = vadd.f32 0.0, %v720
        %722 = vmatmul.bf16.gmra.mxu0 %v607
        %v723 = vpop.f32.mrf.mxu0
        %v724 = vadd.f32 0.0, %v723
        %v725 = vpop.f32.mrf.mxu0
        %v726 = vadd.f32 0.0, %v725
        %727 = vmatmul.bf16.gmra.mxu0 %v615
        %v728 = vpop.f32.mrf.mxu0
        %v729 = vadd.f32 0.0, %v728
        %v730 = vpop.f32.mrf.mxu0
        %v731 = vadd.f32 0.0, %v730
        %732 = vmatmul.bf16.gmra.mxu0 %v623
        %v733 = vpop.f32.mrf.mxu0
        %v734 = vadd.f32 0.0, %v733
        %v735 = vpop.f32.mrf.mxu0
        %v736 = vadd.f32 0.0, %v735
        %737 = vmatmul.bf16.gmra.mxu0 %v631
        %v738 = vpop.f32.mrf.mxu0
        %v739 = vadd.f32 0.0, %v738
        %v740 = vpop.f32.mrf.mxu0
        %v741 = vadd.f32 0.0, %v740
        %742 = vdwg.mxu0
        %v768 = vunpack.c.l.b16 %v473
        %v769 = vunpack.c.l.b16 %v474
        %v770 = vunpack.c.l.b16 %v475
        %v771 = vunpack.c.l.b16 %v476
        %v772 = vunpack.c.l.b16 %v477
        %v773 = vunpack.c.l.b16 %v478
        %v774 = vunpack.c.l.b16 %v479
        %v775 = vunpack.c.l.b16 %v480
        %v776 = vunpack.c.l.b16 %v481
        %v777 = vunpack.c.l.b16 %v482
        %v778 = vunpack.c.l.b16 %v483
        %v779 = vunpack.c.l.b16 %v484
        %v780 = vunpack.c.l.b16 %v485
        %v781 = vunpack.c.l.b16 %v486
        %v782 = vunpack.c.l.b16 %v487
        %v783 = vunpack.c.l.b16 %v488
        %v784 = vpack.c.b16 %v769, %v768
        %v785 = vpack.c.b16 %v771, %v770
        %v786 = vpack.c.b16 %v773, %v772
        %v787 = vpack.c.b16 %v775, %v774
        %v788 = vpack.c.b16 %v777, %v776
        %v789 = vpack.c.b16 %v779, %v778
        %v790 = vpack.c.b16 %v781, %v780
        %v791 = vpack.c.b16 %v783, %v782
        %800 = vmatpush.bf16.msra.mxu0 %v791
        %801 = vmatpush.bf16.msra.mxu0 %v790
        %802 = vmatpush.bf16.msra.mxu0 %v789
        %803 = vmatpush.bf16.msra.mxu0 %v788
        %804 = vmatpush.bf16.msra.mxu0 %v787
        %805 = vmatpush.bf16.msra.mxu0 %v786
        %806 = vmatpush.bf16.msra.mxu0 %v785
        %807 = vmatpush.bf16.msra.mxu0 %v784
        %808 = vmatmul.bf16.gmra.mxu0 %v545
        %v809 = vpop.f32.mrf.mxu0
        %v810 = vadd.f32 %v699, %v809
        %v811 = vpop.f32.mrf.mxu0
        %v812 = vadd.f32 %v701, %v811
        %813 = vmatmul.bf16.gmra.mxu0 %v546
        %v814 = vpop.f32.mrf.mxu0
        %v815 = vadd.f32 %v704, %v814
        %v816 = vpop.f32.mrf.mxu0
        %v817 = vadd.f32 %v706, %v816
        %818 = vmatmul.bf16.gmra.mxu0 %v547
        %v819 = vpop.f32.mrf.mxu0
        %v820 = vadd.f32 %v709, %v819
        %v821 = vpop.f32.mrf.mxu0
        %v822 = vadd.f32 %v711, %v821
        %823 = vmatmul.bf16.gmra.mxu0 %v548
        %v824 = vpop.f32.mrf.mxu0
        %v825 = vadd.f32 %v714, %v824
        %v826 = vpop.f32.mrf.mxu0
        %v827 = vadd.f32 %v716, %v826
        %828 = vmatmul.bf16.gmra.mxu0 %v549
        %v829 = vpop.f32.mrf.mxu0
        %v830 = vadd.f32 %v719, %v829
        %v831 = vpop.f32.mrf.mxu0
        %v832 = vadd.f32 %v721, %v831
        %833 = vmatmul.bf16.gmra.mxu0 %v550
        %v834 = vpop.f32.mrf.mxu0
        %v835 = vadd.f32 %v724, %v834
        %v836 = vpop.f32.mrf.mxu0
        %v837 = vadd.f32 %v726, %v836
        %838 = vmatmul.bf16.gmra.mxu0 %v551
        %v839 = vpop.f32.mrf.mxu0
        %v840 = vadd.f32 %v729, %v839
        %v841 = vpop.f32.mrf.mxu0
        %v842 = vadd.f32 %v731, %v841
        %843 = vmatmul.bf16.gmra.mxu0 %v552
        %v844 = vpop.f32.mrf.mxu0
        %v845 = vadd.f32 %v734, %v844
        %v846 = vpop.f32.mrf.mxu0
        %v847 = vadd.f32 %v736, %v846
        %848 = vmatmul.bf16.gmra.mxu0 %v553
        %v849 = vpop.f32.mrf.mxu0
        %v850 = vadd.f32 %v739, %v849
        %v851 = vpop.f32.mrf.mxu0
        %v852 = vadd.f32 %v741, %v851
        %853 = vdwg.mxu0
        %v854 = vld [vmem:[%s337] sm:$0xe]
        %s855 = scalar_lea.vmem %s1, 128
        %v856 = vld [vmem:[%s855] sm:$0xf]
        %v857 = vld [vmem:[%s855 + $0x4] sm:$0xf]
        %v858 = vld [vmem:[%s855 + $0x8] sm:$0xf]
        %v859 = vld [vmem:[%s855 + $0xc] sm:$0xf]
        %v860 = vld [vmem:[%s855 + $0x10] sm:$0xf]
        %v861 = vld [vmem:[%s855 + $0x14] sm:$0xf]
        %v862 = vld [vmem:[%s855 + $0x18] sm:$0xf]
        %v863 = vld [vmem:[%s855 + $0x1c] sm:$0xf]
        %v864 = vld [vmem:[%s855 + $0x20] sm:$0xf]
        %v865 = vld [vmem:[%s855 + $0x24] sm:$0xf]
        %v866 = vld [vmem:[%s855 + $0x28] sm:$0xf]
        %v867 = vld [vmem:[%s855 + $0x2c] sm:$0xf]
        %v868 = vld [vmem:[%s855 + $0x30] sm:$0xf]
        %v869 = vld [vmem:[%s855 + $0x34] sm:$0xf]
        %v870 = vld [vmem:[%s855 + $0x38] sm:$0xf]
        %v871 = vld [vmem:[%s855 + $0x3c] sm:$0xf]
        %v873 = vunpack.c.l.b16 %v854
        %v874 = vpack.c.b16 %v527, %v873
        %vm875 = vcmask 1046528
        %v876 = vrot.slane %v874, 1
        %v877 = vrot.slane %v546, 1
        %v878 = vsel %vm875, %v876, %v877
        %v879 = vrot.slane %v547, 1
        %v880 = vsel %vm875, %v877, %v879
        %v881 = vrot.slane %v548, 1
        %v882 = vsel %vm875, %v879, %v881
        %v883 = vrot.slane %v549, 1
        %v884 = vsel %vm875, %v881, %v883
        %v885 = vrot.slane %v550, 1
        %v886 = vsel %vm875, %v883, %v885
        %v887 = vrot.slane %v551, 1
        %v888 = vsel %vm875, %v885, %v887
        %v889 = vrot.slane %v552, 1
        %v890 = vsel %vm875, %v887, %v889
        %v891 = vrot.slane %v553, 1
        %v892 = vsel %vm875, %v889, %v891
        %v893 = vrot.slane %v554, 1
        %v894 = vsel %vm875, %v891, %v893
        %v920 = vunpack.c.l.b16 %v856
        %v921 = vunpack.c.l.b16 %v857
        %v922 = vunpack.c.l.b16 %v858
        %v923 = vunpack.c.l.b16 %v859
        %v924 = vunpack.c.l.b16 %v860
        %v925 = vunpack.c.l.b16 %v861
        %v926 = vunpack.c.l.b16 %v862
        %v927 = vunpack.c.l.b16 %v863
        %v928 = vunpack.c.l.b16 %v864
        %v929 = vunpack.c.l.b16 %v865
        %v930 = vunpack.c.l.b16 %v866
        %v931 = vunpack.c.l.b16 %v867
        %v932 = vunpack.c.l.b16 %v868
        %v933 = vunpack.c.l.b16 %v869
        %v934 = vunpack.c.l.b16 %v870
        %v935 = vunpack.c.l.b16 %v871
        %v936 = vpack.c.b16 %v921, %v920
        %v937 = vpack.c.b16 %v923, %v922
        %v938 = vpack.c.b16 %v925, %v924
        %v939 = vpack.c.b16 %v927, %v926
        %v940 = vpack.c.b16 %v929, %v928
        %v941 = vpack.c.b16 %v931, %v930
        %v942 = vpack.c.b16 %v933, %v932
        %v943 = vpack.c.b16 %v935, %v934
        %952 = vmatpush.bf16.msra.mxu0 %v943
        %953 = vmatpush.bf16.msra.mxu0 %v942
        %954 = vmatpush.bf16.msra.mxu0 %v941
        %955 = vmatpush.bf16.msra.mxu0 %v940
        %956 = vmatpush.bf16.msra.mxu0 %v939
        %957 = vmatpush.bf16.msra.mxu0 %v938
        %958 = vmatpush.bf16.msra.mxu0 %v937
        %959 = vmatpush.bf16.msra.mxu0 %v936
        %960 = vmatmul.bf16.gmra.mxu0 %v878
        %v961 = vpop.f32.mrf.mxu0
        %v962 = vadd.f32 0.0, %v961
        %v963 = vpop.f32.mrf.mxu0
        %v964 = vadd.f32 0.0, %v963
        %965 = vmatmul.bf16.gmra.mxu0 %v880
        %v966 = vpop.f32.mrf.mxu0
        %v967 = vadd.f32 0.0, %v966
        %v968 = vpop.f32.mrf.mxu0
        %v969 = vadd.f32 0.0, %v968
        %970 = vmatmul.bf16.gmra.mxu0 %v882
        %v971 = vpop.f32.mrf.mxu0
        %v972 = vadd.f32 0.0, %v971
        %v973 = vpop.f32.mrf.mxu0
        %v974 = vadd.f32 0.0, %v973
        %975 = vmatmul.bf16.gmra.mxu0 %v884
        %v976 = vpop.f32.mrf.mxu0
        %v977 = vadd.f32 0.0, %v976
        %v978 = vpop.f32.mrf.mxu0
        %v979 = vadd.f32 0.0, %v978
        %980 = vmatmul.bf16.gmra.mxu0 %v886
        %v981 = vpop.f32.mrf.mxu0
        %v982 = vadd.f32 0.0, %v981
        %v983 = vpop.f32.mrf.mxu0
        %v984 = vadd.f32 0.0, %v983
        %985 = vmatmul.bf16.gmra.mxu0 %v888
        %v986 = vpop.f32.mrf.mxu0
        %v987 = vadd.f32 0.0, %v986
        %v988 = vpop.f32.mrf.mxu0
        %v989 = vadd.f32 0.0, %v988
        %990 = vmatmul.bf16.gmra.mxu0 %v890
        %v991 = vpop.f32.mrf.mxu0
        %v992 = vadd.f32 0.0, %v991
        %v993 = vpop.f32.mrf.mxu0
        %v994 = vadd.f32 0.0, %v993
        %995 = vmatmul.bf16.gmra.mxu0 %v892
        %v996 = vpop.f32.mrf.mxu0
        %v997 = vadd.f32 0.0, %v996
        %v998 = vpop.f32.mrf.mxu0
        %v999 = vadd.f32 0.0, %v998
        %1000 = vmatmul.bf16.gmra.mxu0 %v894
        %v1001 = vpop.f32.mrf.mxu0
        %v1002 = vadd.f32 0.0, %v1001
        %v1003 = vpop.f32.mrf.mxu0
        %v1004 = vadd.f32 0.0, %v1003
        %1005 = vdwg.mxu0
        %v1006 = vadd.f32 %v810, %v962
        %v1007 = vadd.f32 %v812, %v964
        %v1008 = vadd.f32 %v815, %v967
        %v1009 = vadd.f32 %v817, %v969
        %v1010 = vadd.f32 %v820, %v972
        %v1011 = vadd.f32 %v822, %v974
        %v1012 = vadd.f32 %v825, %v977
        %v1013 = vadd.f32 %v827, %v979
        %v1014 = vadd.f32 %v830, %v982
        %v1015 = vadd.f32 %v832, %v984
        %v1016 = vadd.f32 %v835, %v987
        %v1017 = vadd.f32 %v837, %v989
        %v1018 = vadd.f32 %v840, %v992
        %v1019 = vadd.f32 %v842, %v994
        %v1020 = vadd.f32 %v845, %v997
        %v1021 = vadd.f32 %v847, %v999
        %v1022 = vadd.f32 %v850, %v1002
        %v1023 = vadd.f32 %v852, %v1004
        %v1024 = vld [vmem:[%s337 + $0xc] sm:$0xf]
        %v1025 = vld [vmem:[%s337 + $0x10] sm:$0xf]
        %v1026 = vld [vmem:[%s337 + $0x14] sm:$0xf]
        %v1027 = vld [vmem:[%s337 + $0x18] sm:$0xf]
        %v1028 = vld [vmem:[%s337 + $0x1c] sm:$0xf]
        %v1029 = vld [vmem:[%s337 + $0x20] sm:$0xf]
        %v1030 = vld [vmem:[%s337 + $0x24] sm:$0xf]
        %v1031 = vld [vmem:[%s337 + $0x28] sm:$0xf]
        %v1032 = vld [vmem:[%s337 + $0x2c] sm:$0xf]
        %v1033 = vld [vmem:[%s337 + $0x30] sm:$0xf]
        %v1034 = vld [vmem:[%s337 + $0x34] sm:$0xf]
        %v1035 = vld [vmem:[%s337 + $0x38] sm:$0xf]
        %v1036 = vld [vmem:[%s337 + $0x3c] sm:$0xf]
        %v1037 = vld [vmem:[%s337 + $0x40] sm:$0xf]
        %v1038 = vld [vmem:[%s337 + $0x44] sm:$0xf]
        %v1039 = vld [vmem:[%s337 + $0x48] sm:$0xf]
        %v1040 = vld [vmem:[%s337 + $0x4c] sm:$0xf]
        %v1041 = vld [vmem:[%s337 + $0x50] sm:$0xf]
        %s1042 = scalar_lea.vmem %s1, 192
        %v1043 = vld [vmem:[%s1042] sm:$0xf]
        %v1044 = vld [vmem:[%s1042 + $0x4] sm:$0xf]
        %v1045 = vld [vmem:[%s1042 + $0x8] sm:$0xf]
        %v1046 = vld [vmem:[%s1042 + $0xc] sm:$0xf]
        %v1047 = vld [vmem:[%s1042 + $0x10] sm:$0xf]
        %v1048 = vld [vmem:[%s1042 + $0x14] sm:$0xf]
        %v1049 = vld [vmem:[%s1042 + $0x18] sm:$0xf]
        %v1050 = vld [vmem:[%s1042 + $0x1c] sm:$0xf]
        %v1051 = vld [vmem:[%s1042 + $0x20] sm:$0xf]
        %v1052 = vld [vmem:[%s1042 + $0x24] sm:$0xf]
        %v1053 = vld [vmem:[%s1042 + $0x28] sm:$0xf]
        %v1054 = vld [vmem:[%s1042 + $0x2c] sm:$0xf]
        %v1055 = vld [vmem:[%s1042 + $0x30] sm:$0xf]
        %v1056 = vld [vmem:[%s1042 + $0x34] sm:$0xf]
        %v1057 = vld [vmem:[%s1042 + $0x38] sm:$0xf]
        %v1058 = vld [vmem:[%s1042 + $0x3c] sm:$0xf]
        %v1077 = vunpack.c.l.b16 %v1024
        %v1078 = vunpack.c.l.b16 %v1025
        %v1079 = vunpack.c.l.b16 %v1026
        %v1080 = vunpack.c.l.b16 %v1027
        %v1081 = vunpack.c.l.b16 %v1028
        %v1082 = vunpack.c.l.b16 %v1029
        %v1083 = vunpack.c.l.b16 %v1030
        %v1084 = vunpack.c.l.b16 %v1031
        %v1085 = vunpack.c.l.b16 %v1032
        %v1086 = vunpack.c.l.b16 %v1033
        %v1087 = vunpack.c.l.b16 %v1034
        %v1088 = vunpack.c.l.b16 %v1035
        %v1089 = vunpack.c.l.b16 %v1036
        %v1090 = vunpack.c.l.b16 %v1037
        %v1091 = vunpack.c.l.b16 %v1038
        %v1092 = vunpack.c.l.b16 %v1039
        %v1093 = vunpack.c.l.b16 %v1040
        %v1094 = vunpack.c.l.b16 %v1041
        %v1095 = vpack.c.b16 %v1078, %v1077
        %v1096 = vpack.c.b16 %v1080, %v1079
        %v1097 = vpack.c.b16 %v1082, %v1081
        %v1098 = vpack.c.b16 %v1084, %v1083
        %v1099 = vpack.c.b16 %v1086, %v1085
        %v1100 = vpack.c.b16 %v1088, %v1087
        %v1101 = vpack.c.b16 %v1090, %v1089
        %v1102 = vpack.c.b16 %v1092, %v1091
        %v1103 = vpack.c.b16 %v1094, %v1093
        %v1129 = vunpack.c.l.b16 %v1043
        %v1130 = vunpack.c.l.b16 %v1044
        %v1131 = vunpack.c.l.b16 %v1045
        %v1132 = vunpack.c.l.b16 %v1046
        %v1133 = vunpack.c.l.b16 %v1047
        %v1134 = vunpack.c.l.b16 %v1048
        %v1135 = vunpack.c.l.b16 %v1049
        %v1136 = vunpack.c.l.b16 %v1050
        %v1137 = vunpack.c.l.b16 %v1051
        %v1138 = vunpack.c.l.b16 %v1052
        %v1139 = vunpack.c.l.b16 %v1053
        %v1140 = vunpack.c.l.b16 %v1054
        %v1141 = vunpack.c.l.b16 %v1055
        %v1142 = vunpack.c.l.b16 %v1056
        %v1143 = vunpack.c.l.b16 %v1057
        %v1144 = vunpack.c.l.b16 %v1058
        %v1145 = vpack.c.b16 %v1130, %v1129
        %v1146 = vpack.c.b16 %v1132, %v1131
        %v1147 = vpack.c.b16 %v1134, %v1133
        %v1148 = vpack.c.b16 %v1136, %v1135
        %v1149 = vpack.c.b16 %v1138, %v1137
        %v1150 = vpack.c.b16 %v1140, %v1139
        %v1151 = vpack.c.b16 %v1142, %v1141
        %v1152 = vpack.c.b16 %v1144, %v1143
        %1161 = vmatpush.bf16.msra.mxu0 %v1152
        %1162 = vmatpush.bf16.msra.mxu0 %v1151
        %1163 = vmatpush.bf16.msra.mxu0 %v1150
        %1164 = vmatpush.bf16.msra.mxu0 %v1149
        %1165 = vmatpush.bf16.msra.mxu0 %v1148
        %1166 = vmatpush.bf16.msra.mxu0 %v1147
        %1167 = vmatpush.bf16.msra.mxu0 %v1146
        %1168 = vmatpush.bf16.msra.mxu0 %v1145
        %1169 = vmatmul.bf16.gmra.mxu0 %v1095
        %v1170 = vpop.f32.mrf.mxu0
        %v1171 = vadd.f32 0.0, %v1170
        %v1172 = vpop.f32.mrf.mxu0
        %v1173 = vadd.f32 0.0, %v1172
        %1174 = vmatmul.bf16.gmra.mxu0 %v1096
        %v1175 = vpop.f32.mrf.mxu0
        %v1176 = vadd.f32 0.0, %v1175
        %v1177 = vpop.f32.mrf.mxu0
        %v1178 = vadd.f32 0.0, %v1177
        %1179 = vmatmul.bf16.gmra.mxu0 %v1097
        %v1180 = vpop.f32.mrf.mxu0
        %v1181 = vadd.f32 0.0, %v1180
        %v1182 = vpop.f32.mrf.mxu0
        %v1183 = vadd.f32 0.0, %v1182
        %1184 = vmatmul.bf16.gmra.mxu0 %v1098
        %v1185 = vpop.f32.mrf.mxu0
        %v1186 = vadd.f32 0.0, %v1185
        %v1187 = vpop.f32.mrf.mxu0
        %v1188 = vadd.f32 0.0, %v1187
        %1189 = vmatmul.bf16.gmra.mxu0 %v1099
        %v1190 = vpop.f32.mrf.mxu0
        %v1191 = vadd.f32 0.0, %v1190
        %v1192 = vpop.f32.mrf.mxu0
        %v1193 = vadd.f32 0.0, %v1192
        %1194 = vmatmul.bf16.gmra.mxu0 %v1100
        %v1195 = vpop.f32.mrf.mxu0
        %v1196 = vadd.f32 0.0, %v1195
        %v1197 = vpop.f32.mrf.mxu0
        %v1198 = vadd.f32 0.0, %v1197
        %1199 = vmatmul.bf16.gmra.mxu0 %v1101
        %v1200 = vpop.f32.mrf.mxu0
        %v1201 = vadd.f32 0.0, %v1200
        %v1202 = vpop.f32.mrf.mxu0
        %v1203 = vadd.f32 0.0, %v1202
        %1204 = vmatmul.bf16.gmra.mxu0 %v1102
        %v1205 = vpop.f32.mrf.mxu0
        %v1206 = vadd.f32 0.0, %v1205
        %v1207 = vpop.f32.mrf.mxu0
        %v1208 = vadd.f32 0.0, %v1207
        %1209 = vmatmul.bf16.gmra.mxu0 %v1103
        %v1210 = vpop.f32.mrf.mxu0
        %v1211 = vadd.f32 0.0, %v1210
        %v1212 = vpop.f32.mrf.mxu0
        %v1213 = vadd.f32 0.0, %v1212
        %1214 = vdwg.mxu0
        %v1215 = vadd.f32 %v1006, %v1171
        %v1216 = vadd.f32 %v1007, %v1173
        %v1217 = vadd.f32 %v1008, %v1176
        %v1218 = vadd.f32 %v1009, %v1178
        %v1219 = vadd.f32 %v1010, %v1181
        %v1220 = vadd.f32 %v1011, %v1183
        %v1221 = vadd.f32 %v1012, %v1186
        %v1222 = vadd.f32 %v1013, %v1188
        %v1223 = vadd.f32 %v1014, %v1191
        %v1224 = vadd.f32 %v1015, %v1193
        %v1225 = vadd.f32 %v1016, %v1196
        %v1226 = vadd.f32 %v1017, %v1198
        %v1227 = vadd.f32 %v1018, %v1201
        %v1228 = vadd.f32 %v1019, %v1203
        %v1229 = vadd.f32 %v1020, %v1206
        %v1230 = vadd.f32 %v1021, %v1208
        %v1231 = vadd.f32 %v1022, %v1211
        %v1232 = vadd.f32 %v1023, %v1213
        %v1233 = vld [vmem:[%s337 + $0xc] sm:$0xf]
        %v1234 = vld [vmem:[%s337 + $0x10] sm:$0xf]
        %v1235 = vld [vmem:[%s337 + $0x14] sm:$0xf]
        %v1236 = vld [vmem:[%s337 + $0x18] sm:$0xf]
        %v1237 = vld [vmem:[%s337 + $0x1c] sm:$0xf]
        %v1238 = vld [vmem:[%s337 + $0x20] sm:$0xf]
        %v1239 = vld [vmem:[%s337 + $0x24] sm:$0xf]
        %v1240 = vld [vmem:[%s337 + $0x28] sm:$0xf]
        %v1241 = vld [vmem:[%s337 + $0x2c] sm:$0xf]
        %v1242 = vld [vmem:[%s337 + $0x30] sm:$0xf]
        %v1243 = vld [vmem:[%s337 + $0x34] sm:$0xf]
        %v1244 = vld [vmem:[%s337 + $0x38] sm:$0xf]
        %v1245 = vld [vmem:[%s337 + $0x3c] sm:$0xf]
        %v1246 = vld [vmem:[%s337 + $0x40] sm:$0xf]
        %v1247 = vld [vmem:[%s337 + $0x44] sm:$0xf]
        %v1248 = vld [vmem:[%s337 + $0x48] sm:$0xf]
        %v1249 = vld [vmem:[%s337 + $0x4c] sm:$0xf]
        %v1250 = vld [vmem:[%s337 + $0x50] sm:$0xf]
        %v1251 = vld [vmem:[%s337 + $0x54] sm:$0x1]
        %s1252 = scalar_lea.vmem %s1, 256
        %v1253 = vld [vmem:[%s1252] sm:$0xf]
        %v1254 = vld [vmem:[%s1252 + $0x4] sm:$0xf]
        %v1255 = vld [vmem:[%s1252 + $0x8] sm:$0xf]
        %v1256 = vld [vmem:[%s1252 + $0xc] sm:$0xf]
        %v1257 = vld [vmem:[%s1252 + $0x10] sm:$0xf]
        %v1258 = vld [vmem:[%s1252 + $0x14] sm:$0xf]
        %v1259 = vld [vmem:[%s1252 + $0x18] sm:$0xf]
        %v1260 = vld [vmem:[%s1252 + $0x1c] sm:$0xf]
        %v1261 = vld [vmem:[%s1252 + $0x20] sm:$0xf]
        %v1262 = vld [vmem:[%s1252 + $0x24] sm:$0xf]
        %v1263 = vld [vmem:[%s1252 + $0x28] sm:$0xf]
        %v1264 = vld [vmem:[%s1252 + $0x2c] sm:$0xf]
        %v1265 = vld [vmem:[%s1252 + $0x30] sm:$0xf]
        %v1266 = vld [vmem:[%s1252 + $0x34] sm:$0xf]
        %v1267 = vld [vmem:[%s1252 + $0x38] sm:$0xf]
        %v1268 = vld [vmem:[%s1252 + $0x3c] sm:$0xf]
        %v1288 = vunpack.c.l.b16 %v1233
        %v1289 = vunpack.c.l.b16 %v1234
        %v1290 = vunpack.c.l.b16 %v1235
        %v1291 = vunpack.c.l.b16 %v1236
        %v1292 = vunpack.c.l.b16 %v1237
        %v1293 = vunpack.c.l.b16 %v1238
        %v1294 = vunpack.c.l.b16 %v1239
        %v1295 = vunpack.c.l.b16 %v1240
        %v1296 = vunpack.c.l.b16 %v1241
        %v1297 = vunpack.c.l.b16 %v1242
        %v1298 = vunpack.c.l.b16 %v1243
        %v1299 = vunpack.c.l.b16 %v1244
        %v1300 = vunpack.c.l.b16 %v1245
        %v1301 = vunpack.c.l.b16 %v1246
        %v1302 = vunpack.c.l.b16 %v1247
        %v1303 = vunpack.c.l.b16 %v1248
        %v1304 = vunpack.c.l.b16 %v1249
        %v1305 = vunpack.c.l.b16 %v1250
        %v1306 = vunpack.c.l.b16 %v1251
        %v1307 = vpack.c.b16 %v1289, %v1288
        %v1308 = vpack.c.b16 %v1291, %v1290
        %v1309 = vpack.c.b16 %v1293, %v1292
        %v1310 = vpack.c.b16 %v1295, %v1294
        %v1311 = vpack.c.b16 %v1297, %v1296
        %v1312 = vpack.c.b16 %v1299, %v1298
        %v1313 = vpack.c.b16 %v1301, %v1300
        %v1314 = vpack.c.b16 %v1303, %v1302
        %v1315 = vpack.c.b16 %v1305, %v1304
        %v1316 = vpack.c.b16 %v1306, %v1306
        %v1318 = vshrl.u32 %v1307, 16
        %v1320 = vshll.u32 %v1307, 16
        %v1322 = vrot.slane %v1320, 1
        %v1323 = vor.u32 %v1318, %v1322
        %v1325 = vshll.u32 %v1308, 16
        %v1327 = vrot.slane %v1325, 1
        %v1328 = vsel %vm555, %v1323, %v1327
        %v1329 = vshrl.u32 %v1308, 16
        %v1331 = vor.u32 %v1329, %v1327
        %v1333 = vshll.u32 %v1309, 16
        %v1335 = vrot.slane %v1333, 1
        %v1336 = vsel %vm555, %v1331, %v1335
        %v1337 = vshrl.u32 %v1309, 16
        %v1339 = vor.u32 %v1337, %v1335
        %v1341 = vshll.u32 %v1310, 16
        %v1343 = vrot.slane %v1341, 1
        %v1344 = vsel %vm555, %v1339, %v1343
        %v1345 = vshrl.u32 %v1310, 16
        %v1347 = vor.u32 %v1345, %v1343
        %v1349 = vshll.u32 %v1311, 16
        %v1351 = vrot.slane %v1349, 1
        %v1352 = vsel %vm555, %v1347, %v1351
        %v1353 = vshrl.u32 %v1311, 16
        %v1355 = vor.u32 %v1353, %v1351
        %v1357 = vshll.u32 %v1312, 16
        %v1359 = vrot.slane %v1357, 1
        %v1360 = vsel %vm555, %v1355, %v1359
        %v1361 = vshrl.u32 %v1312, 16
        %v1363 = vor.u32 %v1361, %v1359
        %v1365 = vshll.u32 %v1313, 16
        %v1367 = vrot.slane %v1365, 1
        %v1368 = vsel %vm555, %v1363, %v1367
        %v1369 = vshrl.u32 %v1313, 16
        %v1371 = vor.u32 %v1369, %v1367
        %v1373 = vshll.u32 %v1314, 16
        %v1375 = vrot.slane %v1373, 1
        %v1376 = vsel %vm555, %v1371, %v1375
        %v1377 = vshrl.u32 %v1314, 16
        %v1379 = vor.u32 %v1377, %v1375
        %v1381 = vshll.u32 %v1315, 16
        %v1383 = vrot.slane %v1381, 1
        %v1384 = vsel %vm555, %v1379, %v1383
        %v1385 = vshrl.u32 %v1315, 16
        %v1387 = vor.u32 %v1385, %v1383
        %v1389 = vshll.u32 %v1316, 16
        %v1391 = vrot.slane %v1389, 1
        %v1392 = vsel %vm555, %v1387, %v1391
        %v1418 = vunpack.c.l.b16 %v1253
        %v1419 = vunpack.c.l.b16 %v1254
        %v1420 = vunpack.c.l.b16 %v1255
        %v1421 = vunpack.c.l.b16 %v1256
        %v1422 = vunpack.c.l.b16 %v1257
        %v1423 = vunpack.c.l.b16 %v1258
        %v1424 = vunpack.c.l.b16 %v1259
        %v1425 = vunpack.c.l.b16 %v1260
        %v1426 = vunpack.c.l.b16 %v1261
        %v1427 = vunpack.c.l.b16 %v1262
        %v1428 = vunpack.c.l.b16 %v1263
        %v1429 = vunpack.c.l.b16 %v1264
        %v1430 = vunpack.c.l.b16 %v1265
        %v1431 = vunpack.c.l.b16 %v1266
        %v1432 = vunpack.c.l.b16 %v1267
        %v1433 = vunpack.c.l.b16 %v1268
        %v1434 = vpack.c.b16 %v1419, %v1418
        %v1435 = vpack.c.b16 %v1421, %v1420
        %v1436 = vpack.c.b16 %v1423, %v1422
        %v1437 = vpack.c.b16 %v1425, %v1424
        %v1438 = vpack.c.b16 %v1427, %v1426
        %v1439 = vpack.c.b16 %v1429, %v1428
        %v1440 = vpack.c.b16 %v1431, %v1430
        %v1441 = vpack.c.b16 %v1433, %v1432
        %1450 = vmatpush.bf16.msra.mxu0 %v1441
        %1451 = vmatpush.bf16.msra.mxu0 %v1440
        %1452 = vmatpush.bf16.msra.mxu0 %v1439
        %1453 = vmatpush.bf16.msra.mxu0 %v1438
        %1454 = vmatpush.bf16.msra.mxu0 %v1437
        %1455 = vmatpush.bf16.msra.mxu0 %v1436
        %1456 = vmatpush.bf16.msra.mxu0 %v1435
        %1457 = vmatpush.bf16.msra.mxu0 %v1434
        %1458 = vmatmul.bf16.gmra.mxu0 %v1328
        %v1459 = vpop.f32.mrf.mxu0
        %v1460 = vadd.f32 0.0, %v1459
        %v1461 = vpop.f32.mrf.mxu0
        %v1462 = vadd.f32 0.0, %v1461
        %1463 = vmatmul.bf16.gmra.mxu0 %v1336
        %v1464 = vpop.f32.mrf.mxu0
        %v1465 = vadd.f32 0.0, %v1464
        %v1466 = vpop.f32.mrf.mxu0
        %v1467 = vadd.f32 0.0, %v1466
        %1468 = vmatmul.bf16.gmra.mxu0 %v1344
        %v1469 = vpop.f32.mrf.mxu0
        %v1470 = vadd.f32 0.0, %v1469
        %v1471 = vpop.f32.mrf.mxu0
        %v1472 = vadd.f32 0.0, %v1471
        %1473 = vmatmul.bf16.gmra.mxu0 %v1352
        %v1474 = vpop.f32.mrf.mxu0
        %v1475 = vadd.f32 0.0, %v1474
        %v1476 = vpop.f32.mrf.mxu0
        %v1477 = vadd.f32 0.0, %v1476
        %1478 = vmatmul.bf16.gmra.mxu0 %v1360
        %v1479 = vpop.f32.mrf.mxu0
        %v1480 = vadd.f32 0.0, %v1479
        %v1481 = vpop.f32.mrf.mxu0
        %v1482 = vadd.f32 0.0, %v1481
        %1483 = vmatmul.bf16.gmra.mxu0 %v1368
        %v1484 = vpop.f32.mrf.mxu0
        %v1485 = vadd.f32 0.0, %v1484
        %v1486 = vpop.f32.mrf.mxu0
        %v1487 = vadd.f32 0.0, %v1486
        %1488 = vmatmul.bf16.gmra.mxu0 %v1376
        %v1489 = vpop.f32.mrf.mxu0
        %v1490 = vadd.f32 0.0, %v1489
        %v1491 = vpop.f32.mrf.mxu0
        %v1492 = vadd.f32 0.0, %v1491
        %1493 = vmatmul.bf16.gmra.mxu0 %v1384
        %v1494 = vpop.f32.mrf.mxu0
        %v1495 = vadd.f32 0.0, %v1494
        %v1496 = vpop.f32.mrf.mxu0
        %v1497 = vadd.f32 0.0, %v1496
        %1498 = vmatmul.bf16.gmra.mxu0 %v1392
        %v1499 = vpop.f32.mrf.mxu0
        %v1500 = vadd.f32 0.0, %v1499
        %v1501 = vpop.f32.mrf.mxu0
        %v1502 = vadd.f32 0.0, %v1501
        %1503 = vdwg.mxu0
        %v1504 = vadd.f32 %v1215, %v1460
        %v1505 = vadd.f32 %v1216, %v1462
        %v1506 = vadd.f32 %v1217, %v1465
        %v1507 = vadd.f32 %v1218, %v1467
        %v1508 = vadd.f32 %v1219, %v1470
        %v1509 = vadd.f32 %v1220, %v1472
        %v1510 = vadd.f32 %v1221, %v1475
        %v1511 = vadd.f32 %v1222, %v1477
        %v1512 = vadd.f32 %v1223, %v1480
        %v1513 = vadd.f32 %v1224, %v1482
        %v1514 = vadd.f32 %v1225, %v1485
        %v1515 = vadd.f32 %v1226, %v1487
        %v1516 = vadd.f32 %v1227, %v1490
        %v1517 = vadd.f32 %v1228, %v1492
        %v1518 = vadd.f32 %v1229, %v1495
        %v1519 = vadd.f32 %v1230, %v1497
        %v1520 = vadd.f32 %v1231, %v1500
        %v1521 = vadd.f32 %v1232, %v1502
        %v1522 = vld [vmem:[%s337 + $0xc] sm:$0xe]
        %s1523 = scalar_lea.vmem %s1, 320
        %v1524 = vld [vmem:[%s1523] sm:$0xf]
        %v1525 = vld [vmem:[%s1523 + $0x4] sm:$0xf]
        %v1526 = vld [vmem:[%s1523 + $0x8] sm:$0xf]
        %v1527 = vld [vmem:[%s1523 + $0xc] sm:$0xf]
        %v1528 = vld [vmem:[%s1523 + $0x10] sm:$0xf]
        %v1529 = vld [vmem:[%s1523 + $0x14] sm:$0xf]
        %v1530 = vld [vmem:[%s1523 + $0x18] sm:$0xf]
        %v1531 = vld [vmem:[%s1523 + $0x1c] sm:$0xf]
        %v1532 = vld [vmem:[%s1523 + $0x20] sm:$0xf]
        %v1533 = vld [vmem:[%s1523 + $0x24] sm:$0xf]
        %v1534 = vld [vmem:[%s1523 + $0x28] sm:$0xf]
        %v1535 = vld [vmem:[%s1523 + $0x2c] sm:$0xf]
        %v1536 = vld [vmem:[%s1523 + $0x30] sm:$0xf]
        %v1537 = vld [vmem:[%s1523 + $0x34] sm:$0xf]
        %v1538 = vld [vmem:[%s1523 + $0x38] sm:$0xf]
        %v1539 = vld [vmem:[%s1523 + $0x3c] sm:$0xf]
        %v1541 = vunpack.c.l.b16 %v1522
        %v1542 = vpack.c.b16 %v1289, %v1541
        %v1543 = vrot.slane %v1542, 1
        %v1544 = vrot.slane %v1308, 1
        %v1545 = vsel %vm875, %v1543, %v1544
        %v1546 = vrot.slane %v1309, 1
        %v1547 = vsel %vm875, %v1544, %v1546
        %v1548 = vrot.slane %v1310, 1
        %v1549 = vsel %vm875, %v1546, %v1548
        %v1550 = vrot.slane %v1311, 1
        %v1551 = vsel %vm875, %v1548, %v1550
        %v1552 = vrot.slane %v1312, 1
        %v1553 = vsel %vm875, %v1550, %v1552
        %v1554 = vrot.slane %v1313, 1
        %v1555 = vsel %vm875, %v1552, %v1554
        %v1556 = vrot.slane %v1314, 1
        %v1557 = vsel %vm875, %v1554, %v1556
        %v1558 = vrot.slane %v1315, 1
        %v1559 = vsel %vm875, %v1556, %v1558
        %v1560 = vrot.slane %v1316, 1
        %v1561 = vsel %vm875, %v1558, %v1560
        %v1587 = vunpack.c.l.b16 %v1524
        %v1588 = vunpack.c.l.b16 %v1525
        %v1589 = vunpack.c.l.b16 %v1526
        %v1590 = vunpack.c.l.b16 %v1527
        %v1591 = vunpack.c.l.b16 %v1528
        %v1592 = vunpack.c.l.b16 %v1529
        %v1593 = vunpack.c.l.b16 %v1530
        %v1594 = vunpack.c.l.b16 %v1531
        %v1595 = vunpack.c.l.b16 %v1532
        %v1596 = vunpack.c.l.b16 %v1533
        %v1597 = vunpack.c.l.b16 %v1534
        %v1598 = vunpack.c.l.b16 %v1535
        %v1599 = vunpack.c.l.b16 %v1536
        %v1600 = vunpack.c.l.b16 %v1537
        %v1601 = vunpack.c.l.b16 %v1538
        %v1602 = vunpack.c.l.b16 %v1539
        %v1603 = vpack.c.b16 %v1588, %v1587
        %v1604 = vpack.c.b16 %v1590, %v1589
        %v1605 = vpack.c.b16 %v1592, %v1591
        %v1606 = vpack.c.b16 %v1594, %v1593
        %v1607 = vpack.c.b16 %v1596, %v1595
        %v1608 = vpack.c.b16 %v1598, %v1597
        %v1609 = vpack.c.b16 %v1600, %v1599
        %v1610 = vpack.c.b16 %v1602, %v1601
        %1619 = vmatpush.bf16.msra.mxu0 %v1610
        %1620 = vmatpush.bf16.msra.mxu0 %v1609
        %1621 = vmatpush.bf16.msra.mxu0 %v1608
        %1622 = vmatpush.bf16.msra.mxu0 %v1607
        %1623 = vmatpush.bf16.msra.mxu0 %v1606
        %1624 = vmatpush.bf16.msra.mxu0 %v1605
        %1625 = vmatpush.bf16.msra.mxu0 %v1604
        %1626 = vmatpush.bf16.msra.mxu0 %v1603
        %1627 = vmatmul.bf16.gmra.mxu0 %v1545
        %v1628 = vpop.f32.mrf.mxu0
        %v1629 = vadd.f32 0.0, %v1628
        %v1630 = vpop.f32.mrf.mxu0
        %v1631 = vadd.f32 0.0, %v1630
        %1632 = vmatmul.bf16.gmra.mxu0 %v1547
        %v1633 = vpop.f32.mrf.mxu0
        %v1634 = vadd.f32 0.0, %v1633
        %v1635 = vpop.f32.mrf.mxu0
        %v1636 = vadd.f32 0.0, %v1635
        %1637 = vmatmul.bf16.gmra.mxu0 %v1549
        %v1638 = vpop.f32.mrf.mxu0
        %v1639 = vadd.f32 0.0, %v1638
        %v1640 = vpop.f32.mrf.mxu0
        %v1641 = vadd.f32 0.0, %v1640
        %1642 = vmatmul.bf16.gmra.mxu0 %v1551
        %v1643 = vpop.f32.mrf.mxu0
        %v1644 = vadd.f32 0.0, %v1643
        %v1645 = vpop.f32.mrf.mxu0
        %v1646 = vadd.f32 0.0, %v1645
        %1647 = vmatmul.bf16.gmra.mxu0 %v1553
        %v1648 = vpop.f32.mrf.mxu0
        %v1649 = vadd.f32 0.0, %v1648
        %v1650 = vpop.f32.mrf.mxu0
        %v1651 = vadd.f32 0.0, %v1650
        %1652 = vmatmul.bf16.gmra.mxu0 %v1555
        %v1653 = vpop.f32.mrf.mxu0
        %v1654 = vadd.f32 0.0, %v1653
        %v1655 = vpop.f32.mrf.mxu0
        %v1656 = vadd.f32 0.0, %v1655
        %1657 = vmatmul.bf16.gmra.mxu0 %v1557
        %v1658 = vpop.f32.mrf.mxu0
        %v1659 = vadd.f32 0.0, %v1658
        %v1660 = vpop.f32.mrf.mxu0
        %v1661 = vadd.f32 0.0, %v1660
        %1662 = vmatmul.bf16.gmra.mxu0 %v1559
        %v1663 = vpop.f32.mrf.mxu0
        %v1664 = vadd.f32 0.0, %v1663
        %v1665 = vpop.f32.mrf.mxu0
        %v1666 = vadd.f32 0.0, %v1665
        %1667 = vmatmul.bf16.gmra.mxu0 %v1561
        %v1668 = vpop.f32.mrf.mxu0
        %v1669 = vadd.f32 0.0, %v1668
        %v1670 = vpop.f32.mrf.mxu0
        %v1671 = vadd.f32 0.0, %v1670
        %1672 = vdwg.mxu0
        %v1673 = vadd.f32 %v1504, %v1629
        %v1674 = vadd.f32 %v1505, %v1631
        %v1675 = vadd.f32 %v1506, %v1634
        %v1676 = vadd.f32 %v1507, %v1636
        %v1677 = vadd.f32 %v1508, %v1639
        %v1678 = vadd.f32 %v1509, %v1641
        %v1679 = vadd.f32 %v1510, %v1644
        %v1680 = vadd.f32 %v1511, %v1646
        %v1681 = vadd.f32 %v1512, %v1649
        %v1682 = vadd.f32 %v1513, %v1651
        %v1683 = vadd.f32 %v1514, %v1654
        %v1684 = vadd.f32 %v1515, %v1656
        %v1685 = vadd.f32 %v1516, %v1659
        %v1686 = vadd.f32 %v1517, %v1661
        %v1687 = vadd.f32 %v1518, %v1664
        %v1688 = vadd.f32 %v1519, %v1666
        %v1689 = vadd.f32 %v1520, %v1669
        %v1690 = vadd.f32 %v1521, %v1671
        %v1691 = vld [vmem:[%s337 + $0x18] sm:$0xf]
        %v1692 = vld [vmem:[%s337 + $0x1c] sm:$0xf]
        %v1693 = vld [vmem:[%s337 + $0x20] sm:$0xf]
        %v1694 = vld [vmem:[%s337 + $0x24] sm:$0xf]
        %v1695 = vld [vmem:[%s337 + $0x28] sm:$0xf]
        %v1696 = vld [vmem:[%s337 + $0x2c] sm:$0xf]
        %v1697 = vld [vmem:[%s337 + $0x30] sm:$0xf]
        %v1698 = vld [vmem:[%s337 + $0x34] sm:$0xf]
        %v1699 = vld [vmem:[%s337 + $0x38] sm:$0xf]
        %v1700 = vld [vmem:[%s337 + $0x3c] sm:$0xf]
        %v1701 = vld [vmem:[%s337 + $0x40] sm:$0xf]
        %v1702 = vld [vmem:[%s337 + $0x44] sm:$0xf]
        %v1703 = vld [vmem:[%s337 + $0x48] sm:$0xf]
        %v1704 = vld [vmem:[%s337 + $0x4c] sm:$0xf]
        %v1705 = vld [vmem:[%s337 + $0x50] sm:$0xf]
        %v1706 = vld [vmem:[%s337 + $0x54] sm:$0xf]
        %v1707 = vld [vmem:[%s337 + $0x58] sm:$0xf]
        %v1708 = vld [vmem:[%s337 + $0x5c] sm:$0xf]
        %s1709 = scalar_lea.vmem %s1, 384
        %v1710 = vld [vmem:[%s1709] sm:$0xf]
        %v1711 = vld [vmem:[%s1709 + $0x4] sm:$0xf]
        %v1712 = vld [vmem:[%s1709 + $0x8] sm:$0xf]
        %v1713 = vld [vmem:[%s1709 + $0xc] sm:$0xf]
        %v1714 = vld [vmem:[%s1709 + $0x10] sm:$0xf]
        %v1715 = vld [vmem:[%s1709 + $0x14] sm:$0xf]
        %v1716 = vld [vmem:[%s1709 + $0x18] sm:$0xf]
        %v1717 = vld [vmem:[%s1709 + $0x1c] sm:$0xf]
        %v1718 = vld [vmem:[%s1709 + $0x20] sm:$0xf]
        %v1719 = vld [vmem:[%s1709 + $0x24] sm:$0xf]
        %v1720 = vld [vmem:[%s1709 + $0x28] sm:$0xf]
        %v1721 = vld [vmem:[%s1709 + $0x2c] sm:$0xf]
        %v1722 = vld [vmem:[%s1709 + $0x30] sm:$0xf]
        %v1723 = vld [vmem:[%s1709 + $0x34] sm:$0xf]
        %v1724 = vld [vmem:[%s1709 + $0x38] sm:$0xf]
        %v1725 = vld [vmem:[%s1709 + $0x3c] sm:$0xf]
        %v1744 = vunpack.c.l.b16 %v1691
        %v1745 = vunpack.c.l.b16 %v1692
        %v1746 = vunpack.c.l.b16 %v1693
        %v1747 = vunpack.c.l.b16 %v1694
        %v1748 = vunpack.c.l.b16 %v1695
        %v1749 = vunpack.c.l.b16 %v1696
        %v1750 = vunpack.c.l.b16 %v1697
        %v1751 = vunpack.c.l.b16 %v1698
        %v1752 = vunpack.c.l.b16 %v1699
        %v1753 = vunpack.c.l.b16 %v1700
        %v1754 = vunpack.c.l.b16 %v1701
        %v1755 = vunpack.c.l.b16 %v1702
        %v1756 = vunpack.c.l.b16 %v1703
        %v1757 = vunpack.c.l.b16 %v1704
        %v1758 = vunpack.c.l.b16 %v1705
        %v1759 = vunpack.c.l.b16 %v1706
        %v1760 = vunpack.c.l.b16 %v1707
        %v1761 = vunpack.c.l.b16 %v1708
        %v1762 = vpack.c.b16 %v1745, %v1744
        %v1763 = vpack.c.b16 %v1747, %v1746
        %v1764 = vpack.c.b16 %v1749, %v1748
        %v1765 = vpack.c.b16 %v1751, %v1750
        %v1766 = vpack.c.b16 %v1753, %v1752
        %v1767 = vpack.c.b16 %v1755, %v1754
        %v1768 = vpack.c.b16 %v1757, %v1756
        %v1769 = vpack.c.b16 %v1759, %v1758
        %v1770 = vpack.c.b16 %v1761, %v1760
        %v1796 = vunpack.c.l.b16 %v1710
        %v1797 = vunpack.c.l.b16 %v1711
        %v1798 = vunpack.c.l.b16 %v1712
        %v1799 = vunpack.c.l.b16 %v1713
        %v1800 = vunpack.c.l.b16 %v1714
        %v1801 = vunpack.c.l.b16 %v1715
        %v1802 = vunpack.c.l.b16 %v1716
        %v1803 = vunpack.c.l.b16 %v1717
        %v1804 = vunpack.c.l.b16 %v1718
        %v1805 = vunpack.c.l.b16 %v1719
        %v1806 = vunpack.c.l.b16 %v1720
        %v1807 = vunpack.c.l.b16 %v1721
        %v1808 = vunpack.c.l.b16 %v1722
        %v1809 = vunpack.c.l.b16 %v1723
        %v1810 = vunpack.c.l.b16 %v1724
        %v1811 = vunpack.c.l.b16 %v1725
        %v1812 = vpack.c.b16 %v1797, %v1796
        %v1813 = vpack.c.b16 %v1799, %v1798
        %v1814 = vpack.c.b16 %v1801, %v1800
        %v1815 = vpack.c.b16 %v1803, %v1802
        %v1816 = vpack.c.b16 %v1805, %v1804
        %v1817 = vpack.c.b16 %v1807, %v1806
        %v1818 = vpack.c.b16 %v1809, %v1808
        %v1819 = vpack.c.b16 %v1811, %v1810
        %1828 = vmatpush.bf16.msra.mxu0 %v1819
        %1829 = vmatpush.bf16.msra.mxu0 %v1818
        %1830 = vmatpush.bf16.msra.mxu0 %v1817
        %1831 = vmatpush.bf16.msra.mxu0 %v1816
        %1832 = vmatpush.bf16.msra.mxu0 %v1815
        %1833 = vmatpush.bf16.msra.mxu0 %v1814
        %1834 = vmatpush.bf16.msra.mxu0 %v1813
        %1835 = vmatpush.bf16.msra.mxu0 %v1812
        %1836 = vmatmul.bf16.gmra.mxu0 %v1762
        %v1837 = vpop.f32.mrf.mxu0
        %v1838 = vadd.f32 0.0, %v1837
        %v1839 = vpop.f32.mrf.mxu0
        %v1840 = vadd.f32 0.0, %v1839
        %1841 = vmatmul.bf16.gmra.mxu0 %v1763
        %v1842 = vpop.f32.mrf.mxu0
        %v1843 = vadd.f32 0.0, %v1842
        %v1844 = vpop.f32.mrf.mxu0
        %v1845 = vadd.f32 0.0, %v1844
        %1846 = vmatmul.bf16.gmra.mxu0 %v1764
        %v1847 = vpop.f32.mrf.mxu0
        %v1848 = vadd.f32 0.0, %v1847
        %v1849 = vpop.f32.mrf.mxu0
        %v1850 = vadd.f32 0.0, %v1849
        %1851 = vmatmul.bf16.gmra.mxu0 %v1765
        %v1852 = vpop.f32.mrf.mxu0
        %v1853 = vadd.f32 0.0, %v1852
        %v1854 = vpop.f32.mrf.mxu0
        %v1855 = vadd.f32 0.0, %v1854
        %1856 = vmatmul.bf16.gmra.mxu0 %v1766
        %v1857 = vpop.f32.mrf.mxu0
        %v1858 = vadd.f32 0.0, %v1857
        %v1859 = vpop.f32.mrf.mxu0
        %v1860 = vadd.f32 0.0, %v1859
        %1861 = vmatmul.bf16.gmra.mxu0 %v1767
        %v1862 = vpop.f32.mrf.mxu0
        %v1863 = vadd.f32 0.0, %v1862
        %v1864 = vpop.f32.mrf.mxu0
        %v1865 = vadd.f32 0.0, %v1864
        %1866 = vmatmul.bf16.gmra.mxu0 %v1768
        %v1867 = vpop.f32.mrf.mxu0
        %v1868 = vadd.f32 0.0, %v1867
        %v1869 = vpop.f32.mrf.mxu0
        %v1870 = vadd.f32 0.0, %v1869
        %1871 = vmatmul.bf16.gmra.mxu0 %v1769
        %v1872 = vpop.f32.mrf.mxu0
        %v1873 = vadd.f32 0.0, %v1872
        %v1874 = vpop.f32.mrf.mxu0
        %v1875 = vadd.f32 0.0, %v1874
        %1876 = vmatmul.bf16.gmra.mxu0 %v1770
        %v1877 = vpop.f32.mrf.mxu0
        %v1878 = vadd.f32 0.0, %v1877
        %v1879 = vpop.f32.mrf.mxu0
        %v1880 = vadd.f32 0.0, %v1879
        %1881 = vdwg.mxu0
        %v1882 = vadd.f32 %v1673, %v1838
        %v1883 = vadd.f32 %v1674, %v1840
        %v1884 = vadd.f32 %v1675, %v1843
        %v1885 = vadd.f32 %v1676, %v1845
        %v1886 = vadd.f32 %v1677, %v1848
        %v1887 = vadd.f32 %v1678, %v1850
        %v1888 = vadd.f32 %v1679, %v1853
        %v1889 = vadd.f32 %v1680, %v1855
        %v1890 = vadd.f32 %v1681, %v1858
        %v1891 = vadd.f32 %v1682, %v1860
        %v1892 = vadd.f32 %v1683, %v1863
        %v1893 = vadd.f32 %v1684, %v1865
        %v1894 = vadd.f32 %v1685, %v1868
        %v1895 = vadd.f32 %v1686, %v1870
        %v1896 = vadd.f32 %v1687, %v1873
        %v1897 = vadd.f32 %v1688, %v1875
        %v1898 = vadd.f32 %v1689, %v1878
        %v1899 = vadd.f32 %v1690, %v1880
        %v1900 = vld [vmem:[%s337 + $0x18] sm:$0xf]
        %v1901 = vld [vmem:[%s337 + $0x1c] sm:$0xf]
        %v1902 = vld [vmem:[%s337 + $0x20] sm:$0xf]
        %v1903 = vld [vmem:[%s337 + $0x24] sm:$0xf]
        %v1904 = vld [vmem:[%s337 + $0x28] sm:$0xf]
        %v1905 = vld [vmem:[%s337 + $0x2c] sm:$0xf]
        %v1906 = vld [vmem:[%s337 + $0x30] sm:$0xf]
        %v1907 = vld [vmem:[%s337 + $0x34] sm:$0xf]
        %v1908 = vld [vmem:[%s337 + $0x38] sm:$0xf]
        %v1909 = vld [vmem:[%s337 + $0x3c] sm:$0xf]
        %v1910 = vld [vmem:[%s337 + $0x40] sm:$0xf]
        %v1911 = vld [vmem:[%s337 + $0x44] sm:$0xf]
        %v1912 = vld [vmem:[%s337 + $0x48] sm:$0xf]
        %v1913 = vld [vmem:[%s337 + $0x4c] sm:$0xf]
        %v1914 = vld [vmem:[%s337 + $0x50] sm:$0xf]
        %v1915 = vld [vmem:[%s337 + $0x54] sm:$0xf]
        %v1916 = vld [vmem:[%s337 + $0x58] sm:$0xf]
        %v1917 = vld [vmem:[%s337 + $0x5c] sm:$0xf]
        %v1918 = vld [vmem:[%s337 + $0x60] sm:$0x1]
        %s1919 = scalar_lea.vmem %s1, 448
        %v1920 = vld [vmem:[%s1919] sm:$0xf]
        %v1921 = vld [vmem:[%s1919 + $0x4] sm:$0xf]
        %v1922 = vld [vmem:[%s1919 + $0x8] sm:$0xf]
        %v1923 = vld [vmem:[%s1919 + $0xc] sm:$0xf]
        %v1924 = vld [vmem:[%s1919 + $0x10] sm:$0xf]
        %v1925 = vld [vmem:[%s1919 + $0x14] sm:$0xf]
        %v1926 = vld [vmem:[%s1919 + $0x18] sm:$0xf]
        %v1927 = vld [vmem:[%s1919 + $0x1c] sm:$0xf]
        %v1928 = vld [vmem:[%s1919 + $0x20] sm:$0xf]
        %v1929 = vld [vmem:[%s1919 + $0x24] sm:$0xf]
        %v1930 = vld [vmem:[%s1919 + $0x28] sm:$0xf]
        %v1931 = vld [vmem:[%s1919 + $0x2c] sm:$0xf]
        %v1932 = vld [vmem:[%s1919 + $0x30] sm:$0xf]
        %v1933 = vld [vmem:[%s1919 + $0x34] sm:$0xf]
        %v1934 = vld [vmem:[%s1919 + $0x38] sm:$0xf]
        %v1935 = vld [vmem:[%s1919 + $0x3c] sm:$0xf]
        %v1955 = vunpack.c.l.b16 %v1900
        %v1956 = vunpack.c.l.b16 %v1901
        %v1957 = vunpack.c.l.b16 %v1902
        %v1958 = vunpack.c.l.b16 %v1903
        %v1959 = vunpack.c.l.b16 %v1904
        %v1960 = vunpack.c.l.b16 %v1905
        %v1961 = vunpack.c.l.b16 %v1906
        %v1962 = vunpack.c.l.b16 %v1907
        %v1963 = vunpack.c.l.b16 %v1908
        %v1964 = vunpack.c.l.b16 %v1909
        %v1965 = vunpack.c.l.b16 %v1910
        %v1966 = vunpack.c.l.b16 %v1911
        %v1967 = vunpack.c.l.b16 %v1912
        %v1968 = vunpack.c.l.b16 %v1913
        %v1969 = vunpack.c.l.b16 %v1914
        %v1970 = vunpack.c.l.b16 %v1915
        %v1971 = vunpack.c.l.b16 %v1916
        %v1972 = vunpack.c.l.b16 %v1917
        %v1973 = vunpack.c.l.b16 %v1918
        %v1974 = vpack.c.b16 %v1956, %v1955
        %v1975 = vpack.c.b16 %v1958, %v1957
        %v1976 = vpack.c.b16 %v1960, %v1959
        %v1977 = vpack.c.b16 %v1962, %v1961
        %v1978 = vpack.c.b16 %v1964, %v1963
        %v1979 = vpack.c.b16 %v1966, %v1965
        %v1980 = vpack.c.b16 %v1968, %v1967
        %v1981 = vpack.c.b16 %v1970, %v1969
        %v1982 = vpack.c.b16 %v1972, %v1971
        %v1983 = vpack.c.b16 %v1973, %v1973
        %v1985 = vshrl.u32 %v1974, 16
        %v1987 = vshll.u32 %v1974, 16
        %v1989 = vrot.slane %v1987, 1
        %v1990 = vor.u32 %v1985, %v1989
        %v1992 = vshll.u32 %v1975, 16
        %v1994 = vrot.slane %v1992, 1
        %v1995 = vsel %vm555, %v1990, %v1994
        %v1996 = vshrl.u32 %v1975, 16
        %v1998 = vor.u32 %v1996, %v1994
        %v2000 = vshll.u32 %v1976, 16
        %v2002 = vrot.slane %v2000, 1
        %v2003 = vsel %vm555, %v1998, %v2002
        %v2004 = vshrl.u32 %v1976, 16
        %v2006 = vor.u32 %v2004, %v2002
        %v2008 = vshll.u32 %v1977, 16
        %v2010 = vrot.slane %v2008, 1
        %v2011 = vsel %vm555, %v2006, %v2010
        %v2012 = vshrl.u32 %v1977, 16
        %v2014 = vor.u32 %v2012, %v2010
        %v2016 = vshll.u32 %v1978, 16
        %v2018 = vrot.slane %v2016, 1
        %v2019 = vsel %vm555, %v2014, %v2018
        %v2020 = vshrl.u32 %v1978, 16
        %v2022 = vor.u32 %v2020, %v2018
        %v2024 = vshll.u32 %v1979, 16
        %v2026 = vrot.slane %v2024, 1
        %v2027 = vsel %vm555, %v2022, %v2026
        %v2028 = vshrl.u32 %v1979, 16
        %v2030 = vor.u32 %v2028, %v2026
        %v2032 = vshll.u32 %v1980, 16
        %v2034 = vrot.slane %v2032, 1
        %v2035 = vsel %vm555, %v2030, %v2034
        %v2036 = vshrl.u32 %v1980, 16
        %v2038 = vor.u32 %v2036, %v2034
        %v2040 = vshll.u32 %v1981, 16
        %v2042 = vrot.slane %v2040, 1
        %v2043 = vsel %vm555, %v2038, %v2042
        %v2044 = vshrl.u32 %v1981, 16
        %v2046 = vor.u32 %v2044, %v2042
        %v2048 = vshll.u32 %v1982, 16
        %v2050 = vrot.slane %v2048, 1
        %v2051 = vsel %vm555, %v2046, %v2050
        %v2052 = vshrl.u32 %v1982, 16
        %v2054 = vor.u32 %v2052, %v2050
        %v2056 = vshll.u32 %v1983, 16
        %v2058 = vrot.slane %v2056, 1
        %v2059 = vsel %vm555, %v2054, %v2058
        %v2085 = vunpack.c.l.b16 %v1920
        %v2086 = vunpack.c.l.b16 %v1921
        %v2087 = vunpack.c.l.b16 %v1922
        %v2088 = vunpack.c.l.b16 %v1923
        %v2089 = vunpack.c.l.b16 %v1924
        %v2090 = vunpack.c.l.b16 %v1925
        %v2091 = vunpack.c.l.b16 %v1926
        %v2092 = vunpack.c.l.b16 %v1927
        %v2093 = vunpack.c.l.b16 %v1928
        %v2094 = vunpack.c.l.b16 %v1929
        %v2095 = vunpack.c.l.b16 %v1930
        %v2096 = vunpack.c.l.b16 %v1931
        %v2097 = vunpack.c.l.b16 %v1932
        %v2098 = vunpack.c.l.b16 %v1933
        %v2099 = vunpack.c.l.b16 %v1934
        %v2100 = vunpack.c.l.b16 %v1935
        %v2101 = vpack.c.b16 %v2086, %v2085
        %v2102 = vpack.c.b16 %v2088, %v2087
        %v2103 = vpack.c.b16 %v2090, %v2089
        %v2104 = vpack.c.b16 %v2092, %v2091
        %v2105 = vpack.c.b16 %v2094, %v2093
        %v2106 = vpack.c.b16 %v2096, %v2095
        %v2107 = vpack.c.b16 %v2098, %v2097
        %v2108 = vpack.c.b16 %v2100, %v2099
        %2117 = vmatpush.bf16.msra.mxu0 %v2108
        %2118 = vmatpush.bf16.msra.mxu0 %v2107
        %2119 = vmatpush.bf16.msra.mxu0 %v2106
        %2120 = vmatpush.bf16.msra.mxu0 %v2105
        %2121 = vmatpush.bf16.msra.mxu0 %v2104
        %2122 = vmatpush.bf16.msra.mxu0 %v2103
        %2123 = vmatpush.bf16.msra.mxu0 %v2102
        %2124 = vmatpush.bf16.msra.mxu0 %v2101
        %2125 = vmatmul.bf16.gmra.mxu0 %v1995
        %v2126 = vpop.f32.mrf.mxu0
        %v2127 = vadd.f32 0.0, %v2126
        %v2128 = vpop.f32.mrf.mxu0
        %v2129 = vadd.f32 0.0, %v2128
        %2130 = vmatmul.bf16.gmra.mxu0 %v2003
        %v2131 = vpop.f32.mrf.mxu0
        %v2132 = vadd.f32 0.0, %v2131
        %v2133 = vpop.f32.mrf.mxu0
        %v2134 = vadd.f32 0.0, %v2133
        %2135 = vmatmul.bf16.gmra.mxu0 %v2011
        %v2136 = vpop.f32.mrf.mxu0
        %v2137 = vadd.f32 0.0, %v2136
        %v2138 = vpop.f32.mrf.mxu0
        %v2139 = vadd.f32 0.0, %v2138
        %2140 = vmatmul.bf16.gmra.mxu0 %v2019
        %v2141 = vpop.f32.mrf.mxu0
        %v2142 = vadd.f32 0.0, %v2141
        %v2143 = vpop.f32.mrf.mxu0
        %v2144 = vadd.f32 0.0, %v2143
        %2145 = vmatmul.bf16.gmra.mxu0 %v2027
        %v2146 = vpop.f32.mrf.mxu0
        %v2147 = vadd.f32 0.0, %v2146
        %v2148 = vpop.f32.mrf.mxu0
        %v2149 = vadd.f32 0.0, %v2148
        %2150 = vmatmul.bf16.gmra.mxu0 %v2035
        %v2151 = vpop.f32.mrf.mxu0
        %v2152 = vadd.f32 0.0, %v2151
        %v2153 = vpop.f32.mrf.mxu0
        %v2154 = vadd.f32 0.0, %v2153
        %2155 = vmatmul.bf16.gmra.mxu0 %v2043
        %v2156 = vpop.f32.mrf.mxu0
        %v2157 = vadd.f32 0.0, %v2156
        %v2158 = vpop.f32.mrf.mxu0
        %v2159 = vadd.f32 0.0, %v2158
        %2160 = vmatmul.bf16.gmra.mxu0 %v2051
        %v2161 = vpop.f32.mrf.mxu0
        %v2162 = vadd.f32 0.0, %v2161
        %v2163 = vpop.f32.mrf.mxu0
        %v2164 = vadd.f32 0.0, %v2163
        %2165 = vmatmul.bf16.gmra.mxu0 %v2059
        %v2166 = vpop.f32.mrf.mxu0
        %v2167 = vadd.f32 0.0, %v2166
        %v2168 = vpop.f32.mrf.mxu0
        %v2169 = vadd.f32 0.0, %v2168
        %2170 = vdwg.mxu0
        %v2171 = vadd.f32 %v1882, %v2127
        %v2172 = vadd.f32 %v1883, %v2129
        %v2173 = vadd.f32 %v1884, %v2132
        %v2174 = vadd.f32 %v1885, %v2134
        %v2175 = vadd.f32 %v1886, %v2137
        %v2176 = vadd.f32 %v1887, %v2139
        %v2177 = vadd.f32 %v1888, %v2142
        %v2178 = vadd.f32 %v1889, %v2144
        %v2179 = vadd.f32 %v1890, %v2147
        %v2180 = vadd.f32 %v1891, %v2149
        %v2181 = vadd.f32 %v1892, %v2152
        %v2182 = vadd.f32 %v1893, %v2154
        %v2183 = vadd.f32 %v1894, %v2157
        %v2184 = vadd.f32 %v1895, %v2159
        %v2185 = vadd.f32 %v1896, %v2162
        %v2186 = vadd.f32 %v1897, %v2164
        %v2187 = vadd.f32 %v1898, %v2167
        %v2188 = vadd.f32 %v1899, %v2169
        %v2189 = vld [vmem:[%s337 + $0x18] sm:$0xe]
        %s2190 = scalar_lea.vmem %s1, 512
        %v2191 = vld [vmem:[%s2190] sm:$0xf]
        %v2192 = vld [vmem:[%s2190 + $0x4] sm:$0xf]
        %v2193 = vld [vmem:[%s2190 + $0x8] sm:$0xf]
        %v2194 = vld [vmem:[%s2190 + $0xc] sm:$0xf]
        %v2195 = vld [vmem:[%s2190 + $0x10] sm:$0xf]
        %v2196 = vld [vmem:[%s2190 + $0x14] sm:$0xf]
        %v2197 = vld [vmem:[%s2190 + $0x18] sm:$0xf]
        %v2198 = vld [vmem:[%s2190 + $0x1c] sm:$0xf]
        %v2199 = vld [vmem:[%s2190 + $0x20] sm:$0xf]
        %v2200 = vld [vmem:[%s2190 + $0x24] sm:$0xf]
        %v2201 = vld [vmem:[%s2190 + $0x28] sm:$0xf]
        %v2202 = vld [vmem:[%s2190 + $0x2c] sm:$0xf]
        %v2203 = vld [vmem:[%s2190 + $0x30] sm:$0xf]
        %v2204 = vld [vmem:[%s2190 + $0x34] sm:$0xf]
        %v2205 = vld [vmem:[%s2190 + $0x38] sm:$0xf]
        %v2206 = vld [vmem:[%s2190 + $0x3c] sm:$0xf]
        %v2208 = vunpack.c.l.b16 %v2189
        %v2209 = vpack.c.b16 %v1956, %v2208
        %v2210 = vrot.slane %v2209, 1
        %v2211 = vrot.slane %v1975, 1
        %v2212 = vsel %vm875, %v2210, %v2211
        %v2213 = vrot.slane %v1976, 1
        %v2214 = vsel %vm875, %v2211, %v2213
        %v2215 = vrot.slane %v1977, 1
        %v2216 = vsel %vm875, %v2213, %v2215
        %v2217 = vrot.slane %v1978, 1
        %v2218 = vsel %vm875, %v2215, %v2217
        %v2219 = vrot.slane %v1979, 1
        %v2220 = vsel %vm875, %v2217, %v2219
        %v2221 = vrot.slane %v1980, 1
        %v2222 = vsel %vm875, %v2219, %v2221
        %v2223 = vrot.slane %v1981, 1
        %v2224 = vsel %vm875, %v2221, %v2223
        %v2225 = vrot.slane %v1982, 1
        %v2226 = vsel %vm875, %v2223, %v2225
        %v2227 = vrot.slane %v1983, 1
        %v2228 = vsel %vm875, %v2225, %v2227
        %v2254 = vunpack.c.l.b16 %v2191
        %v2255 = vunpack.c.l.b16 %v2192
        %v2256 = vunpack.c.l.b16 %v2193
        %v2257 = vunpack.c.l.b16 %v2194
        %v2258 = vunpack.c.l.b16 %v2195
        %v2259 = vunpack.c.l.b16 %v2196
        %v2260 = vunpack.c.l.b16 %v2197
        %v2261 = vunpack.c.l.b16 %v2198
        %v2262 = vunpack.c.l.b16 %v2199
        %v2263 = vunpack.c.l.b16 %v2200
        %v2264 = vunpack.c.l.b16 %v2201
        %v2265 = vunpack.c.l.b16 %v2202
        %v2266 = vunpack.c.l.b16 %v2203
        %v2267 = vunpack.c.l.b16 %v2204
        %v2268 = vunpack.c.l.b16 %v2205
        %v2269 = vunpack.c.l.b16 %v2206
        %v2270 = vpack.c.b16 %v2255, %v2254
        %v2271 = vpack.c.b16 %v2257, %v2256
        %v2272 = vpack.c.b16 %v2259, %v2258
        %v2273 = vpack.c.b16 %v2261, %v2260
        %v2274 = vpack.c.b16 %v2263, %v2262
        %v2275 = vpack.c.b16 %v2265, %v2264
        %v2276 = vpack.c.b16 %v2267, %v2266
        %v2277 = vpack.c.b16 %v2269, %v2268
        %2286 = vmatpush.bf16.msra.mxu0 %v2277
        %2287 = vmatpush.bf16.msra.mxu0 %v2276
        %2288 = vmatpush.bf16.msra.mxu0 %v2275
        %2289 = vmatpush.bf16.msra.mxu0 %v2274
        %2290 = vmatpush.bf16.msra.mxu0 %v2273
        %2291 = vmatpush.bf16.msra.mxu0 %v2272
        %2292 = vmatpush.bf16.msra.mxu0 %v2271
        %2293 = vmatpush.bf16.msra.mxu0 %v2270
        %2294 = vmatmul.bf16.gmra.mxu0 %v2212
        %v2295 = vpop.f32.mrf.mxu0
        %v2296 = vadd.f32 0.0, %v2295
        %v2297 = vpop.f32.mrf.mxu0
        %v2298 = vadd.f32 0.0, %v2297
        %2299 = vmatmul.bf16.gmra.mxu0 %v2214
        %v2300 = vpop.f32.mrf.mxu0
        %v2301 = vadd.f32 0.0, %v2300
        %v2302 = vpop.f32.mrf.mxu0
        %v2303 = vadd.f32 0.0, %v2302
        %2304 = vmatmul.bf16.gmra.mxu0 %v2216
        %v2305 = vpop.f32.mrf.mxu0
        %v2306 = vadd.f32 0.0, %v2305
        %v2307 = vpop.f32.mrf.mxu0
        %v2308 = vadd.f32 0.0, %v2307
        %2309 = vmatmul.bf16.gmra.mxu0 %v2218
        %v2310 = vpop.f32.mrf.mxu0
        %v2311 = vadd.f32 0.0, %v2310
        %v2312 = vpop.f32.mrf.mxu0
        %v2313 = vadd.f32 0.0, %v2312
        %2314 = vmatmul.bf16.gmra.mxu0 %v2220
        %v2315 = vpop.f32.mrf.mxu0
        %v2316 = vadd.f32 0.0, %v2315
        %v2317 = vpop.f32.mrf.mxu0
        %v2318 = vadd.f32 0.0, %v2317
        %2319 = vmatmul.bf16.gmra.mxu0 %v2222
        %v2320 = vpop.f32.mrf.mxu0
        %v2321 = vadd.f32 0.0, %v2320
        %v2322 = vpop.f32.mrf.mxu0
        %v2323 = vadd.f32 0.0, %v2322
        %2324 = vmatmul.bf16.gmra.mxu0 %v2224
        %v2325 = vpop.f32.mrf.mxu0
        %v2326 = vadd.f32 0.0, %v2325
        %v2327 = vpop.f32.mrf.mxu0
        %v2328 = vadd.f32 0.0, %v2327
        %2329 = vmatmul.bf16.gmra.mxu0 %v2226
        %v2330 = vpop.f32.mrf.mxu0
        %v2331 = vadd.f32 0.0, %v2330
        %v2332 = vpop.f32.mrf.mxu0
        %v2333 = vadd.f32 0.0, %v2332
        %2334 = vmatmul.bf16.gmra.mxu0 %v2228
        %v2335 = vpop.f32.mrf.mxu0
        %v2336 = vadd.f32 0.0, %v2335
        %v2337 = vpop.f32.mrf.mxu0
        %v2338 = vadd.f32 0.0, %v2337
        %2339 = vdwg.mxu0
        %v2340 = vadd.f32 %v2171, %v2296
        %v2341 = vadd.f32 %v2172, %v2298
        %v2342 = vadd.f32 %v2173, %v2301
        %v2343 = vadd.f32 %v2174, %v2303
        %v2344 = vadd.f32 %v2175, %v2306
        %v2345 = vadd.f32 %v2176, %v2308
        %v2346 = vadd.f32 %v2177, %v2311
        %v2347 = vadd.f32 %v2178, %v2313
        %v2348 = vadd.f32 %v2179, %v2316
        %v2349 = vadd.f32 %v2180, %v2318
        %v2350 = vadd.f32 %v2181, %v2321
        %v2351 = vadd.f32 %v2182, %v2323
        %v2352 = vadd.f32 %v2183, %v2326
        %v2353 = vadd.f32 %v2184, %v2328
        %v2354 = vadd.f32 %v2185, %v2331
        %v2355 = vadd.f32 %v2186, %v2333
        %v2356 = vadd.f32 %v2187, %v2336
        %v2357 = vadd.f32 %v2188, %v2338
        %v2358 = vmax.f32 %v2340, 0.0
        %v2359 = vmax.f32 %v2341, 0.0
        %v2360 = vmax.f32 %v2342, 0.0
        %v2361 = vmax.f32 %v2343, 0.0
        %v2362 = vmax.f32 %v2344, 0.0
        %v2363 = vmax.f32 %v2345, 0.0
        %v2364 = vmax.f32 %v2346, 0.0
        %v2365 = vmax.f32 %v2347, 0.0
        %v2366 = vmax.f32 %v2348, 0.0
        %v2367 = vmax.f32 %v2349, 0.0
        %v2368 = vmax.f32 %v2350, 0.0
        %v2369 = vmax.f32 %v2351, 0.0
        %v2370 = vmax.f32 %v2352, 0.0
        %v2371 = vmax.f32 %v2353, 0.0
        %v2372 = vmax.f32 %v2354, 0.0
        %v2373 = vmax.f32 %v2355, 0.0
        %v2374 = vmax.f32 %v2356, 0.0
        %v2375 = vmax.f32 %v2357, 0.0
        %2377 = vset.pattern.permute.xlu0 0
        %2378 = vperm.xlu0 %2377, %v437
        %v2379 = vpop.permute.xlu0 %2378
        %2382 = vset.pattern.permute.xlu0 0
        %2383 = vperm.xlu0 %2382, %v438
        %v2384 = vpop.permute.xlu0 %2383
        %2387 = vset.pattern.permute.xlu0 0
        %2388 = vperm.xlu0 %2387, %v439
        %v2389 = vpop.permute.xlu0 %2388
        %2392 = vset.pattern.permute.xlu0 0
        %2393 = vperm.xlu0 %2392, %v440
        %v2394 = vpop.permute.xlu0 %2393
        %2397 = vset.pattern.permute.xlu0 0
        %2398 = vperm.xlu0 %2397, %v441
        %v2399 = vpop.permute.xlu0 %2398
        %2402 = vset.pattern.permute.xlu0 0
        %2403 = vperm.xlu0 %2402, %v442
        %v2404 = vpop.permute.xlu0 %2403
        %2407 = vset.pattern.permute.xlu0 0
        %2408 = vperm.xlu0 %2407, %v443
        %v2409 = vpop.permute.xlu0 %2408
        %2412 = vset.pattern.permute.xlu0 0
        %2413 = vperm.xlu0 %2412, %v444
        %v2414 = vpop.permute.xlu0 %2413
        %2417 = vset.pattern.permute.xlu0 0
        %2418 = vperm.xlu0 %2417, %v445
        %v2419 = vpop.permute.xlu0 %2418
        %2422 = vset.pattern.permute.xlu0 0
        %2423 = vperm.xlu0 %2422, %v446
        %v2424 = vpop.permute.xlu0 %2423
        %2427 = vset.pattern.permute.xlu0 0
        %2428 = vperm.xlu0 %2427, %v447
        %v2429 = vpop.permute.xlu0 %2428
        %2432 = vset.pattern.permute.xlu0 0
        %2433 = vperm.xlu0 %2432, %v448
        %v2434 = vpop.permute.xlu0 %2433
        %2437 = vset.pattern.permute.xlu0 0
        %2438 = vperm.xlu0 %2437, %v449
        %v2439 = vpop.permute.xlu0 %2438
        %2442 = vset.pattern.permute.xlu0 0
        %2443 = vperm.xlu0 %2442, %v450
        %v2444 = vpop.permute.xlu0 %2443
        %2447 = vset.pattern.permute.xlu0 0
        %2448 = vperm.xlu0 %2447, %v451
        %v2449 = vpop.permute.xlu0 %2448
        %2452 = vset.pattern.permute.xlu0 0
        %2453 = vperm.xlu0 %2452, %v452
        %v2454 = vpop.permute.xlu0 %2453
        %2457 = vset.pattern.permute.xlu0 0
        %2458 = vperm.xlu0 %2457, %v453
        %v2459 = vpop.permute.xlu0 %2458
        %2462 = vset.pattern.permute.xlu0 0
        %2463 = vperm.xlu0 %2462, %v454
        %v2464 = vpop.permute.xlu0 %2463
        %v2466 = vmul.f32 %v2358, %v2379
        %v2467 = vmul.f32 %v2359, %v2384
        %v2468 = vmul.f32 %v2360, %v2389
        %v2469 = vmul.f32 %v2361, %v2394
        %v2470 = vmul.f32 %v2362, %v2399
        %v2471 = vmul.f32 %v2363, %v2404
        %v2472 = vmul.f32 %v2364, %v2409
        %v2473 = vmul.f32 %v2365, %v2414
        %v2474 = vmul.f32 %v2366, %v2419
        %v2475 = vmul.f32 %v2367, %v2424
        %v2476 = vmul.f32 %v2368, %v2429
        %v2477 = vmul.f32 %v2369, %v2434
        %v2478 = vmul.f32 %v2370, %v2439
        %v2479 = vmul.f32 %v2371, %v2444
        %v2480 = vmul.f32 %v2372, %v2449
        %v2481 = vmul.f32 %v2373, %v2454
        %v2482 = vmul.f32 %v2374, %v2459
        %v2483 = vmul.f32 %v2375, %v2464
        %v2484 = vpack.c.bf16 %v2466, %v2466
        %v2485 = vpack.c.bf16 %v2467, %v2467
        %v2486 = vpack.c.bf16 %v2468, %v2468
        %v2487 = vpack.c.bf16 %v2469, %v2469
        %v2488 = vpack.c.bf16 %v2470, %v2470
        %v2489 = vpack.c.bf16 %v2471, %v2471
        %v2490 = vpack.c.bf16 %v2472, %v2472
        %v2491 = vpack.c.bf16 %v2473, %v2473
        %v2492 = vpack.c.bf16 %v2474, %v2474
        %v2493 = vpack.c.bf16 %v2475, %v2475
        %v2494 = vpack.c.bf16 %v2476, %v2476
        %v2495 = vpack.c.bf16 %v2477, %v2477
        %v2496 = vpack.c.bf16 %v2478, %v2478
        %v2497 = vpack.c.bf16 %v2479, %v2479
        %v2498 = vpack.c.bf16 %v2480, %v2480
        %v2499 = vpack.c.bf16 %v2481, %v2481
        %v2500 = vpack.c.bf16 %v2482, %v2482
        %v2501 = vpack.c.bf16 %v2483, %v2483
        %2502 = vst [vmem:[#allocation3] sm:$0xf] %v2484
        %2503 = vst [vmem:[#allocation3 + $0x4] sm:$0xf] %v2485
        %2504 = vst [vmem:[#allocation3 + $0x8] sm:$0xf] %v2486
        %2505 = vst [vmem:[#allocation3 + $0xc] sm:$0xf] %v2487
        %2506 = vst [vmem:[#allocation3 + $0x10] sm:$0xf] %v2488
        %2507 = vst [vmem:[#allocation3 + $0x14] sm:$0xf] %v2489
        %2508 = vst [vmem:[#allocation3 + $0x18] sm:$0xf] %v2490
        %2509 = vst [vmem:[#allocation3 + $0x1c] sm:$0xf] %v2491
        %2510 = vst [vmem:[#allocation3 + $0x20] sm:$0xf] %v2492
        %2511 = vst [vmem:[#allocation3 + $0x24] sm:$0xf] %v2493
        %2512 = vst [vmem:[#allocation3 + $0x28] sm:$0xf] %v2494
        %2513 = vst [vmem:[#allocation3 + $0x2c] sm:$0xf] %v2495
        %2514 = vst [vmem:[#allocation3 + $0x30] sm:$0xf] %v2496
        %2515 = vst [vmem:[#allocation3 + $0x34] sm:$0xf] %v2497
        %2516 = vst [vmem:[#allocation3 + $0x38] sm:$0xf] %v2498
        %2517 = vst [vmem:[#allocation3 + $0x3c] sm:$0xf] %v2499
        %2518 = vst [vmem:[#allocation3 + $0x40] sm:$0xf] %v2500
        %2519 = vst [vmem:[#allocation3 + $0x44] sm:$0xf] %v2501
        %v2520 = vld [vmem:[%s337 + $0x48] sm:$0xf]
        %v2521 = vld [vmem:[%s337 + $0x4c] sm:$0xf]
        %v2522 = vld [vmem:[%s337 + $0x50] sm:$0xf]
        %v2523 = vld [vmem:[%s337 + $0x54] sm:$0xf]
        %v2524 = vld [vmem:[%s337 + $0x58] sm:$0xf]
        %v2525 = vld [vmem:[%s337 + $0x5c] sm:$0xf]
        %v2526 = vld [vmem:[%s337 + $0x60] sm:$0xf]
        %v2527 = vld [vmem:[%s337 + $0x64] sm:$0xf]
        %v2528 = vld [vmem:[%s337 + $0x68] sm:$0xf]
        %v2529 = vld [vmem:[%s337 + $0x6c] sm:$0xf]
        %v2530 = vld [vmem:[%s337 + $0x70] sm:$0xf]
        %v2531 = vld [vmem:[%s337 + $0x74] sm:$0xf]
        %v2532 = vld [vmem:[%s337 + $0x78] sm:$0xf]
        %v2533 = vld [vmem:[%s337 + $0x7c] sm:$0xf]
        %v2534 = vld [vmem:[%s337 + $0x80] sm:$0xf]
        %v2535 = vld [vmem:[%s337 + $0x84] sm:$0xf]
        %v2536 = vld [vmem:[%s337 + $0x88] sm:$0xf]
        %v2537 = vld [vmem:[%s337 + $0x8c] sm:$0xf]
        %v2538 = vld [vmem:[%s1] sm:$0xf]
        %v2539 = vld [vmem:[%s1 + $0x4] sm:$0xf]
        %v2540 = vld [vmem:[%s1 + $0x8] sm:$0xf]
        %v2541 = vld [vmem:[%s1 + $0xc] sm:$0xf]
        %v2542 = vld [vmem:[%s1 + $0x10] sm:$0xf]
        %v2543 = vld [vmem:[%s1 + $0x14] sm:$0xf]
        %v2544 = vld [vmem:[%s1 + $0x18] sm:$0xf]
        %v2545 = vld [vmem:[%s1 + $0x1c] sm:$0xf]
        %v2546 = vld [vmem:[%s1 + $0x20] sm:$0xf]
        %v2547 = vld [vmem:[%s1 + $0x24] sm:$0xf]
        %v2548 = vld [vmem:[%s1 + $0x28] sm:$0xf]
        %v2549 = vld [vmem:[%s1 + $0x2c] sm:$0xf]
        %v2550 = vld [vmem:[%s1 + $0x30] sm:$0xf]
        %v2551 = vld [vmem:[%s1 + $0x34] sm:$0xf]
        %v2552 = vld [vmem:[%s1 + $0x38] sm:$0xf]
        %v2553 = vld [vmem:[%s1 + $0x3c] sm:$0xf]
        %v2554 = vld [vmem:[%s337 + $0x90] sm:$0x1]
        %v2555 = vld [vmem:[%s490] sm:$0xf]
        %v2556 = vld [vmem:[%s490 + $0x4] sm:$0xf]
        %v2557 = vld [vmem:[%s490 + $0x8] sm:$0xf]
        %v2558 = vld [vmem:[%s490 + $0xc] sm:$0xf]
        %v2559 = vld [vmem:[%s490 + $0x10] sm:$0xf]
        %v2560 = vld [vmem:[%s490 + $0x14] sm:$0xf]
        %v2561 = vld [vmem:[%s490 + $0x18] sm:$0xf]
        %v2562 = vld [vmem:[%s490 + $0x1c] sm:$0xf]
        %v2563 = vld [vmem:[%s490 + $0x20] sm:$0xf]
        %v2564 = vld [vmem:[%s490 + $0x24] sm:$0xf]
        %v2565 = vld [vmem:[%s490 + $0x28] sm:$0xf]
        %v2566 = vld [vmem:[%s490 + $0x2c] sm:$0xf]
        %v2567 = vld [vmem:[%s490 + $0x30] sm:$0xf]
        %v2568 = vld [vmem:[%s490 + $0x34] sm:$0xf]
        %v2569 = vld [vmem:[%s490 + $0x38] sm:$0xf]
        %v2570 = vld [vmem:[%s490 + $0x3c] sm:$0xf]
        %v2590 = vunpack.c.l.b16 %v2520
        %v2591 = vunpack.c.l.b16 %v2521
        %v2592 = vunpack.c.l.b16 %v2522
        %v2593 = vunpack.c.l.b16 %v2523
        %v2594 = vunpack.c.l.b16 %v2524
        %v2595 = vunpack.c.l.b16 %v2525
        %v2596 = vunpack.c.l.b16 %v2526
        %v2597 = vunpack.c.l.b16 %v2527
        %v2598 = vunpack.c.l.b16 %v2528
        %v2599 = vunpack.c.l.b16 %v2529
        %v2600 = vunpack.c.l.b16 %v2530
        %v2601 = vunpack.c.l.b16 %v2531
        %v2602 = vunpack.c.l.b16 %v2532
        %v2603 = vunpack.c.l.b16 %v2533
        %v2604 = vunpack.c.l.b16 %v2534
        %v2605 = vunpack.c.l.b16 %v2535
        %v2606 = vunpack.c.l.b16 %v2536
        %v2607 = vunpack.c.l.b16 %v2537
        %v2608 = vunpack.c.l.b16 %v2554
        %v2609 = vpack.c.b16 %v2591, %v2590
        %v2610 = vpack.c.b16 %v2593, %v2592
        %v2611 = vpack.c.b16 %v2595, %v2594
        %v2612 = vpack.c.b16 %v2597, %v2596
        %v2613 = vpack.c.b16 %v2599, %v2598
        %v2614 = vpack.c.b16 %v2601, %v2600
        %v2615 = vpack.c.b16 %v2603, %v2602
        %v2616 = vpack.c.b16 %v2605, %v2604
        %v2617 = vpack.c.b16 %v2607, %v2606
        %v2618 = vpack.c.b16 %v2608, %v2608
        %v2620 = vshrl.u32 %v2609, 16
        %v2622 = vshll.u32 %v2609, 16
        %v2624 = vrot.slane %v2622, 1
        %v2625 = vor.u32 %v2620, %v2624
        %v2627 = vshll.u32 %v2610, 16
        %v2629 = vrot.slane %v2627, 1
        %v2630 = vsel %vm555, %v2625, %v2629
        %v2631 = vshrl.u32 %v2610, 16
        %v2633 = vor.u32 %v2631, %v2629
        %v2635 = vshll.u32 %v2611, 16
        %v2637 = vrot.slane %v2635, 1
        %v2638 = vsel %vm555, %v2633, %v2637
        %v2639 = vshrl.u32 %v2611, 16
        %v2641 = vor.u32 %v2639, %v2637
        %v2643 = vshll.u32 %v2612, 16
        %v2645 = vrot.slane %v2643, 1
        %v2646 = vsel %vm555, %v2641, %v2645
        %v2647 = vshrl.u32 %v2612, 16
        %v2649 = vor.u32 %v2647, %v2645
        %v2651 = vshll.u32 %v2613, 16
        %v2653 = vrot.slane %v2651, 1
        %v2654 = vsel %vm555, %v2649, %v2653
        %v2655 = vshrl.u32 %v2613, 16
        %v2657 = vor.u32 %v2655, %v2653
        %v2659 = vshll.u32 %v2614, 16
        %v2661 = vrot.slane %v2659, 1
        %v2662 = vsel %vm555, %v2657, %v2661
        %v2663 = vshrl.u32 %v2614, 16
        %v2665 = vor.u32 %v2663, %v2661
        %v2667 = vshll.u32 %v2615, 16
        %v2669 = vrot.slane %v2667, 1
        %v2670 = vsel %vm555, %v2665, %v2669
        %v2671 = vshrl.u32 %v2615, 16
        %v2673 = vor.u32 %v2671, %v2669
        %v2675 = vshll.u32 %v2616, 16
        %v2677 = vrot.slane %v2675, 1
        %v2678 = vsel %vm555, %v2673, %v2677
        %v2679 = vshrl.u32 %v2616, 16
        %v2681 = vor.u32 %v2679, %v2677
        %v2683 = vshll.u32 %v2617, 16
        %v2685 = vrot.slane %v2683, 1
        %v2686 = vsel %vm555, %v2681, %v2685
        %v2687 = vshrl.u32 %v2617, 16
        %v2689 = vor.u32 %v2687, %v2685
        %v2691 = vshll.u32 %v2618, 16
        %v2693 = vrot.slane %v2691, 1
        %v2694 = vsel %vm555, %v2689, %v2693
        %v2720 = vunpack.c.l.b16 %v2555
        %v2721 = vunpack.c.l.b16 %v2556
        %v2722 = vunpack.c.l.b16 %v2557
        %v2723 = vunpack.c.l.b16 %v2558
        %v2724 = vunpack.c.l.b16 %v2559
        %v2725 = vunpack.c.l.b16 %v2560
        %v2726 = vunpack.c.l.b16 %v2561
        %v2727 = vunpack.c.l.b16 %v2562
        %v2728 = vunpack.c.l.b16 %v2563
        %v2729 = vunpack.c.l.b16 %v2564
        %v2730 = vunpack.c.l.b16 %v2565
        %v2731 = vunpack.c.l.b16 %v2566
        %v2732 = vunpack.c.l.b16 %v2567
        %v2733 = vunpack.c.l.b16 %v2568
        %v2734 = vunpack.c.l.b16 %v2569
        %v2735 = vunpack.c.l.b16 %v2570
        %v2736 = vpack.c.b16 %v2721, %v2720
        %v2737 = vpack.c.b16 %v2723, %v2722
        %v2738 = vpack.c.b16 %v2725, %v2724
        %v2739 = vpack.c.b16 %v2727, %v2726
        %v2740 = vpack.c.b16 %v2729, %v2728
        %v2741 = vpack.c.b16 %v2731, %v2730
        %v2742 = vpack.c.b16 %v2733, %v2732
        %v2743 = vpack.c.b16 %v2735, %v2734
        %2752 = vmatpush.bf16.msra.mxu0 %v2743
        %2753 = vmatpush.bf16.msra.mxu0 %v2742
        %2754 = vmatpush.bf16.msra.mxu0 %v2741
        %2755 = vmatpush.bf16.msra.mxu0 %v2740
        %2756 = vmatpush.bf16.msra.mxu0 %v2739
        %2757 = vmatpush.bf16.msra.mxu0 %v2738
        %2758 = vmatpush.bf16.msra.mxu0 %v2737
        %2759 = vmatpush.bf16.msra.mxu0 %v2736
        %2760 = vmatmul.bf16.gmra.mxu0 %v2630
        %v2761 = vpop.f32.mrf.mxu0
        %v2762 = vadd.f32 0.0, %v2761
        %v2763 = vpop.f32.mrf.mxu0
        %v2764 = vadd.f32 0.0, %v2763
        %2765 = vmatmul.bf16.gmra.mxu0 %v2638
        %v2766 = vpop.f32.mrf.mxu0
        %v2767 = vadd.f32 0.0, %v2766
        %v2768 = vpop.f32.mrf.mxu0
        %v2769 = vadd.f32 0.0, %v2768
        %2770 = vmatmul.bf16.gmra.mxu0 %v2646
        %v2771 = vpop.f32.mrf.mxu0
        %v2772 = vadd.f32 0.0, %v2771
        %v2773 = vpop.f32.mrf.mxu0
        %v2774 = vadd.f32 0.0, %v2773
        %2775 = vmatmul.bf16.gmra.mxu0 %v2654
        %v2776 = vpop.f32.mrf.mxu0
        %v2777 = vadd.f32 0.0, %v2776
        %v2778 = vpop.f32.mrf.mxu0
        %v2779 = vadd.f32 0.0, %v2778
        %2780 = vmatmul.bf16.gmra.mxu0 %v2662
        %v2781 = vpop.f32.mrf.mxu0
        %v2782 = vadd.f32 0.0, %v2781
        %v2783 = vpop.f32.mrf.mxu0
        %v2784 = vadd.f32 0.0, %v2783
        %2785 = vmatmul.bf16.gmra.mxu0 %v2670
        %v2786 = vpop.f32.mrf.mxu0
        %v2787 = vadd.f32 0.0, %v2786
        %v2788 = vpop.f32.mrf.mxu0
        %v2789 = vadd.f32 0.0, %v2788
        %2790 = vmatmul.bf16.gmra.mxu0 %v2678
        %v2791 = vpop.f32.mrf.mxu0
        %v2792 = vadd.f32 0.0, %v2791
        %v2793 = vpop.f32.mrf.mxu0
        %v2794 = vadd.f32 0.0, %v2793
        %2795 = vmatmul.bf16.gmra.mxu0 %v2686
        %v2796 = vpop.f32.mrf.mxu0
        %v2797 = vadd.f32 0.0, %v2796
        %v2798 = vpop.f32.mrf.mxu0
        %v2799 = vadd.f32 0.0, %v2798
        %2800 = vmatmul.bf16.gmra.mxu0 %v2694
        %v2801 = vpop.f32.mrf.mxu0
        %v2802 = vadd.f32 0.0, %v2801
        %v2803 = vpop.f32.mrf.mxu0
        %v2804 = vadd.f32 0.0, %v2803
        %2805 = vdwg.mxu0
        %v2831 = vunpack.c.l.b16 %v2538
        %v2832 = vunpack.c.l.b16 %v2539
        %v2833 = vunpack.c.l.b16 %v2540
        %v2834 = vunpack.c.l.b16 %v2541
        %v2835 = vunpack.c.l.b16 %v2542
        %v2836 = vunpack.c.l.b16 %v2543
        %v2837 = vunpack.c.l.b16 %v2544
        %v2838 = vunpack.c.l.b16 %v2545
        %v2839 = vunpack.c.l.b16 %v2546
        %v2840 = vunpack.c.l.b16 %v2547
        %v2841 = vunpack.c.l.b16 %v2548
        %v2842 = vunpack.c.l.b16 %v2549
        %v2843 = vunpack.c.l.b16 %v2550
        %v2844 = vunpack.c.l.b16 %v2551
        %v2845 = vunpack.c.l.b16 %v2552
        %v2846 = vunpack.c.l.b16 %v2553
        %v2847 = vpack.c.b16 %v2832, %v2831
        %v2848 = vpack.c.b16 %v2834, %v2833
        %v2849 = vpack.c.b16 %v2836, %v2835
        %v2850 = vpack.c.b16 %v2838, %v2837
        %v2851 = vpack.c.b16 %v2840, %v2839
        %v2852 = vpack.c.b16 %v2842, %v2841
        %v2853 = vpack.c.b16 %v2844, %v2843
        %v2854 = vpack.c.b16 %v2846, %v2845
        %2863 = vmatpush.bf16.msra.mxu0 %v2854
        %2864 = vmatpush.bf16.msra.mxu0 %v2853
        %2865 = vmatpush.bf16.msra.mxu0 %v2852
        %2866 = vmatpush.bf16.msra.mxu0 %v2851
        %2867 = vmatpush.bf16.msra.mxu0 %v2850
        %2868 = vmatpush.bf16.msra.mxu0 %v2849
        %2869 = vmatpush.bf16.msra.mxu0 %v2848
        %2870 = vmatpush.bf16.msra.mxu0 %v2847
        %2871 = vmatmul.bf16.gmra.mxu0 %v2609
        %v2872 = vpop.f32.mrf.mxu0
        %v2873 = vadd.f32 %v2762, %v2872
        %v2874 = vpop.f32.mrf.mxu0
        %v2875 = vadd.f32 %v2764, %v2874
        %2876 = vmatmul.bf16.gmra.mxu0 %v2610
        %v2877 = vpop.f32.mrf.mxu0
        %v2878 = vadd.f32 %v2767, %v2877
        %v2879 = vpop.f32.mrf.mxu0
        %v2880 = vadd.f32 %v2769, %v2879
        %2881 = vmatmul.bf16.gmra.mxu0 %v2611
        %v2882 = vpop.f32.mrf.mxu0
        %v2883 = vadd.f32 %v2772, %v2882
        %v2884 = vpop.f32.mrf.mxu0
        %v2885 = vadd.f32 %v2774, %v2884
        %2886 = vmatmul.bf16.gmra.mxu0 %v2612
        %v2887 = vpop.f32.mrf.mxu0
        %v2888 = vadd.f32 %v2777, %v2887
        %v2889 = vpop.f32.mrf.mxu0
        %v2890 = vadd.f32 %v2779, %v2889
        %2891 = vmatmul.bf16.gmra.mxu0 %v2613
        %v2892 = vpop.f32.mrf.mxu0
        %v2893 = vadd.f32 %v2782, %v2892
        %v2894 = vpop.f32.mrf.mxu0
        %v2895 = vadd.f32 %v2784, %v2894
        %2896 = vmatmul.bf16.gmra.mxu0 %v2614
        %v2897 = vpop.f32.mrf.mxu0
        %v2898 = vadd.f32 %v2787, %v2897
        %v2899 = vpop.f32.mrf.mxu0
        %v2900 = vadd.f32 %v2789, %v2899
        %2901 = vmatmul.bf16.gmra.mxu0 %v2615
        %v2902 = vpop.f32.mrf.mxu0
        %v2903 = vadd.f32 %v2792, %v2902
        %v2904 = vpop.f32.mrf.mxu0
        %v2905 = vadd.f32 %v2794, %v2904
        %2906 = vmatmul.bf16.gmra.mxu0 %v2616
        %v2907 = vpop.f32.mrf.mxu0
        %v2908 = vadd.f32 %v2797, %v2907
        %v2909 = vpop.f32.mrf.mxu0
        %v2910 = vadd.f32 %v2799, %v2909
        %2911 = vmatmul.bf16.gmra.mxu0 %v2617
        %v2912 = vpop.f32.mrf.mxu0
        %v2913 = vadd.f32 %v2802, %v2912
        %v2914 = vpop.f32.mrf.mxu0
        %v2915 = vadd.f32 %v2804, %v2914
        %2916 = vdwg.mxu0
        %v2917 = vld [vmem:[%s337 + $0x48] sm:$0xe]
        %v2918 = vld [vmem:[%s855] sm:$0xf]
        %v2919 = vld [vmem:[%s855 + $0x4] sm:$0xf]
        %v2920 = vld [vmem:[%s855 + $0x8] sm:$0xf]
        %v2921 = vld [vmem:[%s855 + $0xc] sm:$0xf]
        %v2922 = vld [vmem:[%s855 + $0x10] sm:$0xf]
        %v2923 = vld [vmem:[%s855 + $0x14] sm:$0xf]
        %v2924 = vld [vmem:[%s855 + $0x18] sm:$0xf]
        %v2925 = vld [vmem:[%s855 + $0x1c] sm:$0xf]
        %v2926 = vld [vmem:[%s855 + $0x20] sm:$0xf]
        %v2927 = vld [vmem:[%s855 + $0x24] sm:$0xf]
        %v2928 = vld [vmem:[%s855 + $0x28] sm:$0xf]
        %v2929 = vld [vmem:[%s855 + $0x2c] sm:$0xf]
        %v2930 = vld [vmem:[%s855 + $0x30] sm:$0xf]
        %v2931 = vld [vmem:[%s855 + $0x34] sm:$0xf]
        %v2932 = vld [vmem:[%s855 + $0x38] sm:$0xf]
        %v2933 = vld [vmem:[%s855 + $0x3c] sm:$0xf]
        %v2935 = vunpack.c.l.b16 %v2917
        %v2936 = vpack.c.b16 %v2591, %v2935
        %v2937 = vrot.slane %v2936, 1
        %v2938 = vrot.slane %v2610, 1
        %v2939 = vsel %vm875, %v2937, %v2938
        %v2940 = vrot.slane %v2611, 1
        %v2941 = vsel %vm875, %v2938, %v2940
        %v2942 = vrot.slane %v2612, 1
        %v2943 = vsel %vm875, %v2940, %v2942
        %v2944 = vrot.slane %v2613, 1
        %v2945 = vsel %vm875, %v2942, %v2944
        %v2946 = vrot.slane %v2614, 1
        %v2947 = vsel %vm875, %v2944, %v2946
        %v2948 = vrot.slane %v2615, 1
        %v2949 = vsel %vm875, %v2946, %v2948
        %v2950 = vrot.slane %v2616, 1
        %v2951 = vsel %vm875, %v2948, %v2950
        %v2952 = vrot.slane %v2617, 1
        %v2953 = vsel %vm875, %v2950, %v2952
        %v2954 = vrot.slane %v2618, 1
        %v2955 = vsel %vm875, %v2952, %v2954
        %v2981 = vunpack.c.l.b16 %v2918
        %v2982 = vunpack.c.l.b16 %v2919
        %v2983 = vunpack.c.l.b16 %v2920
        %v2984 = vunpack.c.l.b16 %v2921
        %v2985 = vunpack.c.l.b16 %v2922
        %v2986 = vunpack.c.l.b16 %v2923
        %v2987 = vunpack.c.l.b16 %v2924
        %v2988 = vunpack.c.l.b16 %v2925
        %v2989 = vunpack.c.l.b16 %v2926
        %v2990 = vunpack.c.l.b16 %v2927
        %v2991 = vunpack.c.l.b16 %v2928
        %v2992 = vunpack.c.l.b16 %v2929
        %v2993 = vunpack.c.l.b16 %v2930
        %v2994 = vunpack.c.l.b16 %v2931
        %v2995 = vunpack.c.l.b16 %v2932
        %v2996 = vunpack.c.l.b16 %v2933
        %v2997 = vpack.c.b16 %v2982, %v2981
        %v2998 = vpack.c.b16 %v2984, %v2983
        %v2999 = vpack.c.b16 %v2986, %v2985
        %v3000 = vpack.c.b16 %v2988, %v2987
        %v3001 = vpack.c.b16 %v2990, %v2989
        %v3002 = vpack.c.b16 %v2992, %v2991
        %v3003 = vpack.c.b16 %v2994, %v2993
        %v3004 = vpack.c.b16 %v2996, %v2995
        %3013 = vmatpush.bf16.msra.mxu0 %v3004
        %3014 = vmatpush.bf16.msra.mxu0 %v3003
        %3015 = vmatpush.bf16.msra.mxu0 %v3002
        %3016 = vmatpush.bf16.msra.mxu0 %v3001
        %3017 = vmatpush.bf16.msra.mxu0 %v3000
        %3018 = vmatpush.bf16.msra.mxu0 %v2999
        %3019 = vmatpush.bf16.msra.mxu0 %v2998
        %3020 = vmatpush.bf16.msra.mxu0 %v2997
        %3021 = vmatmul.bf16.gmra.mxu0 %v2939
        %v3022 = vpop.f32.mrf.mxu0
        %v3023 = vadd.f32 0.0, %v3022
        %v3024 = vpop.f32.mrf.mxu0
        %v3025 = vadd.f32 0.0, %v3024
        %3026 = vmatmul.bf16.gmra.mxu0 %v2941
        %v3027 = vpop.f32.mrf.mxu0
        %v3028 = vadd.f32 0.0, %v3027
        %v3029 = vpop.f32.mrf.mxu0
        %v3030 = vadd.f32 0.0, %v3029
        %3031 = vmatmul.bf16.gmra.mxu0 %v2943
        %v3032 = vpop.f32.mrf.mxu0
        %v3033 = vadd.f32 0.0, %v3032
        %v3034 = vpop.f32.mrf.mxu0
        %v3035 = vadd.f32 0.0, %v3034
        %3036 = vmatmul.bf16.gmra.mxu0 %v2945
        %v3037 = vpop.f32.mrf.mxu0
        %v3038 = vadd.f32 0.0, %v3037
        %v3039 = vpop.f32.mrf.mxu0
        %v3040 = vadd.f32 0.0, %v3039
        %3041 = vmatmul.bf16.gmra.mxu0 %v2947
        %v3042 = vpop.f32.mrf.mxu0
        %v3043 = vadd.f32 0.0, %v3042
        %v3044 = vpop.f32.mrf.mxu0
        %v3045 = vadd.f32 0.0, %v3044
        %3046 = vmatmul.bf16.gmra.mxu0 %v2949
        %v3047 = vpop.f32.mrf.mxu0
        %v3048 = vadd.f32 0.0, %v3047
        %v3049 = vpop.f32.mrf.mxu0
        %v3050 = vadd.f32 0.0, %v3049
        %3051 = vmatmul.bf16.gmra.mxu0 %v2951
        %v3052 = vpop.f32.mrf.mxu0
        %v3053 = vadd.f32 0.0, %v3052
        %v3054 = vpop.f32.mrf.mxu0
        %v3055 = vadd.f32 0.0, %v3054
        %3056 = vmatmul.bf16.gmra.mxu0 %v2953
        %v3057 = vpop.f32.mrf.mxu0
        %v3058 = vadd.f32 0.0, %v3057
        %v3059 = vpop.f32.mrf.mxu0
        %v3060 = vadd.f32 0.0, %v3059
        %3061 = vmatmul.bf16.gmra.mxu0 %v2955
        %v3062 = vpop.f32.mrf.mxu0
        %v3063 = vadd.f32 0.0, %v3062
        %v3064 = vpop.f32.mrf.mxu0
        %v3065 = vadd.f32 0.0, %v3064
        %3066 = vdwg.mxu0
        %v3067 = vadd.f32 %v2873, %v3023
        %v3068 = vadd.f32 %v2875, %v3025
        %v3069 = vadd.f32 %v2878, %v3028
        %v3070 = vadd.f32 %v2880, %v3030
        %v3071 = vadd.f32 %v2883, %v3033
        %v3072 = vadd.f32 %v2885, %v3035
        %v3073 = vadd.f32 %v2888, %v3038
        %v3074 = vadd.f32 %v2890, %v3040
        %v3075 = vadd.f32 %v2893, %v3043
        %v3076 = vadd.f32 %v2895, %v3045
        %v3077 = vadd.f32 %v2898, %v3048
        %v3078 = vadd.f32 %v2900, %v3050
        %v3079 = vadd.f32 %v2903, %v3053
        %v3080 = vadd.f32 %v2905, %v3055
        %v3081 = vadd.f32 %v2908, %v3058
        %v3082 = vadd.f32 %v2910, %v3060
        %v3083 = vadd.f32 %v2913, %v3063
        %v3084 = vadd.f32 %v2915, %v3065
        %v3085 = vld [vmem:[%s337 + $0x54] sm:$0xf]
        %v3086 = vld [vmem:[%s337 + $0x58] sm:$0xf]
        %v3087 = vld [vmem:[%s337 + $0x5c] sm:$0xf]
        %v3088 = vld [vmem:[%s337 + $0x60] sm:$0xf]
        %v3089 = vld [vmem:[%s337 + $0x64] sm:$0xf]
        %v3090 = vld [vmem:[%s337 + $0x68] sm:$0xf]
        %v3091 = vld [vmem:[%s337 + $0x6c] sm:$0xf]
        %v3092 = vld [vmem:[%s337 + $0x70] sm:$0xf]
        %v3093 = vld [vmem:[%s337 + $0x74] sm:$0xf]
        %v3094 = vld [vmem:[%s337 + $0x78] sm:$0xf]
        %v3095 = vld [vmem:[%s337 + $0x7c] sm:$0xf]
        %v3096 = vld [vmem:[%s337 + $0x80] sm:$0xf]
        %v3097 = vld [vmem:[%s337 + $0x84] sm:$0xf]
        %v3098 = vld [vmem:[%s337 + $0x88] sm:$0xf]
        %v3099 = vld [vmem:[%s337 + $0x8c] sm:$0xf]
        %v3100 = vld [vmem:[%s337 + $0x90] sm:$0xf]
        %v3101 = vld [vmem:[%s337 + $0x94] sm:$0xf]
        %v3102 = vld [vmem:[%s337 + $0x98] sm:$0xf]
        %v3103 = vld [vmem:[%s1042] sm:$0xf]
        %v3104 = vld [vmem:[%s1042 + $0x4] sm:$0xf]
        %v3105 = vld [vmem:[%s1042 + $0x8] sm:$0xf]
        %v3106 = vld [vmem:[%s1042 + $0xc] sm:$0xf]
        %v3107 = vld [vmem:[%s1042 + $0x10] sm:$0xf]
        %v3108 = vld [vmem:[%s1042 + $0x14] sm:$0xf]
        %v3109 = vld [vmem:[%s1042 + $0x18] sm:$0xf]
        %v3110 = vld [vmem:[%s1042 + $0x1c] sm:$0xf]
        %v3111 = vld [vmem:[%s1042 + $0x20] sm:$0xf]
        %v3112 = vld [vmem:[%s1042 + $0x24] sm:$0xf]
        %v3113 = vld [vmem:[%s1042 + $0x28] sm:$0xf]
        %v3114 = vld [vmem:[%s1042 + $0x2c] sm:$0xf]
        %v3115 = vld [vmem:[%s1042 + $0x30] sm:$0xf]
        %v3116 = vld [vmem:[%s1042 + $0x34] sm:$0xf]
        %v3117 = vld [vmem:[%s1042 + $0x38] sm:$0xf]
        %v3118 = vld [vmem:[%s1042 + $0x3c] sm:$0xf]
        %v3137 = vunpack.c.l.b16 %v3085
        %v3138 = vunpack.c.l.b16 %v3086
        %v3139 = vunpack.c.l.b16 %v3087
        %v3140 = vunpack.c.l.b16 %v3088
        %v3141 = vunpack.c.l.b16 %v3089
        %v3142 = vunpack.c.l.b16 %v3090
        %v3143 = vunpack.c.l.b16 %v3091
        %v3144 = vunpack.c.l.b16 %v3092
        %v3145 = vunpack.c.l.b16 %v3093
        %v3146 = vunpack.c.l.b16 %v3094
        %v3147 = vunpack.c.l.b16 %v3095
        %v3148 = vunpack.c.l.b16 %v3096
        %v3149 = vunpack.c.l.b16 %v3097
        %v3150 = vunpack.c.l.b16 %v3098
        %v3151 = vunpack.c.l.b16 %v3099
        %v3152 = vunpack.c.l.b16 %v3100
        %v3153 = vunpack.c.l.b16 %v3101
        %v3154 = vunpack.c.l.b16 %v3102
        %v3155 = vpack.c.b16 %v3138, %v3137
        %v3156 = vpack.c.b16 %v3140, %v3139
        %v3157 = vpack.c.b16 %v3142, %v3141
        %v3158 = vpack.c.b16 %v3144, %v3143
        %v3159 = vpack.c.b16 %v3146, %v3145
        %v3160 = vpack.c.b16 %v3148, %v3147
        %v3161 = vpack.c.b16 %v3150, %v3149
        %v3162 = vpack.c.b16 %v3152, %v3151
        %v3163 = vpack.c.b16 %v3154, %v3153
        %v3189 = vunpack.c.l.b16 %v3103
        %v3190 = vunpack.c.l.b16 %v3104
        %v3191 = vunpack.c.l.b16 %v3105
        %v3192 = vunpack.c.l.b16 %v3106
        %v3193 = vunpack.c.l.b16 %v3107
        %v3194 = vunpack.c.l.b16 %v3108
        %v3195 = vunpack.c.l.b16 %v3109
        %v3196 = vunpack.c.l.b16 %v3110
        %v3197 = vunpack.c.l.b16 %v3111
        %v3198 = vunpack.c.l.b16 %v3112
        %v3199 = vunpack.c.l.b16 %v3113
        %v3200 = vunpack.c.l.b16 %v3114
        %v3201 = vunpack.c.l.b16 %v3115
        %v3202 = vunpack.c.l.b16 %v3116
        %v3203 = vunpack.c.l.b16 %v3117
        %v3204 = vunpack.c.l.b16 %v3118
        %v3205 = vpack.c.b16 %v3190, %v3189
        %v3206 = vpack.c.b16 %v3192, %v3191
        %v3207 = vpack.c.b16 %v3194, %v3193
        %v3208 = vpack.c.b16 %v3196, %v3195
        %v3209 = vpack.c.b16 %v3198, %v3197
        %v3210 = vpack.c.b16 %v3200, %v3199
        %v3211 = vpack.c.b16 %v3202, %v3201
        %v3212 = vpack.c.b16 %v3204, %v3203
        %3221 = vmatpush.bf16.msra.mxu0 %v3212
        %3222 = vmatpush.bf16.msra.mxu0 %v3211
        %3223 = vmatpush.bf16.msra.mxu0 %v3210
        %3224 = vmatpush.bf16.msra.mxu0 %v3209
        %3225 = vmatpush.bf16.msra.mxu0 %v3208
        %3226 = vmatpush.bf16.msra.mxu0 %v3207
        %3227 = vmatpush.bf16.msra.mxu0 %v3206
        %3228 = vmatpush.bf16.msra.mxu0 %v3205
        %3229 = vmatmul.bf16.gmra.mxu0 %v3155
        %v3230 = vpop.f32.mrf.mxu0
        %v3231 = vadd.f32 0.0, %v3230
        %v3232 = vpop.f32.mrf.mxu0
        %v3233 = vadd.f32 0.0, %v3232
        %3234 = vmatmul.bf16.gmra.mxu0 %v3156
        %v3235 = vpop.f32.mrf.mxu0
        %v3236 = vadd.f32 0.0, %v3235
        %v3237 = vpop.f32.mrf.mxu0
        %v3238 = vadd.f32 0.0, %v3237
        %3239 = vmatmul.bf16.gmra.mxu0 %v3157
        %v3240 = vpop.f32.mrf.mxu0
        %v3241 = vadd.f32 0.0, %v3240
        %v3242 = vpop.f32.mrf.mxu0
        %v3243 = vadd.f32 0.0, %v3242
        %3244 = vmatmul.bf16.gmra.mxu0 %v3158
        %v3245 = vpop.f32.mrf.mxu0
        %v3246 = vadd.f32 0.0, %v3245
        %v3247 = vpop.f32.mrf.mxu0
        %v3248 = vadd.f32 0.0, %v3247
        %3249 = vmatmul.bf16.gmra.mxu0 %v3159
        %v3250 = vpop.f32.mrf.mxu0
        %v3251 = vadd.f32 0.0, %v3250
        %v3252 = vpop.f32.mrf.mxu0
        %v3253 = vadd.f32 0.0, %v3252
        %3254 = vmatmul.bf16.gmra.mxu0 %v3160
        %v3255 = vpop.f32.mrf.mxu0
        %v3256 = vadd.f32 0.0, %v3255
        %v3257 = vpop.f32.mrf.mxu0
        %v3258 = vadd.f32 0.0, %v3257
        %3259 = vmatmul.bf16.gmra.mxu0 %v3161
        %v3260 = vpop.f32.mrf.mxu0
        %v3261 = vadd.f32 0.0, %v3260
        %v3262 = vpop.f32.mrf.mxu0
        %v3263 = vadd.f32 0.0, %v3262
        %3264 = vmatmul.bf16.gmra.mxu0 %v3162
        %v3265 = vpop.f32.mrf.mxu0
        %v3266 = vadd.f32 0.0, %v3265
        %v3267 = vpop.f32.mrf.mxu0
        %v3268 = vadd.f32 0.0, %v3267
        %3269 = vmatmul.bf16.gmra.mxu0 %v3163
        %v3270 = vpop.f32.mrf.mxu0
        %v3271 = vadd.f32 0.0, %v3270
        %v3272 = vpop.f32.mrf.mxu0
        %v3273 = vadd.f32 0.0, %v3272
        %3274 = vdwg.mxu0
        %v3275 = vadd.f32 %v3067, %v3231
        %v3276 = vadd.f32 %v3068, %v3233
        %v3277 = vadd.f32 %v3069, %v3236
        %v3278 = vadd.f32 %v3070, %v3238
        %v3279 = vadd.f32 %v3071, %v3241
        %v3280 = vadd.f32 %v3072, %v3243
        %v3281 = vadd.f32 %v3073, %v3246
        %v3282 = vadd.f32 %v3074, %v3248
        %v3283 = vadd.f32 %v3075, %v3251
        %v3284 = vadd.f32 %v3076, %v3253
        %v3285 = vadd.f32 %v3077, %v3256
        %v3286 = vadd.f32 %v3078, %v3258
        %v3287 = vadd.f32 %v3079, %v3261
        %v3288 = vadd.f32 %v3080, %v3263
        %v3289 = vadd.f32 %v3081, %v3266
        %v3290 = vadd.f32 %v3082, %v3268
        %v3291 = vadd.f32 %v3083, %v3271
        %v3292 = vadd.f32 %v3084, %v3273
        %v3293 = vld [vmem:[%s337 + $0x54] sm:$0xf]
        %v3294 = vld [vmem:[%s337 + $0x58] sm:$0xf]
        %v3295 = vld [vmem:[%s337 + $0x5c] sm:$0xf]
        %v3296 = vld [vmem:[%s337 + $0x60] sm:$0xf]
        %v3297 = vld [vmem:[%s337 + $0x64] sm:$0xf]
        %v3298 = vld [vmem:[%s337 + $0x68] sm:$0xf]
        %v3299 = vld [vmem:[%s337 + $0x6c] sm:$0xf]
        %v3300 = vld [vmem:[%s337 + $0x70] sm:$0xf]
        %v3301 = vld [vmem:[%s337 + $0x74] sm:$0xf]
        %v3302 = vld [vmem:[%s337 + $0x78] sm:$0xf]
        %v3303 = vld [vmem:[%s337 + $0x7c] sm:$0xf]
        %v3304 = vld [vmem:[%s337 + $0x80] sm:$0xf]
        %v3305 = vld [vmem:[%s337 + $0x84] sm:$0xf]
        %v3306 = vld [vmem:[%s337 + $0x88] sm:$0xf]
        %v3307 = vld [vmem:[%s337 + $0x8c] sm:$0xf]
        %v3308 = vld [vmem:[%s337 + $0x90] sm:$0xf]
        %v3309 = vld [vmem:[%s337 + $0x94] sm:$0xf]
        %v3310 = vld [vmem:[%s337 + $0x98] sm:$0xf]
        %v3311 = vld [vmem:[%s337 + $0x9c] sm:$0x1]
        %v3312 = vld [vmem:[%s1252] sm:$0xf]
        %v3313 = vld [vmem:[%s1252 + $0x4] sm:$0xf]
        %v3314 = vld [vmem:[%s1252 + $0x8] sm:$0xf]
        %v3315 = vld [vmem:[%s1252 + $0xc] sm:$0xf]
        %v3316 = vld [vmem:[%s1252 + $0x10] sm:$0xf]
        %v3317 = vld [vmem:[%s1252 + $0x14] sm:$0xf]
        %v3318 = vld [vmem:[%s1252 + $0x18] sm:$0xf]
        %v3319 = vld [vmem:[%s1252 + $0x1c] sm:$0xf]
        %v3320 = vld [vmem:[%s1252 + $0x20] sm:$0xf]
        %v3321 = vld [vmem:[%s1252 + $0x24] sm:$0xf]
        %v3322 = vld [vmem:[%s1252 + $0x28] sm:$0xf]
        %v3323 = vld [vmem:[%s1252 + $0x2c] sm:$0xf]
        %v3324 = vld [vmem:[%s1252 + $0x30] sm:$0xf]
        %v3325 = vld [vmem:[%s1252 + $0x34] sm:$0xf]
        %v3326 = vld [vmem:[%s1252 + $0x38] sm:$0xf]
        %v3327 = vld [vmem:[%s1252 + $0x3c] sm:$0xf]
        %v3347 = vunpack.c.l.b16 %v3293
        %v3348 = vunpack.c.l.b16 %v3294
        %v3349 = vunpack.c.l.b16 %v3295
        %v3350 = vunpack.c.l.b16 %v3296
        %v3351 = vunpack.c.l.b16 %v3297
        %v3352 = vunpack.c.l.b16 %v3298
        %v3353 = vunpack.c.l.b16 %v3299
        %v3354 = vunpack.c.l.b16 %v3300
        %v3355 = vunpack.c.l.b16 %v3301
        %v3356 = vunpack.c.l.b16 %v3302
        %v3357 = vunpack.c.l.b16 %v3303
        %v3358 = vunpack.c.l.b16 %v3304
        %v3359 = vunpack.c.l.b16 %v3305
        %v3360 = vunpack.c.l.b16 %v3306
        %v3361 = vunpack.c.l.b16 %v3307
        %v3362 = vunpack.c.l.b16 %v3308
        %v3363 = vunpack.c.l.b16 %v3309
        %v3364 = vunpack.c.l.b16 %v3310
        %v3365 = vunpack.c.l.b16 %v3311
        %v3366 = vpack.c.b16 %v3348, %v3347
        %v3367 = vpack.c.b16 %v3350, %v3349
        %v3368 = vpack.c.b16 %v3352, %v3351
        %v3369 = vpack.c.b16 %v3354, %v3353
        %v3370 = vpack.c.b16 %v3356, %v3355
        %v3371 = vpack.c.b16 %v3358, %v3357
        %v3372 = vpack.c.b16 %v3360, %v3359
        %v3373 = vpack.c.b16 %v3362, %v3361
        %v3374 = vpack.c.b16 %v3364, %v3363
        %v3375 = vpack.c.b16 %v3365, %v3365
        %v3377 = vshrl.u32 %v3366, 16
        %v3379 = vshll.u32 %v3366, 16
        %v3381 = vrot.slane %v3379, 1
        %v3382 = vor.u32 %v3377, %v3381
        %v3384 = vshll.u32 %v3367, 16
        %v3386 = vrot.slane %v3384, 1
        %v3387 = vsel %vm555, %v3382, %v3386
        %v3388 = vshrl.u32 %v3367, 16
        %v3390 = vor.u32 %v3388, %v3386
        %v3392 = vshll.u32 %v3368, 16
        %v3394 = vrot.slane %v3392, 1
        %v3395 = vsel %vm555, %v3390, %v3394
        %v3396 = vshrl.u32 %v3368, 16
        %v3398 = vor.u32 %v3396, %v3394
        %v3400 = vshll.u32 %v3369, 16
        %v3402 = vrot.slane %v3400, 1
        %v3403 = vsel %vm555, %v3398, %v3402
        %v3404 = vshrl.u32 %v3369, 16
        %v3406 = vor.u32 %v3404, %v3402
        %v3408 = vshll.u32 %v3370, 16
        %v3410 = vrot.slane %v3408, 1
        %v3411 = vsel %vm555, %v3406, %v3410
        %v3412 = vshrl.u32 %v3370, 16
        %v3414 = vor.u32 %v3412, %v3410
        %v3416 = vshll.u32 %v3371, 16
        %v3418 = vrot.slane %v3416, 1
        %v3419 = vsel %vm555, %v3414, %v3418
        %v3420 = vshrl.u32 %v3371, 16
        %v3422 = vor.u32 %v3420, %v3418
        %v3424 = vshll.u32 %v3372, 16
        %v3426 = vrot.slane %v3424, 1
        %v3427 = vsel %vm555, %v3422, %v3426
        %v3428 = vshrl.u32 %v3372, 16
        %v3430 = vor.u32 %v3428, %v3426
        %v3432 = vshll.u32 %v3373, 16
        %v3434 = vrot.slane %v3432, 1
        %v3435 = vsel %vm555, %v3430, %v3434
        %v3436 = vshrl.u32 %v3373, 16
        %v3438 = vor.u32 %v3436, %v3434
        %v3440 = vshll.u32 %v3374, 16
        %v3442 = vrot.slane %v3440, 1
        %v3443 = vsel %vm555, %v3438, %v3442
        %v3444 = vshrl.u32 %v3374, 16
        %v3446 = vor.u32 %v3444, %v3442
        %v3448 = vshll.u32 %v3375, 16
        %v3450 = vrot.slane %v3448, 1
        %v3451 = vsel %vm555, %v3446, %v3450
        %v3477 = vunpack.c.l.b16 %v3312
        %v3478 = vunpack.c.l.b16 %v3313
        %v3479 = vunpack.c.l.b16 %v3314
        %v3480 = vunpack.c.l.b16 %v3315
        %v3481 = vunpack.c.l.b16 %v3316
        %v3482 = vunpack.c.l.b16 %v3317
        %v3483 = vunpack.c.l.b16 %v3318
        %v3484 = vunpack.c.l.b16 %v3319
        %v3485 = vunpack.c.l.b16 %v3320
        %v3486 = vunpack.c.l.b16 %v3321
        %v3487 = vunpack.c.l.b16 %v3322
        %v3488 = vunpack.c.l.b16 %v3323
        %v3489 = vunpack.c.l.b16 %v3324
        %v3490 = vunpack.c.l.b16 %v3325
        %v3491 = vunpack.c.l.b16 %v3326
        %v3492 = vunpack.c.l.b16 %v3327
        %v3493 = vpack.c.b16 %v3478, %v3477
        %v3494 = vpack.c.b16 %v3480, %v3479
        %v3495 = vpack.c.b16 %v3482, %v3481
        %v3496 = vpack.c.b16 %v3484, %v3483
        %v3497 = vpack.c.b16 %v3486, %v3485
        %v3498 = vpack.c.b16 %v3488, %v3487
        %v3499 = vpack.c.b16 %v3490, %v3489
        %v3500 = vpack.c.b16 %v3492, %v3491
        %3509 = vmatpush.bf16.msra.mxu0 %v3500
        %3510 = vmatpush.bf16.msra.mxu0 %v3499
        %3511 = vmatpush.bf16.msra.mxu0 %v3498
        %3512 = vmatpush.bf16.msra.mxu0 %v3497
        %3513 = vmatpush.bf16.msra.mxu0 %v3496
        %3514 = vmatpush.bf16.msra.mxu0 %v3495
        %3515 = vmatpush.bf16.msra.mxu0 %v3494
        %3516 = vmatpush.bf16.msra.mxu0 %v3493
        %3517 = vmatmul.bf16.gmra.mxu0 %v3387
        %v3518 = vpop.f32.mrf.mxu0
        %v3519 = vadd.f32 0.0, %v3518
        %v3520 = vpop.f32.mrf.mxu0
        %v3521 = vadd.f32 0.0, %v3520
        %3522 = vmatmul.bf16.gmra.mxu0 %v3395
        %v3523 = vpop.f32.mrf.mxu0
        %v3524 = vadd.f32 0.0, %v3523
        %v3525 = vpop.f32.mrf.mxu0
        %v3526 = vadd.f32 0.0, %v3525
        %3527 = vmatmul.bf16.gmra.mxu0 %v3403
        %v3528 = vpop.f32.mrf.mxu0
        %v3529 = vadd.f32 0.0, %v3528
        %v3530 = vpop.f32.mrf.mxu0
        %v3531 = vadd.f32 0.0, %v3530
        %3532 = vmatmul.bf16.gmra.mxu0 %v3411
        %v3533 = vpop.f32.mrf.mxu0
        %v3534 = vadd.f32 0.0, %v3533
        %v3535 = vpop.f32.mrf.mxu0
        %v3536 = vadd.f32 0.0, %v3535
        %3537 = vmatmul.bf16.gmra.mxu0 %v3419
        %v3538 = vpop.f32.mrf.mxu0
        %v3539 = vadd.f32 0.0, %v3538
        %v3540 = vpop.f32.mrf.mxu0
        %v3541 = vadd.f32 0.0, %v3540
        %3542 = vmatmul.bf16.gmra.mxu0 %v3427
        %v3543 = vpop.f32.mrf.mxu0
        %v3544 = vadd.f32 0.0, %v3543
        %v3545 = vpop.f32.mrf.mxu0
        %v3546 = vadd.f32 0.0, %v3545
        %3547 = vmatmul.bf16.gmra.mxu0 %v3435
        %v3548 = vpop.f32.mrf.mxu0
        %v3549 = vadd.f32 0.0, %v3548
        %v3550 = vpop.f32.mrf.mxu0
        %v3551 = vadd.f32 0.0, %v3550
        %3552 = vmatmul.bf16.gmra.mxu0 %v3443
        %v3553 = vpop.f32.mrf.mxu0
        %v3554 = vadd.f32 0.0, %v3553
        %v3555 = vpop.f32.mrf.mxu0
        %v3556 = vadd.f32 0.0, %v3555
        %3557 = vmatmul.bf16.gmra.mxu0 %v3451
        %v3558 = vpop.f32.mrf.mxu0
        %v3559 = vadd.f32 0.0, %v3558
        %v3560 = vpop.f32.mrf.mxu0
        %v3561 = vadd.f32 0.0, %v3560
        %3562 = vdwg.mxu0
        %v3563 = vadd.f32 %v3275, %v3519
        %v3564 = vadd.f32 %v3276, %v3521
        %v3565 = vadd.f32 %v3277, %v3524
        %v3566 = vadd.f32 %v3278, %v3526
        %v3567 = vadd.f32 %v3279, %v3529
        %v3568 = vadd.f32 %v3280, %v3531
        %v3569 = vadd.f32 %v3281, %v3534
        %v3570 = vadd.f32 %v3282, %v3536
        %v3571 = vadd.f32 %v3283, %v3539
        %v3572 = vadd.f32 %v3284, %v3541
        %v3573 = vadd.f32 %v3285, %v3544
        %v3574 = vadd.f32 %v3286, %v3546
        %v3575 = vadd.f32 %v3287, %v3549
        %v3576 = vadd.f32 %v3288, %v3551
        %v3577 = vadd.f32 %v3289, %v3554
        %v3578 = vadd.f32 %v3290, %v3556
        %v3579 = vadd.f32 %v3291, %v3559
        %v3580 = vadd.f32 %v3292, %v3561
        %v3581 = vld [vmem:[%s337 + $0x54] sm:$0xe]
        %v3582 = vld [vmem:[%s1523] sm:$0xf]
        %v3583 = vld [vmem:[%s1523 + $0x4] sm:$0xf]
        %v3584 = vld [vmem:[%s1523 + $0x8] sm:$0xf]
        %v3585 = vld [vmem:[%s1523 + $0xc] sm:$0xf]
        %v3586 = vld [vmem:[%s1523 + $0x10] sm:$0xf]
        %v3587 = vld [vmem:[%s1523 + $0x14] sm:$0xf]
        %v3588 = vld [vmem:[%s1523 + $0x18] sm:$0xf]
        %v3589 = vld [vmem:[%s1523 + $0x1c] sm:$0xf]
        %v3590 = vld [vmem:[%s1523 + $0x20] sm:$0xf]
        %v3591 = vld [vmem:[%s1523 + $0x24] sm:$0xf]
        %v3592 = vld [vmem:[%s1523 + $0x28] sm:$0xf]
        %v3593 = vld [vmem:[%s1523 + $0x2c] sm:$0xf]
        %v3594 = vld [vmem:[%s1523 + $0x30] sm:$0xf]
        %v3595 = vld [vmem:[%s1523 + $0x34] sm:$0xf]
        %v3596 = vld [vmem:[%s1523 + $0x38] sm:$0xf]
        %v3597 = vld [vmem:[%s1523 + $0x3c] sm:$0xf]
        %v3599 = vunpack.c.l.b16 %v3581
        %v3600 = vpack.c.b16 %v3348, %v3599
        %v3601 = vrot.slane %v3600, 1
        %v3602 = vrot.slane %v3367, 1
        %v3603 = vsel %vm875, %v3601, %v3602
        %v3604 = vrot.slane %v3368, 1
        %v3605 = vsel %vm875, %v3602, %v3604
        %v3606 = vrot.slane %v3369, 1
        %v3607 = vsel %vm875, %v3604, %v3606
        %v3608 = vrot.slane %v3370, 1
        %v3609 = vsel %vm875, %v3606, %v3608
        %v3610 = vrot.slane %v3371, 1
        %v3611 = vsel %vm875, %v3608, %v3610
        %v3612 = vrot.slane %v3372, 1
        %v3613 = vsel %vm875, %v3610, %v3612
        %v3614 = vrot.slane %v3373, 1
        %v3615 = vsel %vm875, %v3612, %v3614
        %v3616 = vrot.slane %v3374, 1
        %v3617 = vsel %vm875, %v3614, %v3616
        %v3618 = vrot.slane %v3375, 1
        %v3619 = vsel %vm875, %v3616, %v3618
        %v3645 = vunpack.c.l.b16 %v3582
        %v3646 = vunpack.c.l.b16 %v3583
        %v3647 = vunpack.c.l.b16 %v3584
        %v3648 = vunpack.c.l.b16 %v3585
        %v3649 = vunpack.c.l.b16 %v3586
        %v3650 = vunpack.c.l.b16 %v3587
        %v3651 = vunpack.c.l.b16 %v3588
        %v3652 = vunpack.c.l.b16 %v3589
        %v3653 = vunpack.c.l.b16 %v3590
        %v3654 = vunpack.c.l.b16 %v3591
        %v3655 = vunpack.c.l.b16 %v3592
        %v3656 = vunpack.c.l.b16 %v3593
        %v3657 = vunpack.c.l.b16 %v3594
        %v3658 = vunpack.c.l.b16 %v3595
        %v3659 = vunpack.c.l.b16 %v3596
        %v3660 = vunpack.c.l.b16 %v3597
        %v3661 = vpack.c.b16 %v3646, %v3645
        %v3662 = vpack.c.b16 %v3648, %v3647
        %v3663 = vpack.c.b16 %v3650, %v3649
        %v3664 = vpack.c.b16 %v3652, %v3651
        %v3665 = vpack.c.b16 %v3654, %v3653
        %v3666 = vpack.c.b16 %v3656, %v3655
        %v3667 = vpack.c.b16 %v3658, %v3657
        %v3668 = vpack.c.b16 %v3660, %v3659
        %3677 = vmatpush.bf16.msra.mxu0 %v3668
        %3678 = vmatpush.bf16.msra.mxu0 %v3667
        %3679 = vmatpush.bf16.msra.mxu0 %v3666
        %3680 = vmatpush.bf16.msra.mxu0 %v3665
        %3681 = vmatpush.bf16.msra.mxu0 %v3664
        %3682 = vmatpush.bf16.msra.mxu0 %v3663
        %3683 = vmatpush.bf16.msra.mxu0 %v3662
        %3684 = vmatpush.bf16.msra.mxu0 %v3661
        %3685 = vmatmul.bf16.gmra.mxu0 %v3603
        %v3686 = vpop.f32.mrf.mxu0
        %v3687 = vadd.f32 0.0, %v3686
        %v3688 = vpop.f32.mrf.mxu0
        %v3689 = vadd.f32 0.0, %v3688
        %3690 = vmatmul.bf16.gmra.mxu0 %v3605
        %v3691 = vpop.f32.mrf.mxu0
        %v3692 = vadd.f32 0.0, %v3691
        %v3693 = vpop.f32.mrf.mxu0
        %v3694 = vadd.f32 0.0, %v3693
        %3695 = vmatmul.bf16.gmra.mxu0 %v3607
        %v3696 = vpop.f32.mrf.mxu0
        %v3697 = vadd.f32 0.0, %v3696
        %v3698 = vpop.f32.mrf.mxu0
        %v3699 = vadd.f32 0.0, %v3698
        %3700 = vmatmul.bf16.gmra.mxu0 %v3609
        %v3701 = vpop.f32.mrf.mxu0
        %v3702 = vadd.f32 0.0, %v3701
        %v3703 = vpop.f32.mrf.mxu0
        %v3704 = vadd.f32 0.0, %v3703
        %3705 = vmatmul.bf16.gmra.mxu0 %v3611
        %v3706 = vpop.f32.mrf.mxu0
        %v3707 = vadd.f32 0.0, %v3706
        %v3708 = vpop.f32.mrf.mxu0
        %v3709 = vadd.f32 0.0, %v3708
        %3710 = vmatmul.bf16.gmra.mxu0 %v3613
        %v3711 = vpop.f32.mrf.mxu0
        %v3712 = vadd.f32 0.0, %v3711
        %v3713 = vpop.f32.mrf.mxu0
        %v3714 = vadd.f32 0.0, %v3713
        %3715 = vmatmul.bf16.gmra.mxu0 %v3615
        %v3716 = vpop.f32.mrf.mxu0
        %v3717 = vadd.f32 0.0, %v3716
        %v3718 = vpop.f32.mrf.mxu0
        %v3719 = vadd.f32 0.0, %v3718
        %3720 = vmatmul.bf16.gmra.mxu0 %v3617
        %v3721 = vpop.f32.mrf.mxu0
        %v3722 = vadd.f32 0.0, %v3721
        %v3723 = vpop.f32.mrf.mxu0
        %v3724 = vadd.f32 0.0, %v3723
        %3725 = vmatmul.bf16.gmra.mxu0 %v3619
        %v3726 = vpop.f32.mrf.mxu0
        %v3727 = vadd.f32 0.0, %v3726
        %v3728 = vpop.f32.mrf.mxu0
        %v3729 = vadd.f32 0.0, %v3728
        %3730 = vdwg.mxu0
        %v3731 = vadd.f32 %v3563, %v3687
        %v3732 = vadd.f32 %v3564, %v3689
        %v3733 = vadd.f32 %v3565, %v3692
        %v3734 = vadd.f32 %v3566, %v3694
        %v3735 = vadd.f32 %v3567, %v3697
        %v3736 = vadd.f32 %v3568, %v3699
        %v3737 = vadd.f32 %v3569, %v3702
        %v3738 = vadd.f32 %v3570, %v3704
        %v3739 = vadd.f32 %v3571, %v3707
        %v3740 = vadd.f32 %v3572, %v3709
        %v3741 = vadd.f32 %v3573, %v3712
        %v3742 = vadd.f32 %v3574, %v3714
        %v3743 = vadd.f32 %v3575, %v3717
        %v3744 = vadd.f32 %v3576, %v3719
        %v3745 = vadd.f32 %v3577, %v3722
        %v3746 = vadd.f32 %v3578, %v3724
        %v3747 = vadd.f32 %v3579, %v3727
        %v3748 = vadd.f32 %v3580, %v3729
        %v3749 = vld [vmem:[%s337 + $0x60] sm:$0xf]
        %v3750 = vld [vmem:[%s337 + $0x64] sm:$0xf]
        %v3751 = vld [vmem:[%s337 + $0x68] sm:$0xf]
        %v3752 = vld [vmem:[%s337 + $0x6c] sm:$0xf]
        %v3753 = vld [vmem:[%s337 + $0x70] sm:$0xf]
        %v3754 = vld [vmem:[%s337 + $0x74] sm:$0xf]
        %v3755 = vld [vmem:[%s337 + $0x78] sm:$0xf]
        %v3756 = vld [vmem:[%s337 + $0x7c] sm:$0xf]
        %v3757 = vld [vmem:[%s337 + $0x80] sm:$0xf]
        %v3758 = vld [vmem:[%s337 + $0x84] sm:$0xf]
        %v3759 = vld [vmem:[%s337 + $0x88] sm:$0xf]
        %v3760 = vld [vmem:[%s337 + $0x8c] sm:$0xf]
        %v3761 = vld [vmem:[%s337 + $0x90] sm:$0xf]
        %v3762 = vld [vmem:[%s337 + $0x94] sm:$0xf]
        %v3763 = vld [vmem:[%s337 + $0x98] sm:$0xf]
        %v3764 = vld [vmem:[%s337 + $0x9c] sm:$0xf]
        %v3765 = vld [vmem:[%s337 + $0xa0] sm:$0xf]
        %v3766 = vld [vmem:[%s337 + $0xa4] sm:$0xf]
        %v3767 = vld [vmem:[%s1709] sm:$0xf]
        %v3768 = vld [vmem:[%s1709 + $0x4] sm:$0xf]
        %v3769 = vld [vmem:[%s1709 + $0x8] sm:$0xf]
        %v3770 = vld [vmem:[%s1709 + $0xc] sm:$0xf]
        %v3771 = vld [vmem:[%s1709 + $0x10] sm:$0xf]
        %v3772 = vld [vmem:[%s1709 + $0x14] sm:$0xf]
        %v3773 = vld [vmem:[%s1709 + $0x18] sm:$0xf]
        %v3774 = vld [vmem:[%s1709 + $0x1c] sm:$0xf]
        %v3775 = vld [vmem:[%s1709 + $0x20] sm:$0xf]
        %v3776 = vld [vmem:[%s1709 + $0x24] sm:$0xf]
        %v3777 = vld [vmem:[%s1709 + $0x28] sm:$0xf]
        %v3778 = vld [vmem:[%s1709 + $0x2c] sm:$0xf]
        %v3779 = vld [vmem:[%s1709 + $0x30] sm:$0xf]
        %v3780 = vld [vmem:[%s1709 + $0x34] sm:$0xf]
        %v3781 = vld [vmem:[%s1709 + $0x38] sm:$0xf]
        %v3782 = vld [vmem:[%s1709 + $0x3c] sm:$0xf]
        %v3801 = vunpack.c.l.b16 %v3749
        %v3802 = vunpack.c.l.b16 %v3750
        %v3803 = vunpack.c.l.b16 %v3751
        %v3804 = vunpack.c.l.b16 %v3752
        %v3805 = vunpack.c.l.b16 %v3753
        %v3806 = vunpack.c.l.b16 %v3754
        %v3807 = vunpack.c.l.b16 %v3755
        %v3808 = vunpack.c.l.b16 %v3756
        %v3809 = vunpack.c.l.b16 %v3757
        %v3810 = vunpack.c.l.b16 %v3758
        %v3811 = vunpack.c.l.b16 %v3759
        %v3812 = vunpack.c.l.b16 %v3760
        %v3813 = vunpack.c.l.b16 %v3761
        %v3814 = vunpack.c.l.b16 %v3762
        %v3815 = vunpack.c.l.b16 %v3763
        %v3816 = vunpack.c.l.b16 %v3764
        %v3817 = vunpack.c.l.b16 %v3765
        %v3818 = vunpack.c.l.b16 %v3766
        %v3819 = vpack.c.b16 %v3802, %v3801
        %v3820 = vpack.c.b16 %v3804, %v3803
        %v3821 = vpack.c.b16 %v3806, %v3805
        %v3822 = vpack.c.b16 %v3808, %v3807
        %v3823 = vpack.c.b16 %v3810, %v3809
        %v3824 = vpack.c.b16 %v3812, %v3811
        %v3825 = vpack.c.b16 %v3814, %v3813
        %v3826 = vpack.c.b16 %v3816, %v3815
        %v3827 = vpack.c.b16 %v3818, %v3817
        %v3853 = vunpack.c.l.b16 %v3767
        %v3854 = vunpack.c.l.b16 %v3768
        %v3855 = vunpack.c.l.b16 %v3769
        %v3856 = vunpack.c.l.b16 %v3770
        %v3857 = vunpack.c.l.b16 %v3771
        %v3858 = vunpack.c.l.b16 %v3772
        %v3859 = vunpack.c.l.b16 %v3773
        %v3860 = vunpack.c.l.b16 %v3774
        %v3861 = vunpack.c.l.b16 %v3775
        %v3862 = vunpack.c.l.b16 %v3776
        %v3863 = vunpack.c.l.b16 %v3777
        %v3864 = vunpack.c.l.b16 %v3778
        %v3865 = vunpack.c.l.b16 %v3779
        %v3866 = vunpack.c.l.b16 %v3780
        %v3867 = vunpack.c.l.b16 %v3781
        %v3868 = vunpack.c.l.b16 %v3782
        %v3869 = vpack.c.b16 %v3854, %v3853
        %v3870 = vpack.c.b16 %v3856, %v3855
        %v3871 = vpack.c.b16 %v3858, %v3857
        %v3872 = vpack.c.b16 %v3860, %v3859
        %v3873 = vpack.c.b16 %v3862, %v3861
        %v3874 = vpack.c.b16 %v3864, %v3863
        %v3875 = vpack.c.b16 %v3866, %v3865
        %v3876 = vpack.c.b16 %v3868, %v3867
        %3885 = vmatpush.bf16.msra.mxu0 %v3876
        %3886 = vmatpush.bf16.msra.mxu0 %v3875
        %3887 = vmatpush.bf16.msra.mxu0 %v3874
        %3888 = vmatpush.bf16.msra.mxu0 %v3873
        %3889 = vmatpush.bf16.msra.mxu0 %v3872
        %3890 = vmatpush.bf16.msra.mxu0 %v3871
        %3891 = vmatpush.bf16.msra.mxu0 %v3870
        %3892 = vmatpush.bf16.msra.mxu0 %v3869
        %3893 = vmatmul.bf16.gmra.mxu0 %v3819
        %v3894 = vpop.f32.mrf.mxu0
        %v3895 = vadd.f32 0.0, %v3894
        %v3896 = vpop.f32.mrf.mxu0
        %v3897 = vadd.f32 0.0, %v3896
        %3898 = vmatmul.bf16.gmra.mxu0 %v3820
        %v3899 = vpop.f32.mrf.mxu0
        %v3900 = vadd.f32 0.0, %v3899
        %v3901 = vpop.f32.mrf.mxu0
        %v3902 = vadd.f32 0.0, %v3901
        %3903 = vmatmul.bf16.gmra.mxu0 %v3821
        %v3904 = vpop.f32.mrf.mxu0
        %v3905 = vadd.f32 0.0, %v3904
        %v3906 = vpop.f32.mrf.mxu0
        %v3907 = vadd.f32 0.0, %v3906
        %3908 = vmatmul.bf16.gmra.mxu0 %v3822
        %v3909 = vpop.f32.mrf.mxu0
        %v3910 = vadd.f32 0.0, %v3909
        %v3911 = vpop.f32.mrf.mxu0
        %v3912 = vadd.f32 0.0, %v3911
        %3913 = vmatmul.bf16.gmra.mxu0 %v3823
        %v3914 = vpop.f32.mrf.mxu0
        %v3915 = vadd.f32 0.0, %v3914
        %v3916 = vpop.f32.mrf.mxu0
        %v3917 = vadd.f32 0.0, %v3916
        %3918 = vmatmul.bf16.gmra.mxu0 %v3824
        %v3919 = vpop.f32.mrf.mxu0
        %v3920 = vadd.f32 0.0, %v3919
        %v3921 = vpop.f32.mrf.mxu0
        %v3922 = vadd.f32 0.0, %v3921
        %3923 = vmatmul.bf16.gmra.mxu0 %v3825
        %v3924 = vpop.f32.mrf.mxu0
        %v3925 = vadd.f32 0.0, %v3924
        %v3926 = vpop.f32.mrf.mxu0
        %v3927 = vadd.f32 0.0, %v3926
        %3928 = vmatmul.bf16.gmra.mxu0 %v3826
        %v3929 = vpop.f32.mrf.mxu0
        %v3930 = vadd.f32 0.0, %v3929
        %v3931 = vpop.f32.mrf.mxu0
        %v3932 = vadd.f32 0.0, %v3931
        %3933 = vmatmul.bf16.gmra.mxu0 %v3827
        %v3934 = vpop.f32.mrf.mxu0
        %v3935 = vadd.f32 0.0, %v3934
        %v3936 = vpop.f32.mrf.mxu0
        %v3937 = vadd.f32 0.0, %v3936
        %3938 = vdwg.mxu0
        %v3939 = vadd.f32 %v3731, %v3895
        %v3940 = vadd.f32 %v3732, %v3897
        %v3941 = vadd.f32 %v3733, %v3900
        %v3942 = vadd.f32 %v3734, %v3902
        %v3943 = vadd.f32 %v3735, %v3905
        %v3944 = vadd.f32 %v3736, %v3907
        %v3945 = vadd.f32 %v3737, %v3910
        %v3946 = vadd.f32 %v3738, %v3912
        %v3947 = vadd.f32 %v3739, %v3915
        %v3948 = vadd.f32 %v3740, %v3917
        %v3949 = vadd.f32 %v3741, %v3920
        %v3950 = vadd.f32 %v3742, %v3922
        %v3951 = vadd.f32 %v3743, %v3925
        %v3952 = vadd.f32 %v3744, %v3927
        %v3953 = vadd.f32 %v3745, %v3930
        %v3954 = vadd.f32 %v3746, %v3932
        %v3955 = vadd.f32 %v3747, %v3935
        %v3956 = vadd.f32 %v3748, %v3937
        %v3957 = vld [vmem:[%s337 + $0x60] sm:$0xf]
        %v3958 = vld [vmem:[%s337 + $0x64] sm:$0xf]
        %v3959 = vld [vmem:[%s337 + $0x68] sm:$0xf]
        %v3960 = vld [vmem:[%s337 + $0x6c] sm:$0xf]
        %v3961 = vld [vmem:[%s337 + $0x70] sm:$0xf]
        %v3962 = vld [vmem:[%s337 + $0x74] sm:$0xf]
        %v3963 = vld [vmem:[%s337 + $0x78] sm:$0xf]
        %v3964 = vld [vmem:[%s337 + $0x7c] sm:$0xf]
        %v3965 = vld [vmem:[%s337 + $0x80] sm:$0xf]
        %v3966 = vld [vmem:[%s337 + $0x84] sm:$0xf]
        %v3967 = vld [vmem:[%s337 + $0x88] sm:$0xf]
        %v3968 = vld [vmem:[%s337 + $0x8c] sm:$0xf]
        %v3969 = vld [vmem:[%s337 + $0x90] sm:$0xf]
        %v3970 = vld [vmem:[%s337 + $0x94] sm:$0xf]
        %v3971 = vld [vmem:[%s337 + $0x98] sm:$0xf]
        %v3972 = vld [vmem:[%s337 + $0x9c] sm:$0xf]
        %v3973 = vld [vmem:[%s337 + $0xa0] sm:$0xf]
        %v3974 = vld [vmem:[%s337 + $0xa4] sm:$0xf]
        %v3975 = vld [vmem:[%s337 + $0xa8] sm:$0x1]
        %v3976 = vld [vmem:[%s1919] sm:$0xf]
        %v3977 = vld [vmem:[%s1919 + $0x4] sm:$0xf]
        %v3978 = vld [vmem:[%s1919 + $0x8] sm:$0xf]
        %v3979 = vld [vmem:[%s1919 + $0xc] sm:$0xf]
        %v3980 = vld [vmem:[%s1919 + $0x10] sm:$0xf]
        %v3981 = vld [vmem:[%s1919 + $0x14] sm:$0xf]
        %v3982 = vld [vmem:[%s1919 + $0x18] sm:$0xf]
        %v3983 = vld [vmem:[%s1919 + $0x1c] sm:$0xf]
        %v3984 = vld [vmem:[%s1919 + $0x20] sm:$0xf]
        %v3985 = vld [vmem:[%s1919 + $0x24] sm:$0xf]
        %v3986 = vld [vmem:[%s1919 + $0x28] sm:$0xf]
        %v3987 = vld [vmem:[%s1919 + $0x2c] sm:$0xf]
        %v3988 = vld [vmem:[%s1919 + $0x30] sm:$0xf]
        %v3989 = vld [vmem:[%s1919 + $0x34] sm:$0xf]
        %v3990 = vld [vmem:[%s1919 + $0x38] sm:$0xf]
        %v3991 = vld [vmem:[%s1919 + $0x3c] sm:$0xf]
        %v4011 = vunpack.c.l.b16 %v3957
        %v4012 = vunpack.c.l.b16 %v3958
        %v4013 = vunpack.c.l.b16 %v3959
        %v4014 = vunpack.c.l.b16 %v3960
        %v4015 = vunpack.c.l.b16 %v3961
        %v4016 = vunpack.c.l.b16 %v3962
        %v4017 = vunpack.c.l.b16 %v3963
        %v4018 = vunpack.c.l.b16 %v3964
        %v4019 = vunpack.c.l.b16 %v3965
        %v4020 = vunpack.c.l.b16 %v3966
        %v4021 = vunpack.c.l.b16 %v3967
        %v4022 = vunpack.c.l.b16 %v3968
        %v4023 = vunpack.c.l.b16 %v3969
        %v4024 = vunpack.c.l.b16 %v3970
        %v4025 = vunpack.c.l.b16 %v3971
        %v4026 = vunpack.c.l.b16 %v3972
        %v4027 = vunpack.c.l.b16 %v3973
        %v4028 = vunpack.c.l.b16 %v3974
        %v4029 = vunpack.c.l.b16 %v3975
        %v4030 = vpack.c.b16 %v4012, %v4011
        %v4031 = vpack.c.b16 %v4014, %v4013
        %v4032 = vpack.c.b16 %v4016, %v4015
        %v4033 = vpack.c.b16 %v4018, %v4017
        %v4034 = vpack.c.b16 %v4020, %v4019
        %v4035 = vpack.c.b16 %v4022, %v4021
        %v4036 = vpack.c.b16 %v4024, %v4023
        %v4037 = vpack.c.b16 %v4026, %v4025
        %v4038 = vpack.c.b16 %v4028, %v4027
        %v4039 = vpack.c.b16 %v4029, %v4029
        %v4041 = vshrl.u32 %v4030, 16
        %v4043 = vshll.u32 %v4030, 16
        %v4045 = vrot.slane %v4043, 1
        %v4046 = vor.u32 %v4041, %v4045
        %v4048 = vshll.u32 %v4031, 16
        %v4050 = vrot.slane %v4048, 1
        %v4051 = vsel %vm555, %v4046, %v4050
        %v4052 = vshrl.u32 %v4031, 16
        %v4054 = vor.u32 %v4052, %v4050
        %v4056 = vshll.u32 %v4032, 16
        %v4058 = vrot.slane %v4056, 1
        %v4059 = vsel %vm555, %v4054, %v4058
        %v4060 = vshrl.u32 %v4032, 16
        %v4062 = vor.u32 %v4060, %v4058
        %v4064 = vshll.u32 %v4033, 16
        %v4066 = vrot.slane %v4064, 1
        %v4067 = vsel %vm555, %v4062, %v4066
        %v4068 = vshrl.u32 %v4033, 16
        %v4070 = vor.u32 %v4068, %v4066
        %v4072 = vshll.u32 %v4034, 16
        %v4074 = vrot.slane %v4072, 1
        %v4075 = vsel %vm555, %v4070, %v4074
        %v4076 = vshrl.u32 %v4034, 16
        %v4078 = vor.u32 %v4076, %v4074
        %v4080 = vshll.u32 %v4035, 16
        %v4082 = vrot.slane %v4080, 1
        %v4083 = vsel %vm555, %v4078, %v4082
        %v4084 = vshrl.u32 %v4035, 16
        %v4086 = vor.u32 %v4084, %v4082
        %v4088 = vshll.u32 %v4036, 16
        %v4090 = vrot.slane %v4088, 1
        %v4091 = vsel %vm555, %v4086, %v4090
        %v4092 = vshrl.u32 %v4036, 16
        %v4094 = vor.u32 %v4092, %v4090
        %v4096 = vshll.u32 %v4037, 16
        %v4098 = vrot.slane %v4096, 1
        %v4099 = vsel %vm555, %v4094, %v4098
        %v4100 = vshrl.u32 %v4037, 16
        %v4102 = vor.u32 %v4100, %v4098
        %v4104 = vshll.u32 %v4038, 16
        %v4106 = vrot.slane %v4104, 1
        %v4107 = vsel %vm555, %v4102, %v4106
        %v4108 = vshrl.u32 %v4038, 16
        %v4110 = vor.u32 %v4108, %v4106
        %v4112 = vshll.u32 %v4039, 16
        %v4114 = vrot.slane %v4112, 1
        %v4115 = vsel %vm555, %v4110, %v4114
        %v4141 = vunpack.c.l.b16 %v3976
        %v4142 = vunpack.c.l.b16 %v3977
        %v4143 = vunpack.c.l.b16 %v3978
        %v4144 = vunpack.c.l.b16 %v3979
        %v4145 = vunpack.c.l.b16 %v3980
        %v4146 = vunpack.c.l.b16 %v3981
        %v4147 = vunpack.c.l.b16 %v3982
        %v4148 = vunpack.c.l.b16 %v3983
        %v4149 = vunpack.c.l.b16 %v3984
        %v4150 = vunpack.c.l.b16 %v3985
        %v4151 = vunpack.c.l.b16 %v3986
        %v4152 = vunpack.c.l.b16 %v3987
        %v4153 = vunpack.c.l.b16 %v3988
        %v4154 = vunpack.c.l.b16 %v3989
        %v4155 = vunpack.c.l.b16 %v3990
        %v4156 = vunpack.c.l.b16 %v3991
        %v4157 = vpack.c.b16 %v4142, %v4141
        %v4158 = vpack.c.b16 %v4144, %v4143
        %v4159 = vpack.c.b16 %v4146, %v4145
        %v4160 = vpack.c.b16 %v4148, %v4147
        %v4161 = vpack.c.b16 %v4150, %v4149
        %v4162 = vpack.c.b16 %v4152, %v4151
        %v4163 = vpack.c.b16 %v4154, %v4153
        %v4164 = vpack.c.b16 %v4156, %v4155
        %4173 = vmatpush.bf16.msra.mxu0 %v4164
        %4174 = vmatpush.bf16.msra.mxu0 %v4163
        %4175 = vmatpush.bf16.msra.mxu0 %v4162
        %4176 = vmatpush.bf16.msra.mxu0 %v4161
        %4177 = vmatpush.bf16.msra.mxu0 %v4160
        %4178 = vmatpush.bf16.msra.mxu0 %v4159
        %4179 = vmatpush.bf16.msra.mxu0 %v4158
        %4180 = vmatpush.bf16.msra.mxu0 %v4157
        %4181 = vmatmul.bf16.gmra.mxu0 %v4051
        %v4182 = vpop.f32.mrf.mxu0
        %v4183 = vadd.f32 0.0, %v4182
        %v4184 = vpop.f32.mrf.mxu0
        %v4185 = vadd.f32 0.0, %v4184
        %4186 = vmatmul.bf16.gmra.mxu0 %v4059
        %v4187 = vpop.f32.mrf.mxu0
        %v4188 = vadd.f32 0.0, %v4187
        %v4189 = vpop.f32.mrf.mxu0
        %v4190 = vadd.f32 0.0, %v4189
        %4191 = vmatmul.bf16.gmra.mxu0 %v4067
        %v4192 = vpop.f32.mrf.mxu0
        %v4193 = vadd.f32 0.0, %v4192
        %v4194 = vpop.f32.mrf.mxu0
        %v4195 = vadd.f32 0.0, %v4194
        %4196 = vmatmul.bf16.gmra.mxu0 %v4075
        %v4197 = vpop.f32.mrf.mxu0
        %v4198 = vadd.f32 0.0, %v4197
        %v4199 = vpop.f32.mrf.mxu0
        %v4200 = vadd.f32 0.0, %v4199
        %4201 = vmatmul.bf16.gmra.mxu0 %v4083
        %v4202 = vpop.f32.mrf.mxu0
        %v4203 = vadd.f32 0.0, %v4202
        %v4204 = vpop.f32.mrf.mxu0
        %v4205 = vadd.f32 0.0, %v4204
        %4206 = vmatmul.bf16.gmra.mxu0 %v4091
        %v4207 = vpop.f32.mrf.mxu0
        %v4208 = vadd.f32 0.0, %v4207
        %v4209 = vpop.f32.mrf.mxu0
        %v4210 = vadd.f32 0.0, %v4209
        %4211 = vmatmul.bf16.gmra.mxu0 %v4099
        %v4212 = vpop.f32.mrf.mxu0
        %v4213 = vadd.f32 0.0, %v4212
        %v4214 = vpop.f32.mrf.mxu0
        %v4215 = vadd.f32 0.0, %v4214
        %4216 = vmatmul.bf16.gmra.mxu0 %v4107
        %v4217 = vpop.f32.mrf.mxu0
        %v4218 = vadd.f32 0.0, %v4217
        %v4219 = vpop.f32.mrf.mxu0
        %v4220 = vadd.f32 0.0, %v4219
        %4221 = vmatmul.bf16.gmra.mxu0 %v4115
        %v4222 = vpop.f32.mrf.mxu0
        %v4223 = vadd.f32 0.0, %v4222
        %v4224 = vpop.f32.mrf.mxu0
        %v4225 = vadd.f32 0.0, %v4224
        %4226 = vdwg.mxu0
        %v4227 = vadd.f32 %v3939, %v4183
        %v4228 = vadd.f32 %v3940, %v4185
        %v4229 = vadd.f32 %v3941, %v4188
        %v4230 = vadd.f32 %v3942, %v4190
        %v4231 = vadd.f32 %v3943, %v4193
        %v4232 = vadd.f32 %v3944, %v4195
        %v4233 = vadd.f32 %v3945, %v4198
        %v4234 = vadd.f32 %v3946, %v4200
        %v4235 = vadd.f32 %v3947, %v4203
        %v4236 = vadd.f32 %v3948, %v4205
        %v4237 = vadd.f32 %v3949, %v4208
        %v4238 = vadd.f32 %v3950, %v4210
        %v4239 = vadd.f32 %v3951, %v4213
        %v4240 = vadd.f32 %v3952, %v4215
        %v4241 = vadd.f32 %v3953, %v4218
        %v4242 = vadd.f32 %v3954, %v4220
        %v4243 = vadd.f32 %v3955, %v4223
        %v4244 = vadd.f32 %v3956, %v4225
        %v4245 = vld [vmem:[%s337 + $0x60] sm:$0xe]
        %v4246 = vld [vmem:[%s2190] sm:$0xf]
        %v4247 = vld [vmem:[%s2190 + $0x4] sm:$0xf]
        %v4248 = vld [vmem:[%s2190 + $0x8] sm:$0xf]
        %v4249 = vld [vmem:[%s2190 + $0xc] sm:$0xf]
        %v4250 = vld [vmem:[%s2190 + $0x10] sm:$0xf]
        %v4251 = vld [vmem:[%s2190 + $0x14] sm:$0xf]
        %v4252 = vld [vmem:[%s2190 + $0x18] sm:$0xf]
        %v4253 = vld [vmem:[%s2190 + $0x1c] sm:$0xf]
        %v4254 = vld [vmem:[%s2190 + $0x20] sm:$0xf]
        %v4255 = vld [vmem:[%s2190 + $0x24] sm:$0xf]
        %v4256 = vld [vmem:[%s2190 + $0x28] sm:$0xf]
        %v4257 = vld [vmem:[%s2190 + $0x2c] sm:$0xf]
        %v4258 = vld [vmem:[%s2190 + $0x30] sm:$0xf]
        %v4259 = vld [vmem:[%s2190 + $0x34] sm:$0xf]
        %v4260 = vld [vmem:[%s2190 + $0x38] sm:$0xf]
        %v4261 = vld [vmem:[%s2190 + $0x3c] sm:$0xf]
        %v4263 = vunpack.c.l.b16 %v4245
        %v4264 = vpack.c.b16 %v4012, %v4263
        %v4265 = vrot.slane %v4264, 1
        %v4266 = vrot.slane %v4031, 1
        %v4267 = vsel %vm875, %v4265, %v4266
        %v4268 = vrot.slane %v4032, 1
        %v4269 = vsel %vm875, %v4266, %v4268
        %v4270 = vrot.slane %v4033, 1
        %v4271 = vsel %vm875, %v4268, %v4270
        %v4272 = vrot.slane %v4034, 1
        %v4273 = vsel %vm875, %v4270, %v4272
        %v4274 = vrot.slane %v4035, 1
        %v4275 = vsel %vm875, %v4272, %v4274
        %v4276 = vrot.slane %v4036, 1
        %v4277 = vsel %vm875, %v4274, %v4276
        %v4278 = vrot.slane %v4037, 1
        %v4279 = vsel %vm875, %v4276, %v4278
        %v4280 = vrot.slane %v4038, 1
        %v4281 = vsel %vm875, %v4278, %v4280
        %v4282 = vrot.slane %v4039, 1
        %v4283 = vsel %vm875, %v4280, %v4282
        %v4309 = vunpack.c.l.b16 %v4246
        %v4310 = vunpack.c.l.b16 %v4247
        %v4311 = vunpack.c.l.b16 %v4248
        %v4312 = vunpack.c.l.b16 %v4249
        %v4313 = vunpack.c.l.b16 %v4250
        %v4314 = vunpack.c.l.b16 %v4251
        %v4315 = vunpack.c.l.b16 %v4252
        %v4316 = vunpack.c.l.b16 %v4253
        %v4317 = vunpack.c.l.b16 %v4254
        %v4318 = vunpack.c.l.b16 %v4255
        %v4319 = vunpack.c.l.b16 %v4256
        %v4320 = vunpack.c.l.b16 %v4257
        %v4321 = vunpack.c.l.b16 %v4258
        %v4322 = vunpack.c.l.b16 %v4259
        %v4323 = vunpack.c.l.b16 %v4260
        %v4324 = vunpack.c.l.b16 %v4261
        %v4325 = vpack.c.b16 %v4310, %v4309
        %v4326 = vpack.c.b16 %v4312, %v4311
        %v4327 = vpack.c.b16 %v4314, %v4313
        %v4328 = vpack.c.b16 %v4316, %v4315
        %v4329 = vpack.c.b16 %v4318, %v4317
        %v4330 = vpack.c.b16 %v4320, %v4319
        %v4331 = vpack.c.b16 %v4322, %v4321
        %v4332 = vpack.c.b16 %v4324, %v4323
        %4341 = vmatpush.bf16.msra.mxu0 %v4332
        %4342 = vmatpush.bf16.msra.mxu0 %v4331
        %4343 = vmatpush.bf16.msra.mxu0 %v4330
        %4344 = vmatpush.bf16.msra.mxu0 %v4329
        %4345 = vmatpush.bf16.msra.mxu0 %v4328
        %4346 = vmatpush.bf16.msra.mxu0 %v4327
        %4347 = vmatpush.bf16.msra.mxu0 %v4326
        %4348 = vmatpush.bf16.msra.mxu0 %v4325
        %4349 = vmatmul.bf16.gmra.mxu0 %v4267
        %v4350 = vpop.f32.mrf.mxu0
        %v4351 = vadd.f32 0.0, %v4350
        %v4352 = vpop.f32.mrf.mxu0
        %v4353 = vadd.f32 0.0, %v4352
        %4354 = vmatmul.bf16.gmra.mxu0 %v4269
        %v4355 = vpop.f32.mrf.mxu0
        %v4356 = vadd.f32 0.0, %v4355
        %v4357 = vpop.f32.mrf.mxu0
        %v4358 = vadd.f32 0.0, %v4357
        %4359 = vmatmul.bf16.gmra.mxu0 %v4271
        %v4360 = vpop.f32.mrf.mxu0
        %v4361 = vadd.f32 0.0, %v4360
        %v4362 = vpop.f32.mrf.mxu0
        %v4363 = vadd.f32 0.0, %v4362
        %4364 = vmatmul.bf16.gmra.mxu0 %v4273
        %v4365 = vpop.f32.mrf.mxu0
        %v4366 = vadd.f32 0.0, %v4365
        %v4367 = vpop.f32.mrf.mxu0
        %v4368 = vadd.f32 0.0, %v4367
        %4369 = vmatmul.bf16.gmra.mxu0 %v4275
        %v4370 = vpop.f32.mrf.mxu0
        %v4371 = vadd.f32 0.0, %v4370
        %v4372 = vpop.f32.mrf.mxu0
        %v4373 = vadd.f32 0.0, %v4372
        %4374 = vmatmul.bf16.gmra.mxu0 %v4277
        %v4375 = vpop.f32.mrf.mxu0
        %v4376 = vadd.f32 0.0, %v4375
        %v4377 = vpop.f32.mrf.mxu0
        %v4378 = vadd.f32 0.0, %v4377
        %4379 = vmatmul.bf16.gmra.mxu0 %v4279
        %v4380 = vpop.f32.mrf.mxu0
        %v4381 = vadd.f32 0.0, %v4380
        %v4382 = vpop.f32.mrf.mxu0
        %v4383 = vadd.f32 0.0, %v4382
        %4384 = vmatmul.bf16.gmra.mxu0 %v4281
        %v4385 = vpop.f32.mrf.mxu0
        %v4386 = vadd.f32 0.0, %v4385
        %v4387 = vpop.f32.mrf.mxu0
        %v4388 = vadd.f32 0.0, %v4387
        %4389 = vmatmul.bf16.gmra.mxu0 %v4283
        %v4390 = vpop.f32.mrf.mxu0
        %v4391 = vadd.f32 0.0, %v4390
        %v4392 = vpop.f32.mrf.mxu0
        %v4393 = vadd.f32 0.0, %v4392
        %4394 = vdwg.mxu0
        %v4395 = vadd.f32 %v4227, %v4351
        %v4396 = vadd.f32 %v4228, %v4353
        %v4397 = vadd.f32 %v4229, %v4356
        %v4398 = vadd.f32 %v4230, %v4358
        %v4399 = vadd.f32 %v4231, %v4361
        %v4400 = vadd.f32 %v4232, %v4363
        %v4401 = vadd.f32 %v4233, %v4366
        %v4402 = vadd.f32 %v4234, %v4368
        %v4403 = vadd.f32 %v4235, %v4371
        %v4404 = vadd.f32 %v4236, %v4373
        %v4405 = vadd.f32 %v4237, %v4376
        %v4406 = vadd.f32 %v4238, %v4378
        %v4407 = vadd.f32 %v4239, %v4381
        %v4408 = vadd.f32 %v4240, %v4383
        %v4409 = vadd.f32 %v4241, %v4386
        %v4410 = vadd.f32 %v4242, %v4388
        %v4411 = vadd.f32 %v4243, %v4391
        %v4412 = vadd.f32 %v4244, %v4393
        %v4413 = vmax.f32 %v4395, 0.0
        %v4414 = vmax.f32 %v4396, 0.0
        %v4415 = vmax.f32 %v4397, 0.0
        %v4416 = vmax.f32 %v4398, 0.0
        %v4417 = vmax.f32 %v4399, 0.0
        %v4418 = vmax.f32 %v4400, 0.0
        %v4419 = vmax.f32 %v4401, 0.0
        %v4420 = vmax.f32 %v4402, 0.0
        %v4421 = vmax.f32 %v4403, 0.0
        %v4422 = vmax.f32 %v4404, 0.0
        %v4423 = vmax.f32 %v4405, 0.0
        %v4424 = vmax.f32 %v4406, 0.0
        %v4425 = vmax.f32 %v4407, 0.0
        %v4426 = vmax.f32 %v4408, 0.0
        %v4427 = vmax.f32 %v4409, 0.0
        %v4428 = vmax.f32 %v4410, 0.0
        %v4429 = vmax.f32 %v4411, 0.0
        %v4430 = vmax.f32 %v4412, 0.0
        %v4431 = vmul.f32 %v4413, %v2379
        %v4432 = vmul.f32 %v4414, %v2384
        %v4433 = vmul.f32 %v4415, %v2389
        %v4434 = vmul.f32 %v4416, %v2394
        %v4435 = vmul.f32 %v4417, %v2399
        %v4436 = vmul.f32 %v4418, %v2404
        %v4437 = vmul.f32 %v4419, %v2409
        %v4438 = vmul.f32 %v4420, %v2414
        %v4439 = vmul.f32 %v4421, %v2419
        %v4440 = vmul.f32 %v4422, %v2424
        %v4441 = vmul.f32 %v4423, %v2429
        %v4442 = vmul.f32 %v4424, %v2434
        %v4443 = vmul.f32 %v4425, %v2439
        %v4444 = vmul.f32 %v4426, %v2444
        %v4445 = vmul.f32 %v4427, %v2449
        %v4446 = vmul.f32 %v4428, %v2454
        %v4447 = vmul.f32 %v4429, %v2459
        %v4448 = vmul.f32 %v4430, %v2464
        %v4449 = vpack.c.bf16 %v4431, %v4431
        %v4450 = vpack.c.bf16 %v4432, %v4432
        %v4451 = vpack.c.bf16 %v4433, %v4433
        %v4452 = vpack.c.bf16 %v4434, %v4434
        %v4453 = vpack.c.bf16 %v4435, %v4435
        %v4454 = vpack.c.bf16 %v4436, %v4436
        %v4455 = vpack.c.bf16 %v4437, %v4437
        %v4456 = vpack.c.bf16 %v4438, %v4438
        %v4457 = vpack.c.bf16 %v4439, %v4439
        %v4458 = vpack.c.bf16 %v4440, %v4440
        %v4459 = vpack.c.bf16 %v4441, %v4441
        %v4460 = vpack.c.bf16 %v4442, %v4442
        %v4461 = vpack.c.bf16 %v4443, %v4443
        %v4462 = vpack.c.bf16 %v4444, %v4444
        %v4463 = vpack.c.bf16 %v4445, %v4445
        %v4464 = vpack.c.bf16 %v4446, %v4446
        %v4465 = vpack.c.bf16 %v4447, %v4447
        %v4466 = vpack.c.bf16 %v4448, %v4448
        %4467 = vst [vmem:[#allocation3 + $0x48] sm:$0xf] %v4449
        %4468 = vst [vmem:[#allocation3 + $0x4c] sm:$0xf] %v4450
        %4469 = vst [vmem:[#allocation3 + $0x50] sm:$0xf] %v4451
        %4470 = vst [vmem:[#allocation3 + $0x54] sm:$0xf] %v4452
        %4471 = vst [vmem:[#allocation3 + $0x58] sm:$0xf] %v4453
        %4472 = vst [vmem:[#allocation3 + $0x5c] sm:$0xf] %v4454
        %4473 = vst [vmem:[#allocation3 + $0x60] sm:$0xf] %v4455
        %4474 = vst [vmem:[#allocation3 + $0x64] sm:$0xf] %v4456
        %4475 = vst [vmem:[#allocation3 + $0x68] sm:$0xf] %v4457
        %4476 = vst [vmem:[#allocation3 + $0x6c] sm:$0xf] %v4458
        %4477 = vst [vmem:[#allocation3 + $0x70] sm:$0xf] %v4459
        %4478 = vst [vmem:[#allocation3 + $0x74] sm:$0xf] %v4460
        %4479 = vst [vmem:[#allocation3 + $0x78] sm:$0xf] %v4461
        %4480 = vst [vmem:[#allocation3 + $0x7c] sm:$0xf] %v4462
        %4481 = vst [vmem:[#allocation3 + $0x80] sm:$0xf] %v4463
        %4482 = vst [vmem:[#allocation3 + $0x84] sm:$0xf] %v4464
        %4483 = vst [vmem:[#allocation3 + $0x88] sm:$0xf] %v4465
        %4484 = vst [vmem:[#allocation3 + $0x8c] sm:$0xf] %v4466
        %v4485 = vld [vmem:[%s337 + $0x90] sm:$0xf]
        %v4486 = vld [vmem:[%s337 + $0x94] sm:$0xf]
        %v4487 = vld [vmem:[%s337 + $0x98] sm:$0xf]
        %v4488 = vld [vmem:[%s337 + $0x9c] sm:$0xf]
        %v4489 = vld [vmem:[%s337 + $0xa0] sm:$0xf]
        %v4490 = vld [vmem:[%s337 + $0xa4] sm:$0xf]
        %v4491 = vld [vmem:[%s337 + $0xa8] sm:$0xf]
        %v4492 = vld [vmem:[%s337 + $0xac] sm:$0xf]
        %v4493 = vld [vmem:[%s337 + $0xb0] sm:$0xf]
        %v4494 = vld [vmem:[%s337 + $0xb4] sm:$0xf]
        %v4495 = vld [vmem:[%s337 + $0xb8] sm:$0xf]
        %v4496 = vld [vmem:[%s337 + $0xbc] sm:$0xf]
        %v4497 = vld [vmem:[%s337 + $0xc0] sm:$0xf]
        %v4498 = vld [vmem:[%s337 + $0xc4] sm:$0xf]
        %v4499 = vld [vmem:[%s337 + $0xc8] sm:$0xf]
        %v4500 = vld [vmem:[%s337 + $0xcc] sm:$0xf]
        %v4501 = vld [vmem:[%s337 + $0xd0] sm:$0xf]
        %v4502 = vld [vmem:[%s337 + $0xd4] sm:$0xf]
        %v4503 = vld [vmem:[%s1] sm:$0xf]
        %v4504 = vld [vmem:[%s1 + $0x4] sm:$0xf]
        %v4505 = vld [vmem:[%s1 + $0x8] sm:$0xf]
        %v4506 = vld [vmem:[%s1 + $0xc] sm:$0xf]
        %v4507 = vld [vmem:[%s1 + $0x10] sm:$0xf]
        %v4508 = vld [vmem:[%s1 + $0x14] sm:$0xf]
        %v4509 = vld [vmem:[%s1 + $0x18] sm:$0xf]
        %v4510 = vld [vmem:[%s1 + $0x1c] sm:$0xf]
        %v4511 = vld [vmem:[%s1 + $0x20] sm:$0xf]
        %v4512 = vld [vmem:[%s1 + $0x24] sm:$0xf]
        %v4513 = vld [vmem:[%s1 + $0x28] sm:$0xf]
        %v4514 = vld [vmem:[%s1 + $0x2c] sm:$0xf]
        %v4515 = vld [vmem:[%s1 + $0x30] sm:$0xf]
        %v4516 = vld [vmem:[%s1 + $0x34] sm:$0xf]
        %v4517 = vld [vmem:[%s1 + $0x38] sm:$0xf]
        %v4518 = vld [vmem:[%s1 + $0x3c] sm:$0xf]
        %v4519 = vld [vmem:[%s337 + $0xd8] sm:$0x1]
        %v4520 = vld [vmem:[%s490] sm:$0xf]
        %v4521 = vld [vmem:[%s490 + $0x4] sm:$0xf]
        %v4522 = vld [vmem:[%s490 + $0x8] sm:$0xf]
        %v4523 = vld [vmem:[%s490 + $0xc] sm:$0xf]
        %v4524 = vld [vmem:[%s490 + $0x10] sm:$0xf]
        %v4525 = vld [vmem:[%s490 + $0x14] sm:$0xf]
        %v4526 = vld [vmem:[%s490 + $0x18] sm:$0xf]
        %v4527 = vld [vmem:[%s490 + $0x1c] sm:$0xf]
        %v4528 = vld [vmem:[%s490 + $0x20] sm:$0xf]
        %v4529 = vld [vmem:[%s490 + $0x24] sm:$0xf]
        %v4530 = vld [vmem:[%s490 + $0x28] sm:$0xf]
        %v4531 = vld [vmem:[%s490 + $0x2c] sm:$0xf]
        %v4532 = vld [vmem:[%s490 + $0x30] sm:$0xf]
        %v4533 = vld [vmem:[%s490 + $0x34] sm:$0xf]
        %v4534 = vld [vmem:[%s490 + $0x38] sm:$0xf]
        %v4535 = vld [vmem:[%s490 + $0x3c] sm:$0xf]
        %v4555 = vunpack.c.l.b16 %v4485
        %v4556 = vunpack.c.l.b16 %v4486
        %v4557 = vunpack.c.l.b16 %v4487
        %v4558 = vunpack.c.l.b16 %v4488
        %v4559 = vunpack.c.l.b16 %v4489
        %v4560 = vunpack.c.l.b16 %v4490
        %v4561 = vunpack.c.l.b16 %v4491
        %v4562 = vunpack.c.l.b16 %v4492
        %v4563 = vunpack.c.l.b16 %v4493
        %v4564 = vunpack.c.l.b16 %v4494
        %v4565 = vunpack.c.l.b16 %v4495
        %v4566 = vunpack.c.l.b16 %v4496
        %v4567 = vunpack.c.l.b16 %v4497
        %v4568 = vunpack.c.l.b16 %v4498
        %v4569 = vunpack.c.l.b16 %v4499
        %v4570 = vunpack.c.l.b16 %v4500
        %v4571 = vunpack.c.l.b16 %v4501
        %v4572 = vunpack.c.l.b16 %v4502
        %v4573 = vunpack.c.l.b16 %v4519
        %v4574 = vpack.c.b16 %v4556, %v4555
        %v4575 = vpack.c.b16 %v4558, %v4557
        %v4576 = vpack.c.b16 %v4560, %v4559
        %v4577 = vpack.c.b16 %v4562, %v4561
        %v4578 = vpack.c.b16 %v4564, %v4563
        %v4579 = vpack.c.b16 %v4566, %v4565
        %v4580 = vpack.c.b16 %v4568, %v4567
        %v4581 = vpack.c.b16 %v4570, %v4569
        %v4582 = vpack.c.b16 %v4572, %v4571
        %v4583 = vpack.c.b16 %v4573, %v4573
        %v4585 = vshrl.u32 %v4574, 16
        %v4587 = vshll.u32 %v4574, 16
        %v4589 = vrot.slane %v4587, 1
        %v4590 = vor.u32 %v4585, %v4589
        %v4592 = vshll.u32 %v4575, 16
        %v4594 = vrot.slane %v4592, 1
        %v4595 = vsel %vm555, %v4590, %v4594
        %v4596 = vshrl.u32 %v4575, 16
        %v4598 = vor.u32 %v4596, %v4594
        %v4600 = vshll.u32 %v4576, 16
        %v4602 = vrot.slane %v4600, 1
        %v4603 = vsel %vm555, %v4598, %v4602
        %v4604 = vshrl.u32 %v4576, 16
        %v4606 = vor.u32 %v4604, %v4602
        %v4608 = vshll.u32 %v4577, 16
        %v4610 = vrot.slane %v4608, 1
        %v4611 = vsel %vm555, %v4606, %v4610
        %v4612 = vshrl.u32 %v4577, 16
        %v4614 = vor.u32 %v4612, %v4610
        %v4616 = vshll.u32 %v4578, 16
        %v4618 = vrot.slane %v4616, 1
        %v4619 = vsel %vm555, %v4614, %v4618
        %v4620 = vshrl.u32 %v4578, 16
        %v4622 = vor.u32 %v4620, %v4618
        %v4624 = vshll.u32 %v4579, 16
        %v4626 = vrot.slane %v4624, 1
        %v4627 = vsel %vm555, %v4622, %v4626
        %v4628 = vshrl.u32 %v4579, 16
        %v4630 = vor.u32 %v4628, %v4626
        %v4632 = vshll.u32 %v4580, 16
        %v4634 = vrot.slane %v4632, 1
        %v4635 = vsel %vm555, %v4630, %v4634
        %v4636 = vshrl.u32 %v4580, 16
        %v4638 = vor.u32 %v4636, %v4634
        %v4640 = vshll.u32 %v4581, 16
        %v4642 = vrot.slane %v4640, 1
        %v4643 = vsel %vm555, %v4638, %v4642
        %v4644 = vshrl.u32 %v4581, 16
        %v4646 = vor.u32 %v4644, %v4642
        %v4648 = vshll.u32 %v4582, 16
        %v4650 = vrot.slane %v4648, 1
        %v4651 = vsel %vm555, %v4646, %v4650
        %v4652 = vshrl.u32 %v4582, 16
        %v4654 = vor.u32 %v4652, %v4650
        %v4656 = vshll.u32 %v4583, 16
        %v4658 = vrot.slane %v4656, 1
        %v4659 = vsel %vm555, %v4654, %v4658
        %v4685 = vunpack.c.l.b16 %v4520
        %v4686 = vunpack.c.l.b16 %v4521
        %v4687 = vunpack.c.l.b16 %v4522
        %v4688 = vunpack.c.l.b16 %v4523
        %v4689 = vunpack.c.l.b16 %v4524
        %v4690 = vunpack.c.l.b16 %v4525
        %v4691 = vunpack.c.l.b16 %v4526
        %v4692 = vunpack.c.l.b16 %v4527
        %v4693 = vunpack.c.l.b16 %v4528
        %v4694 = vunpack.c.l.b16 %v4529
        %v4695 = vunpack.c.l.b16 %v4530
        %v4696 = vunpack.c.l.b16 %v4531
        %v4697 = vunpack.c.l.b16 %v4532
        %v4698 = vunpack.c.l.b16 %v4533
        %v4699 = vunpack.c.l.b16 %v4534
        %v4700 = vunpack.c.l.b16 %v4535
        %v4701 = vpack.c.b16 %v4686, %v4685
        %v4702 = vpack.c.b16 %v4688, %v4687
        %v4703 = vpack.c.b16 %v4690, %v4689
        %v4704 = vpack.c.b16 %v4692, %v4691
        %v4705 = vpack.c.b16 %v4694, %v4693
        %v4706 = vpack.c.b16 %v4696, %v4695
        %v4707 = vpack.c.b16 %v4698, %v4697
        %v4708 = vpack.c.b16 %v4700, %v4699
        %4717 = vmatpush.bf16.msra.mxu0 %v4708
        %4718 = vmatpush.bf16.msra.mxu0 %v4707
        %4719 = vmatpush.bf16.msra.mxu0 %v4706
        %4720 = vmatpush.bf16.msra.mxu0 %v4705
        %4721 = vmatpush.bf16.msra.mxu0 %v4704
        %4722 = vmatpush.bf16.msra.mxu0 %v4703
        %4723 = vmatpush.bf16.msra.mxu0 %v4702
        %4724 = vmatpush.bf16.msra.mxu0 %v4701
        %4725 = vmatmul.bf16.gmra.mxu0 %v4595
        %v4726 = vpop.f32.mrf.mxu0
        %v4727 = vadd.f32 0.0, %v4726
        %v4728 = vpop.f32.mrf.mxu0
        %v4729 = vadd.f32 0.0, %v4728
        %4730 = vmatmul.bf16.gmra.mxu0 %v4603
        %v4731 = vpop.f32.mrf.mxu0
        %v4732 = vadd.f32 0.0, %v4731
        %v4733 = vpop.f32.mrf.mxu0
        %v4734 = vadd.f32 0.0, %v4733
        %4735 = vmatmul.bf16.gmra.mxu0 %v4611
        %v4736 = vpop.f32.mrf.mxu0
        %v4737 = vadd.f32 0.0, %v4736
        %v4738 = vpop.f32.mrf.mxu0
        %v4739 = vadd.f32 0.0, %v4738
        %4740 = vmatmul.bf16.gmra.mxu0 %v4619
        %v4741 = vpop.f32.mrf.mxu0
        %v4742 = vadd.f32 0.0, %v4741
        %v4743 = vpop.f32.mrf.mxu0
        %v4744 = vadd.f32 0.0, %v4743
        %4745 = vmatmul.bf16.gmra.mxu0 %v4627
        %v4746 = vpop.f32.mrf.mxu0
        %v4747 = vadd.f32 0.0, %v4746
        %v4748 = vpop.f32.mrf.mxu0
        %v4749 = vadd.f32 0.0, %v4748
        %4750 = vmatmul.bf16.gmra.mxu0 %v4635
        %v4751 = vpop.f32.mrf.mxu0
        %v4752 = vadd.f32 0.0, %v4751
        %v4753 = vpop.f32.mrf.mxu0
        %v4754 = vadd.f32 0.0, %v4753
        %4755 = vmatmul.bf16.gmra.mxu0 %v4643
        %v4756 = vpop.f32.mrf.mxu0
        %v4757 = vadd.f32 0.0, %v4756
        %v4758 = vpop.f32.mrf.mxu0
        %v4759 = vadd.f32 0.0, %v4758
        %4760 = vmatmul.bf16.gmra.mxu0 %v4651
        %v4761 = vpop.f32.mrf.mxu0
        %v4762 = vadd.f32 0.0, %v4761
        %v4763 = vpop.f32.mrf.mxu0
        %v4764 = vadd.f32 0.0, %v4763
        %4765 = vmatmul.bf16.gmra.mxu0 %v4659
        %v4766 = vpop.f32.mrf.mxu0
        %v4767 = vadd.f32 0.0, %v4766
        %v4768 = vpop.f32.mrf.mxu0
        %v4769 = vadd.f32 0.0, %v4768
        %4770 = vdwg.mxu0
        %v4796 = vunpack.c.l.b16 %v4503
        %v4797 = vunpack.c.l.b16 %v4504
        %v4798 = vunpack.c.l.b16 %v4505
        %v4799 = vunpack.c.l.b16 %v4506
        %v4800 = vunpack.c.l.b16 %v4507
        %v4801 = vunpack.c.l.b16 %v4508
        %v4802 = vunpack.c.l.b16 %v4509
        %v4803 = vunpack.c.l.b16 %v4510
        %v4804 = vunpack.c.l.b16 %v4511
        %v4805 = vunpack.c.l.b16 %v4512
        %v4806 = vunpack.c.l.b16 %v4513
        %v4807 = vunpack.c.l.b16 %v4514
        %v4808 = vunpack.c.l.b16 %v4515
        %v4809 = vunpack.c.l.b16 %v4516
        %v4810 = vunpack.c.l.b16 %v4517
        %v4811 = vunpack.c.l.b16 %v4518
        %v4812 = vpack.c.b16 %v4797, %v4796
        %v4813 = vpack.c.b16 %v4799, %v4798
        %v4814 = vpack.c.b16 %v4801, %v4800
        %v4815 = vpack.c.b16 %v4803, %v4802
        %v4816 = vpack.c.b16 %v4805, %v4804
        %v4817 = vpack.c.b16 %v4807, %v4806
        %v4818 = vpack.c.b16 %v4809, %v4808
        %v4819 = vpack.c.b16 %v4811, %v4810
        %4828 = vmatpush.bf16.msra.mxu0 %v4819
        %4829 = vmatpush.bf16.msra.mxu0 %v4818
        %4830 = vmatpush.bf16.msra.mxu0 %v4817
        %4831 = vmatpush.bf16.msra.mxu0 %v4816
        %4832 = vmatpush.bf16.msra.mxu0 %v4815
        %4833 = vmatpush.bf16.msra.mxu0 %v4814
        %4834 = vmatpush.bf16.msra.mxu0 %v4813
        %4835 = vmatpush.bf16.msra.mxu0 %v4812
        %4836 = vmatmul.bf16.gmra.mxu0 %v4574
        %v4837 = vpop.f32.mrf.mxu0
        %v4838 = vadd.f32 %v4727, %v4837
        %v4839 = vpop.f32.mrf.mxu0
        %v4840 = vadd.f32 %v4729, %v4839
        %4841 = vmatmul.bf16.gmra.mxu0 %v4575
        %v4842 = vpop.f32.mrf.mxu0
        %v4843 = vadd.f32 %v4732, %v4842
        %v4844 = vpop.f32.mrf.mxu0
        %v4845 = vadd.f32 %v4734, %v4844
        %4846 = vmatmul.bf16.gmra.mxu0 %v4576
        %v4847 = vpop.f32.mrf.mxu0
        %v4848 = vadd.f32 %v4737, %v4847
        %v4849 = vpop.f32.mrf.mxu0
        %v4850 = vadd.f32 %v4739, %v4849
        %4851 = vmatmul.bf16.gmra.mxu0 %v4577
        %v4852 = vpop.f32.mrf.mxu0
        %v4853 = vadd.f32 %v4742, %v4852
        %v4854 = vpop.f32.mrf.mxu0
        %v4855 = vadd.f32 %v4744, %v4854
        %4856 = vmatmul.bf16.gmra.mxu0 %v4578
        %v4857 = vpop.f32.mrf.mxu0
        %v4858 = vadd.f32 %v4747, %v4857
        %v4859 = vpop.f32.mrf.mxu0
        %v4860 = vadd.f32 %v4749, %v4859
        %4861 = vmatmul.bf16.gmra.mxu0 %v4579
        %v4862 = vpop.f32.mrf.mxu0
        %v4863 = vadd.f32 %v4752, %v4862
        %v4864 = vpop.f32.mrf.mxu0
        %v4865 = vadd.f32 %v4754, %v4864
        %4866 = vmatmul.bf16.gmra.mxu0 %v4580
        %v4867 = vpop.f32.mrf.mxu0
        %v4868 = vadd.f32 %v4757, %v4867
        %v4869 = vpop.f32.mrf.mxu0
        %v4870 = vadd.f32 %v4759, %v4869
        %4871 = vmatmul.bf16.gmra.mxu0 %v4581
        %v4872 = vpop.f32.mrf.mxu0
        %v4873 = vadd.f32 %v4762, %v4872
        %v4874 = vpop.f32.mrf.mxu0
        %v4875 = vadd.f32 %v4764, %v4874
        %4876 = vmatmul.bf16.gmra.mxu0 %v4582
        %v4877 = vpop.f32.mrf.mxu0
        %v4878 = vadd.f32 %v4767, %v4877
        %v4879 = vpop.f32.mrf.mxu0
        %v4880 = vadd.f32 %v4769, %v4879
        %4881 = vdwg.mxu0
        %v4882 = vld [vmem:[%s337 + $0x90] sm:$0xe]
        %v4883 = vld [vmem:[%s855] sm:$0xf]
        %v4884 = vld [vmem:[%s855 + $0x4] sm:$0xf]
        %v4885 = vld [vmem:[%s855 + $0x8] sm:$0xf]
        %v4886 = vld [vmem:[%s855 + $0xc] sm:$0xf]
        %v4887 = vld [vmem:[%s855 + $0x10] sm:$0xf]
        %v4888 = vld [vmem:[%s855 + $0x14] sm:$0xf]
        %v4889 = vld [vmem:[%s855 + $0x18] sm:$0xf]
        %v4890 = vld [vmem:[%s855 + $0x1c] sm:$0xf]
        %v4891 = vld [vmem:[%s855 + $0x20] sm:$0xf]
        %v4892 = vld [vmem:[%s855 + $0x24] sm:$0xf]
        %v4893 = vld [vmem:[%s855 + $0x28] sm:$0xf]
        %v4894 = vld [vmem:[%s855 + $0x2c] sm:$0xf]
        %v4895 = vld [vmem:[%s855 + $0x30] sm:$0xf]
        %v4896 = vld [vmem:[%s855 + $0x34] sm:$0xf]
        %v4897 = vld [vmem:[%s855 + $0x38] sm:$0xf]
        %v4898 = vld [vmem:[%s855 + $0x3c] sm:$0xf]
        %v4900 = vunpack.c.l.b16 %v4882
        %v4901 = vpack.c.b16 %v4556, %v4900
        %v4902 = vrot.slane %v4901, 1
        %v4903 = vrot.slane %v4575, 1
        %v4904 = vsel %vm875, %v4902, %v4903
        %v4905 = vrot.slane %v4576, 1
        %v4906 = vsel %vm875, %v4903, %v4905
        %v4907 = vrot.slane %v4577, 1
        %v4908 = vsel %vm875, %v4905, %v4907
        %v4909 = vrot.slane %v4578, 1
        %v4910 = vsel %vm875, %v4907, %v4909
        %v4911 = vrot.slane %v4579, 1
        %v4912 = vsel %vm875, %v4909, %v4911
        %v4913 = vrot.slane %v4580, 1
        %v4914 = vsel %vm875, %v4911, %v4913
        %v4915 = vrot.slane %v4581, 1
        %v4916 = vsel %vm875, %v4913, %v4915
        %v4917 = vrot.slane %v4582, 1
        %v4918 = vsel %vm875, %v4915, %v4917
        %v4919 = vrot.slane %v4583, 1
        %v4920 = vsel %vm875, %v4917, %v4919
        %v4946 = vunpack.c.l.b16 %v4883
        %v4947 = vunpack.c.l.b16 %v4884
        %v4948 = vunpack.c.l.b16 %v4885
        %v4949 = vunpack.c.l.b16 %v4886
        %v4950 = vunpack.c.l.b16 %v4887
        %v4951 = vunpack.c.l.b16 %v4888
        %v4952 = vunpack.c.l.b16 %v4889
        %v4953 = vunpack.c.l.b16 %v4890
        %v4954 = vunpack.c.l.b16 %v4891
        %v4955 = vunpack.c.l.b16 %v4892
        %v4956 = vunpack.c.l.b16 %v4893
        %v4957 = vunpack.c.l.b16 %v4894
        %v4958 = vunpack.c.l.b16 %v4895
        %v4959 = vunpack.c.l.b16 %v4896
        %v4960 = vunpack.c.l.b16 %v4897
        %v4961 = vunpack.c.l.b16 %v4898
        %v4962 = vpack.c.b16 %v4947, %v4946
        %v4963 = vpack.c.b16 %v4949, %v4948
        %v4964 = vpack.c.b16 %v4951, %v4950
        %v4965 = vpack.c.b16 %v4953, %v4952
        %v4966 = vpack.c.b16 %v4955, %v4954
        %v4967 = vpack.c.b16 %v4957, %v4956
        %v4968 = vpack.c.b16 %v4959, %v4958
        %v4969 = vpack.c.b16 %v4961, %v4960
        %4978 = vmatpush.bf16.msra.mxu0 %v4969
        %4979 = vmatpush.bf16.msra.mxu0 %v4968
        %4980 = vmatpush.bf16.msra.mxu0 %v4967
        %4981 = vmatpush.bf16.msra.mxu0 %v4966
        %4982 = vmatpush.bf16.msra.mxu0 %v4965
        %4983 = vmatpush.bf16.msra.mxu0 %v4964
        %4984 = vmatpush.bf16.msra.mxu0 %v4963
        %4985 = vmatpush.bf16.msra.mxu0 %v4962
        %4986 = vmatmul.bf16.gmra.mxu0 %v4904
        %v4987 = vpop.f32.mrf.mxu0
        %v4988 = vadd.f32 0.0, %v4987
        %v4989 = vpop.f32.mrf.mxu0
        %v4990 = vadd.f32 0.0, %v4989
        %4991 = vmatmul.bf16.gmra.mxu0 %v4906
        %v4992 = vpop.f32.mrf.mxu0
        %v4993 = vadd.f32 0.0, %v4992
        %v4994 = vpop.f32.mrf.mxu0
        %v4995 = vadd.f32 0.0, %v4994
        %4996 = vmatmul.bf16.gmra.mxu0 %v4908
        %v4997 = vpop.f32.mrf.mxu0
        %v4998 = vadd.f32 0.0, %v4997
        %v4999 = vpop.f32.mrf.mxu0
        %v5000 = vadd.f32 0.0, %v4999
        %5001 = vmatmul.bf16.gmra.mxu0 %v4910
        %v5002 = vpop.f32.mrf.mxu0
        %v5003 = vadd.f32 0.0, %v5002
        %v5004 = vpop.f32.mrf.mxu0
        %v5005 = vadd.f32 0.0, %v5004
        %5006 = vmatmul.bf16.gmra.mxu0 %v4912
        %v5007 = vpop.f32.mrf.mxu0
        %v5008 = vadd.f32 0.0, %v5007
        %v5009 = vpop.f32.mrf.mxu0
        %v5010 = vadd.f32 0.0, %v5009
        %5011 = vmatmul.bf16.gmra.mxu0 %v4914
        %v5012 = vpop.f32.mrf.mxu0
        %v5013 = vadd.f32 0.0, %v5012
        %v5014 = vpop.f32.mrf.mxu0
        %v5015 = vadd.f32 0.0, %v5014
        %5016 = vmatmul.bf16.gmra.mxu0 %v4916
        %v5017 = vpop.f32.mrf.mxu0
        %v5018 = vadd.f32 0.0, %v5017
        %v5019 = vpop.f32.mrf.mxu0
        %v5020 = vadd.f32 0.0, %v5019
        %5021 = vmatmul.bf16.gmra.mxu0 %v4918
        %v5022 = vpop.f32.mrf.mxu0
        %v5023 = vadd.f32 0.0, %v5022
        %v5024 = vpop.f32.mrf.mxu0
        %v5025 = vadd.f32 0.0, %v5024
        %5026 = vmatmul.bf16.gmra.mxu0 %v4920
        %v5027 = vpop.f32.mrf.mxu0
        %v5028 = vadd.f32 0.0, %v5027
        %v5029 = vpop.f32.mrf.mxu0
        %v5030 = vadd.f32 0.0, %v5029
        %5031 = vdwg.mxu0
        %v5032 = vadd.f32 %v4838, %v4988
        %v5033 = vadd.f32 %v4840, %v4990
        %v5034 = vadd.f32 %v4843, %v4993
        %v5035 = vadd.f32 %v4845, %v4995
        %v5036 = vadd.f32 %v4848, %v4998
        %v5037 = vadd.f32 %v4850, %v5000
        %v5038 = vadd.f32 %v4853, %v5003
        %v5039 = vadd.f32 %v4855, %v5005
        %v5040 = vadd.f32 %v4858, %v5008
        %v5041 = vadd.f32 %v4860, %v5010
        %v5042 = vadd.f32 %v4863, %v5013
        %v5043 = vadd.f32 %v4865, %v5015
        %v5044 = vadd.f32 %v4868, %v5018
        %v5045 = vadd.f32 %v4870, %v5020
        %v5046 = vadd.f32 %v4873, %v5023
        %v5047 = vadd.f32 %v4875, %v5025
        %v5048 = vadd.f32 %v4878, %v5028
        %v5049 = vadd.f32 %v4880, %v5030
        %v5050 = vld [vmem:[%s337 + $0x9c] sm:$0xf]
        %v5051 = vld [vmem:[%s337 + $0xa0] sm:$0xf]
        %v5052 = vld [vmem:[%s337 + $0xa4] sm:$0xf]
        %v5053 = vld [vmem:[%s337 + $0xa8] sm:$0xf]
        %v5054 = vld [vmem:[%s337 + $0xac] sm:$0xf]
        %v5055 = vld [vmem:[%s337 + $0xb0] sm:$0xf]
        %v5056 = vld [vmem:[%s337 + $0xb4] sm:$0xf]
        %v5057 = vld [vmem:[%s337 + $0xb8] sm:$0xf]
        %v5058 = vld [vmem:[%s337 + $0xbc] sm:$0xf]
        %v5059 = vld [vmem:[%s337 + $0xc0] sm:$0xf]
        %v5060 = vld [vmem:[%s337 + $0xc4] sm:$0xf]
        %v5061 = vld [vmem:[%s337 + $0xc8] sm:$0xf]
        %v5062 = vld [vmem:[%s337 + $0xcc] sm:$0xf]
        %v5063 = vld [vmem:[%s337 + $0xd0] sm:$0xf]
        %v5064 = vld [vmem:[%s337 + $0xd4] sm:$0xf]
        %v5065 = vld [vmem:[%s337 + $0xd8] sm:$0xf]
        %v5066 = vld [vmem:[%s337 + $0xdc] sm:$0xf]
        %v5067 = vld [vmem:[%s337 + $0xe0] sm:$0xf]
        %v5068 = vld [vmem:[%s1042] sm:$0xf]
        %v5069 = vld [vmem:[%s1042 + $0x4] sm:$0xf]
        %v5070 = vld [vmem:[%s1042 + $0x8] sm:$0xf]
        %v5071 = vld [vmem:[%s1042 + $0xc] sm:$0xf]
        %v5072 = vld [vmem:[%s1042 + $0x10] sm:$0xf]
        %v5073 = vld [vmem:[%s1042 + $0x14] sm:$0xf]
        %v5074 = vld [vmem:[%s1042 + $0x18] sm:$0xf]
        %v5075 = vld [vmem:[%s1042 + $0x1c] sm:$0xf]
        %v5076 = vld [vmem:[%s1042 + $0x20] sm:$0xf]
        %v5077 = vld [vmem:[%s1042 + $0x24] sm:$0xf]
        %v5078 = vld [vmem:[%s1042 + $0x28] sm:$0xf]
        %v5079 = vld [vmem:[%s1042 + $0x2c] sm:$0xf]
        %v5080 = vld [vmem:[%s1042 + $0x30] sm:$0xf]
        %v5081 = vld [vmem:[%s1042 + $0x34] sm:$0xf]
        %v5082 = vld [vmem:[%s1042 + $0x38] sm:$0xf]
        %v5083 = vld [vmem:[%s1042 + $0x3c] sm:$0xf]
        %v5102 = vunpack.c.l.b16 %v5050
        %v5103 = vunpack.c.l.b16 %v5051
        %v5104 = vunpack.c.l.b16 %v5052
        %v5105 = vunpack.c.l.b16 %v5053
        %v5106 = vunpack.c.l.b16 %v5054
        %v5107 = vunpack.c.l.b16 %v5055
        %v5108 = vunpack.c.l.b16 %v5056
        %v5109 = vunpack.c.l.b16 %v5057
        %v5110 = vunpack.c.l.b16 %v5058
        %v5111 = vunpack.c.l.b16 %v5059
        %v5112 = vunpack.c.l.b16 %v5060
        %v5113 = vunpack.c.l.b16 %v5061
        %v5114 = vunpack.c.l.b16 %v5062
        %v5115 = vunpack.c.l.b16 %v5063
        %v5116 = vunpack.c.l.b16 %v5064
        %v5117 = vunpack.c.l.b16 %v5065
        %v5118 = vunpack.c.l.b16 %v5066
        %v5119 = vunpack.c.l.b16 %v5067
        %v5120 = vpack.c.b16 %v5103, %v5102
        %v5121 = vpack.c.b16 %v5105, %v5104
        %v5122 = vpack.c.b16 %v5107, %v5106
        %v5123 = vpack.c.b16 %v5109, %v5108
        %v5124 = vpack.c.b16 %v5111, %v5110
        %v5125 = vpack.c.b16 %v5113, %v5112
        %v5126 = vpack.c.b16 %v5115, %v5114
        %v5127 = vpack.c.b16 %v5117, %v5116
        %v5128 = vpack.c.b16 %v5119, %v5118
        %v5154 = vunpack.c.l.b16 %v5068
        %v5155 = vunpack.c.l.b16 %v5069
        %v5156 = vunpack.c.l.b16 %v5070
        %v5157 = vunpack.c.l.b16 %v5071
        %v5158 = vunpack.c.l.b16 %v5072
        %v5159 = vunpack.c.l.b16 %v5073
        %v5160 = vunpack.c.l.b16 %v5074
        %v5161 = vunpack.c.l.b16 %v5075
        %v5162 = vunpack.c.l.b16 %v5076
        %v5163 = vunpack.c.l.b16 %v5077
        %v5164 = vunpack.c.l.b16 %v5078
        %v5165 = vunpack.c.l.b16 %v5079
        %v5166 = vunpack.c.l.b16 %v5080
        %v5167 = vunpack.c.l.b16 %v5081
        %v5168 = vunpack.c.l.b16 %v5082
        %v5169 = vunpack.c.l.b16 %v5083
        %v5170 = vpack.c.b16 %v5155, %v5154
        %v5171 = vpack.c.b16 %v5157, %v5156
        %v5172 = vpack.c.b16 %v5159, %v5158
        %v5173 = vpack.c.b16 %v5161, %v5160
        %v5174 = vpack.c.b16 %v5163, %v5162
        %v5175 = vpack.c.b16 %v5165, %v5164
        %v5176 = vpack.c.b16 %v5167, %v5166
        %v5177 = vpack.c.b16 %v5169, %v5168
        %5186 = vmatpush.bf16.msra.mxu0 %v5177
        %5187 = vmatpush.bf16.msra.mxu0 %v5176
        %5188 = vmatpush.bf16.msra.mxu0 %v5175
        %5189 = vmatpush.bf16.msra.mxu0 %v5174
        %5190 = vmatpush.bf16.msra.mxu0 %v5173
        %5191 = vmatpush.bf16.msra.mxu0 %v5172
        %5192 = vmatpush.bf16.msra.mxu0 %v5171
        %5193 = vmatpush.bf16.msra.mxu0 %v5170
        %5194 = vmatmul.bf16.gmra.mxu0 %v5120
        %v5195 = vpop.f32.mrf.mxu0
        %v5196 = vadd.f32 0.0, %v5195
        %v5197 = vpop.f32.mrf.mxu0
        %v5198 = vadd.f32 0.0, %v5197
        %5199 = vmatmul.bf16.gmra.mxu0 %v5121
        %v5200 = vpop.f32.mrf.mxu0
        %v5201 = vadd.f32 0.0, %v5200
        %v5202 = vpop.f32.mrf.mxu0
        %v5203 = vadd.f32 0.0, %v5202
        %5204 = vmatmul.bf16.gmra.mxu0 %v5122
        %v5205 = vpop.f32.mrf.mxu0
        %v5206 = vadd.f32 0.0, %v5205
        %v5207 = vpop.f32.mrf.mxu0
        %v5208 = vadd.f32 0.0, %v5207
        %5209 = vmatmul.bf16.gmra.mxu0 %v5123
        %v5210 = vpop.f32.mrf.mxu0
        %v5211 = vadd.f32 0.0, %v5210
        %v5212 = vpop.f32.mrf.mxu0
        %v5213 = vadd.f32 0.0, %v5212
        %5214 = vmatmul.bf16.gmra.mxu0 %v5124
        %v5215 = vpop.f32.mrf.mxu0
        %v5216 = vadd.f32 0.0, %v5215
        %v5217 = vpop.f32.mrf.mxu0
        %v5218 = vadd.f32 0.0, %v5217
        %5219 = vmatmul.bf16.gmra.mxu0 %v5125
        %v5220 = vpop.f32.mrf.mxu0
        %v5221 = vadd.f32 0.0, %v5220
        %v5222 = vpop.f32.mrf.mxu0
        %v5223 = vadd.f32 0.0, %v5222
        %5224 = vmatmul.bf16.gmra.mxu0 %v5126
        %v5225 = vpop.f32.mrf.mxu0
        %v5226 = vadd.f32 0.0, %v5225
        %v5227 = vpop.f32.mrf.mxu0
        %v5228 = vadd.f32 0.0, %v5227
        %5229 = vmatmul.bf16.gmra.mxu0 %v5127
        %v5230 = vpop.f32.mrf.mxu0
        %v5231 = vadd.f32 0.0, %v5230
        %v5232 = vpop.f32.mrf.mxu0
        %v5233 = vadd.f32 0.0, %v5232
        %5234 = vmatmul.bf16.gmra.mxu0 %v5128
        %v5235 = vpop.f32.mrf.mxu0
        %v5236 = vadd.f32 0.0, %v5235
        %v5237 = vpop.f32.mrf.mxu0
        %v5238 = vadd.f32 0.0, %v5237
        %5239 = vdwg.mxu0
        %v5240 = vadd.f32 %v5032, %v5196
        %v5241 = vadd.f32 %v5033, %v5198
        %v5242 = vadd.f32 %v5034, %v5201
        %v5243 = vadd.f32 %v5035, %v5203
        %v5244 = vadd.f32 %v5036, %v5206
        %v5245 = vadd.f32 %v5037, %v5208
        %v5246 = vadd.f32 %v5038, %v5211
        %v5247 = vadd.f32 %v5039, %v5213
        %v5248 = vadd.f32 %v5040, %v5216
        %v5249 = vadd.f32 %v5041, %v5218
        %v5250 = vadd.f32 %v5042, %v5221
        %v5251 = vadd.f32 %v5043, %v5223
        %v5252 = vadd.f32 %v5044, %v5226
        %v5253 = vadd.f32 %v5045, %v5228
        %v5254 = vadd.f32 %v5046, %v5231
        %v5255 = vadd.f32 %v5047, %v5233
        %v5256 = vadd.f32 %v5048, %v5236
        %v5257 = vadd.f32 %v5049, %v5238
        %v5258 = vld [vmem:[%s337 + $0x9c] sm:$0xf]
        %v5259 = vld [vmem:[%s337 + $0xa0] sm:$0xf]
        %v5260 = vld [vmem:[%s337 + $0xa4] sm:$0xf]
        %v5261 = vld [vmem:[%s337 + $0xa8] sm:$0xf]
        %v5262 = vld [vmem:[%s337 + $0xac] sm:$0xf]
        %v5263 = vld [vmem:[%s337 + $0xb0] sm:$0xf]
        %v5264 = vld [vmem:[%s337 + $0xb4] sm:$0xf]
        %v5265 = vld [vmem:[%s337 + $0xb8] sm:$0xf]
        %v5266 = vld [vmem:[%s337 + $0xbc] sm:$0xf]
        %v5267 = vld [vmem:[%s337 + $0xc0] sm:$0xf]
        %v5268 = vld [vmem:[%s337 + $0xc4] sm:$0xf]
        %v5269 = vld [vmem:[%s337 + $0xc8] sm:$0xf]
        %v5270 = vld [vmem:[%s337 + $0xcc] sm:$0xf]
        %v5271 = vld [vmem:[%s337 + $0xd0] sm:$0xf]
        %v5272 = vld [vmem:[%s337 + $0xd4] sm:$0xf]
        %v5273 = vld [vmem:[%s337 + $0xd8] sm:$0xf]
        %v5274 = vld [vmem:[%s337 + $0xdc] sm:$0xf]
        %v5275 = vld [vmem:[%s337 + $0xe0] sm:$0xf]
        %v5276 = vld [vmem:[%s337 + $0xe4] sm:$0x1]
        %v5277 = vld [vmem:[%s1252] sm:$0xf]
        %v5278 = vld [vmem:[%s1252 + $0x4] sm:$0xf]
        %v5279 = vld [vmem:[%s1252 + $0x8] sm:$0xf]
        %v5280 = vld [vmem:[%s1252 + $0xc] sm:$0xf]
        %v5281 = vld [vmem:[%s1252 + $0x10] sm:$0xf]
        %v5282 = vld [vmem:[%s1252 + $0x14] sm:$0xf]
        %v5283 = vld [vmem:[%s1252 + $0x18] sm:$0xf]
        %v5284 = vld [vmem:[%s1252 + $0x1c] sm:$0xf]
        %v5285 = vld [vmem:[%s1252 + $0x20] sm:$0xf]
        %v5286 = vld [vmem:[%s1252 + $0x24] sm:$0xf]
        %v5287 = vld [vmem:[%s1252 + $0x28] sm:$0xf]
        %v5288 = vld [vmem:[%s1252 + $0x2c] sm:$0xf]
        %v5289 = vld [vmem:[%s1252 + $0x30] sm:$0xf]
        %v5290 = vld [vmem:[%s1252 + $0x34] sm:$0xf]
        %v5291 = vld [vmem:[%s1252 + $0x38] sm:$0xf]
        %v5292 = vld [vmem:[%s1252 + $0x3c] sm:$0xf]
        %v5312 = vunpack.c.l.b16 %v5258
        %v5313 = vunpack.c.l.b16 %v5259
        %v5314 = vunpack.c.l.b16 %v5260
        %v5315 = vunpack.c.l.b16 %v5261
        %v5316 = vunpack.c.l.b16 %v5262
        %v5317 = vunpack.c.l.b16 %v5263
        %v5318 = vunpack.c.l.b16 %v5264
        %v5319 = vunpack.c.l.b16 %v5265
        %v5320 = vunpack.c.l.b16 %v5266
        %v5321 = vunpack.c.l.b16 %v5267
        %v5322 = vunpack.c.l.b16 %v5268
        %v5323 = vunpack.c.l.b16 %v5269
        %v5324 = vunpack.c.l.b16 %v5270
        %v5325 = vunpack.c.l.b16 %v5271
        %v5326 = vunpack.c.l.b16 %v5272
        %v5327 = vunpack.c.l.b16 %v5273
        %v5328 = vunpack.c.l.b16 %v5274
        %v5329 = vunpack.c.l.b16 %v5275
        %v5330 = vunpack.c.l.b16 %v5276
        %v5331 = vpack.c.b16 %v5313, %v5312
        %v5332 = vpack.c.b16 %v5315, %v5314
        %v5333 = vpack.c.b16 %v5317, %v5316
        %v5334 = vpack.c.b16 %v5319, %v5318
        %v5335 = vpack.c.b16 %v5321, %v5320
        %v5336 = vpack.c.b16 %v5323, %v5322
        %v5337 = vpack.c.b16 %v5325, %v5324
        %v5338 = vpack.c.b16 %v5327, %v5326
        %v5339 = vpack.c.b16 %v5329, %v5328
        %v5340 = vpack.c.b16 %v5330, %v5330
        %v5342 = vshrl.u32 %v5331, 16
        %v5344 = vshll.u32 %v5331, 16
        %v5346 = vrot.slane %v5344, 1
        %v5347 = vor.u32 %v5342, %v5346
        %v5349 = vshll.u32 %v5332, 16
        %v5351 = vrot.slane %v5349, 1
        %v5352 = vsel %vm555, %v5347, %v5351
        %v5353 = vshrl.u32 %v5332, 16
        %v5355 = vor.u32 %v5353, %v5351
        %v5357 = vshll.u32 %v5333, 16
        %v5359 = vrot.slane %v5357, 1
        %v5360 = vsel %vm555, %v5355, %v5359
        %v5361 = vshrl.u32 %v5333, 16
        %v5363 = vor.u32 %v5361, %v5359
        %v5365 = vshll.u32 %v5334, 16
        %v5367 = vrot.slane %v5365, 1
        %v5368 = vsel %vm555, %v5363, %v5367
        %v5369 = vshrl.u32 %v5334, 16
        %v5371 = vor.u32 %v5369, %v5367
        %v5373 = vshll.u32 %v5335, 16
        %v5375 = vrot.slane %v5373, 1
        %v5376 = vsel %vm555, %v5371, %v5375
        %v5377 = vshrl.u32 %v5335, 16
        %v5379 = vor.u32 %v5377, %v5375
        %v5381 = vshll.u32 %v5336, 16
        %v5383 = vrot.slane %v5381, 1
        %v5384 = vsel %vm555, %v5379, %v5383
        %v5385 = vshrl.u32 %v5336, 16
        %v5387 = vor.u32 %v5385, %v5383
        %v5389 = vshll.u32 %v5337, 16
        %v5391 = vrot.slane %v5389, 1
        %v5392 = vsel %vm555, %v5387, %v5391
        %v5393 = vshrl.u32 %v5337, 16
        %v5395 = vor.u32 %v5393, %v5391
        %v5397 = vshll.u32 %v5338, 16
        %v5399 = vrot.slane %v5397, 1
        %v5400 = vsel %vm555, %v5395, %v5399
        %v5401 = vshrl.u32 %v5338, 16
        %v5403 = vor.u32 %v5401, %v5399
        %v5405 = vshll.u32 %v5339, 16
        %v5407 = vrot.slane %v5405, 1
        %v5408 = vsel %vm555, %v5403, %v5407
        %v5409 = vshrl.u32 %v5339, 16
        %v5411 = vor.u32 %v5409, %v5407
        %v5413 = vshll.u32 %v5340, 16
        %v5415 = vrot.slane %v5413, 1
        %v5416 = vsel %vm555, %v5411, %v5415
        %v5442 = vunpack.c.l.b16 %v5277
        %v5443 = vunpack.c.l.b16 %v5278
        %v5444 = vunpack.c.l.b16 %v5279
        %v5445 = vunpack.c.l.b16 %v5280
        %v5446 = vunpack.c.l.b16 %v5281
        %v5447 = vunpack.c.l.b16 %v5282
        %v5448 = vunpack.c.l.b16 %v5283
        %v5449 = vunpack.c.l.b16 %v5284
        %v5450 = vunpack.c.l.b16 %v5285
        %v5451 = vunpack.c.l.b16 %v5286
        %v5452 = vunpack.c.l.b16 %v5287
        %v5453 = vunpack.c.l.b16 %v5288
        %v5454 = vunpack.c.l.b16 %v5289
        %v5455 = vunpack.c.l.b16 %v5290
        %v5456 = vunpack.c.l.b16 %v5291
        %v5457 = vunpack.c.l.b16 %v5292
        %v5458 = vpack.c.b16 %v5443, %v5442
        %v5459 = vpack.c.b16 %v5445, %v5444
        %v5460 = vpack.c.b16 %v5447, %v5446
        %v5461 = vpack.c.b16 %v5449, %v5448
        %v5462 = vpack.c.b16 %v5451, %v5450
        %v5463 = vpack.c.b16 %v5453, %v5452
        %v5464 = vpack.c.b16 %v5455, %v5454
        %v5465 = vpack.c.b16 %v5457, %v5456
        %5474 = vmatpush.bf16.msra.mxu0 %v5465
        %5475 = vmatpush.bf16.msra.mxu0 %v5464
        %5476 = vmatpush.bf16.msra.mxu0 %v5463
        %5477 = vmatpush.bf16.msra.mxu0 %v5462
        %5478 = vmatpush.bf16.msra.mxu0 %v5461
        %5479 = vmatpush.bf16.msra.mxu0 %v5460
        %5480 = vmatpush.bf16.msra.mxu0 %v5459
        %5481 = vmatpush.bf16.msra.mxu0 %v5458
        %5482 = vmatmul.bf16.gmra.mxu0 %v5352
        %v5483 = vpop.f32.mrf.mxu0
        %v5484 = vadd.f32 0.0, %v5483
        %v5485 = vpop.f32.mrf.mxu0
        %v5486 = vadd.f32 0.0, %v5485
        %5487 = vmatmul.bf16.gmra.mxu0 %v5360
        %v5488 = vpop.f32.mrf.mxu0
        %v5489 = vadd.f32 0.0, %v5488
        %v5490 = vpop.f32.mrf.mxu0
        %v5491 = vadd.f32 0.0, %v5490
        %5492 = vmatmul.bf16.gmra.mxu0 %v5368
        %v5493 = vpop.f32.mrf.mxu0
        %v5494 = vadd.f32 0.0, %v5493
        %v5495 = vpop.f32.mrf.mxu0
        %v5496 = vadd.f32 0.0, %v5495
        %5497 = vmatmul.bf16.gmra.mxu0 %v5376
        %v5498 = vpop.f32.mrf.mxu0
        %v5499 = vadd.f32 0.0, %v5498
        %v5500 = vpop.f32.mrf.mxu0
        %v5501 = vadd.f32 0.0, %v5500
        %5502 = vmatmul.bf16.gmra.mxu0 %v5384
        %v5503 = vpop.f32.mrf.mxu0
        %v5504 = vadd.f32 0.0, %v5503
        %v5505 = vpop.f32.mrf.mxu0
        %v5506 = vadd.f32 0.0, %v5505
        %5507 = vmatmul.bf16.gmra.mxu0 %v5392
        %v5508 = vpop.f32.mrf.mxu0
        %v5509 = vadd.f32 0.0, %v5508
        %v5510 = vpop.f32.mrf.mxu0
        %v5511 = vadd.f32 0.0, %v5510
        %5512 = vmatmul.bf16.gmra.mxu0 %v5400
        %v5513 = vpop.f32.mrf.mxu0
        %v5514 = vadd.f32 0.0, %v5513
        %v5515 = vpop.f32.mrf.mxu0
        %v5516 = vadd.f32 0.0, %v5515
        %5517 = vmatmul.bf16.gmra.mxu0 %v5408
        %v5518 = vpop.f32.mrf.mxu0
        %v5519 = vadd.f32 0.0, %v5518
        %v5520 = vpop.f32.mrf.mxu0
        %v5521 = vadd.f32 0.0, %v5520
        %5522 = vmatmul.bf16.gmra.mxu0 %v5416
        %v5523 = vpop.f32.mrf.mxu0
        %v5524 = vadd.f32 0.0, %v5523
        %v5525 = vpop.f32.mrf.mxu0
        %v5526 = vadd.f32 0.0, %v5525
        %5527 = vdwg.mxu0
        %v5528 = vadd.f32 %v5240, %v5484
        %v5529 = vadd.f32 %v5241, %v5486
        %v5530 = vadd.f32 %v5242, %v5489
        %v5531 = vadd.f32 %v5243, %v5491
        %v5532 = vadd.f32 %v5244, %v5494
        %v5533 = vadd.f32 %v5245, %v5496
        %v5534 = vadd.f32 %v5246, %v5499
        %v5535 = vadd.f32 %v5247, %v5501
        %v5536 = vadd.f32 %v5248, %v5504
        %v5537 = vadd.f32 %v5249, %v5506
        %v5538 = vadd.f32 %v5250, %v5509
        %v5539 = vadd.f32 %v5251, %v5511
        %v5540 = vadd.f32 %v5252, %v5514
        %v5541 = vadd.f32 %v5253, %v5516
        %v5542 = vadd.f32 %v5254, %v5519
        %v5543 = vadd.f32 %v5255, %v5521
        %v5544 = vadd.f32 %v5256, %v5524
        %v5545 = vadd.f32 %v5257, %v5526
        %v5546 = vld [vmem:[%s337 + $0x9c] sm:$0xe]
        %v5547 = vld [vmem:[%s1523] sm:$0xf]
        %v5548 = vld [vmem:[%s1523 + $0x4] sm:$0xf]
        %v5549 = vld [vmem:[%s1523 + $0x8] sm:$0xf]
        %v5550 = vld [vmem:[%s1523 + $0xc] sm:$0xf]
        %v5551 = vld [vmem:[%s1523 + $0x10] sm:$0xf]
        %v5552 = vld [vmem:[%s1523 + $0x14] sm:$0xf]
        %v5553 = vld [vmem:[%s1523 + $0x18] sm:$0xf]
        %v5554 = vld [vmem:[%s1523 + $0x1c] sm:$0xf]
        %v5555 = vld [vmem:[%s1523 + $0x20] sm:$0xf]
        %v5556 = vld [vmem:[%s1523 + $0x24] sm:$0xf]
        %v5557 = vld [vmem:[%s1523 + $0x28] sm:$0xf]
        %v5558 = vld [vmem:[%s1523 + $0x2c] sm:$0xf]
        %v5559 = vld [vmem:[%s1523 + $0x30] sm:$0xf]
        %v5560 = vld [vmem:[%s1523 + $0x34] sm:$0xf]
        %v5561 = vld [vmem:[%s1523 + $0x38] sm:$0xf]
        %v5562 = vld [vmem:[%s1523 + $0x3c] sm:$0xf]
        %v5564 = vunpack.c.l.b16 %v5546
        %v5565 = vpack.c.b16 %v5313, %v5564
        %v5566 = vrot.slane %v5565, 1
        %v5567 = vrot.slane %v5332, 1
        %v5568 = vsel %vm875, %v5566, %v5567
        %v5569 = vrot.slane %v5333, 1
        %v5570 = vsel %vm875, %v5567, %v5569
        %v5571 = vrot.slane %v5334, 1
        %v5572 = vsel %vm875, %v5569, %v5571
        %v5573 = vrot.slane %v5335, 1
        %v5574 = vsel %vm875, %v5571, %v5573
        %v5575 = vrot.slane %v5336, 1
        %v5576 = vsel %vm875, %v5573, %v5575
        %v5577 = vrot.slane %v5337, 1
        %v5578 = vsel %vm875, %v5575, %v5577
        %v5579 = vrot.slane %v5338, 1
        %v5580 = vsel %vm875, %v5577, %v5579
        %v5581 = vrot.slane %v5339, 1
        %v5582 = vsel %vm875, %v5579, %v5581
        %v5583 = vrot.slane %v5340, 1
        %v5584 = vsel %vm875, %v5581, %v5583
        %v5610 = vunpack.c.l.b16 %v5547
        %v5611 = vunpack.c.l.b16 %v5548
        %v5612 = vunpack.c.l.b16 %v5549
        %v5613 = vunpack.c.l.b16 %v5550
        %v5614 = vunpack.c.l.b16 %v5551
        %v5615 = vunpack.c.l.b16 %v5552
        %v5616 = vunpack.c.l.b16 %v5553
        %v5617 = vunpack.c.l.b16 %v5554
        %v5618 = vunpack.c.l.b16 %v5555
        %v5619 = vunpack.c.l.b16 %v5556
        %v5620 = vunpack.c.l.b16 %v5557
        %v5621 = vunpack.c.l.b16 %v5558
        %v5622 = vunpack.c.l.b16 %v5559
        %v5623 = vunpack.c.l.b16 %v5560
        %v5624 = vunpack.c.l.b16 %v5561
        %v5625 = vunpack.c.l.b16 %v5562
        %v5626 = vpack.c.b16 %v5611, %v5610
        %v5627 = vpack.c.b16 %v5613, %v5612
        %v5628 = vpack.c.b16 %v5615, %v5614
        %v5629 = vpack.c.b16 %v5617, %v5616
        %v5630 = vpack.c.b16 %v5619, %v5618
        %v5631 = vpack.c.b16 %v5621, %v5620
        %v5632 = vpack.c.b16 %v5623, %v5622
        %v5633 = vpack.c.b16 %v5625, %v5624
        %5642 = vmatpush.bf16.msra.mxu0 %v5633
        %5643 = vmatpush.bf16.msra.mxu0 %v5632
        %5644 = vmatpush.bf16.msra.mxu0 %v5631
        %5645 = vmatpush.bf16.msra.mxu0 %v5630
        %5646 = vmatpush.bf16.msra.mxu0 %v5629
        %5647 = vmatpush.bf16.msra.mxu0 %v5628
        %5648 = vmatpush.bf16.msra.mxu0 %v5627
        %5649 = vmatpush.bf16.msra.mxu0 %v5626
        %5650 = vmatmul.bf16.gmra.mxu0 %v5568
        %v5651 = vpop.f32.mrf.mxu0
        %v5652 = vadd.f32 0.0, %v5651
        %v5653 = vpop.f32.mrf.mxu0
        %v5654 = vadd.f32 0.0, %v5653
        %5655 = vmatmul.bf16.gmra.mxu0 %v5570
        %v5656 = vpop.f32.mrf.mxu0
        %v5657 = vadd.f32 0.0, %v5656
        %v5658 = vpop.f32.mrf.mxu0
        %v5659 = vadd.f32 0.0, %v5658
        %5660 = vmatmul.bf16.gmra.mxu0 %v5572
        %v5661 = vpop.f32.mrf.mxu0
        %v5662 = vadd.f32 0.0, %v5661
        %v5663 = vpop.f32.mrf.mxu0
        %v5664 = vadd.f32 0.0, %v5663
        %5665 = vmatmul.bf16.gmra.mxu0 %v5574
        %v5666 = vpop.f32.mrf.mxu0
        %v5667 = vadd.f32 0.0, %v5666
        %v5668 = vpop.f32.mrf.mxu0
        %v5669 = vadd.f32 0.0, %v5668
        %5670 = vmatmul.bf16.gmra.mxu0 %v5576
        %v5671 = vpop.f32.mrf.mxu0
        %v5672 = vadd.f32 0.0, %v5671
        %v5673 = vpop.f32.mrf.mxu0
        %v5674 = vadd.f32 0.0, %v5673
        %5675 = vmatmul.bf16.gmra.mxu0 %v5578
        %v5676 = vpop.f32.mrf.mxu0
        %v5677 = vadd.f32 0.0, %v5676
        %v5678 = vpop.f32.mrf.mxu0
        %v5679 = vadd.f32 0.0, %v5678
        %5680 = vmatmul.bf16.gmra.mxu0 %v5580
        %v5681 = vpop.f32.mrf.mxu0
        %v5682 = vadd.f32 0.0, %v5681
        %v5683 = vpop.f32.mrf.mxu0
        %v5684 = vadd.f32 0.0, %v5683
        %5685 = vmatmul.bf16.gmra.mxu0 %v5582
        %v5686 = vpop.f32.mrf.mxu0
        %v5687 = vadd.f32 0.0, %v5686
        %v5688 = vpop.f32.mrf.mxu0
        %v5689 = vadd.f32 0.0, %v5688
        %5690 = vmatmul.bf16.gmra.mxu0 %v5584
        %v5691 = vpop.f32.mrf.mxu0
        %v5692 = vadd.f32 0.0, %v5691
        %v5693 = vpop.f32.mrf.mxu0
        %v5694 = vadd.f32 0.0, %v5693
        %5695 = vdwg.mxu0
        %v5696 = vadd.f32 %v5528, %v5652
        %v5697 = vadd.f32 %v5529, %v5654
        %v5698 = vadd.f32 %v5530, %v5657
        %v5699 = vadd.f32 %v5531, %v5659
        %v5700 = vadd.f32 %v5532, %v5662
        %v5701 = vadd.f32 %v5533, %v5664
        %v5702 = vadd.f32 %v5534, %v5667
        %v5703 = vadd.f32 %v5535, %v5669
        %v5704 = vadd.f32 %v5536, %v5672
        %v5705 = vadd.f32 %v5537, %v5674
        %v5706 = vadd.f32 %v5538, %v5677
        %v5707 = vadd.f32 %v5539, %v5679
        %v5708 = vadd.f32 %v5540, %v5682
        %v5709 = vadd.f32 %v5541, %v5684
        %v5710 = vadd.f32 %v5542, %v5687
        %v5711 = vadd.f32 %v5543, %v5689
        %v5712 = vadd.f32 %v5544, %v5692
        %v5713 = vadd.f32 %v5545, %v5694
        %v5714 = vld [vmem:[%s337 + $0xa8] sm:$0xf]
        %v5715 = vld [vmem:[%s337 + $0xac] sm:$0xf]
        %v5716 = vld [vmem:[%s337 + $0xb0] sm:$0xf]
        %v5717 = vld [vmem:[%s337 + $0xb4] sm:$0xf]
        %v5718 = vld [vmem:[%s337 + $0xb8] sm:$0xf]
        %v5719 = vld [vmem:[%s337 + $0xbc] sm:$0xf]
        %v5720 = vld [vmem:[%s337 + $0xc0] sm:$0xf]
        %v5721 = vld [vmem:[%s337 + $0xc4] sm:$0xf]
        %v5722 = vld [vmem:[%s337 + $0xc8] sm:$0xf]
        %v5723 = vld [vmem:[%s337 + $0xcc] sm:$0xf]
        %v5724 = vld [vmem:[%s337 + $0xd0] sm:$0xf]
        %v5725 = vld [vmem:[%s337 + $0xd4] sm:$0xf]
        %v5726 = vld [vmem:[%s337 + $0xd8] sm:$0xf]
        %v5727 = vld [vmem:[%s337 + $0xdc] sm:$0xf]
        %v5728 = vld [vmem:[%s337 + $0xe0] sm:$0xf]
        %v5729 = vld [vmem:[%s337 + $0xe4] sm:$0xf]
        %v5730 = vld [vmem:[%s337 + $0xe8] sm:$0xf]
        %v5731 = vld [vmem:[%s337 + $0xec] sm:$0xf]
        %v5732 = vld [vmem:[%s1709] sm:$0xf]
        %v5733 = vld [vmem:[%s1709 + $0x4] sm:$0xf]
        %v5734 = vld [vmem:[%s1709 + $0x8] sm:$0xf]
        %v5735 = vld [vmem:[%s1709 + $0xc] sm:$0xf]
        %v5736 = vld [vmem:[%s1709 + $0x10] sm:$0xf]
        %v5737 = vld [vmem:[%s1709 + $0x14] sm:$0xf]
        %v5738 = vld [vmem:[%s1709 + $0x18] sm:$0xf]
        %v5739 = vld [vmem:[%s1709 + $0x1c] sm:$0xf]
        %v5740 = vld [vmem:[%s1709 + $0x20] sm:$0xf]
        %v5741 = vld [vmem:[%s1709 + $0x24] sm:$0xf]
        %v5742 = vld [vmem:[%s1709 + $0x28] sm:$0xf]
        %v5743 = vld [vmem:[%s1709 + $0x2c] sm:$0xf]
        %v5744 = vld [vmem:[%s1709 + $0x30] sm:$0xf]
        %v5745 = vld [vmem:[%s1709 + $0x34] sm:$0xf]
        %v5746 = vld [vmem:[%s1709 + $0x38] sm:$0xf]
        %v5747 = vld [vmem:[%s1709 + $0x3c] sm:$0xf]
        %v5766 = vunpack.c.l.b16 %v5714
        %v5767 = vunpack.c.l.b16 %v5715
        %v5768 = vunpack.c.l.b16 %v5716
        %v5769 = vunpack.c.l.b16 %v5717
        %v5770 = vunpack.c.l.b16 %v5718
        %v5771 = vunpack.c.l.b16 %v5719
        %v5772 = vunpack.c.l.b16 %v5720
        %v5773 = vunpack.c.l.b16 %v5721
        %v5774 = vunpack.c.l.b16 %v5722
        %v5775 = vunpack.c.l.b16 %v5723
        %v5776 = vunpack.c.l.b16 %v5724
        %v5777 = vunpack.c.l.b16 %v5725
        %v5778 = vunpack.c.l.b16 %v5726
        %v5779 = vunpack.c.l.b16 %v5727
        %v5780 = vunpack.c.l.b16 %v5728
        %v5781 = vunpack.c.l.b16 %v5729
        %v5782 = vunpack.c.l.b16 %v5730
        %v5783 = vunpack.c.l.b16 %v5731
        %v5784 = vpack.c.b16 %v5767, %v5766
        %v5785 = vpack.c.b16 %v5769, %v5768
        %v5786 = vpack.c.b16 %v5771, %v5770
        %v5787 = vpack.c.b16 %v5773, %v5772
        %v5788 = vpack.c.b16 %v5775, %v5774
        %v5789 = vpack.c.b16 %v5777, %v5776
        %v5790 = vpack.c.b16 %v5779, %v5778
        %v5791 = vpack.c.b16 %v5781, %v5780
        %v5792 = vpack.c.b16 %v5783, %v5782
        %v5818 = vunpack.c.l.b16 %v5732
        %v5819 = vunpack.c.l.b16 %v5733
        %v5820 = vunpack.c.l.b16 %v5734
        %v5821 = vunpack.c.l.b16 %v5735
        %v5822 = vunpack.c.l.b16 %v5736
        %v5823 = vunpack.c.l.b16 %v5737
        %v5824 = vunpack.c.l.b16 %v5738
        %v5825 = vunpack.c.l.b16 %v5739
        %v5826 = vunpack.c.l.b16 %v5740
        %v5827 = vunpack.c.l.b16 %v5741
        %v5828 = vunpack.c.l.b16 %v5742
        %v5829 = vunpack.c.l.b16 %v5743
        %v5830 = vunpack.c.l.b16 %v5744
        %v5831 = vunpack.c.l.b16 %v5745
        %v5832 = vunpack.c.l.b16 %v5746
        %v5833 = vunpack.c.l.b16 %v5747
        %v5834 = vpack.c.b16 %v5819, %v5818
        %v5835 = vpack.c.b16 %v5821, %v5820
        %v5836 = vpack.c.b16 %v5823, %v5822
        %v5837 = vpack.c.b16 %v5825, %v5824
        %v5838 = vpack.c.b16 %v5827, %v5826
        %v5839 = vpack.c.b16 %v5829, %v5828
        %v5840 = vpack.c.b16 %v5831, %v5830
        %v5841 = vpack.c.b16 %v5833, %v5832
        %5850 = vmatpush.bf16.msra.mxu0 %v5841
        %5851 = vmatpush.bf16.msra.mxu0 %v5840
        %5852 = vmatpush.bf16.msra.mxu0 %v5839
        %5853 = vmatpush.bf16.msra.mxu0 %v5838
        %5854 = vmatpush.bf16.msra.mxu0 %v5837
        %5855 = vmatpush.bf16.msra.mxu0 %v5836
        %5856 = vmatpush.bf16.msra.mxu0 %v5835
        %5857 = vmatpush.bf16.msra.mxu0 %v5834
        %5858 = vmatmul.bf16.gmra.mxu0 %v5784
        %v5859 = vpop.f32.mrf.mxu0
        %v5860 = vadd.f32 0.0, %v5859
        %v5861 = vpop.f32.mrf.mxu0
        %v5862 = vadd.f32 0.0, %v5861
        %5863 = vmatmul.bf16.gmra.mxu0 %v5785
        %v5864 = vpop.f32.mrf.mxu0
        %v5865 = vadd.f32 0.0, %v5864
        %v5866 = vpop.f32.mrf.mxu0
        %v5867 = vadd.f32 0.0, %v5866
        %5868 = vmatmul.bf16.gmra.mxu0 %v5786
        %v5869 = vpop.f32.mrf.mxu0
        %v5870 = vadd.f32 0.0, %v5869
        %v5871 = vpop.f32.mrf.mxu0
        %v5872 = vadd.f32 0.0, %v5871
        %5873 = vmatmul.bf16.gmra.mxu0 %v5787
        %v5874 = vpop.f32.mrf.mxu0
        %v5875 = vadd.f32 0.0, %v5874
        %v5876 = vpop.f32.mrf.mxu0
        %v5877 = vadd.f32 0.0, %v5876
        %5878 = vmatmul.bf16.gmra.mxu0 %v5788
        %v5879 = vpop.f32.mrf.mxu0
        %v5880 = vadd.f32 0.0, %v5879
        %v5881 = vpop.f32.mrf.mxu0
        %v5882 = vadd.f32 0.0, %v5881
        %5883 = vmatmul.bf16.gmra.mxu0 %v5789
        %v5884 = vpop.f32.mrf.mxu0
        %v5885 = vadd.f32 0.0, %v5884
        %v5886 = vpop.f32.mrf.mxu0
        %v5887 = vadd.f32 0.0, %v5886
        %5888 = vmatmul.bf16.gmra.mxu0 %v5790
        %v5889 = vpop.f32.mrf.mxu0
        %v5890 = vadd.f32 0.0, %v5889
        %v5891 = vpop.f32.mrf.mxu0
        %v5892 = vadd.f32 0.0, %v5891
        %5893 = vmatmul.bf16.gmra.mxu0 %v5791
        %v5894 = vpop.f32.mrf.mxu0
        %v5895 = vadd.f32 0.0, %v5894
        %v5896 = vpop.f32.mrf.mxu0
        %v5897 = vadd.f32 0.0, %v5896
        %5898 = vmatmul.bf16.gmra.mxu0 %v5792
        %v5899 = vpop.f32.mrf.mxu0
        %v5900 = vadd.f32 0.0, %v5899
        %v5901 = vpop.f32.mrf.mxu0
        %v5902 = vadd.f32 0.0, %v5901
        %5903 = vdwg.mxu0
        %v5904 = vadd.f32 %v5696, %v5860
        %v5905 = vadd.f32 %v5697, %v5862
        %v5906 = vadd.f32 %v5698, %v5865
        %v5907 = vadd.f32 %v5699, %v5867
        %v5908 = vadd.f32 %v5700, %v5870
        %v5909 = vadd.f32 %v5701, %v5872
        %v5910 = vadd.f32 %v5702, %v5875
        %v5911 = vadd.f32 %v5703, %v5877
        %v5912 = vadd.f32 %v5704, %v5880
        %v5913 = vadd.f32 %v5705, %v5882
        %v5914 = vadd.f32 %v5706, %v5885
        %v5915 = vadd.f32 %v5707, %v5887
        %v5916 = vadd.f32 %v5708, %v5890
        %v5917 = vadd.f32 %v5709, %v5892
        %v5918 = vadd.f32 %v5710, %v5895
        %v5919 = vadd.f32 %v5711, %v5897
        %v5920 = vadd.f32 %v5712, %v5900
        %v5921 = vadd.f32 %v5713, %v5902
        %v5922 = vld [vmem:[%s337 + $0xa8] sm:$0xf]
        %v5923 = vld [vmem:[%s337 + $0xac] sm:$0xf]
        %v5924 = vld [vmem:[%s337 + $0xb0] sm:$0xf]
        %v5925 = vld [vmem:[%s337 + $0xb4] sm:$0xf]
        %v5926 = vld [vmem:[%s337 + $0xb8] sm:$0xf]
        %v5927 = vld [vmem:[%s337 + $0xbc] sm:$0xf]
        %v5928 = vld [vmem:[%s337 + $0xc0] sm:$0xf]
        %v5929 = vld [vmem:[%s337 + $0xc4] sm:$0xf]
        %v5930 = vld [vmem:[%s337 + $0xc8] sm:$0xf]
        %v5931 = vld [vmem:[%s337 + $0xcc] sm:$0xf]
        %v5932 = vld [vmem:[%s337 + $0xd0] sm:$0xf]
        %v5933 = vld [vmem:[%s337 + $0xd4] sm:$0xf]
        %v5934 = vld [vmem:[%s337 + $0xd8] sm:$0xf]
        %v5935 = vld [vmem:[%s337 + $0xdc] sm:$0xf]
        %v5936 = vld [vmem:[%s337 + $0xe0] sm:$0xf]
        %v5937 = vld [vmem:[%s337 + $0xe4] sm:$0xf]
        %v5938 = vld [vmem:[%s337 + $0xe8] sm:$0xf]
        %v5939 = vld [vmem:[%s337 + $0xec] sm:$0xf]
        %v5940 = vld [vmem:[%s337 + $0xf0] sm:$0x1]
        %v5941 = vld [vmem:[%s1919] sm:$0xf]
        %v5942 = vld [vmem:[%s1919 + $0x4] sm:$0xf]
        %v5943 = vld [vmem:[%s1919 + $0x8] sm:$0xf]
        %v5944 = vld [vmem:[%s1919 + $0xc] sm:$0xf]
        %v5945 = vld [vmem:[%s1919 + $0x10] sm:$0xf]
        %v5946 = vld [vmem:[%s1919 + $0x14] sm:$0xf]
        %v5947 = vld [vmem:[%s1919 + $0x18] sm:$0xf]
        %v5948 = vld [vmem:[%s1919 + $0x1c] sm:$0xf]
        %v5949 = vld [vmem:[%s1919 + $0x20] sm:$0xf]
        %v5950 = vld [vmem:[%s1919 + $0x24] sm:$0xf]
        %v5951 = vld [vmem:[%s1919 + $0x28] sm:$0xf]
        %v5952 = vld [vmem:[%s1919 + $0x2c] sm:$0xf]
        %v5953 = vld [vmem:[%s1919 + $0x30] sm:$0xf]
        %v5954 = vld [vmem:[%s1919 + $0x34] sm:$0xf]
        %v5955 = vld [vmem:[%s1919 + $0x38] sm:$0xf]
        %v5956 = vld [vmem:[%s1919 + $0x3c] sm:$0xf]
        %v5976 = vunpack.c.l.b16 %v5922
        %v5977 = vunpack.c.l.b16 %v5923
        %v5978 = vunpack.c.l.b16 %v5924
        %v5979 = vunpack.c.l.b16 %v5925
        %v5980 = vunpack.c.l.b16 %v5926
        %v5981 = vunpack.c.l.b16 %v5927
        %v5982 = vunpack.c.l.b16 %v5928
        %v5983 = vunpack.c.l.b16 %v5929
        %v5984 = vunpack.c.l.b16 %v5930
        %v5985 = vunpack.c.l.b16 %v5931
        %v5986 = vunpack.c.l.b16 %v5932
        %v5987 = vunpack.c.l.b16 %v5933
        %v5988 = vunpack.c.l.b16 %v5934
        %v5989 = vunpack.c.l.b16 %v5935
        %v5990 = vunpack.c.l.b16 %v5936
        %v5991 = vunpack.c.l.b16 %v5937
        %v5992 = vunpack.c.l.b16 %v5938
        %v5993 = vunpack.c.l.b16 %v5939
        %v5994 = vunpack.c.l.b16 %v5940
        %v5995 = vpack.c.b16 %v5977, %v5976
        %v5996 = vpack.c.b16 %v5979, %v5978
        %v5997 = vpack.c.b16 %v5981, %v5980
        %v5998 = vpack.c.b16 %v5983, %v5982
        %v5999 = vpack.c.b16 %v5985, %v5984
        %v6000 = vpack.c.b16 %v5987, %v5986
        %v6001 = vpack.c.b16 %v5989, %v5988
        %v6002 = vpack.c.b16 %v5991, %v5990
        %v6003 = vpack.c.b16 %v5993, %v5992
        %v6004 = vpack.c.b16 %v5994, %v5994
        %v6006 = vshrl.u32 %v5995, 16
        %v6008 = vshll.u32 %v5995, 16
        %v6010 = vrot.slane %v6008, 1
        %v6011 = vor.u32 %v6006, %v6010
        %v6013 = vshll.u32 %v5996, 16
        %v6015 = vrot.slane %v6013, 1
        %v6016 = vsel %vm555, %v6011, %v6015
        %v6017 = vshrl.u32 %v5996, 16
        %v6019 = vor.u32 %v6017, %v6015
        %v6021 = vshll.u32 %v5997, 16
        %v6023 = vrot.slane %v6021, 1
        %v6024 = vsel %vm555, %v6019, %v6023
        %v6025 = vshrl.u32 %v5997, 16
        %v6027 = vor.u32 %v6025, %v6023
        %v6029 = vshll.u32 %v5998, 16
        %v6031 = vrot.slane %v6029, 1
        %v6032 = vsel %vm555, %v6027, %v6031
        %v6033 = vshrl.u32 %v5998, 16
        %v6035 = vor.u32 %v6033, %v6031
        %v6037 = vshll.u32 %v5999, 16
        %v6039 = vrot.slane %v6037, 1
        %v6040 = vsel %vm555, %v6035, %v6039
        %v6041 = vshrl.u32 %v5999, 16
        %v6043 = vor.u32 %v6041, %v6039
        %v6045 = vshll.u32 %v6000, 16
        %v6047 = vrot.slane %v6045, 1
        %v6048 = vsel %vm555, %v6043, %v6047
        %v6049 = vshrl.u32 %v6000, 16
        %v6051 = vor.u32 %v6049, %v6047
        %v6053 = vshll.u32 %v6001, 16
        %v6055 = vrot.slane %v6053, 1
        %v6056 = vsel %vm555, %v6051, %v6055
        %v6057 = vshrl.u32 %v6001, 16
        %v6059 = vor.u32 %v6057, %v6055
        %v6061 = vshll.u32 %v6002, 16
        %v6063 = vrot.slane %v6061, 1
        %v6064 = vsel %vm555, %v6059, %v6063
        %v6065 = vshrl.u32 %v6002, 16
        %v6067 = vor.u32 %v6065, %v6063
        %v6069 = vshll.u32 %v6003, 16
        %v6071 = vrot.slane %v6069, 1
        %v6072 = vsel %vm555, %v6067, %v6071
        %v6073 = vshrl.u32 %v6003, 16
        %v6075 = vor.u32 %v6073, %v6071
        %v6077 = vshll.u32 %v6004, 16
        %v6079 = vrot.slane %v6077, 1
        %v6080 = vsel %vm555, %v6075, %v6079
        %v6106 = vunpack.c.l.b16 %v5941
        %v6107 = vunpack.c.l.b16 %v5942
        %v6108 = vunpack.c.l.b16 %v5943
        %v6109 = vunpack.c.l.b16 %v5944
        %v6110 = vunpack.c.l.b16 %v5945
        %v6111 = vunpack.c.l.b16 %v5946
        %v6112 = vunpack.c.l.b16 %v5947
        %v6113 = vunpack.c.l.b16 %v5948
        %v6114 = vunpack.c.l.b16 %v5949
        %v6115 = vunpack.c.l.b16 %v5950
        %v6116 = vunpack.c.l.b16 %v5951
        %v6117 = vunpack.c.l.b16 %v5952
        %v6118 = vunpack.c.l.b16 %v5953
        %v6119 = vunpack.c.l.b16 %v5954
        %v6120 = vunpack.c.l.b16 %v5955
        %v6121 = vunpack.c.l.b16 %v5956
        %v6122 = vpack.c.b16 %v6107, %v6106
        %v6123 = vpack.c.b16 %v6109, %v6108
        %v6124 = vpack.c.b16 %v6111, %v6110
        %v6125 = vpack.c.b16 %v6113, %v6112
        %v6126 = vpack.c.b16 %v6115, %v6114
        %v6127 = vpack.c.b16 %v6117, %v6116
        %v6128 = vpack.c.b16 %v6119, %v6118
        %v6129 = vpack.c.b16 %v6121, %v6120
        %6138 = vmatpush.bf16.msra.mxu0 %v6129
        %6139 = vmatpush.bf16.msra.mxu0 %v6128
        %6140 = vmatpush.bf16.msra.mxu0 %v6127
        %6141 = vmatpush.bf16.msra.mxu0 %v6126
        %6142 = vmatpush.bf16.msra.mxu0 %v6125
        %6143 = vmatpush.bf16.msra.mxu0 %v6124
        %6144 = vmatpush.bf16.msra.mxu0 %v6123
        %6145 = vmatpush.bf16.msra.mxu0 %v6122
        %6146 = vmatmul.bf16.gmra.mxu0 %v6016
        %v6147 = vpop.f32.mrf.mxu0
        %v6148 = vadd.f32 0.0, %v6147
        %v6149 = vpop.f32.mrf.mxu0
        %v6150 = vadd.f32 0.0, %v6149
        %6151 = vmatmul.bf16.gmra.mxu0 %v6024
        %v6152 = vpop.f32.mrf.mxu0
        %v6153 = vadd.f32 0.0, %v6152
        %v6154 = vpop.f32.mrf.mxu0
        %v6155 = vadd.f32 0.0, %v6154
        %6156 = vmatmul.bf16.gmra.mxu0 %v6032
        %v6157 = vpop.f32.mrf.mxu0
        %v6158 = vadd.f32 0.0, %v6157
        %v6159 = vpop.f32.mrf.mxu0
        %v6160 = vadd.f32 0.0, %v6159
        %6161 = vmatmul.bf16.gmra.mxu0 %v6040
        %v6162 = vpop.f32.mrf.mxu0
        %v6163 = vadd.f32 0.0, %v6162
        %v6164 = vpop.f32.mrf.mxu0
        %v6165 = vadd.f32 0.0, %v6164
        %6166 = vmatmul.bf16.gmra.mxu0 %v6048
        %v6167 = vpop.f32.mrf.mxu0
        %v6168 = vadd.f32 0.0, %v6167
        %v6169 = vpop.f32.mrf.mxu0
        %v6170 = vadd.f32 0.0, %v6169
        %6171 = vmatmul.bf16.gmra.mxu0 %v6056
        %v6172 = vpop.f32.mrf.mxu0
        %v6173 = vadd.f32 0.0, %v6172
        %v6174 = vpop.f32.mrf.mxu0
        %v6175 = vadd.f32 0.0, %v6174
        %6176 = vmatmul.bf16.gmra.mxu0 %v6064
        %v6177 = vpop.f32.mrf.mxu0
        %v6178 = vadd.f32 0.0, %v6177
        %v6179 = vpop.f32.mrf.mxu0
        %v6180 = vadd.f32 0.0, %v6179
        %6181 = vmatmul.bf16.gmra.mxu0 %v6072
        %v6182 = vpop.f32.mrf.mxu0
        %v6183 = vadd.f32 0.0, %v6182
        %v6184 = vpop.f32.mrf.mxu0
        %v6185 = vadd.f32 0.0, %v6184
        %6186 = vmatmul.bf16.gmra.mxu0 %v6080
        %v6187 = vpop.f32.mrf.mxu0
        %v6188 = vadd.f32 0.0, %v6187
        %v6189 = vpop.f32.mrf.mxu0
        %v6190 = vadd.f32 0.0, %v6189
        %6191 = vdwg.mxu0
        %v6192 = vadd.f32 %v5904, %v6148
        %v6193 = vadd.f32 %v5905, %v6150
        %v6194 = vadd.f32 %v5906, %v6153
        %v6195 = vadd.f32 %v5907, %v6155
        %v6196 = vadd.f32 %v5908, %v6158
        %v6197 = vadd.f32 %v5909, %v6160
        %v6198 = vadd.f32 %v5910, %v6163
        %v6199 = vadd.f32 %v5911, %v6165
        %v6200 = vadd.f32 %v5912, %v6168
        %v6201 = vadd.f32 %v5913, %v6170
        %v6202 = vadd.f32 %v5914, %v6173
        %v6203 = vadd.f32 %v5915, %v6175
        %v6204 = vadd.f32 %v5916, %v6178
        %v6205 = vadd.f32 %v5917, %v6180
        %v6206 = vadd.f32 %v5918, %v6183
        %v6207 = vadd.f32 %v5919, %v6185
        %v6208 = vadd.f32 %v5920, %v6188
        %v6209 = vadd.f32 %v5921, %v6190
        %v6210 = vld [vmem:[%s337 + $0xa8] sm:$0xe]
        %v6211 = vld [vmem:[%s2190] sm:$0xf]
        %v6212 = vld [vmem:[%s2190 + $0x4] sm:$0xf]
        %v6213 = vld [vmem:[%s2190 + $0x8] sm:$0xf]
        %v6214 = vld [vmem:[%s2190 + $0xc] sm:$0xf]
        %v6215 = vld [vmem:[%s2190 + $0x10] sm:$0xf]
        %v6216 = vld [vmem:[%s2190 + $0x14] sm:$0xf]
        %v6217 = vld [vmem:[%s2190 + $0x18] sm:$0xf]
        %v6218 = vld [vmem:[%s2190 + $0x1c] sm:$0xf]
        %v6219 = vld [vmem:[%s2190 + $0x20] sm:$0xf]
        %v6220 = vld [vmem:[%s2190 + $0x24] sm:$0xf]
        %v6221 = vld [vmem:[%s2190 + $0x28] sm:$0xf]
        %v6222 = vld [vmem:[%s2190 + $0x2c] sm:$0xf]
        %v6223 = vld [vmem:[%s2190 + $0x30] sm:$0xf]
        %v6224 = vld [vmem:[%s2190 + $0x34] sm:$0xf]
        %v6225 = vld [vmem:[%s2190 + $0x38] sm:$0xf]
        %v6226 = vld [vmem:[%s2190 + $0x3c] sm:$0xf]
        %v6228 = vunpack.c.l.b16 %v6210
        %v6229 = vpack.c.b16 %v5977, %v6228
        %v6230 = vrot.slane %v6229, 1
        %v6231 = vrot.slane %v5996, 1
        %v6232 = vsel %vm875, %v6230, %v6231
        %v6233 = vrot.slane %v5997, 1
        %v6234 = vsel %vm875, %v6231, %v6233
        %v6235 = vrot.slane %v5998, 1
        %v6236 = vsel %vm875, %v6233, %v6235
        %v6237 = vrot.slane %v5999, 1
        %v6238 = vsel %vm875, %v6235, %v6237
        %v6239 = vrot.slane %v6000, 1
        %v6240 = vsel %vm875, %v6237, %v6239
        %v6241 = vrot.slane %v6001, 1
        %v6242 = vsel %vm875, %v6239, %v6241
        %v6243 = vrot.slane %v6002, 1
        %v6244 = vsel %vm875, %v6241, %v6243
        %v6245 = vrot.slane %v6003, 1
        %v6246 = vsel %vm875, %v6243, %v6245
        %v6247 = vrot.slane %v6004, 1
        %v6248 = vsel %vm875, %v6245, %v6247
        %v6274 = vunpack.c.l.b16 %v6211
        %v6275 = vunpack.c.l.b16 %v6212
        %v6276 = vunpack.c.l.b16 %v6213
        %v6277 = vunpack.c.l.b16 %v6214
        %v6278 = vunpack.c.l.b16 %v6215
        %v6279 = vunpack.c.l.b16 %v6216
        %v6280 = vunpack.c.l.b16 %v6217
        %v6281 = vunpack.c.l.b16 %v6218
        %v6282 = vunpack.c.l.b16 %v6219
        %v6283 = vunpack.c.l.b16 %v6220
        %v6284 = vunpack.c.l.b16 %v6221
        %v6285 = vunpack.c.l.b16 %v6222
        %v6286 = vunpack.c.l.b16 %v6223
        %v6287 = vunpack.c.l.b16 %v6224
        %v6288 = vunpack.c.l.b16 %v6225
        %v6289 = vunpack.c.l.b16 %v6226
        %v6290 = vpack.c.b16 %v6275, %v6274
        %v6291 = vpack.c.b16 %v6277, %v6276
        %v6292 = vpack.c.b16 %v6279, %v6278
        %v6293 = vpack.c.b16 %v6281, %v6280
        %v6294 = vpack.c.b16 %v6283, %v6282
        %v6295 = vpack.c.b16 %v6285, %v6284
        %v6296 = vpack.c.b16 %v6287, %v6286
        %v6297 = vpack.c.b16 %v6289, %v6288
        %6306 = vmatpush.bf16.msra.mxu0 %v6297
        %6307 = vmatpush.bf16.msra.mxu0 %v6296
        %6308 = vmatpush.bf16.msra.mxu0 %v6295
        %6309 = vmatpush.bf16.msra.mxu0 %v6294
        %6310 = vmatpush.bf16.msra.mxu0 %v6293
        %6311 = vmatpush.bf16.msra.mxu0 %v6292
        %6312 = vmatpush.bf16.msra.mxu0 %v6291
        %6313 = vmatpush.bf16.msra.mxu0 %v6290
        %6314 = vmatmul.bf16.gmra.mxu0 %v6232
        %v6315 = vpop.f32.mrf.mxu0
        %v6316 = vadd.f32 0.0, %v6315
        %v6317 = vpop.f32.mrf.mxu0
        %v6318 = vadd.f32 0.0, %v6317
        %6319 = vmatmul.bf16.gmra.mxu0 %v6234
        %v6320 = vpop.f32.mrf.mxu0
        %v6321 = vadd.f32 0.0, %v6320
        %v6322 = vpop.f32.mrf.mxu0
        %v6323 = vadd.f32 0.0, %v6322
        %6324 = vmatmul.bf16.gmra.mxu0 %v6236
        %v6325 = vpop.f32.mrf.mxu0
        %v6326 = vadd.f32 0.0, %v6325
        %v6327 = vpop.f32.mrf.mxu0
        %v6328 = vadd.f32 0.0, %v6327
        %6329 = vmatmul.bf16.gmra.mxu0 %v6238
        %v6330 = vpop.f32.mrf.mxu0
        %v6331 = vadd.f32 0.0, %v6330
        %v6332 = vpop.f32.mrf.mxu0
        %v6333 = vadd.f32 0.0, %v6332
        %6334 = vmatmul.bf16.gmra.mxu0 %v6240
        %v6335 = vpop.f32.mrf.mxu0
        %v6336 = vadd.f32 0.0, %v6335
        %v6337 = vpop.f32.mrf.mxu0
        %v6338 = vadd.f32 0.0, %v6337
        %6339 = vmatmul.bf16.gmra.mxu0 %v6242
        %v6340 = vpop.f32.mrf.mxu0
        %v6341 = vadd.f32 0.0, %v6340
        %v6342 = vpop.f32.mrf.mxu0
        %v6343 = vadd.f32 0.0, %v6342
        %6344 = vmatmul.bf16.gmra.mxu0 %v6244
        %v6345 = vpop.f32.mrf.mxu0
        %v6346 = vadd.f32 0.0, %v6345
        %v6347 = vpop.f32.mrf.mxu0
        %v6348 = vadd.f32 0.0, %v6347
        %6349 = vmatmul.bf16.gmra.mxu0 %v6246
        %v6350 = vpop.f32.mrf.mxu0
        %v6351 = vadd.f32 0.0, %v6350
        %v6352 = vpop.f32.mrf.mxu0
        %v6353 = vadd.f32 0.0, %v6352
        %6354 = vmatmul.bf16.gmra.mxu0 %v6248
        %v6355 = vpop.f32.mrf.mxu0
        %v6356 = vadd.f32 0.0, %v6355
        %v6357 = vpop.f32.mrf.mxu0
        %v6358 = vadd.f32 0.0, %v6357
        %6359 = vdwg.mxu0
        %v6360 = vadd.f32 %v6192, %v6316
        %v6361 = vadd.f32 %v6193, %v6318
        %v6362 = vadd.f32 %v6194, %v6321
        %v6363 = vadd.f32 %v6195, %v6323
        %v6364 = vadd.f32 %v6196, %v6326
        %v6365 = vadd.f32 %v6197, %v6328
        %v6366 = vadd.f32 %v6198, %v6331
        %v6367 = vadd.f32 %v6199, %v6333
        %v6368 = vadd.f32 %v6200, %v6336
        %v6369 = vadd.f32 %v6201, %v6338
        %v6370 = vadd.f32 %v6202, %v6341
        %v6371 = vadd.f32 %v6203, %v6343
        %v6372 = vadd.f32 %v6204, %v6346
        %v6373 = vadd.f32 %v6205, %v6348
        %v6374 = vadd.f32 %v6206, %v6351
        %v6375 = vadd.f32 %v6207, %v6353
        %v6376 = vadd.f32 %v6208, %v6356
        %v6377 = vadd.f32 %v6209, %v6358
        %v6378 = vmax.f32 %v6360, 0.0
        %v6379 = vmax.f32 %v6361, 0.0
        %v6380 = vmax.f32 %v6362, 0.0
        %v6381 = vmax.f32 %v6363, 0.0
        %v6382 = vmax.f32 %v6364, 0.0
        %v6383 = vmax.f32 %v6365, 0.0
        %v6384 = vmax.f32 %v6366, 0.0
        %v6385 = vmax.f32 %v6367, 0.0
        %v6386 = vmax.f32 %v6368, 0.0
        %v6387 = vmax.f32 %v6369, 0.0
        %v6388 = vmax.f32 %v6370, 0.0
        %v6389 = vmax.f32 %v6371, 0.0
        %v6390 = vmax.f32 %v6372, 0.0
        %v6391 = vmax.f32 %v6373, 0.0
        %v6392 = vmax.f32 %v6374, 0.0
        %v6393 = vmax.f32 %v6375, 0.0
        %v6394 = vmax.f32 %v6376, 0.0
        %v6395 = vmax.f32 %v6377, 0.0
        %v6396 = vmul.f32 %v6378, %v2379
        %v6397 = vmul.f32 %v6379, %v2384
        %v6398 = vmul.f32 %v6380, %v2389
        %v6399 = vmul.f32 %v6381, %v2394
        %v6400 = vmul.f32 %v6382, %v2399
        %v6401 = vmul.f32 %v6383, %v2404
        %v6402 = vmul.f32 %v6384, %v2409
        %v6403 = vmul.f32 %v6385, %v2414
        %v6404 = vmul.f32 %v6386, %v2419
        %v6405 = vmul.f32 %v6387, %v2424
        %v6406 = vmul.f32 %v6388, %v2429
        %v6407 = vmul.f32 %v6389, %v2434
        %v6408 = vmul.f32 %v6390, %v2439
        %v6409 = vmul.f32 %v6391, %v2444
        %v6410 = vmul.f32 %v6392, %v2449
        %v6411 = vmul.f32 %v6393, %v2454
        %v6412 = vmul.f32 %v6394, %v2459
        %v6413 = vmul.f32 %v6395, %v2464
        %v6414 = vpack.c.bf16 %v6396, %v6396
        %v6415 = vpack.c.bf16 %v6397, %v6397
        %v6416 = vpack.c.bf16 %v6398, %v6398
        %v6417 = vpack.c.bf16 %v6399, %v6399
        %v6418 = vpack.c.bf16 %v6400, %v6400
        %v6419 = vpack.c.bf16 %v6401, %v6401
        %v6420 = vpack.c.bf16 %v6402, %v6402
        %v6421 = vpack.c.bf16 %v6403, %v6403
        %v6422 = vpack.c.bf16 %v6404, %v6404
        %v6423 = vpack.c.bf16 %v6405, %v6405
        %v6424 = vpack.c.bf16 %v6406, %v6406
        %v6425 = vpack.c.bf16 %v6407, %v6407
        %v6426 = vpack.c.bf16 %v6408, %v6408
        %v6427 = vpack.c.bf16 %v6409, %v6409
        %v6428 = vpack.c.bf16 %v6410, %v6410
        %v6429 = vpack.c.bf16 %v6411, %v6411
        %v6430 = vpack.c.bf16 %v6412, %v6412
        %v6431 = vpack.c.bf16 %v6413, %v6413
        %6432 = vst [vmem:[#allocation3 + $0x90] sm:$0xf] %v6414
        %6433 = vst [vmem:[#allocation3 + $0x94] sm:$0xf] %v6415
        %6434 = vst [vmem:[#allocation3 + $0x98] sm:$0xf] %v6416
        %6435 = vst [vmem:[#allocation3 + $0x9c] sm:$0xf] %v6417
        %6436 = vst [vmem:[#allocation3 + $0xa0] sm:$0xf] %v6418
        %6437 = vst [vmem:[#allocation3 + $0xa4] sm:$0xf] %v6419
        %6438 = vst [vmem:[#allocation3 + $0xa8] sm:$0xf] %v6420
        %6439 = vst [vmem:[#allocation3 + $0xac] sm:$0xf] %v6421
        %6440 = vst [vmem:[#allocation3 + $0xb0] sm:$0xf] %v6422
        %6441 = vst [vmem:[#allocation3 + $0xb4] sm:$0xf] %v6423
        %6442 = vst [vmem:[#allocation3 + $0xb8] sm:$0xf] %v6424
        %6443 = vst [vmem:[#allocation3 + $0xbc] sm:$0xf] %v6425
        %6444 = vst [vmem:[#allocation3 + $0xc0] sm:$0xf] %v6426
        %6445 = vst [vmem:[#allocation3 + $0xc4] sm:$0xf] %v6427
        %6446 = vst [vmem:[#allocation3 + $0xc8] sm:$0xf] %v6428
        %6447 = vst [vmem:[#allocation3 + $0xcc] sm:$0xf] %v6429
        %6448 = vst [vmem:[#allocation3 + $0xd0] sm:$0xf] %v6430
        %6449 = vst [vmem:[#allocation3 + $0xd4] sm:$0xf] %v6431
        %6450 = vst [vmem:[#allocation3 + $0xd8] sm:$0xf] 0
        // Predicated region
        $region83: #{preact_residual_conv_unit.1} parent=35 // pred_check
          %p6451 = pneg %p244
        $region84: #{preact_residual_conv_unit.1} parent=35 // pred_check_branch
          %6453 = sbr.rel (%p6451) target = $region86
        $region85: #{preact_residual_conv_unit.1} parent=35 // pred_region
          %6454 = vst [vmem:[#allocation3] sm:$0xf] 0
          %6455 = vst [vmem:[#allocation3 + $0x4] sm:$0xf] 0
          %6456 = vst [vmem:[#allocation3 + $0x8] sm:$0xf] 0
          %6457 = vst [vmem:[#allocation3 + $0xcc] sm:$0xf] 0
          %6458 = vst [vmem:[#allocation3 + $0xd0] sm:$0xf] 0
          %6459 = vst [vmem:[#allocation3 + $0xd4] sm:$0xf] 0
        $region86: #{preact_residual_conv_unit.1} parent=35 // pred_fallthru
          _
        %v6460 = vld [vmem:[#allocation3] sm:$0xf]
        %v6461 = vld [vmem:[#allocation3 + $0x4] sm:$0xf]
        %v6462 = vld [vmem:[#allocation3 + $0x8] sm:$0xf]
        %v6463 = vld [vmem:[#allocation3 + $0xc] sm:$0xf]
        %v6464 = vld [vmem:[#allocation3 + $0x10] sm:$0xf]
        %v6465 = vld [vmem:[#allocation3 + $0x14] sm:$0xf]
        %v6466 = vld [vmem:[#allocation3 + $0x18] sm:$0xf]
        %v6467 = vld [vmem:[#allocation3 + $0x1c] sm:$0xf]
        %v6468 = vld [vmem:[#allocation3 + $0x20] sm:$0xf]
        %v6469 = vld [vmem:[#allocation3 + $0x24] sm:$0xf]
        %v6470 = vld [vmem:[#allocation3 + $0x28] sm:$0xf]
        %v6471 = vld [vmem:[#allocation3 + $0x2c] sm:$0xf]
        %v6472 = vld [vmem:[#allocation3 + $0x30] sm:$0xf]
        %v6473 = vld [vmem:[#allocation3 + $0x34] sm:$0xf]
        %v6474 = vld [vmem:[#allocation3 + $0x38] sm:$0xf]
        %v6475 = vld [vmem:[#allocation3 + $0x3c] sm:$0xf]
        %v6476 = vld [vmem:[#allocation3 + $0x40] sm:$0xf]
        %v6477 = vld [vmem:[#allocation3 + $0x44] sm:$0xf]
        %v6478 = vld [vmem:[#allocation3 + $0x48] sm:$0xf]
        %v6479 = vld [vmem:[#allocation3 + $0x4c] sm:$0xf]
        %v6480 = vld [vmem:[#allocation3 + $0x50] sm:$0xf]
        %v6481 = vld [vmem:[#allocation3 + $0x54] sm:$0xf]
        %v6482 = vld [vmem:[#allocation3 + $0x58] sm:$0xf]
        %v6483 = vld [vmem:[#allocation3 + $0x5c] sm:$0xf]
        %v6484 = vld [vmem:[%s2] sm:$0xf]
        %v6485 = vld [vmem:[%s2 + $0x4] sm:$0xf]
        %v6486 = vld [vmem:[%s2 + $0x8] sm:$0xf]
        %v6487 = vld [vmem:[%s2 + $0xc] sm:$0xf]
        %v6488 = vld [vmem:[%s2 + $0x10] sm:$0xf]
        %v6489 = vld [vmem:[%s2 + $0x14] sm:$0xf]
        %v6490 = vld [vmem:[%s2 + $0x18] sm:$0xf]
        %v6491 = vld [vmem:[%s2 + $0x1c] sm:$0xf]
        %v6492 = vld [vmem:[%s2 + $0x20] sm:$0xf]
        %v6493 = vld [vmem:[%s2 + $0x24] sm:$0xf]
        %v6494 = vld [vmem:[%s2 + $0x28] sm:$0xf]
        %v6495 = vld [vmem:[%s2 + $0x2c] sm:$0xf]
        %v6496 = vld [vmem:[%s2 + $0x30] sm:$0xf]
        %v6497 = vld [vmem:[%s2 + $0x34] sm:$0xf]
        %v6498 = vld [vmem:[%s2 + $0x38] sm:$0xf]
        %v6499 = vld [vmem:[%s2 + $0x3c] sm:$0xf]
        %v6500 = vld [vmem:[#allocation3 + $0x60] sm:$0x1]
        %s6501 = scalar_lea.vmem %s2, 64
        %v6502 = vld [vmem:[%s6501] sm:$0xf]
        %v6503 = vld [vmem:[%s6501 + $0x4] sm:$0xf]
        %v6504 = vld [vmem:[%s6501 + $0x8] sm:$0xf]
        %v6505 = vld [vmem:[%s6501 + $0xc] sm:$0xf]
        %v6506 = vld [vmem:[%s6501 + $0x10] sm:$0xf]
        %v6507 = vld [vmem:[%s6501 + $0x14] sm:$0xf]
        %v6508 = vld [vmem:[%s6501 + $0x18] sm:$0xf]
        %v6509 = vld [vmem:[%s6501 + $0x1c] sm:$0xf]
        %v6510 = vld [vmem:[%s6501 + $0x20] sm:$0xf]
        %v6511 = vld [vmem:[%s6501 + $0x24] sm:$0xf]
        %v6512 = vld [vmem:[%s6501 + $0x28] sm:$0xf]
        %v6513 = vld [vmem:[%s6501 + $0x2c] sm:$0xf]
        %v6514 = vld [vmem:[%s6501 + $0x30] sm:$0xf]
        %v6515 = vld [vmem:[%s6501 + $0x34] sm:$0xf]
        %v6516 = vld [vmem:[%s6501 + $0x38] sm:$0xf]
        %v6517 = vld [vmem:[%s6501 + $0x3c] sm:$0xf]
        %v6543 = vunpack.c.l.b16 %v6460
        %v6544 = vunpack.c.l.b16 %v6461
        %v6545 = vunpack.c.l.b16 %v6462
        %v6546 = vunpack.c.l.b16 %v6463
        %v6547 = vunpack.c.l.b16 %v6464
        %v6548 = vunpack.c.l.b16 %v6465
        %v6549 = vunpack.c.l.b16 %v6466
        %v6550 = vunpack.c.l.b16 %v6467
        %v6551 = vunpack.c.l.b16 %v6468
        %v6552 = vunpack.c.l.b16 %v6469
        %v6553 = vunpack.c.l.b16 %v6470
        %v6554 = vunpack.c.l.b16 %v6471
        %v6555 = vunpack.c.l.b16 %v6472
        %v6556 = vunpack.c.l.b16 %v6473
        %v6557 = vunpack.c.l.b16 %v6474
        %v6558 = vunpack.c.l.b16 %v6475
        %v6559 = vunpack.c.l.b16 %v6476
        %v6560 = vunpack.c.l.b16 %v6477
        %v6561 = vunpack.c.l.b16 %v6478
        %v6562 = vunpack.c.l.b16 %v6479
        %v6563 = vunpack.c.l.b16 %v6480
        %v6564 = vunpack.c.l.b16 %v6481
        %v6565 = vunpack.c.l.b16 %v6482
        %v6566 = vunpack.c.l.b16 %v6483
        %v6567 = vunpack.c.l.b16 %v6500
        %v6568 = vpack.c.b16 %v6544, %v6543
        %v6569 = vpack.c.b16 %v6546, %v6545
        %v6570 = vpack.c.b16 %v6548, %v6547
        %v6571 = vpack.c.b16 %v6550, %v6549
        %v6572 = vpack.c.b16 %v6552, %v6551
        %v6573 = vpack.c.b16 %v6554, %v6553
        %v6574 = vpack.c.b16 %v6556, %v6555
        %v6575 = vpack.c.b16 %v6558, %v6557
        %v6576 = vpack.c.b16 %v6560, %v6559
        %v6577 = vpack.c.b16 %v6562, %v6561
        %v6578 = vpack.c.b16 %v6564, %v6563
        %v6579 = vpack.c.b16 %v6566, %v6565
        %v6580 = vpack.c.b16 %v6567, %v6567
        %v6582 = vshrl.u32 %v6568, 16
        %v6584 = vshll.u32 %v6568, 16
        %v6586 = vrot.slane %v6584, 1
        %v6587 = vor.u32 %v6582, %v6586
        %v6589 = vshll.u32 %v6569, 16
        %v6591 = vrot.slane %v6589, 1
        %v6592 = vsel %vm555, %v6587, %v6591
        %v6593 = vshrl.u32 %v6569, 16
        %v6595 = vor.u32 %v6593, %v6591
        %v6597 = vshll.u32 %v6570, 16
        %v6599 = vrot.slane %v6597, 1
        %v6600 = vsel %vm555, %v6595, %v6599
        %v6601 = vshrl.u32 %v6570, 16
        %v6603 = vor.u32 %v6601, %v6599
        %v6605 = vshll.u32 %v6571, 16
        %v6607 = vrot.slane %v6605, 1
        %v6608 = vsel %vm555, %v6603, %v6607
        %v6609 = vshrl.u32 %v6571, 16
        %v6611 = vor.u32 %v6609, %v6607
        %v6613 = vshll.u32 %v6572, 16
        %v6615 = vrot.slane %v6613, 1
        %v6616 = vsel %vm555, %v6611, %v6615
        %v6617 = vshrl.u32 %v6572, 16
        %v6619 = vor.u32 %v6617, %v6615
        %v6621 = vshll.u32 %v6573, 16
        %v6623 = vrot.slane %v6621, 1
        %v6624 = vsel %vm555, %v6619, %v6623
        %v6625 = vshrl.u32 %v6573, 16
        %v6627 = vor.u32 %v6625, %v6623
        %v6629 = vshll.u32 %v6574, 16
        %v6631 = vrot.slane %v6629, 1
        %v6632 = vsel %vm555, %v6627, %v6631
        %v6633 = vshrl.u32 %v6574, 16
        %v6635 = vor.u32 %v6633, %v6631
        %v6637 = vshll.u32 %v6575, 16
        %v6639 = vrot.slane %v6637, 1
        %v6640 = vsel %vm555, %v6635, %v6639
        %v6641 = vshrl.u32 %v6575, 16
        %v6643 = vor.u32 %v6641, %v6639
        %v6645 = vshll.u32 %v6576, 16
        %v6647 = vrot.slane %v6645, 1
        %v6648 = vsel %vm555, %v6643, %v6647
        %v6649 = vshrl.u32 %v6576, 16
        %v6651 = vor.u32 %v6649, %v6647
        %v6653 = vshll.u32 %v6577, 16
        %v6655 = vrot.slane %v6653, 1
        %v6656 = vsel %vm555, %v6651, %v6655
        %v6657 = vshrl.u32 %v6577, 16
        %v6659 = vor.u32 %v6657, %v6655
        %v6661 = vshll.u32 %v6578, 16
        %v6663 = vrot.slane %v6661, 1
        %v6664 = vsel %vm555, %v6659, %v6663
        %v6665 = vshrl.u32 %v6578, 16
        %v6667 = vor.u32 %v6665, %v6663
        %v6669 = vshll.u32 %v6579, 16
        %v6671 = vrot.slane %v6669, 1
        %v6672 = vsel %vm555, %v6667, %v6671
        %v6673 = vshrl.u32 %v6579, 16
        %v6675 = vor.u32 %v6673, %v6671
        %v6677 = vshll.u32 %v6580, 16
        %v6679 = vrot.slane %v6677, 1
        %v6680 = vsel %vm555, %v6675, %v6679
        %v6709 = vunpack.c.l.b16 %v6502
        %v6710 = vunpack.c.l.b16 %v6503
        %v6711 = vunpack.c.l.b16 %v6504
        %v6712 = vunpack.c.l.b16 %v6505
        %v6713 = vunpack.c.l.b16 %v6506
        %v6714 = vunpack.c.l.b16 %v6507
        %v6715 = vunpack.c.l.b16 %v6508
        %v6716 = vunpack.c.l.b16 %v6509
        %v6717 = vunpack.c.l.b16 %v6510
        %v6718 = vunpack.c.l.b16 %v6511
        %v6719 = vunpack.c.l.b16 %v6512
        %v6720 = vunpack.c.l.b16 %v6513
        %v6721 = vunpack.c.l.b16 %v6514
        %v6722 = vunpack.c.l.b16 %v6515
        %v6723 = vunpack.c.l.b16 %v6516
        %v6724 = vunpack.c.l.b16 %v6517
        %v6725 = vpack.c.b16 %v6710, %v6709
        %v6726 = vpack.c.b16 %v6712, %v6711
        %v6727 = vpack.c.b16 %v6714, %v6713
        %v6728 = vpack.c.b16 %v6716, %v6715
        %v6729 = vpack.c.b16 %v6718, %v6717
        %v6730 = vpack.c.b16 %v6720, %v6719
        %v6731 = vpack.c.b16 %v6722, %v6721
        %v6732 = vpack.c.b16 %v6724, %v6723
        %6741 = vmatpush.bf16.msra.mxu0 %v6732
        %6742 = vmatpush.bf16.msra.mxu0 %v6731
        %6743 = vmatpush.bf16.msra.mxu0 %v6730
        %6744 = vmatpush.bf16.msra.mxu0 %v6729
        %6745 = vmatpush.bf16.msra.mxu0 %v6728
        %6746 = vmatpush.bf16.msra.mxu0 %v6727
        %6747 = vmatpush.bf16.msra.mxu0 %v6726
        %6748 = vmatpush.bf16.msra.mxu0 %v6725
        %6749 = vmatmul.bf16.gmra.mxu0 %v6592
        %v6750 = vpop.f32.mrf.mxu0
        %v6751 = vadd.f32 0.0, %v6750
        %v6752 = vpop.f32.mrf.mxu0
        %v6753 = vadd.f32 0.0, %v6752
        %6754 = vmatmul.bf16.gmra.mxu0 %v6600
        %v6755 = vpop.f32.mrf.mxu0
        %v6756 = vpop.f32.mrf.mxu0
        %v6757 = vadd.f32 0.0, %v6756
        %6758 = vmatmul.bf16.gmra.mxu0 %v6608
        %v6759 = vpop.f32.mrf.mxu0
        %v6760 = vadd.f32 0.0, %v6759
        %v6761 = vpop.f32.mrf.mxu0
        %6762 = vmatmul.bf16.gmra.mxu0 %v6616
        %v6763 = vpop.f32.mrf.mxu0
        %v6764 = vadd.f32 0.0, %v6763
        %v6765 = vpop.f32.mrf.mxu0
        %v6766 = vadd.f32 0.0, %v6765
        %6767 = vmatmul.bf16.gmra.mxu0 %v6624
        %v6768 = vpop.f32.mrf.mxu0
        %v6769 = vpop.f32.mrf.mxu0
        %v6770 = vadd.f32 0.0, %v6769
        %6771 = vmatmul.bf16.gmra.mxu0 %v6632
        %v6772 = vpop.f32.mrf.mxu0
        %v6773 = vadd.f32 0.0, %v6772
        %v6774 = vpop.f32.mrf.mxu0
        %6775 = vmatmul.bf16.gmra.mxu0 %v6640
        %v6776 = vpop.f32.mrf.mxu0
        %v6777 = vadd.f32 0.0, %v6776
        %v6778 = vpop.f32.mrf.mxu0
        %v6779 = vadd.f32 0.0, %v6778
        %6780 = vmatmul.bf16.gmra.mxu0 %v6648
        %v6781 = vpop.f32.mrf.mxu0
        %v6782 = vpop.f32.mrf.mxu0
        %v6783 = vadd.f32 0.0, %v6782
        %6784 = vmatmul.bf16.gmra.mxu0 %v6656
        %v6785 = vpop.f32.mrf.mxu0
        %v6786 = vadd.f32 0.0, %v6785
        %v6787 = vpop.f32.mrf.mxu0
        %6788 = vmatmul.bf16.gmra.mxu0 %v6664
        %v6789 = vpop.f32.mrf.mxu0
        %v6790 = vadd.f32 0.0, %v6789
        %v6791 = vpop.f32.mrf.mxu0
        %v6792 = vadd.f32 0.0, %v6791
        %6793 = vmatmul.bf16.gmra.mxu0 %v6672
        %v6794 = vpop.f32.mrf.mxu0
        %v6795 = vpop.f32.mrf.mxu0
        %v6796 = vadd.f32 0.0, %v6795
        %6797 = vmatmul.bf16.gmra.mxu0 %v6680
        %v6798 = vpop.f32.mrf.mxu0
        %v6799 = vadd.f32 0.0, %v6798
        %v6800 = vpop.f32.mrf.mxu0
        %6801 = vdwg.mxu0
        %v6830 = vunpack.c.l.b16 %v6484
        %v6831 = vunpack.c.l.b16 %v6485
        %v6832 = vunpack.c.l.b16 %v6486
        %v6833 = vunpack.c.l.b16 %v6487
        %v6834 = vunpack.c.l.b16 %v6488
        %v6835 = vunpack.c.l.b16 %v6489
        %v6836 = vunpack.c.l.b16 %v6490
        %v6837 = vunpack.c.l.b16 %v6491
        %v6838 = vunpack.c.l.b16 %v6492
        %v6839 = vunpack.c.l.b16 %v6493
        %v6840 = vunpack.c.l.b16 %v6494
        %v6841 = vunpack.c.l.b16 %v6495
        %v6842 = vunpack.c.l.b16 %v6496
        %v6843 = vunpack.c.l.b16 %v6497
        %v6844 = vunpack.c.l.b16 %v6498
        %v6845 = vunpack.c.l.b16 %v6499
        %v6846 = vpack.c.b16 %v6831, %v6830
        %v6847 = vpack.c.b16 %v6833, %v6832
        %v6848 = vpack.c.b16 %v6835, %v6834
        %v6849 = vpack.c.b16 %v6837, %v6836
        %v6850 = vpack.c.b16 %v6839, %v6838
        %v6851 = vpack.c.b16 %v6841, %v6840
        %v6852 = vpack.c.b16 %v6843, %v6842
        %v6853 = vpack.c.b16 %v6845, %v6844
        %6862 = vmatpush.bf16.msra.mxu0 %v6853
        %6863 = vmatpush.bf16.msra.mxu0 %v6852
        %6864 = vmatpush.bf16.msra.mxu0 %v6851
        %6865 = vmatpush.bf16.msra.mxu0 %v6850
        %6866 = vmatpush.bf16.msra.mxu0 %v6849
        %6867 = vmatpush.bf16.msra.mxu0 %v6848
        %6868 = vmatpush.bf16.msra.mxu0 %v6847
        %6869 = vmatpush.bf16.msra.mxu0 %v6846
        %6870 = vmatmul.bf16.gmra.mxu0 %v6568
        %v6871 = vpop.f32.mrf.mxu0
        %v6872 = vadd.f32 %v6751, %v6871
        %v6873 = vpop.f32.mrf.mxu0
        %v6874 = vadd.f32 %v6753, %v6873
        %6875 = vmatmul.bf16.gmra.mxu0 %v6569
        %v6876 = vpop.f32.mrf.mxu0
        %v6877 = vpop.f32.mrf.mxu0
        %v6878 = vadd.f32 %v6757, %v6877
        %6879 = vmatmul.bf16.gmra.mxu0 %v6570
        %v6880 = vpop.f32.mrf.mxu0
        %v6881 = vadd.f32 %v6760, %v6880
        %v6882 = vpop.f32.mrf.mxu0
        %6883 = vmatmul.bf16.gmra.mxu0 %v6571
        %v6884 = vpop.f32.mrf.mxu0
        %v6885 = vadd.f32 %v6764, %v6884
        %v6886 = vpop.f32.mrf.mxu0
        %v6887 = vadd.f32 %v6766, %v6886
        %6888 = vmatmul.bf16.gmra.mxu0 %v6572
        %v6889 = vpop.f32.mrf.mxu0
        %v6890 = vpop.f32.mrf.mxu0
        %v6891 = vadd.f32 %v6770, %v6890
        %6892 = vmatmul.bf16.gmra.mxu0 %v6573
        %v6893 = vpop.f32.mrf.mxu0
        %v6894 = vadd.f32 %v6773, %v6893
        %v6895 = vpop.f32.mrf.mxu0
        %6896 = vmatmul.bf16.gmra.mxu0 %v6574
        %v6897 = vpop.f32.mrf.mxu0
        %v6898 = vadd.f32 %v6777, %v6897
        %v6899 = vpop.f32.mrf.mxu0
        %v6900 = vadd.f32 %v6779, %v6899
        %6901 = vmatmul.bf16.gmra.mxu0 %v6575
        %v6902 = vpop.f32.mrf.mxu0
        %v6903 = vpop.f32.mrf.mxu0
        %v6904 = vadd.f32 %v6783, %v6903
        %6905 = vmatmul.bf16.gmra.mxu0 %v6576
        %v6906 = vpop.f32.mrf.mxu0
        %v6907 = vadd.f32 %v6786, %v6906
        %v6908 = vpop.f32.mrf.mxu0
        %6909 = vmatmul.bf16.gmra.mxu0 %v6577
        %v6910 = vpop.f32.mrf.mxu0
        %v6911 = vadd.f32 %v6790, %v6910
        %v6912 = vpop.f32.mrf.mxu0
        %v6913 = vadd.f32 %v6792, %v6912
        %6914 = vmatmul.bf16.gmra.mxu0 %v6578
        %v6915 = vpop.f32.mrf.mxu0
        %v6916 = vpop.f32.mrf.mxu0
        %v6917 = vadd.f32 %v6796, %v6916
        %6918 = vmatmul.bf16.gmra.mxu0 %v6579
        %v6919 = vpop.f32.mrf.mxu0
        %v6920 = vadd.f32 %v6799, %v6919
        %v6921 = vpop.f32.mrf.mxu0
        %6922 = vdwg.mxu0
        %v6923 = vld [vmem:[#allocation3] sm:$0xe]
        %s6924 = scalar_lea.vmem %s2, 128
        %v6925 = vld [vmem:[%s6924] sm:$0xf]
        %v6926 = vld [vmem:[%s6924 + $0x4] sm:$0xf]
        %v6927 = vld [vmem:[%s6924 + $0x8] sm:$0xf]
        %v6928 = vld [vmem:[%s6924 + $0xc] sm:$0xf]
        %v6929 = vld [vmem:[%s6924 + $0x10] sm:$0xf]
        %v6930 = vld [vmem:[%s6924 + $0x14] sm:$0xf]
        %v6931 = vld [vmem:[%s6924 + $0x18] sm:$0xf]
        %v6932 = vld [vmem:[%s6924 + $0x1c] sm:$0xf]
        %v6933 = vld [vmem:[%s6924 + $0x20] sm:$0xf]
        %v6934 = vld [vmem:[%s6924 + $0x24] sm:$0xf]
        %v6935 = vld [vmem:[%s6924 + $0x28] sm:$0xf]
        %v6936 = vld [vmem:[%s6924 + $0x2c] sm:$0xf]
        %v6937 = vld [vmem:[%s6924 + $0x30] sm:$0xf]
        %v6938 = vld [vmem:[%s6924 + $0x34] sm:$0xf]
        %v6939 = vld [vmem:[%s6924 + $0x38] sm:$0xf]
        %v6940 = vld [vmem:[%s6924 + $0x3c] sm:$0xf]
        %v6942 = vunpack.c.l.b16 %v6923
        %v6943 = vpack.c.b16 %v6544, %v6942
        %v6944 = vrot.slane %v6943, 1
        %v6945 = vrot.slane %v6569, 1
        %v6946 = vsel %vm875, %v6944, %v6945
        %v6947 = vrot.slane %v6570, 1
        %v6948 = vsel %vm875, %v6945, %v6947
        %v6949 = vrot.slane %v6571, 1
        %v6950 = vsel %vm875, %v6947, %v6949
        %v6951 = vrot.slane %v6572, 1
        %v6952 = vsel %vm875, %v6949, %v6951
        %v6953 = vrot.slane %v6573, 1
        %v6954 = vsel %vm875, %v6951, %v6953
        %v6955 = vrot.slane %v6574, 1
        %v6956 = vsel %vm875, %v6953, %v6955
        %v6957 = vrot.slane %v6575, 1
        %v6958 = vsel %vm875, %v6955, %v6957
        %v6959 = vrot.slane %v6576, 1
        %v6960 = vsel %vm875, %v6957, %v6959
        %v6961 = vrot.slane %v6577, 1
        %v6962 = vsel %vm875, %v6959, %v6961
        %v6963 = vrot.slane %v6578, 1
        %v6964 = vsel %vm875, %v6961, %v6963
        %v6965 = vrot.slane %v6579, 1
        %v6966 = vsel %vm875, %v6963, %v6965
        %v6967 = vrot.slane %v6580, 1
        %v6968 = vsel %vm875, %v6965, %v6967
        %v6997 = vunpack.c.l.b16 %v6925
        %v6998 = vunpack.c.l.b16 %v6926
        %v6999 = vunpack.c.l.b16 %v6927
        %v7000 = vunpack.c.l.b16 %v6928
        %v7001 = vunpack.c.l.b16 %v6929
        %v7002 = vunpack.c.l.b16 %v6930
        %v7003 = vunpack.c.l.b16 %v6931
        %v7004 = vunpack.c.l.b16 %v6932
        %v7005 = vunpack.c.l.b16 %v6933
        %v7006 = vunpack.c.l.b16 %v6934
        %v7007 = vunpack.c.l.b16 %v6935
        %v7008 = vunpack.c.l.b16 %v6936
        %v7009 = vunpack.c.l.b16 %v6937
        %v7010 = vunpack.c.l.b16 %v6938
        %v7011 = vunpack.c.l.b16 %v6939
        %v7012 = vunpack.c.l.b16 %v6940
        %v7013 = vpack.c.b16 %v6998, %v6997
        %v7014 = vpack.c.b16 %v7000, %v6999
        %v7015 = vpack.c.b16 %v7002, %v7001
        %v7016 = vpack.c.b16 %v7004, %v7003
        %v7017 = vpack.c.b16 %v7006, %v7005
        %v7018 = vpack.c.b16 %v7008, %v7007
        %v7019 = vpack.c.b16 %v7010, %v7009
        %v7020 = vpack.c.b16 %v7012, %v7011
        %7029 = vmatpush.bf16.msra.mxu0 %v7020
        %7030 = vmatpush.bf16.msra.mxu0 %v7019
        %7031 = vmatpush.bf16.msra.mxu0 %v7018
        %7032 = vmatpush.bf16.msra.mxu0 %v7017
        %7033 = vmatpush.bf16.msra.mxu0 %v7016
        %7034 = vmatpush.bf16.msra.mxu0 %v7015
        %7035 = vmatpush.bf16.msra.mxu0 %v7014
        %7036 = vmatpush.bf16.msra.mxu0 %v7013
        %7037 = vmatmul.bf16.gmra.mxu0 %v6946
        %v7038 = vpop.f32.mrf.mxu0
        %v7039 = vadd.f32 0.0, %v7038
        %v7040 = vpop.f32.mrf.mxu0
        %v7041 = vadd.f32 0.0, %v7040
        %7042 = vmatmul.bf16.gmra.mxu0 %v6948
        %v7043 = vpop.f32.mrf.mxu0
        %v7044 = vpop.f32.mrf.mxu0
        %v7045 = vadd.f32 0.0, %v7044
        %7046 = vmatmul.bf16.gmra.mxu0 %v6950
        %v7047 = vpop.f32.mrf.mxu0
        %v7048 = vadd.f32 0.0, %v7047
        %v7049 = vpop.f32.mrf.mxu0
        %7050 = vmatmul.bf16.gmra.mxu0 %v6952
        %v7051 = vpop.f32.mrf.mxu0
        %v7052 = vadd.f32 0.0, %v7051
        %v7053 = vpop.f32.mrf.mxu0
        %v7054 = vadd.f32 0.0, %v7053
        %7055 = vmatmul.bf16.gmra.mxu0 %v6954
        %v7056 = vpop.f32.mrf.mxu0
        %v7057 = vpop.f32.mrf.mxu0
        %v7058 = vadd.f32 0.0, %v7057
        %7059 = vmatmul.bf16.gmra.mxu0 %v6956
        %v7060 = vpop.f32.mrf.mxu0
        %v7061 = vadd.f32 0.0, %v7060
        %v7062 = vpop.f32.mrf.mxu0
        %7063 = vmatmul.bf16.gmra.mxu0 %v6958
        %v7064 = vpop.f32.mrf.mxu0
        %v7065 = vadd.f32 0.0, %v7064
        %v7066 = vpop.f32.mrf.mxu0
        %v7067 = vadd.f32 0.0, %v7066
        %7068 = vmatmul.bf16.gmra.mxu0 %v6960
        %v7069 = vpop.f32.mrf.mxu0
        %v7070 = vpop.f32.mrf.mxu0
        %v7071 = vadd.f32 0.0, %v7070
        %7072 = vmatmul.bf16.gmra.mxu0 %v6962
        %v7073 = vpop.f32.mrf.mxu0
        %v7074 = vadd.f32 0.0, %v7073
        %v7075 = vpop.f32.mrf.mxu0
        %7076 = vmatmul.bf16.gmra.mxu0 %v6964
        %v7077 = vpop.f32.mrf.mxu0
        %v7078 = vadd.f32 0.0, %v7077
        %v7079 = vpop.f32.mrf.mxu0
        %v7080 = vadd.f32 0.0, %v7079
        %7081 = vmatmul.bf16.gmra.mxu0 %v6966
        %v7082 = vpop.f32.mrf.mxu0
        %v7083 = vpop.f32.mrf.mxu0
        %v7084 = vadd.f32 0.0, %v7083
        %7085 = vmatmul.bf16.gmra.mxu0 %v6968
        %v7086 = vpop.f32.mrf.mxu0
        %v7087 = vadd.f32 0.0, %v7086
        %v7088 = vpop.f32.mrf.mxu0
        %7089 = vdwg.mxu0
        %v7090 = vadd.f32 %v6872, %v7039
        %v7091 = vadd.f32 %v6874, %v7041
        %v7092 = vadd.f32 %v6878, %v7045
        %v7093 = vadd.f32 %v6881, %v7048
        %v7094 = vadd.f32 %v6885, %v7052
        %v7095 = vadd.f32 %v6887, %v7054
        %v7096 = vadd.f32 %v6891, %v7058
        %v7097 = vadd.f32 %v6894, %v7061
        %v7098 = vadd.f32 %v6898, %v7065
        %v7099 = vadd.f32 %v6900, %v7067
        %v7100 = vadd.f32 %v6904, %v7071
        %v7101 = vadd.f32 %v6907, %v7074
        %v7102 = vadd.f32 %v6911, %v7078
        %v7103 = vadd.f32 %v6913, %v7080
        %v7104 = vadd.f32 %v6917, %v7084
        %v7105 = vadd.f32 %v6920, %v7087
        %v7106 = vld [vmem:[#allocation3 + $0xc] sm:$0xf]
        %v7107 = vld [vmem:[#allocation3 + $0x10] sm:$0xf]
        %v7108 = vld [vmem:[#allocation3 + $0x14] sm:$0xf]
        %v7109 = vld [vmem:[#allocation3 + $0x18] sm:$0xf]
        %v7110 = vld [vmem:[#allocation3 + $0x1c] sm:$0xf]
        %v7111 = vld [vmem:[#allocation3 + $0x20] sm:$0xf]
        %v7112 = vld [vmem:[#allocation3 + $0x24] sm:$0xf]
        %v7113 = vld [vmem:[#allocation3 + $0x28] sm:$0xf]
        %v7114 = vld [vmem:[#allocation3 + $0x2c] sm:$0xf]
        %v7115 = vld [vmem:[#allocation3 + $0x30] sm:$0xf]
        %v7116 = vld [vmem:[#allocation3 + $0x34] sm:$0xf]
        %v7117 = vld [vmem:[#allocation3 + $0x38] sm:$0xf]
        %v7118 = vld [vmem:[#allocation3 + $0x3c] sm:$0xf]
        %v7119 = vld [vmem:[#allocation3 + $0x40] sm:$0xf]
        %v7120 = vld [vmem:[#allocation3 + $0x44] sm:$0xf]
        %v7121 = vld [vmem:[#allocation3 + $0x48] sm:$0xf]
        %v7122 = vld [vmem:[#allocation3 + $0x4c] sm:$0xf]
        %v7123 = vld [vmem:[#allocation3 + $0x50] sm:$0xf]
        %v7124 = vld [vmem:[#allocation3 + $0x54] sm:$0xf]
        %v7125 = vld [vmem:[#allocation3 + $0x58] sm:$0xf]
        %v7126 = vld [vmem:[#allocation3 + $0x5c] sm:$0xf]
        %v7127 = vld [vmem:[#allocation3 + $0x60] sm:$0xf]
        %v7128 = vld [vmem:[#allocation3 + $0x64] sm:$0xf]
        %v7129 = vld [vmem:[#allocation3 + $0x68] sm:$0xf]
        %s7130 = scalar_lea.vmem %s2, 192
        %v7131 = vld [vmem:[%s7130] sm:$0xf]
        %v7132 = vld [vmem:[%s7130 + $0x4] sm:$0xf]
        %v7133 = vld [vmem:[%s7130 + $0x8] sm:$0xf]
        %v7134 = vld [vmem:[%s7130 + $0xc] sm:$0xf]
        %v7135 = vld [vmem:[%s7130 + $0x10] sm:$0xf]
        %v7136 = vld [vmem:[%s7130 + $0x14] sm:$0xf]
        %v7137 = vld [vmem:[%s7130 + $0x18] sm:$0xf]
        %v7138 = vld [vmem:[%s7130 + $0x1c] sm:$0xf]
        %v7139 = vld [vmem:[%s7130 + $0x20] sm:$0xf]
        %v7140 = vld [vmem:[%s7130 + $0x24] sm:$0xf]
        %v7141 = vld [vmem:[%s7130 + $0x28] sm:$0xf]
        %v7142 = vld [vmem:[%s7130 + $0x2c] sm:$0xf]
        %v7143 = vld [vmem:[%s7130 + $0x30] sm:$0xf]
        %v7144 = vld [vmem:[%s7130 + $0x34] sm:$0xf]
        %v7145 = vld [vmem:[%s7130 + $0x38] sm:$0xf]
        %v7146 = vld [vmem:[%s7130 + $0x3c] sm:$0xf]
        %v7171 = vunpack.c.l.b16 %v7106
        %v7172 = vunpack.c.l.b16 %v7107
        %v7173 = vunpack.c.l.b16 %v7108
        %v7174 = vunpack.c.l.b16 %v7109
        %v7175 = vunpack.c.l.b16 %v7110
        %v7176 = vunpack.c.l.b16 %v7111
        %v7177 = vunpack.c.l.b16 %v7112
        %v7178 = vunpack.c.l.b16 %v7113
        %v7179 = vunpack.c.l.b16 %v7114
        %v7180 = vunpack.c.l.b16 %v7115
        %v7181 = vunpack.c.l.b16 %v7116
        %v7182 = vunpack.c.l.b16 %v7117
        %v7183 = vunpack.c.l.b16 %v7118
        %v7184 = vunpack.c.l.b16 %v7119
        %v7185 = vunpack.c.l.b16 %v7120
        %v7186 = vunpack.c.l.b16 %v7121
        %v7187 = vunpack.c.l.b16 %v7122
        %v7188 = vunpack.c.l.b16 %v7123
        %v7189 = vunpack.c.l.b16 %v7124
        %v7190 = vunpack.c.l.b16 %v7125
        %v7191 = vunpack.c.l.b16 %v7126
        %v7192 = vunpack.c.l.b16 %v7127
        %v7193 = vunpack.c.l.b16 %v7128
        %v7194 = vunpack.c.l.b16 %v7129
        %v7195 = vpack.c.b16 %v7172, %v7171
        %v7196 = vpack.c.b16 %v7174, %v7173
        %v7197 = vpack.c.b16 %v7176, %v7175
        %v7198 = vpack.c.b16 %v7178, %v7177
        %v7199 = vpack.c.b16 %v7180, %v7179
        %v7200 = vpack.c.b16 %v7182, %v7181
        %v7201 = vpack.c.b16 %v7184, %v7183
        %v7202 = vpack.c.b16 %v7186, %v7185
        %v7203 = vpack.c.b16 %v7188, %v7187
        %v7204 = vpack.c.b16 %v7190, %v7189
        %v7205 = vpack.c.b16 %v7192, %v7191
        %v7206 = vpack.c.b16 %v7194, %v7193
        %v7235 = vunpack.c.l.b16 %v7131
        %v7236 = vunpack.c.l.b16 %v7132
        %v7237 = vunpack.c.l.b16 %v7133
        %v7238 = vunpack.c.l.b16 %v7134
        %v7239 = vunpack.c.l.b16 %v7135
        %v7240 = vunpack.c.l.b16 %v7136
        %v7241 = vunpack.c.l.b16 %v7137
        %v7242 = vunpack.c.l.b16 %v7138
        %v7243 = vunpack.c.l.b16 %v7139
        %v7244 = vunpack.c.l.b16 %v7140
        %v7245 = vunpack.c.l.b16 %v7141
        %v7246 = vunpack.c.l.b16 %v7142
        %v7247 = vunpack.c.l.b16 %v7143
        %v7248 = vunpack.c.l.b16 %v7144
        %v7249 = vunpack.c.l.b16 %v7145
        %v7250 = vunpack.c.l.b16 %v7146
        %v7251 = vpack.c.b16 %v7236, %v7235
        %v7252 = vpack.c.b16 %v7238, %v7237
        %v7253 = vpack.c.b16 %v7240, %v7239
        %v7254 = vpack.c.b16 %v7242, %v7241
        %v7255 = vpack.c.b16 %v7244, %v7243
        %v7256 = vpack.c.b16 %v7246, %v7245
        %v7257 = vpack.c.b16 %v7248, %v7247
        %v7258 = vpack.c.b16 %v7250, %v7249
        %7267 = vmatpush.bf16.msra.mxu0 %v7258
        %7268 = vmatpush.bf16.msra.mxu0 %v7257
        %7269 = vmatpush.bf16.msra.mxu0 %v7256
        %7270 = vmatpush.bf16.msra.mxu0 %v7255
        %7271 = vmatpush.bf16.msra.mxu0 %v7254
        %7272 = vmatpush.bf16.msra.mxu0 %v7253
        %7273 = vmatpush.bf16.msra.mxu0 %v7252
        %7274 = vmatpush.bf16.msra.mxu0 %v7251
        %7275 = vmatmul.bf16.gmra.mxu0 %v7195
        %v7276 = vpop.f32.mrf.mxu0
        %v7277 = vadd.f32 0.0, %v7276
        %v7278 = vpop.f32.mrf.mxu0
        %v7279 = vadd.f32 0.0, %v7278
        %7280 = vmatmul.bf16.gmra.mxu0 %v7196
        %v7281 = vpop.f32.mrf.mxu0
        %v7282 = vpop.f32.mrf.mxu0
        %v7283 = vadd.f32 0.0, %v7282
        %7284 = vmatmul.bf16.gmra.mxu0 %v7197
        %v7285 = vpop.f32.mrf.mxu0
        %v7286 = vadd.f32 0.0, %v7285
        %v7287 = vpop.f32.mrf.mxu0
        %7288 = vmatmul.bf16.gmra.mxu0 %v7198
        %v7289 = vpop.f32.mrf.mxu0
        %v7290 = vadd.f32 0.0, %v7289
        %v7291 = vpop.f32.mrf.mxu0
        %v7292 = vadd.f32 0.0, %v7291
        %7293 = vmatmul.bf16.gmra.mxu0 %v7199
        %v7294 = vpop.f32.mrf.mxu0
        %v7295 = vpop.f32.mrf.mxu0
        %v7296 = vadd.f32 0.0, %v7295
        %7297 = vmatmul.bf16.gmra.mxu0 %v7200
        %v7298 = vpop.f32.mrf.mxu0
        %v7299 = vadd.f32 0.0, %v7298
        %v7300 = vpop.f32.mrf.mxu0
        %7301 = vmatmul.bf16.gmra.mxu0 %v7201
        %v7302 = vpop.f32.mrf.mxu0
        %v7303 = vadd.f32 0.0, %v7302
        %v7304 = vpop.f32.mrf.mxu0
        %v7305 = vadd.f32 0.0, %v7304
        %7306 = vmatmul.bf16.gmra.mxu0 %v7202
        %v7307 = vpop.f32.mrf.mxu0
        %v7308 = vpop.f32.mrf.mxu0
        %v7309 = vadd.f32 0.0, %v7308
        %7310 = vmatmul.bf16.gmra.mxu0 %v7203
        %v7311 = vpop.f32.mrf.mxu0
        %v7312 = vadd.f32 0.0, %v7311
        %v7313 = vpop.f32.mrf.mxu0
        %7314 = vmatmul.bf16.gmra.mxu0 %v7204
        %v7315 = vpop.f32.mrf.mxu0
        %v7316 = vadd.f32 0.0, %v7315
        %v7317 = vpop.f32.mrf.mxu0
        %v7318 = vadd.f32 0.0, %v7317
        %7319 = vmatmul.bf16.gmra.mxu0 %v7205
        %v7320 = vpop.f32.mrf.mxu0
        %v7321 = vpop.f32.mrf.mxu0
        %v7322 = vadd.f32 0.0, %v7321
        %7323 = vmatmul.bf16.gmra.mxu0 %v7206
        %v7324 = vpop.f32.mrf.mxu0
        %v7325 = vadd.f32 0.0, %v7324
        %v7326 = vpop.f32.mrf.mxu0
        %7327 = vdwg.mxu0
        %v7328 = vadd.f32 %v7090, %v7277
        %v7329 = vadd.f32 %v7091, %v7279
        %v7330 = vadd.f32 %v7092, %v7283
        %v7331 = vadd.f32 %v7093, %v7286
        %v7332 = vadd.f32 %v7094, %v7290
        %v7333 = vadd.f32 %v7095, %v7292
        %v7334 = vadd.f32 %v7096, %v7296
        %v7335 = vadd.f32 %v7097, %v7299
        %v7336 = vadd.f32 %v7098, %v7303
        %v7337 = vadd.f32 %v7099, %v7305
        %v7338 = vadd.f32 %v7100, %v7309
        %v7339 = vadd.f32 %v7101, %v7312
        %v7340 = vadd.f32 %v7102, %v7316
        %v7341 = vadd.f32 %v7103, %v7318
        %v7342 = vadd.f32 %v7104, %v7322
        %v7343 = vadd.f32 %v7105, %v7325
        %v7344 = vld [vmem:[#allocation3 + $0xc] sm:$0xf]
        %v7345 = vld [vmem:[#allocation3 + $0x10] sm:$0xf]
        %v7346 = vld [vmem:[#allocation3 + $0x14] sm:$0xf]
        %v7347 = vld [vmem:[#allocation3 + $0x18] sm:$0xf]
        %v7348 = vld [vmem:[#allocation3 + $0x1c] sm:$0xf]
        %v7349 = vld [vmem:[#allocation3 + $0x20] sm:$0xf]
        %v7350 = vld [vmem:[#allocation3 + $0x24] sm:$0xf]
        %v7351 = vld [vmem:[#allocation3 + $0x28] sm:$0xf]
        %v7352 = vld [vmem:[#allocation3 + $0x2c] sm:$0xf]
        %v7353 = vld [vmem:[#allocation3 + $0x30] sm:$0xf]
        %v7354 = vld [vmem:[#allocation3 + $0x34] sm:$0xf]
        %v7355 = vld [vmem:[#allocation3 + $0x38] sm:$0xf]
        %v7356 = vld [vmem:[#allocation3 + $0x3c] sm:$0xf]
        %v7357 = vld [vmem:[#allocation3 + $0x40] sm:$0xf]
        %v7358 = vld [vmem:[#allocation3 + $0x44] sm:$0xf]
        %v7359 = vld [vmem:[#allocation3 + $0x48] sm:$0xf]
        %v7360 = vld [vmem:[#allocation3 + $0x4c] sm:$0xf]
        %v7361 = vld [vmem:[#allocation3 + $0x50] sm:$0xf]
        %v7362 = vld [vmem:[#allocation3 + $0x54] sm:$0xf]
        %v7363 = vld [vmem:[#allocation3 + $0x58] sm:$0xf]
        %v7364 = vld [vmem:[#allocation3 + $0x5c] sm:$0xf]
        %v7365 = vld [vmem:[#allocation3 + $0x60] sm:$0xf]
        %v7366 = vld [vmem:[#allocation3 + $0x64] sm:$0xf]
        %v7367 = vld [vmem:[#allocation3 + $0x68] sm:$0xf]
        %v7368 = vld [vmem:[#allocation3 + $0x6c] sm:$0x1]
        %s7369 = scalar_lea.vmem %s2, 256
        %v7370 = vld [vmem:[%s7369] sm:$0xf]
        %v7371 = vld [vmem:[%s7369 + $0x4] sm:$0xf]
        %v7372 = vld [vmem:[%s7369 + $0x8] sm:$0xf]
        %v7373 = vld [vmem:[%s7369 + $0xc] sm:$0xf]
        %v7374 = vld [vmem:[%s7369 + $0x10] sm:$0xf]
        %v7375 = vld [vmem:[%s7369 + $0x14] sm:$0xf]
        %v7376 = vld [vmem:[%s7369 + $0x18] sm:$0xf]
        %v7377 = vld [vmem:[%s7369 + $0x1c] sm:$0xf]
        %v7378 = vld [vmem:[%s7369 + $0x20] sm:$0xf]
        %v7379 = vld [vmem:[%s7369 + $0x24] sm:$0xf]
        %v7380 = vld [vmem:[%s7369 + $0x28] sm:$0xf]
        %v7381 = vld [vmem:[%s7369 + $0x2c] sm:$0xf]
        %v7382 = vld [vmem:[%s7369 + $0x30] sm:$0xf]
        %v7383 = vld [vmem:[%s7369 + $0x34] sm:$0xf]
        %v7384 = vld [vmem:[%s7369 + $0x38] sm:$0xf]
        %v7385 = vld [vmem:[%s7369 + $0x3c] sm:$0xf]
        %v7411 = vunpack.c.l.b16 %v7344
        %v7412 = vunpack.c.l.b16 %v7345
        %v7413 = vunpack.c.l.b16 %v7346
        %v7414 = vunpack.c.l.b16 %v7347
        %v7415 = vunpack.c.l.b16 %v7348
        %v7416 = vunpack.c.l.b16 %v7349
        %v7417 = vunpack.c.l.b16 %v7350
        %v7418 = vunpack.c.l.b16 %v7351
        %v7419 = vunpack.c.l.b16 %v7352
        %v7420 = vunpack.c.l.b16 %v7353
        %v7421 = vunpack.c.l.b16 %v7354
        %v7422 = vunpack.c.l.b16 %v7355
        %v7423 = vunpack.c.l.b16 %v7356
        %v7424 = vunpack.c.l.b16 %v7357
        %v7425 = vunpack.c.l.b16 %v7358
        %v7426 = vunpack.c.l.b16 %v7359
        %v7427 = vunpack.c.l.b16 %v7360
        %v7428 = vunpack.c.l.b16 %v7361
        %v7429 = vunpack.c.l.b16 %v7362
        %v7430 = vunpack.c.l.b16 %v7363
        %v7431 = vunpack.c.l.b16 %v7364
        %v7432 = vunpack.c.l.b16 %v7365
        %v7433 = vunpack.c.l.b16 %v7366
        %v7434 = vunpack.c.l.b16 %v7367
        %v7435 = vunpack.c.l.b16 %v7368
        %v7436 = vpack.c.b16 %v7412, %v7411
        %v7437 = vpack.c.b16 %v7414, %v7413
        %v7438 = vpack.c.b16 %v7416, %v7415
        %v7439 = vpack.c.b16 %v7418, %v7417
        %v7440 = vpack.c.b16 %v7420, %v7419
        %v7441 = vpack.c.b16 %v7422, %v7421
        %v7442 = vpack.c.b16 %v7424, %v7423
        %v7443 = vpack.c.b16 %v7426, %v7425
        %v7444 = vpack.c.b16 %v7428, %v7427
        %v7445 = vpack.c.b16 %v7430, %v7429
        %v7446 = vpack.c.b16 %v7432, %v7431
        %v7447 = vpack.c.b16 %v7434, %v7433
        %v7448 = vpack.c.b16 %v7435, %v7435
        %v7450 = vshrl.u32 %v7436, 16
        %v7452 = vshll.u32 %v7436, 16
        %v7454 = vrot.slane %v7452, 1
        %v7455 = vor.u32 %v7450, %v7454
        %v7457 = vshll.u32 %v7437, 16
        %v7459 = vrot.slane %v7457, 1
        %v7460 = vsel %vm555, %v7455, %v7459
        %v7461 = vshrl.u32 %v7437, 16
        %v7463 = vor.u32 %v7461, %v7459
        %v7465 = vshll.u32 %v7438, 16
        %v7467 = vrot.slane %v7465, 1
        %v7468 = vsel %vm555, %v7463, %v7467
        %v7469 = vshrl.u32 %v7438, 16
        %v7471 = vor.u32 %v7469, %v7467
        %v7473 = vshll.u32 %v7439, 16
        %v7475 = vrot.slane %v7473, 1
        %v7476 = vsel %vm555, %v7471, %v7475
        %v7477 = vshrl.u32 %v7439, 16
        %v7479 = vor.u32 %v7477, %v7475
        %v7481 = vshll.u32 %v7440, 16
        %v7483 = vrot.slane %v7481, 1
        %v7484 = vsel %vm555, %v7479, %v7483
        %v7485 = vshrl.u32 %v7440, 16
        %v7487 = vor.u32 %v7485, %v7483
        %v7489 = vshll.u32 %v7441, 16
        %v7491 = vrot.slane %v7489, 1
        %v7492 = vsel %vm555, %v7487, %v7491
        %v7493 = vshrl.u32 %v7441, 16
        %v7495 = vor.u32 %v7493, %v7491
        %v7497 = vshll.u32 %v7442, 16
        %v7499 = vrot.slane %v7497, 1
        %v7500 = vsel %vm555, %v7495, %v7499
        %v7501 = vshrl.u32 %v7442, 16
        %v7503 = vor.u32 %v7501, %v7499
        %v7505 = vshll.u32 %v7443, 16
        %v7507 = vrot.slane %v7505, 1
        %v7508 = vsel %vm555, %v7503, %v7507
        %v7509 = vshrl.u32 %v7443, 16
        %v7511 = vor.u32 %v7509, %v7507
        %v7513 = vshll.u32 %v7444, 16
        %v7515 = vrot.slane %v7513, 1
        %v7516 = vsel %vm555, %v7511, %v7515
        %v7517 = vshrl.u32 %v7444, 16
        %v7519 = vor.u32 %v7517, %v7515
        %v7521 = vshll.u32 %v7445, 16
        %v7523 = vrot.slane %v7521, 1
        %v7524 = vsel %vm555, %v7519, %v7523
        %v7525 = vshrl.u32 %v7445, 16
        %v7527 = vor.u32 %v7525, %v7523
        %v7529 = vshll.u32 %v7446, 16
        %v7531 = vrot.slane %v7529, 1
        %v7532 = vsel %vm555, %v7527, %v7531
        %v7533 = vshrl.u32 %v7446, 16
        %v7535 = vor.u32 %v7533, %v7531
        %v7537 = vshll.u32 %v7447, 16
        %v7539 = vrot.slane %v7537, 1
        %v7540 = vsel %vm555, %v7535, %v7539
        %v7541 = vshrl.u32 %v7447, 16
        %v7543 = vor.u32 %v7541, %v7539
        %v7545 = vshll.u32 %v7448, 16
        %v7547 = vrot.slane %v7545, 1
        %v7548 = vsel %vm555, %v7543, %v7547
        %v7577 = vunpack.c.l.b16 %v7370
        %v7578 = vunpack.c.l.b16 %v7371
        %v7579 = vunpack.c.l.b16 %v7372
        %v7580 = vunpack.c.l.b16 %v7373
        %v7581 = vunpack.c.l.b16 %v7374
        %v7582 = vunpack.c.l.b16 %v7375
        %v7583 = vunpack.c.l.b16 %v7376
        %v7584 = vunpack.c.l.b16 %v7377
        %v7585 = vunpack.c.l.b16 %v7378
        %v7586 = vunpack.c.l.b16 %v7379
        %v7587 = vunpack.c.l.b16 %v7380
        %v7588 = vunpack.c.l.b16 %v7381
        %v7589 = vunpack.c.l.b16 %v7382
        %v7590 = vunpack.c.l.b16 %v7383
        %v7591 = vunpack.c.l.b16 %v7384
        %v7592 = vunpack.c.l.b16 %v7385
        %v7593 = vpack.c.b16 %v7578, %v7577
        %v7594 = vpack.c.b16 %v7580, %v7579
        %v7595 = vpack.c.b16 %v7582, %v7581
        %v7596 = vpack.c.b16 %v7584, %v7583
        %v7597 = vpack.c.b16 %v7586, %v7585
        %v7598 = vpack.c.b16 %v7588, %v7587
        %v7599 = vpack.c.b16 %v7590, %v7589
        %v7600 = vpack.c.b16 %v7592, %v7591
        %7609 = vmatpush.bf16.msra.mxu0 %v7600
        %7610 = vmatpush.bf16.msra.mxu0 %v7599
        %7611 = vmatpush.bf16.msra.mxu0 %v7598
        %7612 = vmatpush.bf16.msra.mxu0 %v7597
        %7613 = vmatpush.bf16.msra.mxu0 %v7596
        %7614 = vmatpush.bf16.msra.mxu0 %v7595
        %7615 = vmatpush.bf16.msra.mxu0 %v7594
        %7616 = vmatpush.bf16.msra.mxu0 %v7593
        %7617 = vmatmul.bf16.gmra.mxu0 %v7460
        %v7618 = vpop.f32.mrf.mxu0
        %v7619 = vadd.f32 0.0, %v7618
        %v7620 = vpop.f32.mrf.mxu0
        %v7621 = vadd.f32 0.0, %v7620
        %7622 = vmatmul.bf16.gmra.mxu0 %v7468
        %v7623 = vpop.f32.mrf.mxu0
        %v7624 = vpop.f32.mrf.mxu0
        %v7625 = vadd.f32 0.0, %v7624
        %7626 = vmatmul.bf16.gmra.mxu0 %v7476
        %v7627 = vpop.f32.mrf.mxu0
        %v7628 = vadd.f32 0.0, %v7627
        %v7629 = vpop.f32.mrf.mxu0
        %7630 = vmatmul.bf16.gmra.mxu0 %v7484
        %v7631 = vpop.f32.mrf.mxu0
        %v7632 = vadd.f32 0.0, %v7631
        %v7633 = vpop.f32.mrf.mxu0
        %v7634 = vadd.f32 0.0, %v7633
        %7635 = vmatmul.bf16.gmra.mxu0 %v7492
        %v7636 = vpop.f32.mrf.mxu0
        %v7637 = vpop.f32.mrf.mxu0
        %v7638 = vadd.f32 0.0, %v7637
        %7639 = vmatmul.bf16.gmra.mxu0 %v7500
        %v7640 = vpop.f32.mrf.mxu0
        %v7641 = vadd.f32 0.0, %v7640
        %v7642 = vpop.f32.mrf.mxu0
        %7643 = vmatmul.bf16.gmra.mxu0 %v7508
        %v7644 = vpop.f32.mrf.mxu0
        %v7645 = vadd.f32 0.0, %v7644
        %v7646 = vpop.f32.mrf.mxu0
        %v7647 = vadd.f32 0.0, %v7646
        %7648 = vmatmul.bf16.gmra.mxu0 %v7516
        %v7649 = vpop.f32.mrf.mxu0
        %v7650 = vpop.f32.mrf.mxu0
        %v7651 = vadd.f32 0.0, %v7650
        %7652 = vmatmul.bf16.gmra.mxu0 %v7524
        %v7653 = vpop.f32.mrf.mxu0
        %v7654 = vadd.f32 0.0, %v7653
        %v7655 = vpop.f32.mrf.mxu0
        %7656 = vmatmul.bf16.gmra.mxu0 %v7532
        %v7657 = vpop.f32.mrf.mxu0
        %v7658 = vadd.f32 0.0, %v7657
        %v7659 = vpop.f32.mrf.mxu0
        %v7660 = vadd.f32 0.0, %v7659
        %7661 = vmatmul.bf16.gmra.mxu0 %v7540
        %v7662 = vpop.f32.mrf.mxu0
        %v7663 = vpop.f32.mrf.mxu0
        %v7664 = vadd.f32 0.0, %v7663
        %7665 = vmatmul.bf16.gmra.mxu0 %v7548
        %v7666 = vpop.f32.mrf.mxu0
        %v7667 = vadd.f32 0.0, %v7666
        %v7668 = vpop.f32.mrf.mxu0
        %7669 = vdwg.mxu0
        %v7670 = vadd.f32 %v7328, %v7619
        %v7671 = vadd.f32 %v7329, %v7621
        %v7672 = vadd.f32 %v7330, %v7625
        %v7673 = vadd.f32 %v7331, %v7628
        %v7674 = vadd.f32 %v7332, %v7632
        %v7675 = vadd.f32 %v7333, %v7634
        %v7676 = vadd.f32 %v7334, %v7638
        %v7677 = vadd.f32 %v7335, %v7641
        %v7678 = vadd.f32 %v7336, %v7645
        %v7679 = vadd.f32 %v7337, %v7647
        %v7680 = vadd.f32 %v7338, %v7651
        %v7681 = vadd.f32 %v7339, %v7654
        %v7682 = vadd.f32 %v7340, %v7658
        %v7683 = vadd.f32 %v7341, %v7660
        %v7684 = vadd.f32 %v7342, %v7664
        %v7685 = vadd.f32 %v7343, %v7667
        %v7686 = vld [vmem:[#allocation3 + $0xc] sm:$0xe]
        %s7687 = scalar_lea.vmem %s2, 320
        %v7688 = vld [vmem:[%s7687] sm:$0xf]
        %v7689 = vld [vmem:[%s7687 + $0x4] sm:$0xf]
        %v7690 = vld [vmem:[%s7687 + $0x8] sm:$0xf]
        %v7691 = vld [vmem:[%s7687 + $0xc] sm:$0xf]
        %v7692 = vld [vmem:[%s7687 + $0x10] sm:$0xf]
        %v7693 = vld [vmem:[%s7687 + $0x14] sm:$0xf]
        %v7694 = vld [vmem:[%s7687 + $0x18] sm:$0xf]
        %v7695 = vld [vmem:[%s7687 + $0x1c] sm:$0xf]
        %v7696 = vld [vmem:[%s7687 + $0x20] sm:$0xf]
        %v7697 = vld [vmem:[%s7687 + $0x24] sm:$0xf]
        %v7698 = vld [vmem:[%s7687 + $0x28] sm:$0xf]
        %v7699 = vld [vmem:[%s7687 + $0x2c] sm:$0xf]
        %v7700 = vld [vmem:[%s7687 + $0x30] sm:$0xf]
        %v7701 = vld [vmem:[%s7687 + $0x34] sm:$0xf]
        %v7702 = vld [vmem:[%s7687 + $0x38] sm:$0xf]
        %v7703 = vld [vmem:[%s7687 + $0x3c] sm:$0xf]
        %v7705 = vunpack.c.l.b16 %v7686
        %v7706 = vpack.c.b16 %v7412, %v7705
        %v7707 = vrot.slane %v7706, 1
        %v7708 = vrot.slane %v7437, 1
        %v7709 = vsel %vm875, %v7707, %v7708
        %v7710 = vrot.slane %v7438, 1
        %v7711 = vsel %vm875, %v7708, %v7710
        %v7712 = vrot.slane %v7439, 1
        %v7713 = vsel %vm875, %v7710, %v7712
        %v7714 = vrot.slane %v7440, 1
        %v7715 = vsel %vm875, %v7712, %v7714
        %v7716 = vrot.slane %v7441, 1
        %v7717 = vsel %vm875, %v7714, %v7716
        %v7718 = vrot.slane %v7442, 1
        %v7719 = vsel %vm875, %v7716, %v7718
        %v7720 = vrot.slane %v7443, 1
        %v7721 = vsel %vm875, %v7718, %v7720
        %v7722 = vrot.slane %v7444, 1
        %v7723 = vsel %vm875, %v7720, %v7722
        %v7724 = vrot.slane %v7445, 1
        %v7725 = vsel %vm875, %v7722, %v7724
        %v7726 = vrot.slane %v7446, 1
        %v7727 = vsel %vm875, %v7724, %v7726
        %v7728 = vrot.slane %v7447, 1
        %v7729 = vsel %vm875, %v7726, %v7728
        %v7730 = vrot.slane %v7448, 1
        %v7731 = vsel %vm875, %v7728, %v7730
        %v7760 = vunpack.c.l.b16 %v7688
        %v7761 = vunpack.c.l.b16 %v7689
        %v7762 = vunpack.c.l.b16 %v7690
        %v7763 = vunpack.c.l.b16 %v7691
        %v7764 = vunpack.c.l.b16 %v7692
        %v7765 = vunpack.c.l.b16 %v7693
        %v7766 = vunpack.c.l.b16 %v7694
        %v7767 = vunpack.c.l.b16 %v7695
        %v7768 = vunpack.c.l.b16 %v7696
        %v7769 = vunpack.c.l.b16 %v7697
        %v7770 = vunpack.c.l.b16 %v7698
        %v7771 = vunpack.c.l.b16 %v7699
        %v7772 = vunpack.c.l.b16 %v7700
        %v7773 = vunpack.c.l.b16 %v7701
        %v7774 = vunpack.c.l.b16 %v7702
        %v7775 = vunpack.c.l.b16 %v7703
        %v7776 = vpack.c.b16 %v7761, %v7760
        %v7777 = vpack.c.b16 %v7763, %v7762
        %v7778 = vpack.c.b16 %v7765, %v7764
        %v7779 = vpack.c.b16 %v7767, %v7766
        %v7780 = vpack.c.b16 %v7769, %v7768
        %v7781 = vpack.c.b16 %v7771, %v7770
        %v7782 = vpack.c.b16 %v7773, %v7772
        %v7783 = vpack.c.b16 %v7775, %v7774
        %7792 = vmatpush.bf16.msra.mxu0 %v7783
        %7793 = vmatpush.bf16.msra.mxu0 %v7782
        %7794 = vmatpush.bf16.msra.mxu0 %v7781
        %7795 = vmatpush.bf16.msra.mxu0 %v7780
        %7796 = vmatpush.bf16.msra.mxu0 %v7779
        %7797 = vmatpush.bf16.msra.mxu0 %v7778
        %7798 = vmatpush.bf16.msra.mxu0 %v7777
        %7799 = vmatpush.bf16.msra.mxu0 %v7776
        %7800 = vmatmul.bf16.gmra.mxu0 %v7709
        %v7801 = vpop.f32.mrf.mxu0
        %v7802 = vadd.f32 0.0, %v7801
        %v7803 = vpop.f32.mrf.mxu0
        %v7804 = vadd.f32 0.0, %v7803
        %7805 = vmatmul.bf16.gmra.mxu0 %v7711
        %v7806 = vpop.f32.mrf.mxu0
        %v7807 = vpop.f32.mrf.mxu0
        %v7808 = vadd.f32 0.0, %v7807
        %7809 = vmatmul.bf16.gmra.mxu0 %v7713
        %v7810 = vpop.f32.mrf.mxu0
        %v7811 = vadd.f32 0.0, %v7810
        %v7812 = vpop.f32.mrf.mxu0
        %7813 = vmatmul.bf16.gmra.mxu0 %v7715
        %v7814 = vpop.f32.mrf.mxu0
        %v7815 = vadd.f32 0.0, %v7814
        %v7816 = vpop.f32.mrf.mxu0
        %v7817 = vadd.f32 0.0, %v7816
        %7818 = vmatmul.bf16.gmra.mxu0 %v7717
        %v7819 = vpop.f32.mrf.mxu0
        %v7820 = vpop.f32.mrf.mxu0
        %v7821 = vadd.f32 0.0, %v7820
        %7822 = vmatmul.bf16.gmra.mxu0 %v7719
        %v7823 = vpop.f32.mrf.mxu0
        %v7824 = vadd.f32 0.0, %v7823
        %v7825 = vpop.f32.mrf.mxu0
        %7826 = vmatmul.bf16.gmra.mxu0 %v7721
        %v7827 = vpop.f32.mrf.mxu0
        %v7828 = vadd.f32 0.0, %v7827
        %v7829 = vpop.f32.mrf.mxu0
        %v7830 = vadd.f32 0.0, %v7829
        %7831 = vmatmul.bf16.gmra.mxu0 %v7723
        %v7832 = vpop.f32.mrf.mxu0
        %v7833 = vpop.f32.mrf.mxu0
        %v7834 = vadd.f32 0.0, %v7833
        %7835 = vmatmul.bf16.gmra.mxu0 %v7725
        %v7836 = vpop.f32.mrf.mxu0
        %v7837 = vadd.f32 0.0, %v7836
        %v7838 = vpop.f32.mrf.mxu0
        %7839 = vmatmul.bf16.gmra.mxu0 %v7727
        %v7840 = vpop.f32.mrf.mxu0
        %v7841 = vadd.f32 0.0, %v7840
        %v7842 = vpop.f32.mrf.mxu0
        %v7843 = vadd.f32 0.0, %v7842
        %7844 = vmatmul.bf16.gmra.mxu0 %v7729
        %v7845 = vpop.f32.mrf.mxu0
        %v7846 = vpop.f32.mrf.mxu0
        %v7847 = vadd.f32 0.0, %v7846
        %7848 = vmatmul.bf16.gmra.mxu0 %v7731
        %v7849 = vpop.f32.mrf.mxu0
        %v7850 = vadd.f32 0.0, %v7849
        %v7851 = vpop.f32.mrf.mxu0
        %7852 = vdwg.mxu0
        %v7853 = vadd.f32 %v7670, %v7802
        %v7854 = vadd.f32 %v7671, %v7804
        %v7855 = vadd.f32 %v7672, %v7808
        %v7856 = vadd.f32 %v7673, %v7811
        %v7857 = vadd.f32 %v7674, %v7815
        %v7858 = vadd.f32 %v7675, %v7817
        %v7859 = vadd.f32 %v7676, %v7821
        %v7860 = vadd.f32 %v7677, %v7824
        %v7861 = vadd.f32 %v7678, %v7828
        %v7862 = vadd.f32 %v7679, %v7830
        %v7863 = vadd.f32 %v7680, %v7834
        %v7864 = vadd.f32 %v7681, %v7837
        %v7865 = vadd.f32 %v7682, %v7841
        %v7866 = vadd.f32 %v7683, %v7843
        %v7867 = vadd.f32 %v7684, %v7847
        %v7868 = vadd.f32 %v7685, %v7850
        %v7869 = vld [vmem:[#allocation3 + $0x18] sm:$0xf]
        %v7870 = vld [vmem:[#allocation3 + $0x1c] sm:$0xf]
        %v7871 = vld [vmem:[#allocation3 + $0x20] sm:$0xf]
        %v7872 = vld [vmem:[#allocation3 + $0x24] sm:$0xf]
        %v7873 = vld [vmem:[#allocation3 + $0x28] sm:$0xf]
        %v7874 = vld [vmem:[#allocation3 + $0x2c] sm:$0xf]
        %v7875 = vld [vmem:[#allocation3 + $0x30] sm:$0xf]
        %v7876 = vld [vmem:[#allocation3 + $0x34] sm:$0xf]
        %v7877 = vld [vmem:[#allocation3 + $0x38] sm:$0xf]
        %v7878 = vld [vmem:[#allocation3 + $0x3c] sm:$0xf]
        %v7879 = vld [vmem:[#allocation3 + $0x40] sm:$0xf]
        %v7880 = vld [vmem:[#allocation3 + $0x44] sm:$0xf]
        %v7881 = vld [vmem:[#allocation3 + $0x48] sm:$0xf]
        %v7882 = vld [vmem:[#allocation3 + $0x4c] sm:$0xf]
        %v7883 = vld [vmem:[#allocation3 + $0x50] sm:$0xf]
        %v7884 = vld [vmem:[#allocation3 + $0x54] sm:$0xf]
        %v7885 = vld [vmem:[#allocation3 + $0x58] sm:$0xf]
        %v7886 = vld [vmem:[#allocation3 + $0x5c] sm:$0xf]
        %v7887 = vld [vmem:[#allocation3 + $0x60] sm:$0xf]
        %v7888 = vld [vmem:[#allocation3 + $0x64] sm:$0xf]
        %v7889 = vld [vmem:[#allocation3 + $0x68] sm:$0xf]
        %v7890 = vld [vmem:[#allocation3 + $0x6c] sm:$0xf]
        %v7891 = vld [vmem:[#allocation3 + $0x70] sm:$0xf]
        %v7892 = vld [vmem:[#allocation3 + $0x74] sm:$0xf]
        %s7893 = scalar_lea.vmem %s2, 384
        %v7894 = vld [vmem:[%s7893] sm:$0xf]
        %v7895 = vld [vmem:[%s7893 + $0x4] sm:$0xf]
        %v7896 = vld [vmem:[%s7893 + $0x8] sm:$0xf]
        %v7897 = vld [vmem:[%s7893 + $0xc] sm:$0xf]
        %v7898 = vld [vmem:[%s7893 + $0x10] sm:$0xf]
        %v7899 = vld [vmem:[%s7893 + $0x14] sm:$0xf]
        %v7900 = vld [vmem:[%s7893 + $0x18] sm:$0xf]
        %v7901 = vld [vmem:[%s7893 + $0x1c] sm:$0xf]
        %v7902 = vld [vmem:[%s7893 + $0x20] sm:$0xf]
        %v7903 = vld [vmem:[%s7893 + $0x24] sm:$0xf]
        %v7904 = vld [vmem:[%s7893 + $0x28] sm:$0xf]
        %v7905 = vld [vmem:[%s7893 + $0x2c] sm:$0xf]
        %v7906 = vld [vmem:[%s7893 + $0x30] sm:$0xf]
        %v7907 = vld [vmem:[%s7893 + $0x34] sm:$0xf]
        %v7908 = vld [vmem:[%s7893 + $0x38] sm:$0xf]
        %v7909 = vld [vmem:[%s7893 + $0x3c] sm:$0xf]
        %v7934 = vunpack.c.l.b16 %v7869
        %v7935 = vunpack.c.l.b16 %v7870
        %v7936 = vunpack.c.l.b16 %v7871
        %v7937 = vunpack.c.l.b16 %v7872
        %v7938 = vunpack.c.l.b16 %v7873
        %v7939 = vunpack.c.l.b16 %v7874
        %v7940 = vunpack.c.l.b16 %v7875
        %v7941 = vunpack.c.l.b16 %v7876
        %v7942 = vunpack.c.l.b16 %v7877
        %v7943 = vunpack.c.l.b16 %v7878
        %v7944 = vunpack.c.l.b16 %v7879
        %v7945 = vunpack.c.l.b16 %v7880
        %v7946 = vunpack.c.l.b16 %v7881
        %v7947 = vunpack.c.l.b16 %v7882
        %v7948 = vunpack.c.l.b16 %v7883
        %v7949 = vunpack.c.l.b16 %v7884
        %v7950 = vunpack.c.l.b16 %v7885
        %v7951 = vunpack.c.l.b16 %v7886
        %v7952 = vunpack.c.l.b16 %v7887
        %v7953 = vunpack.c.l.b16 %v7888
        %v7954 = vunpack.c.l.b16 %v7889
        %v7955 = vunpack.c.l.b16 %v7890
        %v7956 = vunpack.c.l.b16 %v7891
        %v7957 = vunpack.c.l.b16 %v7892
        %v7958 = vpack.c.b16 %v7935, %v7934
        %v7959 = vpack.c.b16 %v7937, %v7936
        %v7960 = vpack.c.b16 %v7939, %v7938
        %v7961 = vpack.c.b16 %v7941, %v7940
        %v7962 = vpack.c.b16 %v7943, %v7942
        %v7963 = vpack.c.b16 %v7945, %v7944
        %v7964 = vpack.c.b16 %v7947, %v7946
        %v7965 = vpack.c.b16 %v7949, %v7948
        %v7966 = vpack.c.b16 %v7951, %v7950
        %v7967 = vpack.c.b16 %v7953, %v7952
        %v7968 = vpack.c.b16 %v7955, %v7954
        %v7969 = vpack.c.b16 %v7957, %v7956
        %v7998 = vunpack.c.l.b16 %v7894
        %v7999 = vunpack.c.l.b16 %v7895
        %v8000 = vunpack.c.l.b16 %v7896
        %v8001 = vunpack.c.l.b16 %v7897
        %v8002 = vunpack.c.l.b16 %v7898
        %v8003 = vunpack.c.l.b16 %v7899
        %v8004 = vunpack.c.l.b16 %v7900
        %v8005 = vunpack.c.l.b16 %v7901
        %v8006 = vunpack.c.l.b16 %v7902
        %v8007 = vunpack.c.l.b16 %v7903
        %v8008 = vunpack.c.l.b16 %v7904
        %v8009 = vunpack.c.l.b16 %v7905
        %v8010 = vunpack.c.l.b16 %v7906
        %v8011 = vunpack.c.l.b16 %v7907
        %v8012 = vunpack.c.l.b16 %v7908
        %v8013 = vunpack.c.l.b16 %v7909
        %v8014 = vpack.c.b16 %v7999, %v7998
        %v8015 = vpack.c.b16 %v8001, %v8000
        %v8016 = vpack.c.b16 %v8003, %v8002
        %v8017 = vpack.c.b16 %v8005, %v8004
        %v8018 = vpack.c.b16 %v8007, %v8006
        %v8019 = vpack.c.b16 %v8009, %v8008
        %v8020 = vpack.c.b16 %v8011, %v8010
        %v8021 = vpack.c.b16 %v8013, %v8012
        %8030 = vmatpush.bf16.msra.mxu0 %v8021
        %8031 = vmatpush.bf16.msra.mxu0 %v8020
        %8032 = vmatpush.bf16.msra.mxu0 %v8019
        %8033 = vmatpush.bf16.msra.mxu0 %v8018
        %8034 = vmatpush.bf16.msra.mxu0 %v8017
        %8035 = vmatpush.bf16.msra.mxu0 %v8016
        %8036 = vmatpush.bf16.msra.mxu0 %v8015
        %8037 = vmatpush.bf16.msra.mxu0 %v8014
        %8038 = vmatmul.bf16.gmra.mxu0 %v7958
        %v8039 = vpop.f32.mrf.mxu0
        %v8040 = vadd.f32 0.0, %v8039
        %v8041 = vpop.f32.mrf.mxu0
        %v8042 = vadd.f32 0.0, %v8041
        %8043 = vmatmul.bf16.gmra.mxu0 %v7959
        %v8044 = vpop.f32.mrf.mxu0
        %v8045 = vpop.f32.mrf.mxu0
        %v8046 = vadd.f32 0.0, %v8045
        %8047 = vmatmul.bf16.gmra.mxu0 %v7960
        %v8048 = vpop.f32.mrf.mxu0
        %v8049 = vadd.f32 0.0, %v8048
        %v8050 = vpop.f32.mrf.mxu0
        %8051 = vmatmul.bf16.gmra.mxu0 %v7961
        %v8052 = vpop.f32.mrf.mxu0
        %v8053 = vadd.f32 0.0, %v8052
        %v8054 = vpop.f32.mrf.mxu0
        %v8055 = vadd.f32 0.0, %v8054
        %8056 = vmatmul.bf16.gmra.mxu0 %v7962
        %v8057 = vpop.f32.mrf.mxu0
        %v8058 = vpop.f32.mrf.mxu0
        %v8059 = vadd.f32 0.0, %v8058
        %8060 = vmatmul.bf16.gmra.mxu0 %v7963
        %v8061 = vpop.f32.mrf.mxu0
        %v8062 = vadd.f32 0.0, %v8061
        %v8063 = vpop.f32.mrf.mxu0
        %8064 = vmatmul.bf16.gmra.mxu0 %v7964
        %v8065 = vpop.f32.mrf.mxu0
        %v8066 = vadd.f32 0.0, %v8065
        %v8067 = vpop.f32.mrf.mxu0
        %v8068 = vadd.f32 0.0, %v8067
        %8069 = vmatmul.bf16.gmra.mxu0 %v7965
        %v8070 = vpop.f32.mrf.mxu0
        %v8071 = vpop.f32.mrf.mxu0
        %v8072 = vadd.f32 0.0, %v8071
        %8073 = vmatmul.bf16.gmra.mxu0 %v7966
        %v8074 = vpop.f32.mrf.mxu0
        %v8075 = vadd.f32 0.0, %v8074
        %v8076 = vpop.f32.mrf.mxu0
        %8077 = vmatmul.bf16.gmra.mxu0 %v7967
        %v8078 = vpop.f32.mrf.mxu0
        %v8079 = vadd.f32 0.0, %v8078
        %v8080 = vpop.f32.mrf.mxu0
        %v8081 = vadd.f32 0.0, %v8080
        %8082 = vmatmul.bf16.gmra.mxu0 %v7968
        %v8083 = vpop.f32.mrf.mxu0
        %v8084 = vpop.f32.mrf.mxu0
        %v8085 = vadd.f32 0.0, %v8084
        %8086 = vmatmul.bf16.gmra.mxu0 %v7969
        %v8087 = vpop.f32.mrf.mxu0
        %v8088 = vadd.f32 0.0, %v8087
        %v8089 = vpop.f32.mrf.mxu0
        %8090 = vdwg.mxu0
        %v8091 = vadd.f32 %v7853, %v8040
        %v8092 = vadd.f32 %v7854, %v8042
        %v8093 = vadd.f32 %v7855, %v8046
        %v8094 = vadd.f32 %v7856, %v8049
        %v8095 = vadd.f32 %v7857, %v8053
        %v8096 = vadd.f32 %v7858, %v8055
        %v8097 = vadd.f32 %v7859, %v8059
        %v8098 = vadd.f32 %v7860, %v8062
        %v8099 = vadd.f32 %v7861, %v8066
        %v8100 = vadd.f32 %v7862, %v8068
        %v8101 = vadd.f32 %v7863, %v8072
        %v8102 = vadd.f32 %v7864, %v8075
        %v8103 = vadd.f32 %v7865, %v8079
        %v8104 = vadd.f32 %v7866, %v8081
        %v8105 = vadd.f32 %v7867, %v8085
        %v8106 = vadd.f32 %v7868, %v8088
        %v8107 = vld [vmem:[#allocation3 + $0x18] sm:$0xf]
        %v8108 = vld [vmem:[#allocation3 + $0x1c] sm:$0xf]
        %v8109 = vld [vmem:[#allocation3 + $0x20] sm:$0xf]
        %v8110 = vld [vmem:[#allocation3 + $0x24] sm:$0xf]
        %v8111 = vld [vmem:[#allocation3 + $0x28] sm:$0xf]
        %v8112 = vld [vmem:[#allocation3 + $0x2c] sm:$0xf]
        %v8113 = vld [vmem:[#allocation3 + $0x30] sm:$0xf]
        %v8114 = vld [vmem:[#allocation3 + $0x34] sm:$0xf]
        %v8115 = vld [vmem:[#allocation3 + $0x38] sm:$0xf]
        %v8116 = vld [vmem:[#allocation3 + $0x3c] sm:$0xf]
        %v8117 = vld [vmem:[#allocation3 + $0x40] sm:$0xf]
        %v8118 = vld [vmem:[#allocation3 + $0x44] sm:$0xf]
        %v8119 = vld [vmem:[#allocation3 + $0x48] sm:$0xf]
        %v8120 = vld [vmem:[#allocation3 + $0x4c] sm:$0xf]
        %v8121 = vld [vmem:[#allocation3 + $0x50] sm:$0xf]
        %v8122 = vld [vmem:[#allocation3 + $0x54] sm:$0xf]
        %v8123 = vld [vmem:[#allocation3 + $0x58] sm:$0xf]
        %v8124 = vld [vmem:[#allocation3 + $0x5c] sm:$0xf]
        %v8125 = vld [vmem:[#allocation3 + $0x60] sm:$0xf]
        %v8126 = vld [vmem:[#allocation3 + $0x64] sm:$0xf]
        %v8127 = vld [vmem:[#allocation3 + $0x68] sm:$0xf]
        %v8128 = vld [vmem:[#allocation3 + $0x6c] sm:$0xf]
        %v8129 = vld [vmem:[#allocation3 + $0x70] sm:$0xf]
        %v8130 = vld [vmem:[#allocation3 + $0x74] sm:$0xf]
        %v8131 = vld [vmem:[#allocation3 + $0x78] sm:$0x1]
        %s8132 = scalar_lea.vmem %s2, 448
        %v8133 = vld [vmem:[%s8132] sm:$0xf]
        %v8134 = vld [vmem:[%s8132 + $0x4] sm:$0xf]
        %v8135 = vld [vmem:[%s8132 + $0x8] sm:$0xf]
        %v8136 = vld [vmem:[%s8132 + $0xc] sm:$0xf]
        %v8137 = vld [vmem:[%s8132 + $0x10] sm:$0xf]
        %v8138 = vld [vmem:[%s8132 + $0x14] sm:$0xf]
        %v8139 = vld [vmem:[%s8132 + $0x18] sm:$0xf]
        %v8140 = vld [vmem:[%s8132 + $0x1c] sm:$0xf]
        %v8141 = vld [vmem:[%s8132 + $0x20] sm:$0xf]
        %v8142 = vld [vmem:[%s8132 + $0x24] sm:$0xf]
        %v8143 = vld [vmem:[%s8132 + $0x28] sm:$0xf]
        %v8144 = vld [vmem:[%s8132 + $0x2c] sm:$0xf]
        %v8145 = vld [vmem:[%s8132 + $0x30] sm:$0xf]
        %v8146 = vld [vmem:[%s8132 + $0x34] sm:$0xf]
        %v8147 = vld [vmem:[%s8132 + $0x38] sm:$0xf]
        %v8148 = vld [vmem:[%s8132 + $0x3c] sm:$0xf]
        %v8174 = vunpack.c.l.b16 %v8107
        %v8175 = vunpack.c.l.b16 %v8108
        %v8176 = vunpack.c.l.b16 %v8109
        %v8177 = vunpack.c.l.b16 %v8110
        %v8178 = vunpack.c.l.b16 %v8111
        %v8179 = vunpack.c.l.b16 %v8112
        %v8180 = vunpack.c.l.b16 %v8113
        %v8181 = vunpack.c.l.b16 %v8114
        %v8182 = vunpack.c.l.b16 %v8115
        %v8183 = vunpack.c.l.b16 %v8116
        %v8184 = vunpack.c.l.b16 %v8117
        %v8185 = vunpack.c.l.b16 %v8118
        %v8186 = vunpack.c.l.b16 %v8119
        %v8187 = vunpack.c.l.b16 %v8120
        %v8188 = vunpack.c.l.b16 %v8121
        %v8189 = vunpack.c.l.b16 %v8122
        %v8190 = vunpack.c.l.b16 %v8123
        %v8191 = vunpack.c.l.b16 %v8124
        %v8192 = vunpack.c.l.b16 %v8125
        %v8193 = vunpack.c.l.b16 %v8126
        %v8194 = vunpack.c.l.b16 %v8127
        %v8195 = vunpack.c.l.b16 %v8128
        %v8196 = vunpack.c.l.b16 %v8129
        %v8197 = vunpack.c.l.b16 %v8130
        %v8198 = vunpack.c.l.b16 %v8131
        %v8199 = vpack.c.b16 %v8175, %v8174
        %v8200 = vpack.c.b16 %v8177, %v8176
        %v8201 = vpack.c.b16 %v8179, %v8178
        %v8202 = vpack.c.b16 %v8181, %v8180
        %v8203 = vpack.c.b16 %v8183, %v8182
        %v8204 = vpack.c.b16 %v8185, %v8184
        %v8205 = vpack.c.b16 %v8187, %v8186
        %v8206 = vpack.c.b16 %v8189, %v8188
        %v8207 = vpack.c.b16 %v8191, %v8190
        %v8208 = vpack.c.b16 %v8193, %v8192
        %v8209 = vpack.c.b16 %v8195, %v8194
        %v8210 = vpack.c.b16 %v8197, %v8196
        %v8211 = vpack.c.b16 %v8198, %v8198
        %v8213 = vshrl.u32 %v8199, 16
        %v8215 = vshll.u32 %v8199, 16
        %v8217 = vrot.slane %v8215, 1
        %v8218 = vor.u32 %v8213, %v8217
        %v8220 = vshll.u32 %v8200, 16
        %v8222 = vrot.slane %v8220, 1
        %v8223 = vsel %vm555, %v8218, %v8222
        %v8224 = vshrl.u32 %v8200, 16
        %v8226 = vor.u32 %v8224, %v8222
        %v8228 = vshll.u32 %v8201, 16
        %v8230 = vrot.slane %v8228, 1
        %v8231 = vsel %vm555, %v8226, %v8230
        %v8232 = vshrl.u32 %v8201, 16
        %v8234 = vor.u32 %v8232, %v8230
        %v8236 = vshll.u32 %v8202, 16
        %v8238 = vrot.slane %v8236, 1
        %v8239 = vsel %vm555, %v8234, %v8238
        %v8240 = vshrl.u32 %v8202, 16
        %v8242 = vor.u32 %v8240, %v8238
        %v8244 = vshll.u32 %v8203, 16
        %v8246 = vrot.slane %v8244, 1
        %v8247 = vsel %vm555, %v8242, %v8246
        %v8248 = vshrl.u32 %v8203, 16
        %v8250 = vor.u32 %v8248, %v8246
        %v8252 = vshll.u32 %v8204, 16
        %v8254 = vrot.slane %v8252, 1
        %v8255 = vsel %vm555, %v8250, %v8254
        %v8256 = vshrl.u32 %v8204, 16
        %v8258 = vor.u32 %v8256, %v8254
        %v8260 = vshll.u32 %v8205, 16
        %v8262 = vrot.slane %v8260, 1
        %v8263 = vsel %vm555, %v8258, %v8262
        %v8264 = vshrl.u32 %v8205, 16
        %v8266 = vor.u32 %v8264, %v8262
        %v8268 = vshll.u32 %v8206, 16
        %v8270 = vrot.slane %v8268, 1
        %v8271 = vsel %vm555, %v8266, %v8270
        %v8272 = vshrl.u32 %v8206, 16
        %v8274 = vor.u32 %v8272, %v8270
        %v8276 = vshll.u32 %v8207, 16
        %v8278 = vrot.slane %v8276, 1
        %v8279 = vsel %vm555, %v8274, %v8278
        %v8280 = vshrl.u32 %v8207, 16
        %v8282 = vor.u32 %v8280, %v8278
        %v8284 = vshll.u32 %v8208, 16
        %v8286 = vrot.slane %v8284, 1
        %v8287 = vsel %vm555, %v8282, %v8286
        %v8288 = vshrl.u32 %v8208, 16
        %v8290 = vor.u32 %v8288, %v8286
        %v8292 = vshll.u32 %v8209, 16
        %v8294 = vrot.slane %v8292, 1
        %v8295 = vsel %vm555, %v8290, %v8294
        %v8296 = vshrl.u32 %v8209, 16
        %v8298 = vor.u32 %v8296, %v8294
        %v8300 = vshll.u32 %v8210, 16
        %v8302 = vrot.slane %v8300, 1
        %v8303 = vsel %vm555, %v8298, %v8302
        %v8304 = vshrl.u32 %v8210, 16
        %v8306 = vor.u32 %v8304, %v8302
        %v8308 = vshll.u32 %v8211, 16
        %v8310 = vrot.slane %v8308, 1
        %v8311 = vsel %vm555, %v8306, %v8310
        %v8340 = vunpack.c.l.b16 %v8133
        %v8341 = vunpack.c.l.b16 %v8134
        %v8342 = vunpack.c.l.b16 %v8135
        %v8343 = vunpack.c.l.b16 %v8136
        %v8344 = vunpack.c.l.b16 %v8137
        %v8345 = vunpack.c.l.b16 %v8138
        %v8346 = vunpack.c.l.b16 %v8139
        %v8347 = vunpack.c.l.b16 %v8140
        %v8348 = vunpack.c.l.b16 %v8141
        %v8349 = vunpack.c.l.b16 %v8142
        %v8350 = vunpack.c.l.b16 %v8143
        %v8351 = vunpack.c.l.b16 %v8144
        %v8352 = vunpack.c.l.b16 %v8145
        %v8353 = vunpack.c.l.b16 %v8146
        %v8354 = vunpack.c.l.b16 %v8147
        %v8355 = vunpack.c.l.b16 %v8148
        %v8356 = vpack.c.b16 %v8341, %v8340
        %v8357 = vpack.c.b16 %v8343, %v8342
        %v8358 = vpack.c.b16 %v8345, %v8344
        %v8359 = vpack.c.b16 %v8347, %v8346
        %v8360 = vpack.c.b16 %v8349, %v8348
        %v8361 = vpack.c.b16 %v8351, %v8350
        %v8362 = vpack.c.b16 %v8353, %v8352
        %v8363 = vpack.c.b16 %v8355, %v8354
        %8372 = vmatpush.bf16.msra.mxu0 %v8363
        %8373 = vmatpush.bf16.msra.mxu0 %v8362
        %8374 = vmatpush.bf16.msra.mxu0 %v8361
        %8375 = vmatpush.bf16.msra.mxu0 %v8360
        %8376 = vmatpush.bf16.msra.mxu0 %v8359
        %8377 = vmatpush.bf16.msra.mxu0 %v8358
        %8378 = vmatpush.bf16.msra.mxu0 %v8357
        %8379 = vmatpush.bf16.msra.mxu0 %v8356
        %8380 = vmatmul.bf16.gmra.mxu0 %v8223
        %v8381 = vpop.f32.mrf.mxu0
        %v8382 = vadd.f32 0.0, %v8381
        %v8383 = vpop.f32.mrf.mxu0
        %v8384 = vadd.f32 0.0, %v8383
        %8385 = vmatmul.bf16.gmra.mxu0 %v8231
        %v8386 = vpop.f32.mrf.mxu0
        %v8387 = vpop.f32.mrf.mxu0
        %v8388 = vadd.f32 0.0, %v8387
        %8389 = vmatmul.bf16.gmra.mxu0 %v8239
        %v8390 = vpop.f32.mrf.mxu0
        %v8391 = vadd.f32 0.0, %v8390
        %v8392 = vpop.f32.mrf.mxu0
        %8393 = vmatmul.bf16.gmra.mxu0 %v8247
        %v8394 = vpop.f32.mrf.mxu0
        %v8395 = vadd.f32 0.0, %v8394
        %v8396 = vpop.f32.mrf.mxu0
        %v8397 = vadd.f32 0.0, %v8396
        %8398 = vmatmul.bf16.gmra.mxu0 %v8255
        %v8399 = vpop.f32.mrf.mxu0
        %v8400 = vpop.f32.mrf.mxu0
        %v8401 = vadd.f32 0.0, %v8400
        %8402 = vmatmul.bf16.gmra.mxu0 %v8263
        %v8403 = vpop.f32.mrf.mxu0
        %v8404 = vadd.f32 0.0, %v8403
        %v8405 = vpop.f32.mrf.mxu0
        %8406 = vmatmul.bf16.gmra.mxu0 %v8271
        %v8407 = vpop.f32.mrf.mxu0
        %v8408 = vadd.f32 0.0, %v8407
        %v8409 = vpop.f32.mrf.mxu0
        %v8410 = vadd.f32 0.0, %v8409
        %8411 = vmatmul.bf16.gmra.mxu0 %v8279
        %v8412 = vpop.f32.mrf.mxu0
        %v8413 = vpop.f32.mrf.mxu0
        %v8414 = vadd.f32 0.0, %v8413
        %8415 = vmatmul.bf16.gmra.mxu0 %v8287
        %v8416 = vpop.f32.mrf.mxu0
        %v8417 = vadd.f32 0.0, %v8416
        %v8418 = vpop.f32.mrf.mxu0
        %8419 = vmatmul.bf16.gmra.mxu0 %v8295
        %v8420 = vpop.f32.mrf.mxu0
        %v8421 = vadd.f32 0.0, %v8420
        %v8422 = vpop.f32.mrf.mxu0
        %v8423 = vadd.f32 0.0, %v8422
        %8424 = vmatmul.bf16.gmra.mxu0 %v8303
        %v8425 = vpop.f32.mrf.mxu0
        %v8426 = vpop.f32.mrf.mxu0
        %v8427 = vadd.f32 0.0, %v8426
        %8428 = vmatmul.bf16.gmra.mxu0 %v8311
        %v8429 = vpop.f32.mrf.mxu0
        %v8430 = vadd.f32 0.0, %v8429
        %v8431 = vpop.f32.mrf.mxu0
        %8432 = vdwg.mxu0
        %v8433 = vadd.f32 %v8091, %v8382
        %v8434 = vadd.f32 %v8092, %v8384
        %v8435 = vadd.f32 %v8093, %v8388
        %v8436 = vadd.f32 %v8094, %v8391
        %v8437 = vadd.f32 %v8095, %v8395
        %v8438 = vadd.f32 %v8096, %v8397
        %v8439 = vadd.f32 %v8097, %v8401
        %v8440 = vadd.f32 %v8098, %v8404
        %v8441 = vadd.f32 %v8099, %v8408
        %v8442 = vadd.f32 %v8100, %v8410
        %v8443 = vadd.f32 %v8101, %v8414
        %v8444 = vadd.f32 %v8102, %v8417
        %v8445 = vadd.f32 %v8103, %v8421
        %v8446 = vadd.f32 %v8104, %v8423
        %v8447 = vadd.f32 %v8105, %v8427
        %v8448 = vadd.f32 %v8106, %v8430
        %v8449 = vld [vmem:[#allocation3 + $0x18] sm:$0xe]
        %s8450 = scalar_lea.vmem %s2, 512
        %v8451 = vld [vmem:[%s8450] sm:$0xf]
        %v8452 = vld [vmem:[%s8450 + $0x4] sm:$0xf]
        %v8453 = vld [vmem:[%s8450 + $0x8] sm:$0xf]
        %v8454 = vld [vmem:[%s8450 + $0xc] sm:$0xf]
        %v8455 = vld [vmem:[%s8450 + $0x10] sm:$0xf]
        %v8456 = vld [vmem:[%s8450 + $0x14] sm:$0xf]
        %v8457 = vld [vmem:[%s8450 + $0x18] sm:$0xf]
        %v8458 = vld [vmem:[%s8450 + $0x1c] sm:$0xf]
        %v8459 = vld [vmem:[%s8450 + $0x20] sm:$0xf]
        %v8460 = vld [vmem:[%s8450 + $0x24] sm:$0xf]
        %v8461 = vld [vmem:[%s8450 + $0x28] sm:$0xf]
        %v8462 = vld [vmem:[%s8450 + $0x2c] sm:$0xf]
        %v8463 = vld [vmem:[%s8450 + $0x30] sm:$0xf]
        %v8464 = vld [vmem:[%s8450 + $0x34] sm:$0xf]
        %v8465 = vld [vmem:[%s8450 + $0x38] sm:$0xf]
        %v8466 = vld [vmem:[%s8450 + $0x3c] sm:$0xf]
        %v8468 = vunpack.c.l.b16 %v8449
        %v8469 = vpack.c.b16 %v8175, %v8468
        %v8470 = vrot.slane %v8469, 1
        %v8471 = vrot.slane %v8200, 1
        %v8472 = vsel %vm875, %v8470, %v8471
        %v8473 = vrot.slane %v8201, 1
        %v8474 = vsel %vm875, %v8471, %v8473
        %v8475 = vrot.slane %v8202, 1
        %v8476 = vsel %vm875, %v8473, %v8475
        %v8477 = vrot.slane %v8203, 1
        %v8478 = vsel %vm875, %v8475, %v8477
        %v8479 = vrot.slane %v8204, 1
        %v8480 = vsel %vm875, %v8477, %v8479
        %v8481 = vrot.slane %v8205, 1
        %v8482 = vsel %vm875, %v8479, %v8481
        %v8483 = vrot.slane %v8206, 1
        %v8484 = vsel %vm875, %v8481, %v8483
        %v8485 = vrot.slane %v8207, 1
        %v8486 = vsel %vm875, %v8483, %v8485
        %v8487 = vrot.slane %v8208, 1
        %v8488 = vsel %vm875, %v8485, %v8487
        %v8489 = vrot.slane %v8209, 1
        %v8490 = vsel %vm875, %v8487, %v8489
        %v8491 = vrot.slane %v8210, 1
        %v8492 = vsel %vm875, %v8489, %v8491
        %v8493 = vrot.slane %v8211, 1
        %v8494 = vsel %vm875, %v8491, %v8493
        %v8523 = vunpack.c.l.b16 %v8451
        %v8524 = vunpack.c.l.b16 %v8452
        %v8525 = vunpack.c.l.b16 %v8453
        %v8526 = vunpack.c.l.b16 %v8454
        %v8527 = vunpack.c.l.b16 %v8455
        %v8528 = vunpack.c.l.b16 %v8456
        %v8529 = vunpack.c.l.b16 %v8457
        %v8530 = vunpack.c.l.b16 %v8458
        %v8531 = vunpack.c.l.b16 %v8459
        %v8532 = vunpack.c.l.b16 %v8460
        %v8533 = vunpack.c.l.b16 %v8461
        %v8534 = vunpack.c.l.b16 %v8462
        %v8535 = vunpack.c.l.b16 %v8463
        %v8536 = vunpack.c.l.b16 %v8464
        %v8537 = vunpack.c.l.b16 %v8465
        %v8538 = vunpack.c.l.b16 %v8466
        %v8539 = vpack.c.b16 %v8524, %v8523
        %v8540 = vpack.c.b16 %v8526, %v8525
        %v8541 = vpack.c.b16 %v8528, %v8527
        %v8542 = vpack.c.b16 %v8530, %v8529
        %v8543 = vpack.c.b16 %v8532, %v8531
        %v8544 = vpack.c.b16 %v8534, %v8533
        %v8545 = vpack.c.b16 %v8536, %v8535
        %v8546 = vpack.c.b16 %v8538, %v8537
        %8555 = vmatpush.bf16.msra.mxu0 %v8546
        %8556 = vmatpush.bf16.msra.mxu0 %v8545
        %8557 = vmatpush.bf16.msra.mxu0 %v8544
        %8558 = vmatpush.bf16.msra.mxu0 %v8543
        %8559 = vmatpush.bf16.msra.mxu0 %v8542
        %8560 = vmatpush.bf16.msra.mxu0 %v8541
        %8561 = vmatpush.bf16.msra.mxu0 %v8540
        %8562 = vmatpush.bf16.msra.mxu0 %v8539
        %8563 = vmatmul.bf16.gmra.mxu0 %v8472
        %v8564 = vpop.f32.mrf.mxu0
        %v8565 = vadd.f32 0.0, %v8564
        %v8566 = vpop.f32.mrf.mxu0
        %v8567 = vadd.f32 0.0, %v8566
        %8568 = vmatmul.bf16.gmra.mxu0 %v8474
        %v8569 = vpop.f32.mrf.mxu0
        %v8570 = vpop.f32.mrf.mxu0
        %v8571 = vadd.f32 0.0, %v8570
        %8572 = vmatmul.bf16.gmra.mxu0 %v8476
        %v8573 = vpop.f32.mrf.mxu0
        %v8574 = vadd.f32 0.0, %v8573
        %v8575 = vpop.f32.mrf.mxu0
        %8576 = vmatmul.bf16.gmra.mxu0 %v8478
        %v8577 = vpop.f32.mrf.mxu0
        %v8578 = vadd.f32 0.0, %v8577
        %v8579 = vpop.f32.mrf.mxu0
        %v8580 = vadd.f32 0.0, %v8579
        %8581 = vmatmul.bf16.gmra.mxu0 %v8480
        %v8582 = vpop.f32.mrf.mxu0
        %v8583 = vpop.f32.mrf.mxu0
        %v8584 = vadd.f32 0.0, %v8583
        %8585 = vmatmul.bf16.gmra.mxu0 %v8482
        %v8586 = vpop.f32.mrf.mxu0
        %v8587 = vadd.f32 0.0, %v8586
        %v8588 = vpop.f32.mrf.mxu0
        %8589 = vmatmul.bf16.gmra.mxu0 %v8484
        %v8590 = vpop.f32.mrf.mxu0
        %v8591 = vadd.f32 0.0, %v8590
        %v8592 = vpop.f32.mrf.mxu0
        %v8593 = vadd.f32 0.0, %v8592
        %8594 = vmatmul.bf16.gmra.mxu0 %v8486
        %v8595 = vpop.f32.mrf.mxu0
        %v8596 = vpop.f32.mrf.mxu0
        %v8597 = vadd.f32 0.0, %v8596
        %8598 = vmatmul.bf16.gmra.mxu0 %v8488
        %v8599 = vpop.f32.mrf.mxu0
        %v8600 = vadd.f32 0.0, %v8599
        %v8601 = vpop.f32.mrf.mxu0
        %8602 = vmatmul.bf16.gmra.mxu0 %v8490
        %v8603 = vpop.f32.mrf.mxu0
        %v8604 = vadd.f32 0.0, %v8603
        %v8605 = vpop.f32.mrf.mxu0
        %v8606 = vadd.f32 0.0, %v8605
        %8607 = vmatmul.bf16.gmra.mxu0 %v8492
        %v8608 = vpop.f32.mrf.mxu0
        %v8609 = vpop.f32.mrf.mxu0
        %v8610 = vadd.f32 0.0, %v8609
        %8611 = vmatmul.bf16.gmra.mxu0 %v8494
        %v8612 = vpop.f32.mrf.mxu0
        %v8613 = vadd.f32 0.0, %v8612
        %v8614 = vpop.f32.mrf.mxu0
        %8615 = vdwg.mxu0
        %v8616 = vadd.f32 %v8433, %v8565
        %v8617 = vadd.f32 %v8434, %v8567
        %v8618 = vadd.f32 %v8435, %v8571
        %v8619 = vadd.f32 %v8436, %v8574
        %v8620 = vadd.f32 %v8437, %v8578
        %v8621 = vadd.f32 %v8438, %v8580
        %v8622 = vadd.f32 %v8439, %v8584
        %v8623 = vadd.f32 %v8440, %v8587
        %v8624 = vadd.f32 %v8441, %v8591
        %v8625 = vadd.f32 %v8442, %v8593
        %v8626 = vadd.f32 %v8443, %v8597
        %v8627 = vadd.f32 %v8444, %v8600
        %v8628 = vadd.f32 %v8445, %v8604
        %v8629 = vadd.f32 %v8446, %v8606
        %v8630 = vadd.f32 %v8447, %v8610
        %v8631 = vadd.f32 %v8448, %v8613
        %v8632 = vmax.f32 %v8616, 0.0
        %v8633 = vmax.f32 %v8617, 0.0
        %v8634 = vmax.f32 %v8618, 0.0
        %v8635 = vmax.f32 %v8619, 0.0
        %v8636 = vmax.f32 %v8620, 0.0
        %v8637 = vmax.f32 %v8621, 0.0
        %v8638 = vmax.f32 %v8622, 0.0
        %v8639 = vmax.f32 %v8623, 0.0
        %v8640 = vmax.f32 %v8624, 0.0
        %v8641 = vmax.f32 %v8625, 0.0
        %v8642 = vmax.f32 %v8626, 0.0
        %v8643 = vmax.f32 %v8627, 0.0
        %v8644 = vmax.f32 %v8628, 0.0
        %v8645 = vmax.f32 %v8629, 0.0
        %v8646 = vmax.f32 %v8630, 0.0
        %v8647 = vmax.f32 %v8631, 0.0
        %v8648 = vld [vmem:[%s228] sm:$0xff]
        %v8649 = vld [vmem:[%s228 + $0x8] sm:$0xff]
        %v8650 = vld [vmem:[%s228 + $0x10] sm:$0xff]
        %v8651 = vld [vmem:[%s228 + $0x18] sm:$0xff]
        %v8652 = vld [vmem:[%s228 + $0x20] sm:$0xff]
        %v8653 = vld [vmem:[%s228 + $0x28] sm:$0xff]
        %v8654 = vld [vmem:[%s228 + $0x30] sm:$0xff]
        %v8655 = vld [vmem:[%s228 + $0x38] sm:$0xff]
        %v8656 = vld [vmem:[%s228 + $0x40] sm:$0xff]
        %v8657 = vld [vmem:[%s228 + $0x48] sm:$0xff]
        %v8658 = vld [vmem:[%s228 + $0x50] sm:$0xff]
        %v8659 = vld [vmem:[%s228 + $0x58] sm:$0xff]
        %v8660 = vld [vmem:[%s228 + $0x60] sm:$0xff]
        %v8661 = vld [vmem:[%s228 + $0x68] sm:$0xff]
        %v8662 = vld [vmem:[%s228 + $0x70] sm:$0xff]
        %v8663 = vld [vmem:[%s228 + $0x78] sm:$0xff]
        %v8664 = vadd.f32 %v8648, %v8632
        %v8665 = vadd.f32 %v8649, %v8633
        %v8666 = vadd.f32 %v8650, %v8634
        %v8667 = vadd.f32 %v8651, %v8635
        %v8668 = vadd.f32 %v8652, %v8636
        %v8669 = vadd.f32 %v8653, %v8637
        %v8670 = vadd.f32 %v8654, %v8638
        %v8671 = vadd.f32 %v8655, %v8639
        %v8672 = vadd.f32 %v8656, %v8640
        %v8673 = vadd.f32 %v8657, %v8641
        %v8674 = vadd.f32 %v8658, %v8642
        %v8675 = vadd.f32 %v8659, %v8643
        %v8676 = vadd.f32 %v8660, %v8644
        %v8677 = vadd.f32 %v8661, %v8645
        %v8678 = vadd.f32 %v8662, %v8646
        %v8679 = vadd.f32 %v8663, %v8647
        %8680 = vst [vmem:[%s218] sm:$0xff] %v8664
        %8681 = vst [vmem:[%s218 + $0x8] sm:$0xff] %v8665
        %8682 = vst [vmem:[%s218 + $0x10] sm:$0xff] %v8666
        %8683 = vst [vmem:[%s218 + $0x18] sm:$0xff] %v8667
        %8684 = vst [vmem:[%s218 + $0x20] sm:$0xff] %v8668
        %8685 = vst [vmem:[%s218 + $0x28] sm:$0xff] %v8669
        %8686 = vst [vmem:[%s218 + $0x30] sm:$0xff] %v8670
        %8687 = vst [vmem:[%s218 + $0x38] sm:$0xff] %v8671
        %8688 = vst [vmem:[%s218 + $0x40] sm:$0xff] %v8672
        %8689 = vst [vmem:[%s218 + $0x48] sm:$0xff] %v8673
        %8690 = vst [vmem:[%s218 + $0x50] sm:$0xff] %v8674
        %8691 = vst [vmem:[%s218 + $0x58] sm:$0xff] %v8675
        %8692 = vst [vmem:[%s218 + $0x60] sm:$0xff] %v8676
        %8693 = vst [vmem:[%s218 + $0x68] sm:$0xff] %v8677
        %8694 = vst [vmem:[%s218 + $0x70] sm:$0xff] %v8678
        %8695 = vst [vmem:[%s218 + $0x78] sm:$0xff] %v8679
        %v8696 = vld [vmem:[#allocation3 + $0x60] sm:$0xf]
        %v8697 = vld [vmem:[#allocation3 + $0x64] sm:$0xf]
        %v8698 = vld [vmem:[#allocation3 + $0x68] sm:$0xf]
        %v8699 = vld [vmem:[#allocation3 + $0x6c] sm:$0xf]
        %v8700 = vld [vmem:[#allocation3 + $0x70] sm:$0xf]
        %v8701 = vld [vmem:[#allocation3 + $0x74] sm:$0xf]
        %v8702 = vld [vmem:[#allocation3 + $0x78] sm:$0xf]
        %v8703 = vld [vmem:[#allocation3 + $0x7c] sm:$0xf]
        %v8704 = vld [vmem:[#allocation3 + $0x80] sm:$0xf]
        %v8705 = vld [vmem:[#allocation3 + $0x84] sm:$0xf]
        %v8706 = vld [vmem:[#allocation3 + $0x88] sm:$0xf]
        %v8707 = vld [vmem:[#allocation3 + $0x8c] sm:$0xf]
        %v8708 = vld [vmem:[#allocation3 + $0x90] sm:$0xf]
        %v8709 = vld [vmem:[#allocation3 + $0x94] sm:$0xf]
        %v8710 = vld [vmem:[#allocation3 + $0x98] sm:$0xf]
        %v8711 = vld [vmem:[#allocation3 + $0x9c] sm:$0xf]
        %v8712 = vld [vmem:[#allocation3 + $0xa0] sm:$0xf]
        %v8713 = vld [vmem:[#allocation3 + $0xa4] sm:$0xf]
        %v8714 = vld [vmem:[#allocation3 + $0xa8] sm:$0xf]
        %v8715 = vld [vmem:[#allocation3 + $0xac] sm:$0xf]
        %v8716 = vld [vmem:[#allocation3 + $0xb0] sm:$0xf]
        %v8717 = vld [vmem:[#allocation3 + $0xb4] sm:$0xf]
        %v8718 = vld [vmem:[#allocation3 + $0xb8] sm:$0xf]
        %v8719 = vld [vmem:[#allocation3 + $0xbc] sm:$0xf]
        %v8720 = vld [vmem:[%s2] sm:$0xf]
        %v8721 = vld [vmem:[%s2 + $0x4] sm:$0xf]
        %v8722 = vld [vmem:[%s2 + $0x8] sm:$0xf]
        %v8723 = vld [vmem:[%s2 + $0xc] sm:$0xf]
        %v8724 = vld [vmem:[%s2 + $0x10] sm:$0xf]
        %v8725 = vld [vmem:[%s2 + $0x14] sm:$0xf]
        %v8726 = vld [vmem:[%s2 + $0x18] sm:$0xf]
        %v8727 = vld [vmem:[%s2 + $0x1c] sm:$0xf]
        %v8728 = vld [vmem:[%s2 + $0x20] sm:$0xf]
        %v8729 = vld [vmem:[%s2 + $0x24] sm:$0xf]
        %v8730 = vld [vmem:[%s2 + $0x28] sm:$0xf]
        %v8731 = vld [vmem:[%s2 + $0x2c] sm:$0xf]
        %v8732 = vld [vmem:[%s2 + $0x30] sm:$0xf]
        %v8733 = vld [vmem:[%s2 + $0x34] sm:$0xf]
        %v8734 = vld [vmem:[%s2 + $0x38] sm:$0xf]
        %v8735 = vld [vmem:[%s2 + $0x3c] sm:$0xf]
        %v8736 = vld [vmem:[#allocation3 + $0xc0] sm:$0x1]
        %v8737 = vld [vmem:[%s6501] sm:$0xf]
        %v8738 = vld [vmem:[%s6501 + $0x4] sm:$0xf]
        %v8739 = vld [vmem:[%s6501 + $0x8] sm:$0xf]
        %v8740 = vld [vmem:[%s6501 + $0xc] sm:$0xf]
        %v8741 = vld [vmem:[%s6501 + $0x10] sm:$0xf]
        %v8742 = vld [vmem:[%s6501 + $0x14] sm:$0xf]
        %v8743 = vld [vmem:[%s6501 + $0x18] sm:$0xf]
        %v8744 = vld [vmem:[%s6501 + $0x1c] sm:$0xf]
        %v8745 = vld [vmem:[%s6501 + $0x20] sm:$0xf]
        %v8746 = vld [vmem:[%s6501 + $0x24] sm:$0xf]
        %v8747 = vld [vmem:[%s6501 + $0x28] sm:$0xf]
        %v8748 = vld [vmem:[%s6501 + $0x2c] sm:$0xf]
        %v8749 = vld [vmem:[%s6501 + $0x30] sm:$0xf]
        %v8750 = vld [vmem:[%s6501 + $0x34] sm:$0xf]
        %v8751 = vld [vmem:[%s6501 + $0x38] sm:$0xf]
        %v8752 = vld [vmem:[%s6501 + $0x3c] sm:$0xf]
        %v8778 = vunpack.c.l.b16 %v8696
        %v8779 = vunpack.c.l.b16 %v8697
        %v8780 = vunpack.c.l.b16 %v8698
        %v8781 = vunpack.c.l.b16 %v8699
        %v8782 = vunpack.c.l.b16 %v8700
        %v8783 = vunpack.c.l.b16 %v8701
        %v8784 = vunpack.c.l.b16 %v8702
        %v8785 = vunpack.c.l.b16 %v8703
        %v8786 = vunpack.c.l.b16 %v8704
        %v8787 = vunpack.c.l.b16 %v8705
        %v8788 = vunpack.c.l.b16 %v8706
        %v8789 = vunpack.c.l.b16 %v8707
        %v8790 = vunpack.c.l.b16 %v8708
        %v8791 = vunpack.c.l.b16 %v8709
        %v8792 = vunpack.c.l.b16 %v8710
        %v8793 = vunpack.c.l.b16 %v8711
        %v8794 = vunpack.c.l.b16 %v8712
        %v8795 = vunpack.c.l.b16 %v8713
        %v8796 = vunpack.c.l.b16 %v8714
        %v8797 = vunpack.c.l.b16 %v8715
        %v8798 = vunpack.c.l.b16 %v8716
        %v8799 = vunpack.c.l.b16 %v8717
        %v8800 = vunpack.c.l.b16 %v8718
        %v8801 = vunpack.c.l.b16 %v8719
        %v8802 = vunpack.c.l.b16 %v8736
        %v8803 = vpack.c.b16 %v8779, %v8778
        %v8804 = vpack.c.b16 %v8781, %v8780
        %v8805 = vpack.c.b16 %v8783, %v8782
        %v8806 = vpack.c.b16 %v8785, %v8784
        %v8807 = vpack.c.b16 %v8787, %v8786
        %v8808 = vpack.c.b16 %v8789, %v8788
        %v8809 = vpack.c.b16 %v8791, %v8790
        %v8810 = vpack.c.b16 %v8793, %v8792
        %v8811 = vpack.c.b16 %v8795, %v8794
        %v8812 = vpack.c.b16 %v8797, %v8796
        %v8813 = vpack.c.b16 %v8799, %v8798
        %v8814 = vpack.c.b16 %v8801, %v8800
        %v8815 = vpack.c.b16 %v8802, %v8802
        %v8817 = vshrl.u32 %v8803, 16
        %v8819 = vshll.u32 %v8803, 16
        %v8821 = vrot.slane %v8819, 1
        %v8822 = vor.u32 %v8817, %v8821
        %v8824 = vshll.u32 %v8804, 16
        %v8826 = vrot.slane %v8824, 1
        %v8827 = vsel %vm555, %v8822, %v8826
        %v8828 = vshrl.u32 %v8804, 16
        %v8830 = vor.u32 %v8828, %v8826
        %v8832 = vshll.u32 %v8805, 16
        %v8834 = vrot.slane %v8832, 1
        %v8835 = vsel %vm555, %v8830, %v8834
        %v8836 = vshrl.u32 %v8805, 16
        %v8838 = vor.u32 %v8836, %v8834
        %v8840 = vshll.u32 %v8806, 16
        %v8842 = vrot.slane %v8840, 1
        %v8843 = vsel %vm555, %v8838, %v8842
        %v8844 = vshrl.u32 %v8806, 16
        %v8846 = vor.u32 %v8844, %v8842
        %v8848 = vshll.u32 %v8807, 16
        %v8850 = vrot.slane %v8848, 1
        %v8851 = vsel %vm555, %v8846, %v8850
        %v8852 = vshrl.u32 %v8807, 16
        %v8854 = vor.u32 %v8852, %v8850
        %v8856 = vshll.u32 %v8808, 16
        %v8858 = vrot.slane %v8856, 1
        %v8859 = vsel %vm555, %v8854, %v8858
        %v8860 = vshrl.u32 %v8808, 16
        %v8862 = vor.u32 %v8860, %v8858
        %v8864 = vshll.u32 %v8809, 16
        %v8866 = vrot.slane %v8864, 1
        %v8867 = vsel %vm555, %v8862, %v8866
        %v8868 = vshrl.u32 %v8809, 16
        %v8870 = vor.u32 %v8868, %v8866
        %v8872 = vshll.u32 %v8810, 16
        %v8874 = vrot.slane %v8872, 1
        %v8875 = vsel %vm555, %v8870, %v8874
        %v8876 = vshrl.u32 %v8810, 16
        %v8878 = vor.u32 %v8876, %v8874
        %v8880 = vshll.u32 %v8811, 16
        %v8882 = vrot.slane %v8880, 1
        %v8883 = vsel %vm555, %v8878, %v8882
        %v8884 = vshrl.u32 %v8811, 16
        %v8886 = vor.u32 %v8884, %v8882
        %v8888 = vshll.u32 %v8812, 16
        %v8890 = vrot.slane %v8888, 1
        %v8891 = vsel %vm555, %v8886, %v8890
        %v8892 = vshrl.u32 %v8812, 16
        %v8894 = vor.u32 %v8892, %v8890
        %v8896 = vshll.u32 %v8813, 16
        %v8898 = vrot.slane %v8896, 1
        %v8899 = vsel %vm555, %v8894, %v8898
        %v8900 = vshrl.u32 %v8813, 16
        %v8902 = vor.u32 %v8900, %v8898
        %v8904 = vshll.u32 %v8814, 16
        %v8906 = vrot.slane %v8904, 1
        %v8907 = vsel %vm555, %v8902, %v8906
        %v8908 = vshrl.u32 %v8814, 16
        %v8910 = vor.u32 %v8908, %v8906
        %v8912 = vshll.u32 %v8815, 16
        %v8914 = vrot.slane %v8912, 1
        %v8915 = vsel %vm555, %v8910, %v8914
        %v8944 = vunpack.c.l.b16 %v8737
        %v8945 = vunpack.c.l.b16 %v8738
        %v8946 = vunpack.c.l.b16 %v8739
        %v8947 = vunpack.c.l.b16 %v8740
        %v8948 = vunpack.c.l.b16 %v8741
        %v8949 = vunpack.c.l.b16 %v8742
        %v8950 = vunpack.c.l.b16 %v8743
        %v8951 = vunpack.c.l.b16 %v8744
        %v8952 = vunpack.c.l.b16 %v8745
        %v8953 = vunpack.c.l.b16 %v8746
        %v8954 = vunpack.c.l.b16 %v8747
        %v8955 = vunpack.c.l.b16 %v8748
        %v8956 = vunpack.c.l.b16 %v8749
        %v8957 = vunpack.c.l.b16 %v8750
        %v8958 = vunpack.c.l.b16 %v8751
        %v8959 = vunpack.c.l.b16 %v8752
        %v8960 = vpack.c.b16 %v8945, %v8944
        %v8961 = vpack.c.b16 %v8947, %v8946
        %v8962 = vpack.c.b16 %v8949, %v8948
        %v8963 = vpack.c.b16 %v8951, %v8950
        %v8964 = vpack.c.b16 %v8953, %v8952
        %v8965 = vpack.c.b16 %v8955, %v8954
        %v8966 = vpack.c.b16 %v8957, %v8956
        %v8967 = vpack.c.b16 %v8959, %v8958
        %8976 = vmatpush.bf16.msra.mxu0 %v8967
        %8977 = vmatpush.bf16.msra.mxu0 %v8966
        %8978 = vmatpush.bf16.msra.mxu0 %v8965
        %8979 = vmatpush.bf16.msra.mxu0 %v8964
        %8980 = vmatpush.bf16.msra.mxu0 %v8963
        %8981 = vmatpush.bf16.msra.mxu0 %v8962
        %8982 = vmatpush.bf16.msra.mxu0 %v8961
        %8983 = vmatpush.bf16.msra.mxu0 %v8960
        %8984 = vmatmul.bf16.gmra.mxu0 %v8827
        %v8985 = vpop.f32.mrf.mxu0
        %v8986 = vadd.f32 0.0, %v8985
        %v8987 = vpop.f32.mrf.mxu0
        %v8988 = vadd.f32 0.0, %v8987
        %8989 = vmatmul.bf16.gmra.mxu0 %v8835
        %v8990 = vpop.f32.mrf.mxu0
        %v8991 = vpop.f32.mrf.mxu0
        %v8992 = vadd.f32 0.0, %v8991
        %8993 = vmatmul.bf16.gmra.mxu0 %v8843
        %v8994 = vpop.f32.mrf.mxu0
        %v8995 = vadd.f32 0.0, %v8994
        %v8996 = vpop.f32.mrf.mxu0
        %8997 = vmatmul.bf16.gmra.mxu0 %v8851
        %v8998 = vpop.f32.mrf.mxu0
        %v8999 = vadd.f32 0.0, %v8998
        %v9000 = vpop.f32.mrf.mxu0
        %v9001 = vadd.f32 0.0, %v9000
        %9002 = vmatmul.bf16.gmra.mxu0 %v8859
        %v9003 = vpop.f32.mrf.mxu0
        %v9004 = vpop.f32.mrf.mxu0
        %v9005 = vadd.f32 0.0, %v9004
        %9006 = vmatmul.bf16.gmra.mxu0 %v8867
        %v9007 = vpop.f32.mrf.mxu0
        %v9008 = vadd.f32 0.0, %v9007
        %v9009 = vpop.f32.mrf.mxu0
        %9010 = vmatmul.bf16.gmra.mxu0 %v8875
        %v9011 = vpop.f32.mrf.mxu0
        %v9012 = vadd.f32 0.0, %v9011
        %v9013 = vpop.f32.mrf.mxu0
        %v9014 = vadd.f32 0.0, %v9013
        %9015 = vmatmul.bf16.gmra.mxu0 %v8883
        %v9016 = vpop.f32.mrf.mxu0
        %v9017 = vpop.f32.mrf.mxu0
        %v9018 = vadd.f32 0.0, %v9017
        %9019 = vmatmul.bf16.gmra.mxu0 %v8891
        %v9020 = vpop.f32.mrf.mxu0
        %v9021 = vadd.f32 0.0, %v9020
        %v9022 = vpop.f32.mrf.mxu0
        %9023 = vmatmul.bf16.gmra.mxu0 %v8899
        %v9024 = vpop.f32.mrf.mxu0
        %v9025 = vadd.f32 0.0, %v9024
        %v9026 = vpop.f32.mrf.mxu0
        %v9027 = vadd.f32 0.0, %v9026
        %9028 = vmatmul.bf16.gmra.mxu0 %v8907
        %v9029 = vpop.f32.mrf.mxu0
        %v9030 = vpop.f32.mrf.mxu0
        %v9031 = vadd.f32 0.0, %v9030
        %9032 = vmatmul.bf16.gmra.mxu0 %v8915
        %v9033 = vpop.f32.mrf.mxu0
        %v9034 = vadd.f32 0.0, %v9033
        %v9035 = vpop.f32.mrf.mxu0
        %9036 = vdwg.mxu0
        %v9065 = vunpack.c.l.b16 %v8720
        %v9066 = vunpack.c.l.b16 %v8721
        %v9067 = vunpack.c.l.b16 %v8722
        %v9068 = vunpack.c.l.b16 %v8723
        %v9069 = vunpack.c.l.b16 %v8724
        %v9070 = vunpack.c.l.b16 %v8725
        %v9071 = vunpack.c.l.b16 %v8726
        %v9072 = vunpack.c.l.b16 %v8727
        %v9073 = vunpack.c.l.b16 %v8728
        %v9074 = vunpack.c.l.b16 %v8729
        %v9075 = vunpack.c.l.b16 %v8730
        %v9076 = vunpack.c.l.b16 %v8731
        %v9077 = vunpack.c.l.b16 %v8732
        %v9078 = vunpack.c.l.b16 %v8733
        %v9079 = vunpack.c.l.b16 %v8734
        %v9080 = vunpack.c.l.b16 %v8735
        %v9081 = vpack.c.b16 %v9066, %v9065
        %v9082 = vpack.c.b16 %v9068, %v9067
        %v9083 = vpack.c.b16 %v9070, %v9069
        %v9084 = vpack.c.b16 %v9072, %v9071
        %v9085 = vpack.c.b16 %v9074, %v9073
        %v9086 = vpack.c.b16 %v9076, %v9075
        %v9087 = vpack.c.b16 %v9078, %v9077
        %v9088 = vpack.c.b16 %v9080, %v9079
        %9097 = vmatpush.bf16.msra.mxu0 %v9088
        %9098 = vmatpush.bf16.msra.mxu0 %v9087
        %9099 = vmatpush.bf16.msra.mxu0 %v9086
        %9100 = vmatpush.bf16.msra.mxu0 %v9085
        %9101 = vmatpush.bf16.msra.mxu0 %v9084
        %9102 = vmatpush.bf16.msra.mxu0 %v9083
        %9103 = vmatpush.bf16.msra.mxu0 %v9082
        %9104 = vmatpush.bf16.msra.mxu0 %v9081
        %9105 = vmatmul.bf16.gmra.mxu0 %v8803
        %v9106 = vpop.f32.mrf.mxu0
        %v9107 = vadd.f32 %v8986, %v9106
        %v9108 = vpop.f32.mrf.mxu0
        %v9109 = vadd.f32 %v8988, %v9108
        %9110 = vmatmul.bf16.gmra.mxu0 %v8804
        %v9111 = vpop.f32.mrf.mxu0
        %v9112 = vpop.f32.mrf.mxu0
        %v9113 = vadd.f32 %v8992, %v9112
        %9114 = vmatmul.bf16.gmra.mxu0 %v8805
        %v9115 = vpop.f32.mrf.mxu0
        %v9116 = vadd.f32 %v8995, %v9115
        %v9117 = vpop.f32.mrf.mxu0
        %9118 = vmatmul.bf16.gmra.mxu0 %v8806
        %v9119 = vpop.f32.mrf.mxu0
        %v9120 = vadd.f32 %v8999, %v9119
        %v9121 = vpop.f32.mrf.mxu0
        %v9122 = vadd.f32 %v9001, %v9121
        %9123 = vmatmul.bf16.gmra.mxu0 %v8807
        %v9124 = vpop.f32.mrf.mxu0
        %v9125 = vpop.f32.mrf.mxu0
        %v9126 = vadd.f32 %v9005, %v9125
        %9127 = vmatmul.bf16.gmra.mxu0 %v8808
        %v9128 = vpop.f32.mrf.mxu0
        %v9129 = vadd.f32 %v9008, %v9128
        %v9130 = vpop.f32.mrf.mxu0
        %9131 = vmatmul.bf16.gmra.mxu0 %v8809
        %v9132 = vpop.f32.mrf.mxu0
        %v9133 = vadd.f32 %v9012, %v9132
        %v9134 = vpop.f32.mrf.mxu0
        %v9135 = vadd.f32 %v9014, %v9134
        %9136 = vmatmul.bf16.gmra.mxu0 %v8810
        %v9137 = vpop.f32.mrf.mxu0
        %v9138 = vpop.f32.mrf.mxu0
        %v9139 = vadd.f32 %v9018, %v9138
        %9140 = vmatmul.bf16.gmra.mxu0 %v8811
        %v9141 = vpop.f32.mrf.mxu0
        %v9142 = vadd.f32 %v9021, %v9141
        %v9143 = vpop.f32.mrf.mxu0
        %9144 = vmatmul.bf16.gmra.mxu0 %v8812
        %v9145 = vpop.f32.mrf.mxu0
        %v9146 = vadd.f32 %v9025, %v9145
        %v9147 = vpop.f32.mrf.mxu0
        %v9148 = vadd.f32 %v9027, %v9147
        %9149 = vmatmul.bf16.gmra.mxu0 %v8813
        %v9150 = vpop.f32.mrf.mxu0
        %v9151 = vpop.f32.mrf.mxu0
        %v9152 = vadd.f32 %v9031, %v9151
        %9153 = vmatmul.bf16.gmra.mxu0 %v8814
        %v9154 = vpop.f32.mrf.mxu0
        %v9155 = vadd.f32 %v9034, %v9154
        %v9156 = vpop.f32.mrf.mxu0
        %9157 = vdwg.mxu0
        %v9158 = vld [vmem:[#allocation3 + $0x60] sm:$0xe]
        %v9159 = vld [vmem:[%s6924] sm:$0xf]
        %v9160 = vld [vmem:[%s6924 + $0x4] sm:$0xf]
        %v9161 = vld [vmem:[%s6924 + $0x8] sm:$0xf]
        %v9162 = vld [vmem:[%s6924 + $0xc] sm:$0xf]
        %v9163 = vld [vmem:[%s6924 + $0x10] sm:$0xf]
        %v9164 = vld [vmem:[%s6924 + $0x14] sm:$0xf]
        %v9165 = vld [vmem:[%s6924 + $0x18] sm:$0xf]
        %v9166 = vld [vmem:[%s6924 + $0x1c] sm:$0xf]
        %v9167 = vld [vmem:[%s6924 + $0x20] sm:$0xf]
        %v9168 = vld [vmem:[%s6924 + $0x24] sm:$0xf]
        %v9169 = vld [vmem:[%s6924 + $0x28] sm:$0xf]
        %v9170 = vld [vmem:[%s6924 + $0x2c] sm:$0xf]
        %v9171 = vld [vmem:[%s6924 + $0x30] sm:$0xf]
        %v9172 = vld [vmem:[%s6924 + $0x34] sm:$0xf]
        %v9173 = vld [vmem:[%s6924 + $0x38] sm:$0xf]
        %v9174 = vld [vmem:[%s6924 + $0x3c] sm:$0xf]
        %v9176 = vunpack.c.l.b16 %v9158
        %v9177 = vpack.c.b16 %v8779, %v9176
        %v9178 = vrot.slane %v9177, 1
        %v9179 = vrot.slane %v8804, 1
        %v9180 = vsel %vm875, %v9178, %v9179
        %v9181 = vrot.slane %v8805, 1
        %v9182 = vsel %vm875, %v9179, %v9181
        %v9183 = vrot.slane %v8806, 1
        %v9184 = vsel %vm875, %v9181, %v9183
        %v9185 = vrot.slane %v8807, 1
        %v9186 = vsel %vm875, %v9183, %v9185
        %v9187 = vrot.slane %v8808, 1
        %v9188 = vsel %vm875, %v9185, %v9187
        %v9189 = vrot.slane %v8809, 1
        %v9190 = vsel %vm875, %v9187, %v9189
        %v9191 = vrot.slane %v8810, 1
        %v9192 = vsel %vm875, %v9189, %v9191
        %v9193 = vrot.slane %v8811, 1
        %v9194 = vsel %vm875, %v9191, %v9193
        %v9195 = vrot.slane %v8812, 1
        %v9196 = vsel %vm875, %v9193, %v9195
        %v9197 = vrot.slane %v8813, 1
        %v9198 = vsel %vm875, %v9195, %v9197
        %v9199 = vrot.slane %v8814, 1
        %v9200 = vsel %vm875, %v9197, %v9199
        %v9201 = vrot.slane %v8815, 1
        %v9202 = vsel %vm875, %v9199, %v9201
        %v9231 = vunpack.c.l.b16 %v9159
        %v9232 = vunpack.c.l.b16 %v9160
        %v9233 = vunpack.c.l.b16 %v9161
        %v9234 = vunpack.c.l.b16 %v9162
        %v9235 = vunpack.c.l.b16 %v9163
        %v9236 = vunpack.c.l.b16 %v9164
        %v9237 = vunpack.c.l.b16 %v9165
        %v9238 = vunpack.c.l.b16 %v9166
        %v9239 = vunpack.c.l.b16 %v9167
        %v9240 = vunpack.c.l.b16 %v9168
        %v9241 = vunpack.c.l.b16 %v9169
        %v9242 = vunpack.c.l.b16 %v9170
        %v9243 = vunpack.c.l.b16 %v9171
        %v9244 = vunpack.c.l.b16 %v9172
        %v9245 = vunpack.c.l.b16 %v9173
        %v9246 = vunpack.c.l.b16 %v9174
        %v9247 = vpack.c.b16 %v9232, %v9231
        %v9248 = vpack.c.b16 %v9234, %v9233
        %v9249 = vpack.c.b16 %v9236, %v9235
        %v9250 = vpack.c.b16 %v9238, %v9237
        %v9251 = vpack.c.b16 %v9240, %v9239
        %v9252 = vpack.c.b16 %v9242, %v9241
        %v9253 = vpack.c.b16 %v9244, %v9243
        %v9254 = vpack.c.b16 %v9246, %v9245
        %9263 = vmatpush.bf16.msra.mxu0 %v9254
        %9264 = vmatpush.bf16.msra.mxu0 %v9253
        %9265 = vmatpush.bf16.msra.mxu0 %v9252
        %9266 = vmatpush.bf16.msra.mxu0 %v9251
        %9267 = vmatpush.bf16.msra.mxu0 %v9250
        %9268 = vmatpush.bf16.msra.mxu0 %v9249
        %9269 = vmatpush.bf16.msra.mxu0 %v9248
        %9270 = vmatpush.bf16.msra.mxu0 %v9247
        %9271 = vmatmul.bf16.gmra.mxu0 %v9180
        %v9272 = vpop.f32.mrf.mxu0
        %v9273 = vadd.f32 0.0, %v9272
        %v9274 = vpop.f32.mrf.mxu0
        %v9275 = vadd.f32 0.0, %v9274
        %9276 = vmatmul.bf16.gmra.mxu0 %v9182
        %v9277 = vpop.f32.mrf.mxu0
        %v9278 = vpop.f32.mrf.mxu0
        %v9279 = vadd.f32 0.0, %v9278
        %9280 = vmatmul.bf16.gmra.mxu0 %v9184
        %v9281 = vpop.f32.mrf.mxu0
        %v9282 = vadd.f32 0.0, %v9281
        %v9283 = vpop.f32.mrf.mxu0
        %9284 = vmatmul.bf16.gmra.mxu0 %v9186
        %v9285 = vpop.f32.mrf.mxu0
        %v9286 = vadd.f32 0.0, %v9285
        %v9287 = vpop.f32.mrf.mxu0
        %v9288 = vadd.f32 0.0, %v9287
        %9289 = vmatmul.bf16.gmra.mxu0 %v9188
        %v9290 = vpop.f32.mrf.mxu0
        %v9291 = vpop.f32.mrf.mxu0
        %v9292 = vadd.f32 0.0, %v9291
        %9293 = vmatmul.bf16.gmra.mxu0 %v9190
        %v9294 = vpop.f32.mrf.mxu0
        %v9295 = vadd.f32 0.0, %v9294
        %v9296 = vpop.f32.mrf.mxu0
        %9297 = vmatmul.bf16.gmra.mxu0 %v9192
        %v9298 = vpop.f32.mrf.mxu0
        %v9299 = vadd.f32 0.0, %v9298
        %v9300 = vpop.f32.mrf.mxu0
        %v9301 = vadd.f32 0.0, %v9300
        %9302 = vmatmul.bf16.gmra.mxu0 %v9194
        %v9303 = vpop.f32.mrf.mxu0
        %v9304 = vpop.f32.mrf.mxu0
        %v9305 = vadd.f32 0.0, %v9304
        %9306 = vmatmul.bf16.gmra.mxu0 %v9196
        %v9307 = vpop.f32.mrf.mxu0
        %v9308 = vadd.f32 0.0, %v9307
        %v9309 = vpop.f32.mrf.mxu0
        %9310 = vmatmul.bf16.gmra.mxu0 %v9198
        %v9311 = vpop.f32.mrf.mxu0
        %v9312 = vadd.f32 0.0, %v9311
        %v9313 = vpop.f32.mrf.mxu0
        %v9314 = vadd.f32 0.0, %v9313
        %9315 = vmatmul.bf16.gmra.mxu0 %v9200
        %v9316 = vpop.f32.mrf.mxu0
        %v9317 = vpop.f32.mrf.mxu0
        %v9318 = vadd.f32 0.0, %v9317
        %9319 = vmatmul.bf16.gmra.mxu0 %v9202
        %v9320 = vpop.f32.mrf.mxu0
        %v9321 = vadd.f32 0.0, %v9320
        %v9322 = vpop.f32.mrf.mxu0
        %9323 = vdwg.mxu0
        %v9324 = vadd.f32 %v9107, %v9273
        %v9325 = vadd.f32 %v9109, %v9275
        %v9326 = vadd.f32 %v9113, %v9279
        %v9327 = vadd.f32 %v9116, %v9282
        %v9328 = vadd.f32 %v9120, %v9286
        %v9329 = vadd.f32 %v9122, %v9288
        %v9330 = vadd.f32 %v9126, %v9292
        %v9331 = vadd.f32 %v9129, %v9295
        %v9332 = vadd.f32 %v9133, %v9299
        %v9333 = vadd.f32 %v9135, %v9301
        %v9334 = vadd.f32 %v9139, %v9305
        %v9335 = vadd.f32 %v9142, %v9308
        %v9336 = vadd.f32 %v9146, %v9312
        %v9337 = vadd.f32 %v9148, %v9314
        %v9338 = vadd.f32 %v9152, %v9318
        %v9339 = vadd.f32 %v9155, %v9321
        %v9340 = vld [vmem:[#allocation3 + $0x6c] sm:$0xf]
        %v9341 = vld [vmem:[#allocation3 + $0x70] sm:$0xf]
        %v9342 = vld [vmem:[#allocation3 + $0x74] sm:$0xf]
        %v9343 = vld [vmem:[#allocation3 + $0x78] sm:$0xf]
        %v9344 = vld [vmem:[#allocation3 + $0x7c] sm:$0xf]
        %v9345 = vld [vmem:[#allocation3 + $0x80] sm:$0xf]
        %v9346 = vld [vmem:[#allocation3 + $0x84] sm:$0xf]
        %v9347 = vld [vmem:[#allocation3 + $0x88] sm:$0xf]
        %v9348 = vld [vmem:[#allocation3 + $0x8c] sm:$0xf]
        %v9349 = vld [vmem:[#allocation3 + $0x90] sm:$0xf]
        %v9350 = vld [vmem:[#allocation3 + $0x94] sm:$0xf]
        %v9351 = vld [vmem:[#allocation3 + $0x98] sm:$0xf]
        %v9352 = vld [vmem:[#allocation3 + $0x9c] sm:$0xf]
        %v9353 = vld [vmem:[#allocation3 + $0xa0] sm:$0xf]
        %v9354 = vld [vmem:[#allocation3 + $0xa4] sm:$0xf]
        %v9355 = vld [vmem:[#allocation3 + $0xa8] sm:$0xf]
        %v9356 = vld [vmem:[#allocation3 + $0xac] sm:$0xf]
        %v9357 = vld [vmem:[#allocation3 + $0xb0] sm:$0xf]
        %v9358 = vld [vmem:[#allocation3 + $0xb4] sm:$0xf]
        %v9359 = vld [vmem:[#allocation3 + $0xb8] sm:$0xf]
        %v9360 = vld [vmem:[#allocation3 + $0xbc] sm:$0xf]
        %v9361 = vld [vmem:[#allocation3 + $0xc0] sm:$0xf]
        %v9362 = vld [vmem:[#allocation3 + $0xc4] sm:$0xf]
        %v9363 = vld [vmem:[#allocation3 + $0xc8] sm:$0xf]
        %v9364 = vld [vmem:[%s7130] sm:$0xf]
        %v9365 = vld [vmem:[%s7130 + $0x4] sm:$0xf]
        %v9366 = vld [vmem:[%s7130 + $0x8] sm:$0xf]
        %v9367 = vld [vmem:[%s7130 + $0xc] sm:$0xf]
        %v9368 = vld [vmem:[%s7130 + $0x10] sm:$0xf]
        %v9369 = vld [vmem:[%s7130 + $0x14] sm:$0xf]
        %v9370 = vld [vmem:[%s7130 + $0x18] sm:$0xf]
        %v9371 = vld [vmem:[%s7130 + $0x1c] sm:$0xf]
        %v9372 = vld [vmem:[%s7130 + $0x20] sm:$0xf]
        %v9373 = vld [vmem:[%s7130 + $0x24] sm:$0xf]
        %v9374 = vld [vmem:[%s7130 + $0x28] sm:$0xf]
        %v9375 = vld [vmem:[%s7130 + $0x2c] sm:$0xf]
        %v9376 = vld [vmem:[%s7130 + $0x30] sm:$0xf]
        %v9377 = vld [vmem:[%s7130 + $0x34] sm:$0xf]
        %v9378 = vld [vmem:[%s7130 + $0x38] sm:$0xf]
        %v9379 = vld [vmem:[%s7130 + $0x3c] sm:$0xf]
        %v9404 = vunpack.c.l.b16 %v9340
        %v9405 = vunpack.c.l.b16 %v9341
        %v9406 = vunpack.c.l.b16 %v9342
        %v9407 = vunpack.c.l.b16 %v9343
        %v9408 = vunpack.c.l.b16 %v9344
        %v9409 = vunpack.c.l.b16 %v9345
        %v9410 = vunpack.c.l.b16 %v9346
        %v9411 = vunpack.c.l.b16 %v9347
        %v9412 = vunpack.c.l.b16 %v9348
        %v9413 = vunpack.c.l.b16 %v9349
        %v9414 = vunpack.c.l.b16 %v9350
        %v9415 = vunpack.c.l.b16 %v9351
        %v9416 = vunpack.c.l.b16 %v9352
        %v9417 = vunpack.c.l.b16 %v9353
        %v9418 = vunpack.c.l.b16 %v9354
        %v9419 = vunpack.c.l.b16 %v9355
        %v9420 = vunpack.c.l.b16 %v9356
        %v9421 = vunpack.c.l.b16 %v9357
        %v9422 = vunpack.c.l.b16 %v9358
        %v9423 = vunpack.c.l.b16 %v9359
        %v9424 = vunpack.c.l.b16 %v9360
        %v9425 = vunpack.c.l.b16 %v9361
        %v9426 = vunpack.c.l.b16 %v9362
        %v9427 = vunpack.c.l.b16 %v9363
        %v9428 = vpack.c.b16 %v9405, %v9404
        %v9429 = vpack.c.b16 %v9407, %v9406
        %v9430 = vpack.c.b16 %v9409, %v9408
        %v9431 = vpack.c.b16 %v9411, %v9410
        %v9432 = vpack.c.b16 %v9413, %v9412
        %v9433 = vpack.c.b16 %v9415, %v9414
        %v9434 = vpack.c.b16 %v9417, %v9416
        %v9435 = vpack.c.b16 %v9419, %v9418
        %v9436 = vpack.c.b16 %v9421, %v9420
        %v9437 = vpack.c.b16 %v9423, %v9422
        %v9438 = vpack.c.b16 %v9425, %v9424
        %v9439 = vpack.c.b16 %v9427, %v9426
        %v9468 = vunpack.c.l.b16 %v9364
        %v9469 = vunpack.c.l.b16 %v9365
        %v9470 = vunpack.c.l.b16 %v9366
        %v9471 = vunpack.c.l.b16 %v9367
        %v9472 = vunpack.c.l.b16 %v9368
        %v9473 = vunpack.c.l.b16 %v9369
        %v9474 = vunpack.c.l.b16 %v9370
        %v9475 = vunpack.c.l.b16 %v9371
        %v9476 = vunpack.c.l.b16 %v9372
        %v9477 = vunpack.c.l.b16 %v9373
        %v9478 = vunpack.c.l.b16 %v9374
        %v9479 = vunpack.c.l.b16 %v9375
        %v9480 = vunpack.c.l.b16 %v9376
        %v9481 = vunpack.c.l.b16 %v9377
        %v9482 = vunpack.c.l.b16 %v9378
        %v9483 = vunpack.c.l.b16 %v9379
        %v9484 = vpack.c.b16 %v9469, %v9468
        %v9485 = vpack.c.b16 %v9471, %v9470
        %v9486 = vpack.c.b16 %v9473, %v9472
        %v9487 = vpack.c.b16 %v9475, %v9474
        %v9488 = vpack.c.b16 %v9477, %v9476
        %v9489 = vpack.c.b16 %v9479, %v9478
        %v9490 = vpack.c.b16 %v9481, %v9480
        %v9491 = vpack.c.b16 %v9483, %v9482
        %9500 = vmatpush.bf16.msra.mxu0 %v9491
        %9501 = vmatpush.bf16.msra.mxu0 %v9490
        %9502 = vmatpush.bf16.msra.mxu0 %v9489
        %9503 = vmatpush.bf16.msra.mxu0 %v9488
        %9504 = vmatpush.bf16.msra.mxu0 %v9487
        %9505 = vmatpush.bf16.msra.mxu0 %v9486
        %9506 = vmatpush.bf16.msra.mxu0 %v9485
        %9507 = vmatpush.bf16.msra.mxu0 %v9484
        %9508 = vmatmul.bf16.gmra.mxu0 %v9428
        %v9509 = vpop.f32.mrf.mxu0
        %v9510 = vadd.f32 0.0, %v9509
        %v9511 = vpop.f32.mrf.mxu0
        %v9512 = vadd.f32 0.0, %v9511
        %9513 = vmatmul.bf16.gmra.mxu0 %v9429
        %v9514 = vpop.f32.mrf.mxu0
        %v9515 = vpop.f32.mrf.mxu0
        %v9516 = vadd.f32 0.0, %v9515
        %9517 = vmatmul.bf16.gmra.mxu0 %v9430
        %v9518 = vpop.f32.mrf.mxu0
        %v9519 = vadd.f32 0.0, %v9518
        %v9520 = vpop.f32.mrf.mxu0
        %9521 = vmatmul.bf16.gmra.mxu0 %v9431
        %v9522 = vpop.f32.mrf.mxu0
        %v9523 = vadd.f32 0.0, %v9522
        %v9524 = vpop.f32.mrf.mxu0
        %v9525 = vadd.f32 0.0, %v9524
        %9526 = vmatmul.bf16.gmra.mxu0 %v9432
        %v9527 = vpop.f32.mrf.mxu0
        %v9528 = vpop.f32.mrf.mxu0
        %v9529 = vadd.f32 0.0, %v9528
        %9530 = vmatmul.bf16.gmra.mxu0 %v9433
        %v9531 = vpop.f32.mrf.mxu0
        %v9532 = vadd.f32 0.0, %v9531
        %v9533 = vpop.f32.mrf.mxu0
        %9534 = vmatmul.bf16.gmra.mxu0 %v9434
        %v9535 = vpop.f32.mrf.mxu0
        %v9536 = vadd.f32 0.0, %v9535
        %v9537 = vpop.f32.mrf.mxu0
        %v9538 = vadd.f32 0.0, %v9537
        %9539 = vmatmul.bf16.gmra.mxu0 %v9435
        %v9540 = vpop.f32.mrf.mxu0
        %v9541 = vpop.f32.mrf.mxu0
        %v9542 = vadd.f32 0.0, %v9541
        %9543 = vmatmul.bf16.gmra.mxu0 %v9436
        %v9544 = vpop.f32.mrf.mxu0
        %v9545 = vadd.f32 0.0, %v9544
        %v9546 = vpop.f32.mrf.mxu0
        %9547 = vmatmul.bf16.gmra.mxu0 %v9437
        %v9548 = vpop.f32.mrf.mxu0
        %v9549 = vadd.f32 0.0, %v9548
        %v9550 = vpop.f32.mrf.mxu0
        %v9551 = vadd.f32 0.0, %v9550
        %9552 = vmatmul.bf16.gmra.mxu0 %v9438
        %v9553 = vpop.f32.mrf.mxu0
        %v9554 = vpop.f32.mrf.mxu0
        %v9555 = vadd.f32 0.0, %v9554
        %9556 = vmatmul.bf16.gmra.mxu0 %v9439
        %v9557 = vpop.f32.mrf.mxu0
        %v9558 = vadd.f32 0.0, %v9557
        %v9559 = vpop.f32.mrf.mxu0
        %9560 = vdwg.mxu0
        %v9561 = vadd.f32 %v9324, %v9510
        %v9562 = vadd.f32 %v9325, %v9512
        %v9563 = vadd.f32 %v9326, %v9516
        %v9564 = vadd.f32 %v9327, %v9519
        %v9565 = vadd.f32 %v9328, %v9523
        %v9566 = vadd.f32 %v9329, %v9525
        %v9567 = vadd.f32 %v9330, %v9529
        %v9568 = vadd.f32 %v9331, %v9532
        %v9569 = vadd.f32 %v9332, %v9536
        %v9570 = vadd.f32 %v9333, %v9538
        %v9571 = vadd.f32 %v9334, %v9542
        %v9572 = vadd.f32 %v9335, %v9545
        %v9573 = vadd.f32 %v9336, %v9549
        %v9574 = vadd.f32 %v9337, %v9551
        %v9575 = vadd.f32 %v9338, %v9555
        %v9576 = vadd.f32 %v9339, %v9558
        %v9577 = vld [vmem:[#allocation3 + $0x6c] sm:$0xf]
        %v9578 = vld [vmem:[#allocation3 + $0x70] sm:$0xf]
        %v9579 = vld [vmem:[#allocation3 + $0x74] sm:$0xf]
        %v9580 = vld [vmem:[#allocation3 + $0x78] sm:$0xf]
        %v9581 = vld [vmem:[#allocation3 + $0x7c] sm:$0xf]
        %v9582 = vld [vmem:[#allocation3 + $0x80] sm:$0xf]
        %v9583 = vld [vmem:[#allocation3 + $0x84] sm:$0xf]
        %v9584 = vld [vmem:[#allocation3 + $0x88] sm:$0xf]
        %v9585 = vld [vmem:[#allocation3 + $0x8c] sm:$0xf]
        %v9586 = vld [vmem:[#allocation3 + $0x90] sm:$0xf]
        %v9587 = vld [vmem:[#allocation3 + $0x94] sm:$0xf]
        %v9588 = vld [vmem:[#allocation3 + $0x98] sm:$0xf]
        %v9589 = vld [vmem:[#allocation3 + $0x9c] sm:$0xf]
        %v9590 = vld [vmem:[#allocation3 + $0xa0] sm:$0xf]
        %v9591 = vld [vmem:[#allocation3 + $0xa4] sm:$0xf]
        %v9592 = vld [vmem:[#allocation3 + $0xa8] sm:$0xf]
        %v9593 = vld [vmem:[#allocation3 + $0xac] sm:$0xf]
        %v9594 = vld [vmem:[#allocation3 + $0xb0] sm:$0xf]
        %v9595 = vld [vmem:[#allocation3 + $0xb4] sm:$0xf]
        %v9596 = vld [vmem:[#allocation3 + $0xb8] sm:$0xf]
        %v9597 = vld [vmem:[#allocation3 + $0xbc] sm:$0xf]
        %v9598 = vld [vmem:[#allocation3 + $0xc0] sm:$0xf]
        %v9599 = vld [vmem:[#allocation3 + $0xc4] sm:$0xf]
        %v9600 = vld [vmem:[#allocation3 + $0xc8] sm:$0xf]
        %v9601 = vld [vmem:[#allocation3 + $0xcc] sm:$0x1]
        %v9602 = vld [vmem:[%s7369] sm:$0xf]
        %v9603 = vld [vmem:[%s7369 + $0x4] sm:$0xf]
        %v9604 = vld [vmem:[%s7369 + $0x8] sm:$0xf]
        %v9605 = vld [vmem:[%s7369 + $0xc] sm:$0xf]
        %v9606 = vld [vmem:[%s7369 + $0x10] sm:$0xf]
        %v9607 = vld [vmem:[%s7369 + $0x14] sm:$0xf]
        %v9608 = vld [vmem:[%s7369 + $0x18] sm:$0xf]
        %v9609 = vld [vmem:[%s7369 + $0x1c] sm:$0xf]
        %v9610 = vld [vmem:[%s7369 + $0x20] sm:$0xf]
        %v9611 = vld [vmem:[%s7369 + $0x24] sm:$0xf]
        %v9612 = vld [vmem:[%s7369 + $0x28] sm:$0xf]
        %v9613 = vld [vmem:[%s7369 + $0x2c] sm:$0xf]
        %v9614 = vld [vmem:[%s7369 + $0x30] sm:$0xf]
        %v9615 = vld [vmem:[%s7369 + $0x34] sm:$0xf]
        %v9616 = vld [vmem:[%s7369 + $0x38] sm:$0xf]
        %v9617 = vld [vmem:[%s7369 + $0x3c] sm:$0xf]
        %v9643 = vunpack.c.l.b16 %v9577
        %v9644 = vunpack.c.l.b16 %v9578
        %v9645 = vunpack.c.l.b16 %v9579
        %v9646 = vunpack.c.l.b16 %v9580
        %v9647 = vunpack.c.l.b16 %v9581
        %v9648 = vunpack.c.l.b16 %v9582
        %v9649 = vunpack.c.l.b16 %v9583
        %v9650 = vunpack.c.l.b16 %v9584
        %v9651 = vunpack.c.l.b16 %v9585
        %v9652 = vunpack.c.l.b16 %v9586
        %v9653 = vunpack.c.l.b16 %v9587
        %v9654 = vunpack.c.l.b16 %v9588
        %v9655 = vunpack.c.l.b16 %v9589
        %v9656 = vunpack.c.l.b16 %v9590
        %v9657 = vunpack.c.l.b16 %v9591
        %v9658 = vunpack.c.l.b16 %v9592
        %v9659 = vunpack.c.l.b16 %v9593
        %v9660 = vunpack.c.l.b16 %v9594
        %v9661 = vunpack.c.l.b16 %v9595
        %v9662 = vunpack.c.l.b16 %v9596
        %v9663 = vunpack.c.l.b16 %v9597
        %v9664 = vunpack.c.l.b16 %v9598
        %v9665 = vunpack.c.l.b16 %v9599
        %v9666 = vunpack.c.l.b16 %v9600
        %v9667 = vunpack.c.l.b16 %v9601
        %v9668 = vpack.c.b16 %v9644, %v9643
        %v9669 = vpack.c.b16 %v9646, %v9645
        %v9670 = vpack.c.b16 %v9648, %v9647
        %v9671 = vpack.c.b16 %v9650, %v9649
        %v9672 = vpack.c.b16 %v9652, %v9651
        %v9673 = vpack.c.b16 %v9654, %v9653
        %v9674 = vpack.c.b16 %v9656, %v9655
        %v9675 = vpack.c.b16 %v9658, %v9657
        %v9676 = vpack.c.b16 %v9660, %v9659
        %v9677 = vpack.c.b16 %v9662, %v9661
        %v9678 = vpack.c.b16 %v9664, %v9663
        %v9679 = vpack.c.b16 %v9666, %v9665
        %v9680 = vpack.c.b16 %v9667, %v9667
        %v9682 = vshrl.u32 %v9668, 16
        %v9684 = vshll.u32 %v9668, 16
        %v9686 = vrot.slane %v9684, 1
        %v9687 = vor.u32 %v9682, %v9686
        %v9689 = vshll.u32 %v9669, 16
        %v9691 = vrot.slane %v9689, 1
        %v9692 = vsel %vm555, %v9687, %v9691
        %v9693 = vshrl.u32 %v9669, 16
        %v9695 = vor.u32 %v9693, %v9691
        %v9697 = vshll.u32 %v9670, 16
        %v9699 = vrot.slane %v9697, 1
        %v9700 = vsel %vm555, %v9695, %v9699
        %v9701 = vshrl.u32 %v9670, 16
        %v9703 = vor.u32 %v9701, %v9699
        %v9705 = vshll.u32 %v9671, 16
        %v9707 = vrot.slane %v9705, 1
        %v9708 = vsel %vm555, %v9703, %v9707
        %v9709 = vshrl.u32 %v9671, 16
        %v9711 = vor.u32 %v9709, %v9707
        %v9713 = vshll.u32 %v9672, 16
        %v9715 = vrot.slane %v9713, 1
        %v9716 = vsel %vm555, %v9711, %v9715
        %v9717 = vshrl.u32 %v9672, 16
        %v9719 = vor.u32 %v9717, %v9715
        %v9721 = vshll.u32 %v9673, 16
        %v9723 = vrot.slane %v9721, 1
        %v9724 = vsel %vm555, %v9719, %v9723
        %v9725 = vshrl.u32 %v9673, 16
        %v9727 = vor.u32 %v9725, %v9723
        %v9729 = vshll.u32 %v9674, 16
        %v9731 = vrot.slane %v9729, 1
        %v9732 = vsel %vm555, %v9727, %v9731
        %v9733 = vshrl.u32 %v9674, 16
        %v9735 = vor.u32 %v9733, %v9731
        %v9737 = vshll.u32 %v9675, 16
        %v9739 = vrot.slane %v9737, 1
        %v9740 = vsel %vm555, %v9735, %v9739
        %v9741 = vshrl.u32 %v9675, 16
        %v9743 = vor.u32 %v9741, %v9739
        %v9745 = vshll.u32 %v9676, 16
        %v9747 = vrot.slane %v9745, 1
        %v9748 = vsel %vm555, %v9743, %v9747
        %v9749 = vshrl.u32 %v9676, 16
        %v9751 = vor.u32 %v9749, %v9747
        %v9753 = vshll.u32 %v9677, 16
        %v9755 = vrot.slane %v9753, 1
        %v9756 = vsel %vm555, %v9751, %v9755
        %v9757 = vshrl.u32 %v9677, 16
        %v9759 = vor.u32 %v9757, %v9755
        %v9761 = vshll.u32 %v9678, 16
        %v9763 = vrot.slane %v9761, 1
        %v9764 = vsel %vm555, %v9759, %v9763
        %v9765 = vshrl.u32 %v9678, 16
        %v9767 = vor.u32 %v9765, %v9763
        %v9769 = vshll.u32 %v9679, 16
        %v9771 = vrot.slane %v9769, 1
        %v9772 = vsel %vm555, %v9767, %v9771
        %v9773 = vshrl.u32 %v9679, 16
        %v9775 = vor.u32 %v9773, %v9771
        %v9777 = vshll.u32 %v9680, 16
        %v9779 = vrot.slane %v9777, 1
        %v9780 = vsel %vm555, %v9775, %v9779
        %v9809 = vunpack.c.l.b16 %v9602
        %v9810 = vunpack.c.l.b16 %v9603
        %v9811 = vunpack.c.l.b16 %v9604
        %v9812 = vunpack.c.l.b16 %v9605
        %v9813 = vunpack.c.l.b16 %v9606
        %v9814 = vunpack.c.l.b16 %v9607
        %v9815 = vunpack.c.l.b16 %v9608
        %v9816 = vunpack.c.l.b16 %v9609
        %v9817 = vunpack.c.l.b16 %v9610
        %v9818 = vunpack.c.l.b16 %v9611
        %v9819 = vunpack.c.l.b16 %v9612
        %v9820 = vunpack.c.l.b16 %v9613
        %v9821 = vunpack.c.l.b16 %v9614
        %v9822 = vunpack.c.l.b16 %v9615
        %v9823 = vunpack.c.l.b16 %v9616
        %v9824 = vunpack.c.l.b16 %v9617
        %v9825 = vpack.c.b16 %v9810, %v9809
        %v9826 = vpack.c.b16 %v9812, %v9811
        %v9827 = vpack.c.b16 %v9814, %v9813
        %v9828 = vpack.c.b16 %v9816, %v9815
        %v9829 = vpack.c.b16 %v9818, %v9817
        %v9830 = vpack.c.b16 %v9820, %v9819
        %v9831 = vpack.c.b16 %v9822, %v9821
        %v9832 = vpack.c.b16 %v9824, %v9823
        %9841 = vmatpush.bf16.msra.mxu0 %v9832
        %9842 = vmatpush.bf16.msra.mxu0 %v9831
        %9843 = vmatpush.bf16.msra.mxu0 %v9830
        %9844 = vmatpush.bf16.msra.mxu0 %v9829
        %9845 = vmatpush.bf16.msra.mxu0 %v9828
        %9846 = vmatpush.bf16.msra.mxu0 %v9827
        %9847 = vmatpush.bf16.msra.mxu0 %v9826
        %9848 = vmatpush.bf16.msra.mxu0 %v9825
        %9849 = vmatmul.bf16.gmra.mxu0 %v9692
        %v9850 = vpop.f32.mrf.mxu0
        %v9851 = vadd.f32 0.0, %v9850
        %v9852 = vpop.f32.mrf.mxu0
        %v9853 = vadd.f32 0.0, %v9852
        %9854 = vmatmul.bf16.gmra.mxu0 %v9700
        %v9855 = vpop.f32.mrf.mxu0
        %v9856 = vpop.f32.mrf.mxu0
        %v9857 = vadd.f32 0.0, %v9856
        %9858 = vmatmul.bf16.gmra.mxu0 %v9708
        %v9859 = vpop.f32.mrf.mxu0
        %v9860 = vadd.f32 0.0, %v9859
        %v9861 = vpop.f32.mrf.mxu0
        %9862 = vmatmul.bf16.gmra.mxu0 %v9716
        %v9863 = vpop.f32.mrf.mxu0
        %v9864 = vadd.f32 0.0, %v9863
        %v9865 = vpop.f32.mrf.mxu0
        %v9866 = vadd.f32 0.0, %v9865
        %9867 = vmatmul.bf16.gmra.mxu0 %v9724
        %v9868 = vpop.f32.mrf.mxu0
        %v9869 = vpop.f32.mrf.mxu0
        %v9870 = vadd.f32 0.0, %v9869
        %9871 = vmatmul.bf16.gmra.mxu0 %v9732
        %v9872 = vpop.f32.mrf.mxu0
        %v9873 = vadd.f32 0.0, %v9872
        %v9874 = vpop.f32.mrf.mxu0
        %9875 = vmatmul.bf16.gmra.mxu0 %v9740
        %v9876 = vpop.f32.mrf.mxu0
        %v9877 = vadd.f32 0.0, %v9876
        %v9878 = vpop.f32.mrf.mxu0
        %v9879 = vadd.f32 0.0, %v9878
        %9880 = vmatmul.bf16.gmra.mxu0 %v9748
        %v9881 = vpop.f32.mrf.mxu0
        %v9882 = vpop.f32.mrf.mxu0
        %v9883 = vadd.f32 0.0, %v9882
        %9884 = vmatmul.bf16.gmra.mxu0 %v9756
        %v9885 = vpop.f32.mrf.mxu0
        %v9886 = vadd.f32 0.0, %v9885
        %v9887 = vpop.f32.mrf.mxu0
        %9888 = vmatmul.bf16.gmra.mxu0 %v9764
        %v9889 = vpop.f32.mrf.mxu0
        %v9890 = vadd.f32 0.0, %v9889
        %v9891 = vpop.f32.mrf.mxu0
        %v9892 = vadd.f32 0.0, %v9891
        %9893 = vmatmul.bf16.gmra.mxu0 %v9772
        %v9894 = vpop.f32.mrf.mxu0
        %v9895 = vpop.f32.mrf.mxu0
        %v9896 = vadd.f32 0.0, %v9895
        %9897 = vmatmul.bf16.gmra.mxu0 %v9780
        %v9898 = vpop.f32.mrf.mxu0
        %v9899 = vadd.f32 0.0, %v9898
        %v9900 = vpop.f32.mrf.mxu0
        %9901 = vdwg.mxu0
        %v9902 = vadd.f32 %v9561, %v9851
        %v9903 = vadd.f32 %v9562, %v9853
        %v9904 = vadd.f32 %v9563, %v9857
        %v9905 = vadd.f32 %v9564, %v9860
        %v9906 = vadd.f32 %v9565, %v9864
        %v9907 = vadd.f32 %v9566, %v9866
        %v9908 = vadd.f32 %v9567, %v9870
        %v9909 = vadd.f32 %v9568, %v9873
        %v9910 = vadd.f32 %v9569, %v9877
        %v9911 = vadd.f32 %v9570, %v9879
        %v9912 = vadd.f32 %v9571, %v9883
        %v9913 = vadd.f32 %v9572, %v9886
        %v9914 = vadd.f32 %v9573, %v9890
        %v9915 = vadd.f32 %v9574, %v9892
        %v9916 = vadd.f32 %v9575, %v9896
        %v9917 = vadd.f32 %v9576, %v9899
        %v9918 = vld [vmem:[#allocation3 + $0x6c] sm:$0xe]
        %v9919 = vld [vmem:[%s7687] sm:$0xf]
        %v9920 = vld [vmem:[%s7687 + $0x4] sm:$0xf]
        %v9921 = vld [vmem:[%s7687 + $0x8] sm:$0xf]
        %v9922 = vld [vmem:[%s7687 + $0xc] sm:$0xf]
        %v9923 = vld [vmem:[%s7687 + $0x10] sm:$0xf]
        %v9924 = vld [vmem:[%s7687 + $0x14] sm:$0xf]
        %v9925 = vld [vmem:[%s7687 + $0x18] sm:$0xf]
        %v9926 = vld [vmem:[%s7687 + $0x1c] sm:$0xf]
        %v9927 = vld [vmem:[%s7687 + $0x20] sm:$0xf]
        %v9928 = vld [vmem:[%s7687 + $0x24] sm:$0xf]
        %v9929 = vld [vmem:[%s7687 + $0x28] sm:$0xf]
        %v9930 = vld [vmem:[%s7687 + $0x2c] sm:$0xf]
        %v9931 = vld [vmem:[%s7687 + $0x30] sm:$0xf]
        %v9932 = vld [vmem:[%s7687 + $0x34] sm:$0xf]
        %v9933 = vld [vmem:[%s7687 + $0x38] sm:$0xf]
        %v9934 = vld [vmem:[%s7687 + $0x3c] sm:$0xf]
        %v9936 = vunpack.c.l.b16 %v9918
        %v9937 = vpack.c.b16 %v9644, %v9936
        %v9938 = vrot.slane %v9937, 1
        %v9939 = vrot.slane %v9669, 1
        %v9940 = vsel %vm875, %v9938, %v9939
        %v9941 = vrot.slane %v9670, 1
        %v9942 = vsel %vm875, %v9939, %v9941
        %v9943 = vrot.slane %v9671, 1
        %v9944 = vsel %vm875, %v9941, %v9943
        %v9945 = vrot.slane %v9672, 1
        %v9946 = vsel %vm875, %v9943, %v9945
        %v9947 = vrot.slane %v9673, 1
        %v9948 = vsel %vm875, %v9945, %v9947
        %v9949 = vrot.slane %v9674, 1
        %v9950 = vsel %vm875, %v9947, %v9949
        %v9951 = vrot.slane %v9675, 1
        %v9952 = vsel %vm875, %v9949, %v9951
        %v9953 = vrot.slane %v9676, 1
        %v9954 = vsel %vm875, %v9951, %v9953
        %v9955 = vrot.slane %v9677, 1
        %v9956 = vsel %vm875, %v9953, %v9955
        %v9957 = vrot.slane %v9678, 1
        %v9958 = vsel %vm875, %v9955, %v9957
        %v9959 = vrot.slane %v9679, 1
        %v9960 = vsel %vm875, %v9957, %v9959
        %v9961 = vrot.slane %v9680, 1
        %v9962 = vsel %vm875, %v9959, %v9961
        %v9991 = vunpack.c.l.b16 %v9919
        %v9992 = vunpack.c.l.b16 %v9920
        %v9993 = vunpack.c.l.b16 %v9921
        %v9994 = vunpack.c.l.b16 %v9922
        %v9995 = vunpack.c.l.b16 %v9923
        %v9996 = vunpack.c.l.b16 %v9924
        %v9997 = vunpack.c.l.b16 %v9925
        %v9998 = vunpack.c.l.b16 %v9926
        %v9999 = vunpack.c.l.b16 %v9927
        %v10000 = vunpack.c.l.b16 %v9928
        %v10001 = vunpack.c.l.b16 %v9929
        %v10002 = vunpack.c.l.b16 %v9930
        %v10003 = vunpack.c.l.b16 %v9931
        %v10004 = vunpack.c.l.b16 %v9932
        %v10005 = vunpack.c.l.b16 %v9933
        %v10006 = vunpack.c.l.b16 %v9934
        %v10007 = vpack.c.b16 %v9992, %v9991
        %v10008 = vpack.c.b16 %v9994, %v9993
        %v10009 = vpack.c.b16 %v9996, %v9995
        %v10010 = vpack.c.b16 %v9998, %v9997
        %v10011 = vpack.c.b16 %v10000, %v9999
        %v10012 = vpack.c.b16 %v10002, %v10001
        %v10013 = vpack.c.b16 %v10004, %v10003
        %v10014 = vpack.c.b16 %v10006, %v10005
        %10023 = vmatpush.bf16.msra.mxu0 %v10014
        %10024 = vmatpush.bf16.msra.mxu0 %v10013
        %10025 = vmatpush.bf16.msra.mxu0 %v10012
        %10026 = vmatpush.bf16.msra.mxu0 %v10011
        %10027 = vmatpush.bf16.msra.mxu0 %v10010
        %10028 = vmatpush.bf16.msra.mxu0 %v10009
        %10029 = vmatpush.bf16.msra.mxu0 %v10008
        %10030 = vmatpush.bf16.msra.mxu0 %v10007
        %10031 = vmatmul.bf16.gmra.mxu0 %v9940
        %v10032 = vpop.f32.mrf.mxu0
        %v10033 = vadd.f32 0.0, %v10032
        %v10034 = vpop.f32.mrf.mxu0
        %v10035 = vadd.f32 0.0, %v10034
        %10036 = vmatmul.bf16.gmra.mxu0 %v9942
        %v10037 = vpop.f32.mrf.mxu0
        %v10038 = vpop.f32.mrf.mxu0
        %v10039 = vadd.f32 0.0, %v10038
        %10040 = vmatmul.bf16.gmra.mxu0 %v9944
        %v10041 = vpop.f32.mrf.mxu0
        %v10042 = vadd.f32 0.0, %v10041
        %v10043 = vpop.f32.mrf.mxu0
        %10044 = vmatmul.bf16.gmra.mxu0 %v9946
        %v10045 = vpop.f32.mrf.mxu0
        %v10046 = vadd.f32 0.0, %v10045
        %v10047 = vpop.f32.mrf.mxu0
        %v10048 = vadd.f32 0.0, %v10047
        %10049 = vmatmul.bf16.gmra.mxu0 %v9948
        %v10050 = vpop.f32.mrf.mxu0
        %v10051 = vpop.f32.mrf.mxu0
        %v10052 = vadd.f32 0.0, %v10051
        %10053 = vmatmul.bf16.gmra.mxu0 %v9950
        %v10054 = vpop.f32.mrf.mxu0
        %v10055 = vadd.f32 0.0, %v10054
        %v10056 = vpop.f32.mrf.mxu0
        %10057 = vmatmul.bf16.gmra.mxu0 %v9952
        %v10058 = vpop.f32.mrf.mxu0
        %v10059 = vadd.f32 0.0, %v10058
        %v10060 = vpop.f32.mrf.mxu0
        %v10061 = vadd.f32 0.0, %v10060
        %10062 = vmatmul.bf16.gmra.mxu0 %v9954
        %v10063 = vpop.f32.mrf.mxu0
        %v10064 = vpop.f32.mrf.mxu0
        %v10065 = vadd.f32 0.0, %v10064
        %10066 = vmatmul.bf16.gmra.mxu0 %v9956
        %v10067 = vpop.f32.mrf.mxu0
        %v10068 = vadd.f32 0.0, %v10067
        %v10069 = vpop.f32.mrf.mxu0
        %10070 = vmatmul.bf16.gmra.mxu0 %v9958
        %v10071 = vpop.f32.mrf.mxu0
        %v10072 = vadd.f32 0.0, %v10071
        %v10073 = vpop.f32.mrf.mxu0
        %v10074 = vadd.f32 0.0, %v10073
        %10075 = vmatmul.bf16.gmra.mxu0 %v9960
        %v10076 = vpop.f32.mrf.mxu0
        %v10077 = vpop.f32.mrf.mxu0
        %v10078 = vadd.f32 0.0, %v10077
        %10079 = vmatmul.bf16.gmra.mxu0 %v9962
        %v10080 = vpop.f32.mrf.mxu0
        %v10081 = vadd.f32 0.0, %v10080
        %v10082 = vpop.f32.mrf.mxu0
        %10083 = vdwg.mxu0
        %v10084 = vadd.f32 %v9902, %v10033
        %v10085 = vadd.f32 %v9903, %v10035
        %v10086 = vadd.f32 %v9904, %v10039
        %v10087 = vadd.f32 %v9905, %v10042
        %v10088 = vadd.f32 %v9906, %v10046
        %v10089 = vadd.f32 %v9907, %v10048
        %v10090 = vadd.f32 %v9908, %v10052
        %v10091 = vadd.f32 %v9909, %v10055
        %v10092 = vadd.f32 %v9910, %v10059
        %v10093 = vadd.f32 %v9911, %v10061
        %v10094 = vadd.f32 %v9912, %v10065
        %v10095 = vadd.f32 %v9913, %v10068
        %v10096 = vadd.f32 %v9914, %v10072
        %v10097 = vadd.f32 %v9915, %v10074
        %v10098 = vadd.f32 %v9916, %v10078
        %v10099 = vadd.f32 %v9917, %v10081
        %v10100 = vld [vmem:[#allocation3 + $0x78] sm:$0xf]
        %v10101 = vld [vmem:[#allocation3 + $0x7c] sm:$0xf]
        %v10102 = vld [vmem:[#allocation3 + $0x80] sm:$0xf]
        %v10103 = vld [vmem:[#allocation3 + $0x84] sm:$0xf]
        %v10104 = vld [vmem:[#allocation3 + $0x88] sm:$0xf]
        %v10105 = vld [vmem:[#allocation3 + $0x8c] sm:$0xf]
        %v10106 = vld [vmem:[#allocation3 + $0x90] sm:$0xf]
        %v10107 = vld [vmem:[#allocation3 + $0x94] sm:$0xf]
        %v10108 = vld [vmem:[#allocation3 + $0x98] sm:$0xf]
        %v10109 = vld [vmem:[#allocation3 + $0x9c] sm:$0xf]
        %v10110 = vld [vmem:[#allocation3 + $0xa0] sm:$0xf]
        %v10111 = vld [vmem:[#allocation3 + $0xa4] sm:$0xf]
        %v10112 = vld [vmem:[#allocation3 + $0xa8] sm:$0xf]
        %v10113 = vld [vmem:[#allocation3 + $0xac] sm:$0xf]
        %v10114 = vld [vmem:[#allocation3 + $0xb0] sm:$0xf]
        %v10115 = vld [vmem:[#allocation3 + $0xb4] sm:$0xf]
        %v10116 = vld [vmem:[#allocation3 + $0xb8] sm:$0xf]
        %v10117 = vld [vmem:[#allocation3 + $0xbc] sm:$0xf]
        %v10118 = vld [vmem:[#allocation3 + $0xc0] sm:$0xf]
        %v10119 = vld [vmem:[#allocation3 + $0xc4] sm:$0xf]
        %v10120 = vld [vmem:[#allocation3 + $0xc8] sm:$0xf]
        %v10121 = vld [vmem:[#allocation3 + $0xcc] sm:$0xf]
        %v10122 = vld [vmem:[#allocation3 + $0xd0] sm:$0xf]
        %v10123 = vld [vmem:[#allocation3 + $0xd4] sm:$0xf]
        %v10124 = vld [vmem:[%s7893] sm:$0xf]
        %v10125 = vld [vmem:[%s7893 + $0x4] sm:$0xf]
        %v10126 = vld [vmem:[%s7893 + $0x8] sm:$0xf]
        %v10127 = vld [vmem:[%s7893 + $0xc] sm:$0xf]
        %v10128 = vld [vmem:[%s7893 + $0x10] sm:$0xf]
        %v10129 = vld [vmem:[%s7893 + $0x14] sm:$0xf]
        %v10130 = vld [vmem:[%s7893 + $0x18] sm:$0xf]
        %v10131 = vld [vmem:[%s7893 + $0x1c] sm:$0xf]
        %v10132 = vld [vmem:[%s7893 + $0x20] sm:$0xf]
        %v10133 = vld [vmem:[%s7893 + $0x24] sm:$0xf]
        %v10134 = vld [vmem:[%s7893 + $0x28] sm:$0xf]
        %v10135 = vld [vmem:[%s7893 + $0x2c] sm:$0xf]
        %v10136 = vld [vmem:[%s7893 + $0x30] sm:$0xf]
        %v10137 = vld [vmem:[%s7893 + $0x34] sm:$0xf]
        %v10138 = vld [vmem:[%s7893 + $0x38] sm:$0xf]
        %v10139 = vld [vmem:[%s7893 + $0x3c] sm:$0xf]
        %v10164 = vunpack.c.l.b16 %v10100
        %v10165 = vunpack.c.l.b16 %v10101
        %v10166 = vunpack.c.l.b16 %v10102
        %v10167 = vunpack.c.l.b16 %v10103
        %v10168 = vunpack.c.l.b16 %v10104
        %v10169 = vunpack.c.l.b16 %v10105
        %v10170 = vunpack.c.l.b16 %v10106
        %v10171 = vunpack.c.l.b16 %v10107
        %v10172 = vunpack.c.l.b16 %v10108
        %v10173 = vunpack.c.l.b16 %v10109
        %v10174 = vunpack.c.l.b16 %v10110
        %v10175 = vunpack.c.l.b16 %v10111
        %v10176 = vunpack.c.l.b16 %v10112
        %v10177 = vunpack.c.l.b16 %v10113
        %v10178 = vunpack.c.l.b16 %v10114
        %v10179 = vunpack.c.l.b16 %v10115
        %v10180 = vunpack.c.l.b16 %v10116
        %v10181 = vunpack.c.l.b16 %v10117
        %v10182 = vunpack.c.l.b16 %v10118
        %v10183 = vunpack.c.l.b16 %v10119
        %v10184 = vunpack.c.l.b16 %v10120
        %v10185 = vunpack.c.l.b16 %v10121
        %v10186 = vunpack.c.l.b16 %v10122
        %v10187 = vunpack.c.l.b16 %v10123
        %v10188 = vpack.c.b16 %v10165, %v10164
        %v10189 = vpack.c.b16 %v10167, %v10166
        %v10190 = vpack.c.b16 %v10169, %v10168
        %v10191 = vpack.c.b16 %v10171, %v10170
        %v10192 = vpack.c.b16 %v10173, %v10172
        %v10193 = vpack.c.b16 %v10175, %v10174
        %v10194 = vpack.c.b16 %v10177, %v10176
        %v10195 = vpack.c.b16 %v10179, %v10178
        %v10196 = vpack.c.b16 %v10181, %v10180
        %v10197 = vpack.c.b16 %v10183, %v10182
        %v10198 = vpack.c.b16 %v10185, %v10184
        %v10199 = vpack.c.b16 %v10187, %v10186
        %v10228 = vunpack.c.l.b16 %v10124
        %v10229 = vunpack.c.l.b16 %v10125
        %v10230 = vunpack.c.l.b16 %v10126
        %v10231 = vunpack.c.l.b16 %v10127
        %v10232 = vunpack.c.l.b16 %v10128
        %v10233 = vunpack.c.l.b16 %v10129
        %v10234 = vunpack.c.l.b16 %v10130
        %v10235 = vunpack.c.l.b16 %v10131
        %v10236 = vunpack.c.l.b16 %v10132
        %v10237 = vunpack.c.l.b16 %v10133
        %v10238 = vunpack.c.l.b16 %v10134
        %v10239 = vunpack.c.l.b16 %v10135
        %v10240 = vunpack.c.l.b16 %v10136
        %v10241 = vunpack.c.l.b16 %v10137
        %v10242 = vunpack.c.l.b16 %v10138
        %v10243 = vunpack.c.l.b16 %v10139
        %v10244 = vpack.c.b16 %v10229, %v10228
        %v10245 = vpack.c.b16 %v10231, %v10230
        %v10246 = vpack.c.b16 %v10233, %v10232
        %v10247 = vpack.c.b16 %v10235, %v10234
        %v10248 = vpack.c.b16 %v10237, %v10236
        %v10249 = vpack.c.b16 %v10239, %v10238
        %v10250 = vpack.c.b16 %v10241, %v10240
        %v10251 = vpack.c.b16 %v10243, %v10242
        %10260 = vmatpush.bf16.msra.mxu0 %v10251
        %10261 = vmatpush.bf16.msra.mxu0 %v10250
        %10262 = vmatpush.bf16.msra.mxu0 %v10249
        %10263 = vmatpush.bf16.msra.mxu0 %v10248
        %10264 = vmatpush.bf16.msra.mxu0 %v10247
        %10265 = vmatpush.bf16.msra.mxu0 %v10246
        %10266 = vmatpush.bf16.msra.mxu0 %v10245
        %10267 = vmatpush.bf16.msra.mxu0 %v10244
        %10268 = vmatmul.bf16.gmra.mxu0 %v10188
        %v10269 = vpop.f32.mrf.mxu0
        %v10270 = vadd.f32 0.0, %v10269
        %v10271 = vpop.f32.mrf.mxu0
        %v10272 = vadd.f32 0.0, %v10271
        %10273 = vmatmul.bf16.gmra.mxu0 %v10189
        %v10274 = vpop.f32.mrf.mxu0
        %v10275 = vpop.f32.mrf.mxu0
        %v10276 = vadd.f32 0.0, %v10275
        %10277 = vmatmul.bf16.gmra.mxu0 %v10190
        %v10278 = vpop.f32.mrf.mxu0
        %v10279 = vadd.f32 0.0, %v10278
        %v10280 = vpop.f32.mrf.mxu0
        %10281 = vmatmul.bf16.gmra.mxu0 %v10191
        %v10282 = vpop.f32.mrf.mxu0
        %v10283 = vadd.f32 0.0, %v10282
        %v10284 = vpop.f32.mrf.mxu0
        %v10285 = vadd.f32 0.0, %v10284
        %10286 = vmatmul.bf16.gmra.mxu0 %v10192
        %v10287 = vpop.f32.mrf.mxu0
        %v10288 = vpop.f32.mrf.mxu0
        %v10289 = vadd.f32 0.0, %v10288
        %10290 = vmatmul.bf16.gmra.mxu0 %v10193
        %v10291 = vpop.f32.mrf.mxu0
        %v10292 = vadd.f32 0.0, %v10291
        %v10293 = vpop.f32.mrf.mxu0
        %10294 = vmatmul.bf16.gmra.mxu0 %v10194
        %v10295 = vpop.f32.mrf.mxu0
        %v10296 = vadd.f32 0.0, %v10295
        %v10297 = vpop.f32.mrf.mxu0
        %v10298 = vadd.f32 0.0, %v10297
        %10299 = vmatmul.bf16.gmra.mxu0 %v10195
        %v10300 = vpop.f32.mrf.mxu0
        %v10301 = vpop.f32.mrf.mxu0
        %v10302 = vadd.f32 0.0, %v10301
        %10303 = vmatmul.bf16.gmra.mxu0 %v10196
        %v10304 = vpop.f32.mrf.mxu0
        %v10305 = vadd.f32 0.0, %v10304
        %v10306 = vpop.f32.mrf.mxu0
        %10307 = vmatmul.bf16.gmra.mxu0 %v10197
        %v10308 = vpop.f32.mrf.mxu0
        %v10309 = vadd.f32 0.0, %v10308
        %v10310 = vpop.f32.mrf.mxu0
        %v10311 = vadd.f32 0.0, %v10310
        %10312 = vmatmul.bf16.gmra.mxu0 %v10198
        %v10313 = vpop.f32.mrf.mxu0
        %v10314 = vpop.f32.mrf.mxu0
        %v10315 = vadd.f32 0.0, %v10314
        %10316 = vmatmul.bf16.gmra.mxu0 %v10199
        %v10317 = vpop.f32.mrf.mxu0
        %v10318 = vadd.f32 0.0, %v10317
        %v10319 = vpop.f32.mrf.mxu0
        %10320 = vdwg.mxu0
        %v10321 = vadd.f32 %v10084, %v10270
        %v10322 = vadd.f32 %v10085, %v10272
        %v10323 = vadd.f32 %v10086, %v10276
        %v10324 = vadd.f32 %v10087, %v10279
        %v10325 = vadd.f32 %v10088, %v10283
        %v10326 = vadd.f32 %v10089, %v10285
        %v10327 = vadd.f32 %v10090, %v10289
        %v10328 = vadd.f32 %v10091, %v10292
        %v10329 = vadd.f32 %v10092, %v10296
        %v10330 = vadd.f32 %v10093, %v10298
        %v10331 = vadd.f32 %v10094, %v10302
        %v10332 = vadd.f32 %v10095, %v10305
        %v10333 = vadd.f32 %v10096, %v10309
        %v10334 = vadd.f32 %v10097, %v10311
        %v10335 = vadd.f32 %v10098, %v10315
        %v10336 = vadd.f32 %v10099, %v10318
        %v10337 = vld [vmem:[#allocation3 + $0x78] sm:$0xf]
        %v10338 = vld [vmem:[#allocation3 + $0x7c] sm:$0xf]
        %v10339 = vld [vmem:[#allocation3 + $0x80] sm:$0xf]
        %v10340 = vld [vmem:[#allocation3 + $0x84] sm:$0xf]
        %v10341 = vld [vmem:[#allocation3 + $0x88] sm:$0xf]
        %v10342 = vld [vmem:[#allocation3 + $0x8c] sm:$0xf]
        %v10343 = vld [vmem:[#allocation3 + $0x90] sm:$0xf]
        %v10344 = vld [vmem:[#allocation3 + $0x94] sm:$0xf]
        %v10345 = vld [vmem:[#allocation3 + $0x98] sm:$0xf]
        %v10346 = vld [vmem:[#allocation3 + $0x9c] sm:$0xf]
        %v10347 = vld [vmem:[#allocation3 + $0xa0] sm:$0xf]
        %v10348 = vld [vmem:[#allocation3 + $0xa4] sm:$0xf]
        %v10349 = vld [vmem:[#allocation3 + $0xa8] sm:$0xf]
        %v10350 = vld [vmem:[#allocation3 + $0xac] sm:$0xf]
        %v10351 = vld [vmem:[#allocation3 + $0xb0] sm:$0xf]
        %v10352 = vld [vmem:[#allocation3 + $0xb4] sm:$0xf]
        %v10353 = vld [vmem:[#allocation3 + $0xb8] sm:$0xf]
        %v10354 = vld [vmem:[#allocation3 + $0xbc] sm:$0xf]
        %v10355 = vld [vmem:[#allocation3 + $0xc0] sm:$0xf]
        %v10356 = vld [vmem:[#allocation3 + $0xc4] sm:$0xf]
        %v10357 = vld [vmem:[#allocation3 + $0xc8] sm:$0xf]
        %v10358 = vld [vmem:[#allocation3 + $0xcc] sm:$0xf]
        %v10359 = vld [vmem:[#allocation3 + $0xd0] sm:$0xf]
        %v10360 = vld [vmem:[#allocation3 + $0xd4] sm:$0xf]
        %v10361 = vld [vmem:[#allocation3 + $0xd8] sm:$0x1]
        %v10362 = vld [vmem:[%s8132] sm:$0xf]
        %v10363 = vld [vmem:[%s8132 + $0x4] sm:$0xf]
        %v10364 = vld [vmem:[%s8132 + $0x8] sm:$0xf]
        %v10365 = vld [vmem:[%s8132 + $0xc] sm:$0xf]
        %v10366 = vld [vmem:[%s8132 + $0x10] sm:$0xf]
        %v10367 = vld [vmem:[%s8132 + $0x14] sm:$0xf]
        %v10368 = vld [vmem:[%s8132 + $0x18] sm:$0xf]
        %v10369 = vld [vmem:[%s8132 + $0x1c] sm:$0xf]
        %v10370 = vld [vmem:[%s8132 + $0x20] sm:$0xf]
        %v10371 = vld [vmem:[%s8132 + $0x24] sm:$0xf]
        %v10372 = vld [vmem:[%s8132 + $0x28] sm:$0xf]
        %v10373 = vld [vmem:[%s8132 + $0x2c] sm:$0xf]
        %v10374 = vld [vmem:[%s8132 + $0x30] sm:$0xf]
        %v10375 = vld [vmem:[%s8132 + $0x34] sm:$0xf]
        %v10376 = vld [vmem:[%s8132 + $0x38] sm:$0xf]
        %v10377 = vld [vmem:[%s8132 + $0x3c] sm:$0xf]
        %v10403 = vunpack.c.l.b16 %v10337
        %v10404 = vunpack.c.l.b16 %v10338
        %v10405 = vunpack.c.l.b16 %v10339
        %v10406 = vunpack.c.l.b16 %v10340
        %v10407 = vunpack.c.l.b16 %v10341
        %v10408 = vunpack.c.l.b16 %v10342
        %v10409 = vunpack.c.l.b16 %v10343
        %v10410 = vunpack.c.l.b16 %v10344
        %v10411 = vunpack.c.l.b16 %v10345
        %v10412 = vunpack.c.l.b16 %v10346
        %v10413 = vunpack.c.l.b16 %v10347
        %v10414 = vunpack.c.l.b16 %v10348
        %v10415 = vunpack.c.l.b16 %v10349
        %v10416 = vunpack.c.l.b16 %v10350
        %v10417 = vunpack.c.l.b16 %v10351
        %v10418 = vunpack.c.l.b16 %v10352
        %v10419 = vunpack.c.l.b16 %v10353
        %v10420 = vunpack.c.l.b16 %v10354
        %v10421 = vunpack.c.l.b16 %v10355
        %v10422 = vunpack.c.l.b16 %v10356
        %v10423 = vunpack.c.l.b16 %v10357
        %v10424 = vunpack.c.l.b16 %v10358
        %v10425 = vunpack.c.l.b16 %v10359
        %v10426 = vunpack.c.l.b16 %v10360
        %v10427 = vunpack.c.l.b16 %v10361
        %v10428 = vpack.c.b16 %v10404, %v10403
        %v10429 = vpack.c.b16 %v10406, %v10405
        %v10430 = vpack.c.b16 %v10408, %v10407
        %v10431 = vpack.c.b16 %v10410, %v10409
        %v10432 = vpack.c.b16 %v10412, %v10411
        %v10433 = vpack.c.b16 %v10414, %v10413
        %v10434 = vpack.c.b16 %v10416, %v10415
        %v10435 = vpack.c.b16 %v10418, %v10417
        %v10436 = vpack.c.b16 %v10420, %v10419
        %v10437 = vpack.c.b16 %v10422, %v10421
        %v10438 = vpack.c.b16 %v10424, %v10423
        %v10439 = vpack.c.b16 %v10426, %v10425
        %v10440 = vpack.c.b16 %v10427, %v10427
        %v10442 = vshrl.u32 %v10428, 16
        %v10444 = vshll.u32 %v10428, 16
        %v10446 = vrot.slane %v10444, 1
        %v10447 = vor.u32 %v10442, %v10446
        %v10449 = vshll.u32 %v10429, 16
        %v10451 = vrot.slane %v10449, 1
        %v10452 = vsel %vm555, %v10447, %v10451
        %v10453 = vshrl.u32 %v10429, 16
        %v10455 = vor.u32 %v10453, %v10451
        %v10457 = vshll.u32 %v10430, 16
        %v10459 = vrot.slane %v10457, 1
        %v10460 = vsel %vm555, %v10455, %v10459
        %v10461 = vshrl.u32 %v10430, 16
        %v10463 = vor.u32 %v10461, %v10459
        %v10465 = vshll.u32 %v10431, 16
        %v10467 = vrot.slane %v10465, 1
        %v10468 = vsel %vm555, %v10463, %v10467
        %v10469 = vshrl.u32 %v10431, 16
        %v10471 = vor.u32 %v10469, %v10467
        %v10473 = vshll.u32 %v10432, 16
        %v10475 = vrot.slane %v10473, 1
        %v10476 = vsel %vm555, %v10471, %v10475
        %v10477 = vshrl.u32 %v10432, 16
        %v10479 = vor.u32 %v10477, %v10475
        %v10481 = vshll.u32 %v10433, 16
        %v10483 = vrot.slane %v10481, 1
        %v10484 = vsel %vm555, %v10479, %v10483
        %v10485 = vshrl.u32 %v10433, 16
        %v10487 = vor.u32 %v10485, %v10483
        %v10489 = vshll.u32 %v10434, 16
        %v10491 = vrot.slane %v10489, 1
        %v10492 = vsel %vm555, %v10487, %v10491
        %v10493 = vshrl.u32 %v10434, 16
        %v10495 = vor.u32 %v10493, %v10491
        %v10497 = vshll.u32 %v10435, 16
        %v10499 = vrot.slane %v10497, 1
        %v10500 = vsel %vm555, %v10495, %v10499
        %v10501 = vshrl.u32 %v10435, 16
        %v10503 = vor.u32 %v10501, %v10499
        %v10505 = vshll.u32 %v10436, 16
        %v10507 = vrot.slane %v10505, 1
        %v10508 = vsel %vm555, %v10503, %v10507
        %v10509 = vshrl.u32 %v10436, 16
        %v10511 = vor.u32 %v10509, %v10507
        %v10513 = vshll.u32 %v10437, 16
        %v10515 = vrot.slane %v10513, 1
        %v10516 = vsel %vm555, %v10511, %v10515
        %v10517 = vshrl.u32 %v10437, 16
        %v10519 = vor.u32 %v10517, %v10515
        %v10521 = vshll.u32 %v10438, 16
        %v10523 = vrot.slane %v10521, 1
        %v10524 = vsel %vm555, %v10519, %v10523
        %v10525 = vshrl.u32 %v10438, 16
        %v10527 = vor.u32 %v10525, %v10523
        %v10529 = vshll.u32 %v10439, 16
        %v10531 = vrot.slane %v10529, 1
        %v10532 = vsel %vm555, %v10527, %v10531
        %v10533 = vshrl.u32 %v10439, 16
        %v10535 = vor.u32 %v10533, %v10531
        %v10537 = vshll.u32 %v10440, 16
        %v10539 = vrot.slane %v10537, 1
        %v10540 = vsel %vm555, %v10535, %v10539
        %v10569 = vunpack.c.l.b16 %v10362
        %v10570 = vunpack.c.l.b16 %v10363
        %v10571 = vunpack.c.l.b16 %v10364
        %v10572 = vunpack.c.l.b16 %v10365
        %v10573 = vunpack.c.l.b16 %v10366
        %v10574 = vunpack.c.l.b16 %v10367
        %v10575 = vunpack.c.l.b16 %v10368
        %v10576 = vunpack.c.l.b16 %v10369
        %v10577 = vunpack.c.l.b16 %v10370
        %v10578 = vunpack.c.l.b16 %v10371
        %v10579 = vunpack.c.l.b16 %v10372
        %v10580 = vunpack.c.l.b16 %v10373
        %v10581 = vunpack.c.l.b16 %v10374
        %v10582 = vunpack.c.l.b16 %v10375
        %v10583 = vunpack.c.l.b16 %v10376
        %v10584 = vunpack.c.l.b16 %v10377
        %v10585 = vpack.c.b16 %v10570, %v10569
        %v10586 = vpack.c.b16 %v10572, %v10571
        %v10587 = vpack.c.b16 %v10574, %v10573
        %v10588 = vpack.c.b16 %v10576, %v10575
        %v10589 = vpack.c.b16 %v10578, %v10577
        %v10590 = vpack.c.b16 %v10580, %v10579
        %v10591 = vpack.c.b16 %v10582, %v10581
        %v10592 = vpack.c.b16 %v10584, %v10583
        %10601 = vmatpush.bf16.msra.mxu0 %v10592
        %10602 = vmatpush.bf16.msra.mxu0 %v10591
        %10603 = vmatpush.bf16.msra.mxu0 %v10590
        %10604 = vmatpush.bf16.msra.mxu0 %v10589
        %10605 = vmatpush.bf16.msra.mxu0 %v10588
        %10606 = vmatpush.bf16.msra.mxu0 %v10587
        %10607 = vmatpush.bf16.msra.mxu0 %v10586
        %10608 = vmatpush.bf16.msra.mxu0 %v10585
        %10609 = vmatmul.bf16.gmra.mxu0 %v10452
        %v10610 = vpop.f32.mrf.mxu0
        %v10611 = vadd.f32 0.0, %v10610
        %v10612 = vpop.f32.mrf.mxu0
        %v10613 = vadd.f32 0.0, %v10612
        %10614 = vmatmul.bf16.gmra.mxu0 %v10460
        %v10615 = vpop.f32.mrf.mxu0
        %v10616 = vpop.f32.mrf.mxu0
        %v10617 = vadd.f32 0.0, %v10616
        %10618 = vmatmul.bf16.gmra.mxu0 %v10468
        %v10619 = vpop.f32.mrf.mxu0
        %v10620 = vadd.f32 0.0, %v10619
        %v10621 = vpop.f32.mrf.mxu0
        %10622 = vmatmul.bf16.gmra.mxu0 %v10476
        %v10623 = vpop.f32.mrf.mxu0
        %v10624 = vadd.f32 0.0, %v10623
        %v10625 = vpop.f32.mrf.mxu0
        %v10626 = vadd.f32 0.0, %v10625
        %10627 = vmatmul.bf16.gmra.mxu0 %v10484
        %v10628 = vpop.f32.mrf.mxu0
        %v10629 = vpop.f32.mrf.mxu0
        %v10630 = vadd.f32 0.0, %v10629
        %10631 = vmatmul.bf16.gmra.mxu0 %v10492
        %v10632 = vpop.f32.mrf.mxu0
        %v10633 = vadd.f32 0.0, %v10632
        %v10634 = vpop.f32.mrf.mxu0
        %10635 = vmatmul.bf16.gmra.mxu0 %v10500
        %v10636 = vpop.f32.mrf.mxu0
        %v10637 = vadd.f32 0.0, %v10636
        %v10638 = vpop.f32.mrf.mxu0
        %v10639 = vadd.f32 0.0, %v10638
        %10640 = vmatmul.bf16.gmra.mxu0 %v10508
        %v10641 = vpop.f32.mrf.mxu0
        %v10642 = vpop.f32.mrf.mxu0
        %v10643 = vadd.f32 0.0, %v10642
        %10644 = vmatmul.bf16.gmra.mxu0 %v10516
        %v10645 = vpop.f32.mrf.mxu0
        %v10646 = vadd.f32 0.0, %v10645
        %v10647 = vpop.f32.mrf.mxu0
        %10648 = vmatmul.bf16.gmra.mxu0 %v10524
        %v10649 = vpop.f32.mrf.mxu0
        %v10650 = vadd.f32 0.0, %v10649
        %v10651 = vpop.f32.mrf.mxu0
        %v10652 = vadd.f32 0.0, %v10651
        %10653 = vmatmul.bf16.gmra.mxu0 %v10532
        %v10654 = vpop.f32.mrf.mxu0
        %v10655 = vpop.f32.mrf.mxu0
        %v10656 = vadd.f32 0.0, %v10655
        %10657 = vmatmul.bf16.gmra.mxu0 %v10540
        %v10658 = vpop.f32.mrf.mxu0
        %v10659 = vadd.f32 0.0, %v10658
        %v10660 = vpop.f32.mrf.mxu0
        %10661 = vdwg.mxu0
        %v10662 = vadd.f32 %v10321, %v10611
        %v10663 = vadd.f32 %v10322, %v10613
        %v10664 = vadd.f32 %v10323, %v10617
        %v10665 = vadd.f32 %v10324, %v10620
        %v10666 = vadd.f32 %v10325, %v10624
        %v10667 = vadd.f32 %v10326, %v10626
        %v10668 = vadd.f32 %v10327, %v10630
        %v10669 = vadd.f32 %v10328, %v10633
        %v10670 = vadd.f32 %v10329, %v10637
        %v10671 = vadd.f32 %v10330, %v10639
        %v10672 = vadd.f32 %v10331, %v10643
        %v10673 = vadd.f32 %v10332, %v10646
        %v10674 = vadd.f32 %v10333, %v10650
        %v10675 = vadd.f32 %v10334, %v10652
        %v10676 = vadd.f32 %v10335, %v10656
        %v10677 = vadd.f32 %v10336, %v10659
        %v10678 = vld [vmem:[#allocation3 + $0x78] sm:$0xe]
        %v10679 = vld [vmem:[%s8450] sm:$0xf]
        %v10680 = vld [vmem:[%s8450 + $0x4] sm:$0xf]
        %v10681 = vld [vmem:[%s8450 + $0x8] sm:$0xf]
        %v10682 = vld [vmem:[%s8450 + $0xc] sm:$0xf]
        %v10683 = vld [vmem:[%s8450 + $0x10] sm:$0xf]
        %v10684 = vld [vmem:[%s8450 + $0x14] sm:$0xf]
        %v10685 = vld [vmem:[%s8450 + $0x18] sm:$0xf]
        %v10686 = vld [vmem:[%s8450 + $0x1c] sm:$0xf]
        %v10687 = vld [vmem:[%s8450 + $0x20] sm:$0xf]
        %v10688 = vld [vmem:[%s8450 + $0x24] sm:$0xf]
        %v10689 = vld [vmem:[%s8450 + $0x28] sm:$0xf]
        %v10690 = vld [vmem:[%s8450 + $0x2c] sm:$0xf]
        %v10691 = vld [vmem:[%s8450 + $0x30] sm:$0xf]
        %v10692 = vld [vmem:[%s8450 + $0x34] sm:$0xf]
        %v10693 = vld [vmem:[%s8450 + $0x38] sm:$0xf]
        %v10694 = vld [vmem:[%s8450 + $0x3c] sm:$0xf]
        %v10696 = vunpack.c.l.b16 %v10678
        %v10697 = vpack.c.b16 %v10404, %v10696
        %v10698 = vrot.slane %v10697, 1
        %v10699 = vrot.slane %v10429, 1
        %v10700 = vsel %vm875, %v10698, %v10699
        %v10701 = vrot.slane %v10430, 1
        %v10702 = vsel %vm875, %v10699, %v10701
        %v10703 = vrot.slane %v10431, 1
        %v10704 = vsel %vm875, %v10701, %v10703
        %v10705 = vrot.slane %v10432, 1
        %v10706 = vsel %vm875, %v10703, %v10705
        %v10707 = vrot.slane %v10433, 1
        %v10708 = vsel %vm875, %v10705, %v10707
        %v10709 = vrot.slane %v10434, 1
        %v10710 = vsel %vm875, %v10707, %v10709
        %v10711 = vrot.slane %v10435, 1
        %v10712 = vsel %vm875, %v10709, %v10711
        %v10713 = vrot.slane %v10436, 1
        %v10714 = vsel %vm875, %v10711, %v10713
        %v10715 = vrot.slane %v10437, 1
        %v10716 = vsel %vm875, %v10713, %v10715
        %v10717 = vrot.slane %v10438, 1
        %v10718 = vsel %vm875, %v10715, %v10717
        %v10719 = vrot.slane %v10439, 1
        %v10720 = vsel %vm875, %v10717, %v10719
        %v10721 = vrot.slane %v10440, 1
        %v10722 = vsel %vm875, %v10719, %v10721
        %v10751 = vunpack.c.l.b16 %v10679
        %v10752 = vunpack.c.l.b16 %v10680
        %v10753 = vunpack.c.l.b16 %v10681
        %v10754 = vunpack.c.l.b16 %v10682
        %v10755 = vunpack.c.l.b16 %v10683
        %v10756 = vunpack.c.l.b16 %v10684
        %v10757 = vunpack.c.l.b16 %v10685
        %v10758 = vunpack.c.l.b16 %v10686
        %v10759 = vunpack.c.l.b16 %v10687
        %v10760 = vunpack.c.l.b16 %v10688
        %v10761 = vunpack.c.l.b16 %v10689
        %v10762 = vunpack.c.l.b16 %v10690
        %v10763 = vunpack.c.l.b16 %v10691
        %v10764 = vunpack.c.l.b16 %v10692
        %v10765 = vunpack.c.l.b16 %v10693
        %v10766 = vunpack.c.l.b16 %v10694
        %v10767 = vpack.c.b16 %v10752, %v10751
        %v10768 = vpack.c.b16 %v10754, %v10753
        %v10769 = vpack.c.b16 %v10756, %v10755
        %v10770 = vpack.c.b16 %v10758, %v10757
        %v10771 = vpack.c.b16 %v10760, %v10759
        %v10772 = vpack.c.b16 %v10762, %v10761
        %v10773 = vpack.c.b16 %v10764, %v10763
        %v10774 = vpack.c.b16 %v10766, %v10765
        %10783 = vmatpush.bf16.msra.mxu0 %v10774
        %10784 = vmatpush.bf16.msra.mxu0 %v10773
        %10785 = vmatpush.bf16.msra.mxu0 %v10772
        %10786 = vmatpush.bf16.msra.mxu0 %v10771
        %10787 = vmatpush.bf16.msra.mxu0 %v10770
        %10788 = vmatpush.bf16.msra.mxu0 %v10769
        %10789 = vmatpush.bf16.msra.mxu0 %v10768
        %10790 = vmatpush.bf16.msra.mxu0 %v10767
        %10791 = vmatmul.bf16.gmra.mxu0 %v10700
        %v10792 = vpop.f32.mrf.mxu0
        %v10793 = vadd.f32 0.0, %v10792
        %v10794 = vpop.f32.mrf.mxu0
        %v10795 = vadd.f32 0.0, %v10794
        %10796 = vmatmul.bf16.gmra.mxu0 %v10702
        %v10797 = vpop.f32.mrf.mxu0
        %v10798 = vpop.f32.mrf.mxu0
        %v10799 = vadd.f32 0.0, %v10798
        %10800 = vmatmul.bf16.gmra.mxu0 %v10704
        %v10801 = vpop.f32.mrf.mxu0
        %v10802 = vadd.f32 0.0, %v10801
        %v10803 = vpop.f32.mrf.mxu0
        %10804 = vmatmul.bf16.gmra.mxu0 %v10706
        %v10805 = vpop.f32.mrf.mxu0
        %v10806 = vadd.f32 0.0, %v10805
        %v10807 = vpop.f32.mrf.mxu0
        %v10808 = vadd.f32 0.0, %v10807
        %10809 = vmatmul.bf16.gmra.mxu0 %v10708
        %v10810 = vpop.f32.mrf.mxu0
        %v10811 = vpop.f32.mrf.mxu0
        %v10812 = vadd.f32 0.0, %v10811
        %10813 = vmatmul.bf16.gmra.mxu0 %v10710
        %v10814 = vpop.f32.mrf.mxu0
        %v10815 = vadd.f32 0.0, %v10814
        %v10816 = vpop.f32.mrf.mxu0
        %10817 = vmatmul.bf16.gmra.mxu0 %v10712
        %v10818 = vpop.f32.mrf.mxu0
        %v10819 = vadd.f32 0.0, %v10818
        %v10820 = vpop.f32.mrf.mxu0
        %v10821 = vadd.f32 0.0, %v10820
        %10822 = vmatmul.bf16.gmra.mxu0 %v10714
        %v10823 = vpop.f32.mrf.mxu0
        %v10824 = vpop.f32.mrf.mxu0
        %v10825 = vadd.f32 0.0, %v10824
        %10826 = vmatmul.bf16.gmra.mxu0 %v10716
        %v10827 = vpop.f32.mrf.mxu0
        %v10828 = vadd.f32 0.0, %v10827
        %v10829 = vpop.f32.mrf.mxu0
        %10830 = vmatmul.bf16.gmra.mxu0 %v10718
        %v10831 = vpop.f32.mrf.mxu0
        %v10832 = vadd.f32 0.0, %v10831
        %v10833 = vpop.f32.mrf.mxu0
        %v10834 = vadd.f32 0.0, %v10833
        %10835 = vmatmul.bf16.gmra.mxu0 %v10720
        %v10836 = vpop.f32.mrf.mxu0
        %v10837 = vpop.f32.mrf.mxu0
        %v10838 = vadd.f32 0.0, %v10837
        %10839 = vmatmul.bf16.gmra.mxu0 %v10722
        %v10840 = vpop.f32.mrf.mxu0
        %v10841 = vadd.f32 0.0, %v10840
        %v10842 = vpop.f32.mrf.mxu0
        %10843 = vdwg.mxu0
        %v10844 = vadd.f32 %v10662, %v10793
        %v10845 = vadd.f32 %v10663, %v10795
        %v10846 = vadd.f32 %v10664, %v10799
        %v10847 = vadd.f32 %v10665, %v10802
        %v10848 = vadd.f32 %v10666, %v10806
        %v10849 = vadd.f32 %v10667, %v10808
        %v10850 = vadd.f32 %v10668, %v10812
        %v10851 = vadd.f32 %v10669, %v10815
        %v10852 = vadd.f32 %v10670, %v10819
        %v10853 = vadd.f32 %v10671, %v10821
        %v10854 = vadd.f32 %v10672, %v10825
        %v10855 = vadd.f32 %v10673, %v10828
        %v10856 = vadd.f32 %v10674, %v10832
        %v10857 = vadd.f32 %v10675, %v10834
        %v10858 = vadd.f32 %v10676, %v10838
        %v10859 = vadd.f32 %v10677, %v10841
        %v10860 = vmax.f32 %v10844, 0.0
        %v10861 = vmax.f32 %v10845, 0.0
        %v10862 = vmax.f32 %v10846, 0.0
        %v10863 = vmax.f32 %v10847, 0.0
        %v10864 = vmax.f32 %v10848, 0.0
        %v10865 = vmax.f32 %v10849, 0.0
        %v10866 = vmax.f32 %v10850, 0.0
        %v10867 = vmax.f32 %v10851, 0.0
        %v10868 = vmax.f32 %v10852, 0.0
        %v10869 = vmax.f32 %v10853, 0.0
        %v10870 = vmax.f32 %v10854, 0.0
        %v10871 = vmax.f32 %v10855, 0.0
        %v10872 = vmax.f32 %v10856, 0.0
        %v10873 = vmax.f32 %v10857, 0.0
        %v10874 = vmax.f32 %v10858, 0.0
        %v10875 = vmax.f32 %v10859, 0.0
        %s10876 = scalar_lea.vmem %s228, 128
        %v10877 = vld [vmem:[%s10876] sm:$0xff]
        %v10878 = vld [vmem:[%s10876 + $0x8] sm:$0xff]
        %v10879 = vld [vmem:[%s10876 + $0x10] sm:$0xff]
        %v10880 = vld [vmem:[%s10876 + $0x18] sm:$0xff]
        %v10881 = vld [vmem:[%s10876 + $0x20] sm:$0xff]
        %v10882 = vld [vmem:[%s10876 + $0x28] sm:$0xff]
        %v10883 = vld [vmem:[%s10876 + $0x30] sm:$0xff]
        %v10884 = vld [vmem:[%s10876 + $0x38] sm:$0xff]
        %v10885 = vld [vmem:[%s10876 + $0x40] sm:$0xff]
        %v10886 = vld [vmem:[%s10876 + $0x48] sm:$0xff]
        %v10887 = vld [vmem:[%s10876 + $0x50] sm:$0xff]
        %v10888 = vld [vmem:[%s10876 + $0x58] sm:$0xff]
        %v10889 = vld [vmem:[%s10876 + $0x60] sm:$0xff]
        %v10890 = vld [vmem:[%s10876 + $0x68] sm:$0xff]
        %v10891 = vld [vmem:[%s10876 + $0x70] sm:$0xff]
        %v10892 = vld [vmem:[%s10876 + $0x78] sm:$0xff]
        %v10893 = vadd.f32 %v10877, %v10860
        %v10894 = vadd.f32 %v10878, %v10861
        %v10895 = vadd.f32 %v10879, %v10862
        %v10896 = vadd.f32 %v10880, %v10863
        %v10897 = vadd.f32 %v10881, %v10864
        %v10898 = vadd.f32 %v10882, %v10865
        %v10899 = vadd.f32 %v10883, %v10866
        %v10900 = vadd.f32 %v10884, %v10867
        %v10901 = vadd.f32 %v10885, %v10868
        %v10902 = vadd.f32 %v10886, %v10869
        %v10903 = vadd.f32 %v10887, %v10870
        %v10904 = vadd.f32 %v10888, %v10871
        %v10905 = vadd.f32 %v10889, %v10872
        %v10906 = vadd.f32 %v10890, %v10873
        %v10907 = vadd.f32 %v10891, %v10874
        %v10908 = vadd.f32 %v10892, %v10875
        %s10909 = scalar_lea.vmem %s218, 128 [#allocation5]
        %10910 = vst [vmem:[%s10909] sm:$0xff] %v10893
        %10911 = vst [vmem:[%s10909 + $0x8] sm:$0xff] %v10894
        %10912 = vst [vmem:[%s10909 + $0x10] sm:$0xff] %v10895
        %10913 = vst [vmem:[%s10909 + $0x18] sm:$0xff] %v10896
        %10914 = vst [vmem:[%s10909 + $0x20] sm:$0xff] %v10897
        %10915 = vst [vmem:[%s10909 + $0x28] sm:$0xff] %v10898
        %10916 = vst [vmem:[%s10909 + $0x30] sm:$0xff] %v10899
        %10917 = vst [vmem:[%s10909 + $0x38] sm:$0xff] %v10900
        %10918 = vst [vmem:[%s10909 + $0x40] sm:$0xff] %v10901
        %10919 = vst [vmem:[%s10909 + $0x48] sm:$0xff] %v10902
        %10920 = vst [vmem:[%s10909 + $0x50] sm:$0xff] %v10903
        %10921 = vst [vmem:[%s10909 + $0x58] sm:$0xff] %v10904
        %10922 = vst [vmem:[%s10909 + $0x60] sm:$0xff] %v10905
        %10923 = vst [vmem:[%s10909 + $0x68] sm:$0xff] %v10906
        %10924 = vst [vmem:[%s10909 + $0x70] sm:$0xff] %v10907
        %10925 = vst [vmem:[%s10909 + $0x78] sm:$0xff] %v10908
        %s10926 = sand.u32 %s132, 1
        %s10927 = scalar_lea.sflag [#allocation6], %s10926
        %s10928 = sand.u32 %s132, 1
        %s10929 = smul.addr %s10928, 256
        %s10930 = scalar_lea.vmem [#allocation5], %s10929
        // Predicated region
        $region87: #{preact_residual_conv_unit.1} parent=35 // pred_check
          %p10931 = pneg %p142
        $region88: #{preact_residual_conv_unit.1} parent=35 // pred_check_branch
          %10933 = sbr.rel (%p10931) target = $region90
        $region89: #{preact_residual_conv_unit.1} parent=35 // pred_region
          %s10934 = smul.u32 16, %s24
          %10936 = vsyncadd %s10927, 0
          %s10937 = smul.addr %s10934, 2
          %s10938 = smul.addr %s23, 32
          %s10939 = sadd.s32 %s10937, %s10938
          %s10940 = smul.addr %s10939, 8
          %s10941 = scalar_lea.hbm %s5, %s10940
          %s10942 = sshll.u32 %s10930, 4
          %s10943 = int_to_ptr.vmem [resolvable:$true] %s10942
          %s10944 = sshll.u32 %s10941, 4
          %s10945 = int_to_ptr.hbm [resolvable:$true] %s10944
          %10950 = dma.vmem_to_hbm [thread:$0]  %s10943, 4096, %s10945, %s10927, 128, 128, 8
        $region90: #{preact_residual_conv_unit.1} parent=35 // pred_fallthru
          _
      $region36: #{preact_residual_conv_unit.1} parent=5 // pred_fallthru
        _
      %p10951 = scmp.le.s32.totalorder 2, %s14
      // Predicated region
      $region91: #{preact_residual_conv_unit.1} parent=5 // pred_check
        %p10952 = pneg %p10951
      $region92: #{preact_residual_conv_unit.1} parent=5 // pred_check_branch
        %10954 = sbr.rel (%p10952) target = $region94
      $region93: #{preact_residual_conv_unit.1} parent=5 // pred_region
        %s10955 = ssub.s32 %s14, 2
        // Predicated region
        $region95: #{preact_residual_conv_unit.1} parent=93 // pred_check
          %p10956 = pneg %p148
        $region96: #{preact_residual_conv_unit.1} parent=93 // pred_check_branch
          %10958 = sbr.rel (%p10956) target = $region98
        $region97: #{preact_residual_conv_unit.1} parent=93 // pred_region
          %s10959 = sand.u32 %s133, 1
          %s10960 = scalar_lea.sflag [#allocation6], %s10959
          %s10961 = sand.u32 %s133, 1
          %s10962 = smul.addr %s10961, 256
          %s10963 = scalar_lea.vmem [#allocation5], %s10962
          %10965 = dma.done %s10960, 4096
        $region98: #{preact_residual_conv_unit.1} parent=93 // pred_fallthru
          _
      $region94: #{preact_residual_conv_unit.1} parent=5 // pred_fallthru
        _
    $region6: #{preact_residual_conv_unit.1} parent=1 // loop_footer
      %s18 = sadd.s32 1, %s14
    $region7: #{preact_residual_conv_unit.1} parent=1 // loop_footer_branch
      %13 = sbr.rel target = $region3
    $region8: #{preact_residual_conv_unit.1} parent=1 // loop_exit
      _
    %10966 = vsyncpa [#allocation6], 1
    %s10967 = scalar_lea.sflag [#allocation6], 1
    %10968 = vsyncpa %s10967, 1
  %10969 = vsyncmov [#allocation4]
  %s10970 = vpop.sfrf %10969
  %p10971 = scmp.eq.s32.totalorder %s10970, 0
  %p10972 = pneg %p10971
  %10974 = shalt.err (%p10972)
  %s10975 = scalar_lea.sflag [#allocation4], 1
  %10976 = vsyncmov %s10975
  %s10977 = vpop.sfrf %10976
  %p10978 = scmp.eq.s32.totalorder %s10977, 0
  %p10979 = pneg %p10978
  %10981 = shalt.err (%p10979)

</llo_original>
